<compile_context>
chip_gen: v6e
topology: v6e:2x2x1
jax: 0.10.0
libtpu: 0.0.40
codegen_flags: <defaults>
</compile_context>

<pallas_src>
import jax
import jax.numpy as jnp
from jax.experimental import pallas as pl
from jax.experimental.pallas import tpu as pltpu

HIDDEN = 128
NUM_LAYERS = 3
NUM_OUT = 2
OUT_PAD = 128  # lane-dense epilogue width


def _round_up(n, m):
    return ((n + m - 1) // m) * m


def _sigmoid_tanh(x):
    # sigmoid(x) == 0.5 * tanh(0.5 * x) + 0.5  -> single EUP push + cheap VPU mul/add
    return 0.5 * jnp.tanh(0.5 * x) + 0.5


# ------------------------------ fused kernel ---------------------------------
def _fused_lstm_kernel(x_ref,
                       wih0, whh0, b0,
                       wih1, whh1, b1,
                       wih2, whh2, b2,
                       fcw_ref, fcb_ref,
                       out_ref,
                       seq_a, seq_b, xproj_s):
    SB, _ = x_ref.shape                 # (S*Bp, 128), time-major rows: row = t*Bp + b
    Bp = out_ref.shape[0]
    S = SB // Bp
    H = HIDDEN

    w_ih = (wih0, wih1, wih2)
    w_hh = (whh0, whh1, whh2)
    bias = (b0, b1, b2)
    in_refs = (x_ref, seq_a, seq_b)      # layer l reads in_refs[l]
    out_seq = (seq_a, seq_b, None)       # layer l writes out_seq[l] (last layer: nothing)

    h = None
    for l in range(NUM_LAYERS):
        # One big input projection per layer (M = S*Bp = 64), bias folded in.
        layer_in = in_refs[l][...].astype(jnp.bfloat16)            # (S*Bp, 128) bf16
        xproj_s[...] = (jnp.dot(layer_in, w_ih[l][...],
                                preferred_element_type=jnp.float32)
                        + bias[l][...])                            # (S*Bp, 4H) f32

        h_bf = jnp.zeros((Bp, H), jnp.bfloat16)
        c = jnp.zeros((Bp, H), jnp.float32)
        # S is static -> fully unrolled; one small recurrent MXU op per timestep.
        for t in range(S):
            gates = (xproj_s[t * Bp:(t + 1) * Bp, :]
                     + jnp.dot(h_bf, w_hh[l][...],
                               preferred_element_type=jnp.float32))  # (Bp, 4H) f32
            # PyTorch gate order [i, f, g, o] along the 4H axis (128-lane aligned slices).
            i_g = _sigmoid_tanh(gates[:, 0 * H:1 * H])
            f_g = _sigmoid_tanh(gates[:, 1 * H:2 * H])
            g_g = jnp.tanh(gates[:, 2 * H:3 * H])
            o_g = _sigmoid_tanh(gates[:, 3 * H:4 * H])
            c = f_g * c + i_g * g_g
            h = o_g * jnp.tanh(c)
            h_bf = h.astype(jnp.bfloat16)
            if out_seq[l] is not None:
                # (8,128) f32 tile-aligned store of this layer's output sequence.
                out_seq[l][t * Bp:(t + 1) * Bp, :] = h

    # fc + sigmoid epilogue on the last timestep of the last layer (lane-dense, unmasked store).
    logits = (jnp.dot(h, fcw_ref[...], preferred_element_type=jnp.float32)
              + fcb_ref[...])                                       # (Bp, OUT_PAD) f32
    out_ref[...] = _sigmoid_tanh(logits).astype(out_ref.dtype)


# ------------------------------ parameter setup ------------------------------
def init_params(key, dimension, hidden=HIDDEN, num_layers=NUM_LAYERS, num_out=NUM_OUT):
    """PyTorch-equivalent LSTM/fc params, pre-packed for the fused kernel."""
    d_pad = _round_up(dimension, 128)
    k = 1.0 / float(jnp.sqrt(float(hidden)))
    layers = []
    for layer in range(num_layers):
        d_in = dimension if layer == 0 else hidden
        d_in_pad = d_pad if layer == 0 else hidden
        key, k1, k2, k3, k4 = jax.random.split(key, 5)
        w_ih = jax.random.uniform(k1, (4 * hidden, d_in), jnp.float32, -k, k)
        w_hh = jax.random.uniform(k2, (4 * hidden, hidden), jnp.float32, -k, k)
        b_ih = jax.random.uniform(k3, (4 * hidden,), jnp.float32, -k, k)
        b_hh = jax.random.uniform(k4, (4 * hidden,), jnp.float32, -k, k)
        # W_ih^T zero-padded along its input dim to a lane multiple; bf16 weights, f32 accumulate.
        w_ih_t = jnp.zeros((d_in_pad, 4 * hidden), jnp.float32).at[:d_in].set(w_ih.T)
        layers.append({
            "w_ih_t": w_ih_t.astype(jnp.bfloat16),                  # (d_in_pad, 4H) bf16
            "w_hh_t": w_hh.T.astype(jnp.bfloat16),                  # (H, 4H) bf16
            "bias": (b_ih + b_hh).reshape(1, 4 * hidden),            # (1, 4H) f32
        })
    key, k1, k2 = jax.random.split(key, 3)
    fc_w = jax.random.uniform(k1, (num_out, hidden), jnp.float32, -k, k)
    fc_b = jax.random.uniform(k2, (num_out,), jnp.float32, -k, k)
    # Lane-dense fc: pad the 2 output columns to 128.
    fc_w_pad = jnp.zeros((hidden, OUT_PAD), jnp.float32).at[:, :num_out].set(fc_w.T)
    fc_b_pad = jnp.zeros((1, OUT_PAD), jnp.float32).at[0, :num_out].set(fc_b)
    return {"layers": layers, "fc_w_pad": fc_w_pad, "fc_b_pad": fc_b_pad,
            "fc_w": fc_w, "fc_b": fc_b}


# ---------------------------------- forward ----------------------------------
@jax.jit
def lstm_forward(x_bsd, params):
    # x_bsd: (B, S, D), PyTorch batch_first layout.
    B, S, D = x_bsd.shape
    Bp = _round_up(max(B, 8), 8)                                     # full f32 sublane group
    Dp = params["layers"][0]["w_ih_t"].shape[0]                      # lane-padded input dim
    # Time-major, zero-padded, bf16 once in the wrapper (halves the x DMA).
    x_t = jnp.transpose(x_bsd, (1, 0, 2)).astype(jnp.bfloat16)       # (S, B, D)
    xp = jnp.zeros((S, Bp, Dp), jnp.bfloat16).at[:, :B, :D].set(x_t)
    xp = xp.reshape(S * Bp, Dp)                                      # row = t*Bp + b

    l0, l1, l2 = params["layers"]
    out = pl.pallas_call(
        _fused_lstm_kernel,
        out_shape=jax.ShapeDtypeStruct((Bp, OUT_PAD), jnp.float32),
        scratch_shapes=[
            pltpu.VMEM((S * Bp, HIDDEN), jnp.float32),               # layer-0 output sequence
            pltpu.VMEM((S * Bp, HIDDEN), jnp.float32),               # layer-1 output sequence
            pltpu.VMEM((S * Bp, 4 * HIDDEN), jnp.float32),           # per-layer input projection
        ],
    )(xp,
      l0["w_ih_t"], l0["w_hh_t"], l0["bias"],
      l1["w_ih_t"], l1["w_hh_t"], l1["bias"],
      l2["w_ih_t"], l2["w_hh_t"], l2["bias"],
      params["fc_w_pad"], params["fc_b_pad"])
    return out[:B, :NUM_OUT]


# ----------------------------- pure-JAX reference ----------------------------
def _reference_forward(x_bsd, params):
    B, S, D = x_bsd.shape
    h = [jnp.zeros((B, HIDDEN), jnp.float32) for _ in range(NUM_LAYERS)]
    c = [jnp.zeros((B, HIDDEN), jnp.float32) for _ in range(NUM_LAYERS)]
    H = HIDDEN
    for t in range(S):
        inp = x_bsd[:, t, :]
        for l in range(NUM_LAYERS):
            d_in = inp.shape[-1]
            w_cat = jnp.concatenate(
                [params["layers"][l]["w_ih_t"][:d_in].astype(jnp.float32),
                 params["layers"][l]["w_hh_t"].astype(jnp.float32)], axis=0)
            gates = jnp.concatenate([inp, h[l]], -1) @ w_cat + params["layers"][l]["bias"]
            i_g = jax.nn.sigmoid(gates[:, 0 * H:1 * H])
            f_g = jax.nn.sigmoid(gates[:, 1 * H:2 * H])
            g_g = jnp.tanh(gates[:, 2 * H:3 * H])
            o_g = jax.nn.sigmoid(gates[:, 3 * H:4 * H])
            c[l] = f_g * c[l] + i_g * g_g
            h[l] = o_g * jnp.tanh(c[l])
            inp = h[l]
    logits = h[-1] @ params["fc_w"].T + params["fc_b"]
    return jax.nn.sigmoid(logits)


if __name__ == "__main__":
    key = jax.random.PRNGKey(0)
    kx, kp = jax.random.split(key)

    batch, seq, dimension = 2, 8, 32
    x = jax.random.normal(kx, (batch, seq, dimension), jnp.float32)

    params = init_params(kp, dimension)

    out = lstm_forward(x, params)
    out = jax.block_until_ready(out)
    assert out.shape == (batch, NUM_OUT), out.shape
    assert bool(jnp.all(jnp.isfinite(out)))
    assert bool(jnp.all((out >= 0.0) & (out <= 1.0)))

    ref = _reference_forward(x, params)
    assert bool(jnp.max(jnp.abs(out - ref)) < 5e-2), jnp.max(jnp.abs(out - ref))
    print("KERNEL_OK")
</pallas_src>

<mosaic_0001>
module attributes {stable_mosaic.version = 11 : i64} {
  func.func @_fused_lstm_kernel(%arg0: memref<64x128xbf16, #tpu.memory_space<vmem>>, %arg1: memref<128x512xbf16, #tpu.memory_space<vmem>>, %arg2: memref<128x512xbf16, #tpu.memory_space<vmem>>, %arg3: memref<1x512xf32, #tpu.memory_space<vmem>>, %arg4: memref<128x512xbf16, #tpu.memory_space<vmem>>, %arg5: memref<128x512xbf16, #tpu.memory_space<vmem>>, %arg6: memref<1x512xf32, #tpu.memory_space<vmem>>, %arg7: memref<128x512xbf16, #tpu.memory_space<vmem>>, %arg8: memref<128x512xbf16, #tpu.memory_space<vmem>>, %arg9: memref<1x512xf32, #tpu.memory_space<vmem>>, %arg10: memref<128x128xf32, #tpu.memory_space<vmem>>, %arg11: memref<1x128xf32, #tpu.memory_space<vmem>>, %arg12: memref<8x128xf32, #tpu.memory_space<vmem>>, %arg13: memref<64x128xf32, #tpu.memory_space<vmem>>, %arg14: memref<64x128xf32, #tpu.memory_space<vmem>>, %arg15: memref<64x512xf32, #tpu.memory_space<vmem>>) attributes {dimension_semantics = [], scalar_prefetch = 0 : i64, scratch_operands = 3 : i64, tpu.core_type = #tpu.core_type<tc>} {
    %c0 = arith.constant 0 : index
    %c0_0 = arith.constant 0 : index
    %0 = vector.load %arg0[%c0, %c0_0] : memref<64x128xbf16, #tpu.memory_space<vmem>>, vector<64x128xbf16>
    %c0_1 = arith.constant 0 : index
    %c0_2 = arith.constant 0 : index
    %1 = vector.load %arg1[%c0_1, %c0_2] : memref<128x512xbf16, #tpu.memory_space<vmem>>, vector<128x512xbf16>
    %cst = arith.constant dense<0.000000e+00> : vector<64x512xf32>
    %2 = tpu.matmul %0, %1, %cst {dimension_numbers = #tpu.dot_dimension_numbers<[1], [0], [0], [1], [0, 0, 1, 1], [], []>} : vector<64x128xbf16>, vector<128x512xbf16>, vector<64x512xf32> -> vector<64x512xf32>
    %c0_3 = arith.constant 0 : index
    %c0_4 = arith.constant 0 : index
    %3 = vector.load %arg3[%c0_3, %c0_4] : memref<1x512xf32, #tpu.memory_space<vmem>>, vector<1x512xf32>
    %4 = vector.broadcast %3 : vector<1x512xf32> to vector<64x512xf32>
    %5 = arith.addf %2, %4 : vector<64x512xf32>
    %c0_5 = arith.constant 0 : index
    %c0_6 = arith.constant 0 : index
    %6 = vector.load %arg15[%c0_5, %c0_6] : memref<64x512xf32, #tpu.memory_space<vmem>>, vector<64x512xf32>
    tpu.vector_store %arg15[%c0_5, %c0_6], %5 {strides = array<i32>} : memref<64x512xf32, #tpu.memory_space<vmem>>, vector<64x512xf32>,
    %cst_7 = arith.constant 0.000000e+00 : bf16
    %7 = vector.broadcast %cst_7 : bf16 to vector<8x128xbf16>
    %cst_8 = arith.constant 0.000000e+00 : f32
    %8 = vector.broadcast %cst_8 : f32 to vector<8x128xf32>
    %c0_9 = arith.constant 0 : index
    %c0_10 = arith.constant 0 : index
    %9 = vector.load %arg15[%c0_9, %c0_10] : memref<64x512xf32, #tpu.memory_space<vmem>>, vector<8x512xf32>
    %c0_11 = arith.constant 0 : index
    %c0_12 = arith.constant 0 : index
    %10 = vector.load %arg2[%c0_11, %c0_12] : memref<128x512xbf16, #tpu.memory_space<vmem>>, vector<128x512xbf16>
    %cst_13 = arith.constant dense<0.000000e+00> : vector<8x512xf32>
    %11 = tpu.matmul %7, %10, %cst_13 {dimension_numbers = #tpu.dot_dimension_numbers<[1], [0], [0], [1], [0, 0, 1, 1], [], []>} : vector<8x128xbf16>, vector<128x512xbf16>, vector<8x512xf32> -> vector<8x512xf32>
    %12 = arith.addf %9, %11 : vector<8x512xf32>
    %13 = vector.extract_strided_slice %12 {offsets = [0, 0], sizes = [8, 128], strides = [1, 1]} : vector<8x512xf32> to vector<8x128xf32>
    %cst_14 = arith.constant 5.000000e-01 : f32
    %14 = vector.broadcast %cst_14 : f32 to vector<8x128xf32>
    %15 = arith.mulf %14, %13 : vector<8x128xf32>
    %16 = math.tanh %15 : vector<8x128xf32>
    %cst_15 = arith.constant 5.000000e-01 : f32
    %17 = vector.broadcast %cst_15 : f32 to vector<8x128xf32>
    %18 = arith.mulf %17, %16 : vector<8x128xf32>
    %cst_16 = arith.constant 5.000000e-01 : f32
    %19 = vector.broadcast %cst_16 : f32 to vector<8x128xf32>
    %20 = arith.addf %18, %19 : vector<8x128xf32>
    %21 = vector.extract_strided_slice %12 {offsets = [0, 128], sizes = [8, 128], strides = [1, 1]} : vector<8x512xf32> to vector<8x128xf32>
    %cst_17 = arith.constant 5.000000e-01 : f32
    %22 = vector.broadcast %cst_17 : f32 to vector<8x128xf32>
    %23 = arith.mulf %22, %21 : vector<8x128xf32>
    %24 = math.tanh %23 : vector<8x128xf32>
    %cst_18 = arith.constant 5.000000e-01 : f32
    %25 = vector.broadcast %cst_18 : f32 to vector<8x128xf32>
    %26 = arith.mulf %25, %24 : vector<8x128xf32>
    %cst_19 = arith.constant 5.000000e-01 : f32
    %27 = vector.broadcast %cst_19 : f32 to vector<8x128xf32>
    %28 = arith.addf %26, %27 : vector<8x128xf32>
    %29 = vector.extract_strided_slice %12 {offsets = [0, 256], sizes = [8, 128], strides = [1, 1]} : vector<8x512xf32> to vector<8x128xf32>
    %30 = math.tanh %29 : vector<8x128xf32>
    %31 = vector.extract_strided_slice %12 {offsets = [0, 384], sizes = [8, 128], strides = [1, 1]} : vector<8x512xf32> to vector<8x128xf32>
    %cst_20 = arith.constant 5.000000e-01 : f32
    %32 = vector.broadcast %cst_20 : f32 to vector<8x128xf32>
    %33 = arith.mulf %32, %31 : vector<8x128xf32>
    %34 = math.tanh %33 : vector<8x128xf32>
    %cst_21 = arith.constant 5.000000e-01 : f32
    %35 = vector.broadcast %cst_21 : f32 to vector<8x128xf32>
    %36 = arith.mulf %35, %34 : vector<8x128xf32>
    %cst_22 = arith.constant 5.000000e-01 : f32
    %37 = vector.broadcast %cst_22 : f32 to vector<8x128xf32>
    %38 = arith.addf %36, %37 : vector<8x128xf32>
    %39 = arith.mulf %28, %8 : vector<8x128xf32>
    %40 = arith.mulf %20, %30 : vector<8x128xf32>
    %41 = arith.addf %39, %40 : vector<8x128xf32>
    %42 = math.tanh %41 : vector<8x128xf32>
    %43 = arith.mulf %38, %42 : vector<8x128xf32>
    %44 = arith.truncf %43 : vector<8x128xf32> to vector<8x128xbf16>
    %c0_23 = arith.constant 0 : index
    %c0_24 = arith.constant 0 : index
    %45 = vector.load %arg13[%c0_23, %c0_24] : memref<64x128xf32, #tpu.memory_space<vmem>>, vector<8x128xf32>
    tpu.vector_store %arg13[%c0_23, %c0_24], %43 {strides = array<i32>} : memref<64x128xf32, #tpu.memory_space<vmem>>, vector<8x128xf32>,
    %c8 = arith.constant 8 : index
    %c0_25 = arith.constant 0 : index
    %46 = vector.load %arg15[%c8, %c0_25] : memref<64x512xf32, #tpu.memory_space<vmem>>, vector<8x512xf32>
    %c0_26 = arith.constant 0 : index
    %c0_27 = arith.constant 0 : index
    %47 = vector.load %arg2[%c0_26, %c0_27] : memref<128x512xbf16, #tpu.memory_space<vmem>>, vector<128x512xbf16>
    %cst_28 = arith.constant dense<0.000000e+00> : vector<8x512xf32>
    %48 = tpu.matmul %44, %47, %cst_28 {dimension_numbers = #tpu.dot_dimension_numbers<[1], [0], [0], [1], [0, 0, 1, 1], [], []>} : vector<8x128xbf16>, vector<128x512xbf16>, vector<8x512xf32> -> vector<8x512xf32>
    %49 = arith.addf %46, %48 : vector<8x512xf32>
    %50 = vector.extract_strided_slice %49 {offsets = [0, 0], sizes = [8, 128], strides = [1, 1]} : vector<8x512xf32> to vector<8x128xf32>
    %cst_29 = arith.constant 5.000000e-01 : f32
    %51 = vector.broadcast %cst_29 : f32 to vector<8x128xf32>
    %52 = arith.mulf %51, %50 : vector<8x128xf32>
    %53 = math.tanh %52 : vector<8x128xf32>
    %cst_30 = arith.constant 5.000000e-01 : f32
    %54 = vector.broadcast %cst_30 : f32 to vector<8x128xf32>
    %55 = arith.mulf %54, %53 : vector<8x128xf32>
    %cst_31 = arith.constant 5.000000e-01 : f32
    %56 = vector.broadcast %cst_31 : f32 to vector<8x128xf32>
    %57 = arith.addf %55, %56 : vector<8x128xf32>
    %58 = vector.extract_strided_slice %49 {offsets = [0, 128], sizes = [8, 128], strides = [1, 1]} : vector<8x512xf32> to vector<8x128xf32>
    %cst_32 = arith.constant 5.000000e-01 : f32
    %59 = vector.broadcast %cst_32 : f32 to vector<8x128xf32>
    %60 = arith.mulf %59, %58 : vector<8x128xf32>
    %61 = math.tanh %60 : vector<8x128xf32>
    %cst_33 = arith.constant 5.000000e-01 : f32
    %62 = vector.broadcast %cst_33 : f32 to vector<8x128xf32>
    %63 = arith.mulf %62, %61 : vector<8x128xf32>
    %cst_34 = arith.constant 5.000000e-01 : f32
    %64 = vector.broadcast %cst_34 : f32 to vector<8x128xf32>
    %65 = arith.addf %63, %64 : vector<8x128xf32>
    %66 = vector.extract_strided_slice %49 {offsets = [0, 256], sizes = [8, 128], strides = [1, 1]} : vector<8x512xf32> to vector<8x128xf32>
    %67 = math.tanh %66 : vector<8x128xf32>
    %68 = vector.extract_strided_slice %49 {offsets = [0, 384], sizes = [8, 128], strides = [1, 1]} : vector<8x512xf32> to vector<8x128xf32>
    %cst_35 = arith.constant 5.000000e-01 : f32
    %69 = vector.broadcast %cst_35 : f32 to vector<8x128xf32>
    %70 = arith.mulf %69, %68 : vector<8x128xf32>
    %71 = math.tanh %70 : vector<8x128xf32>
    %cst_36 = arith.constant 5.000000e-01 : f32
    %72 = vector.broadcast %cst_36 : f32 to vector<8x128xf32>
    %73 = arith.mulf %72, %71 : vector<8x128xf32>
    %cst_37 = arith.constant 5.000000e-01 : f32
    %74 = vector.broadcast %cst_37 : f32 to vector<8x128xf32>
    %75 = arith.addf %73, %74 : vector<8x128xf32>
    %76 = arith.mulf %65, %41 : vector<8x128xf32>
    %77 = arith.mulf %57, %67 : vector<8x128xf32>
    %78 = arith.addf %76, %77 : vector<8x128xf32>
    %79 = math.tanh %78 : vector<8x128xf32>
    %80 = arith.mulf %75, %79 : vector<8x128xf32>
    %81 = arith.truncf %80 : vector<8x128xf32> to vector<8x128xbf16>
    %c8_38 = arith.constant 8 : index
    %c0_39 = arith.constant 0 : index
    %82 = vector.load %arg13[%c8_38, %c0_39] : memref<64x128xf32, #tpu.memory_space<vmem>>, vector<8x128xf32>
    tpu.vector_store %arg13[%c8_38, %c0_39], %80 {strides = array<i32>} : memref<64x128xf32, #tpu.memory_space<vmem>>, vector<8x128xf32>,
    %c16 = arith.constant 16 : index
    %c0_40 = arith.constant 0 : index
    %83 = vector.load %arg15[%c16, %c0_40] : memref<64x512xf32, #tpu.memory_space<vmem>>, vector<8x512xf32>
    %c0_41 = arith.constant 0 : index
    %c0_42 = arith.constant 0 : index
    %84 = vector.load %arg2[%c0_41, %c0_42] : memref<128x512xbf16, #tpu.memory_space<vmem>>, vector<128x512xbf16>
    %cst_43 = arith.constant dense<0.000000e+00> : vector<8x512xf32>
    %85 = tpu.matmul %81, %84, %cst_43 {dimension_numbers = #tpu.dot_dimension_numbers<[1], [0], [0], [1], [0, 0, 1, 1], [], []>} : vector<8x128xbf16>, vector<128x512xbf16>, vector<8x512xf32> -> vector<8x512xf32>
    %86 = arith.addf %83, %85 : vector<8x512xf32>
    %87 = vector.extract_strided_slice %86 {offsets = [0, 0], sizes = [8, 128], strides = [1, 1]} : vector<8x512xf32> to vector<8x128xf32>
    %cst_44 = arith.constant 5.000000e-01 : f32
    %88 = vector.broadcast %cst_44 : f32 to vector<8x128xf32>
    %89 = arith.mulf %88, %87 : vector<8x128xf32>
    %90 = math.tanh %89 : vector<8x128xf32>
    %cst_45 = arith.constant 5.000000e-01 : f32
    %91 = vector.broadcast %cst_45 : f32 to vector<8x128xf32>
    %92 = arith.mulf %91, %90 : vector<8x128xf32>
    %cst_46 = arith.constant 5.000000e-01 : f32
    %93 = vector.broadcast %cst_46 : f32 to vector<8x128xf32>
    %94 = arith.addf %92, %93 : vector<8x128xf32>
    %95 = vector.extract_strided_slice %86 {offsets = [0, 128], sizes = [8, 128], strides = [1, 1]} : vector<8x512xf32> to vector<8x128xf32>
    %cst_47 = arith.constant 5.000000e-01 : f32
    %96 = vector.broadcast %cst_47 : f32 to vector<8x128xf32>
    %97 = arith.mulf %96, %95 : vector<8x128xf32>
    %98 = math.tanh %97 : vector<8x128xf32>
    %cst_48 = arith.constant 5.000000e-01 : f32
    %99 = vector.broadcast %cst_48 : f32 to vector<8x128xf32>
    %100 = arith.mulf %99, %98 : vector<8x128xf32>
    %cst_49 = arith.constant 5.000000e-01 : f32
    %101 = vector.broadcast %cst_49 : f32 to vector<8x128xf32>
    %102 = arith.addf %100, %101 : vector<8x128xf32>
    %103 = vector.extract_strided_slice %86 {offsets = [0, 256], sizes = [8, 128], strides = [1, 1]} : vector<8x512xf32> to vector<8x128xf32>
    %104 = math.tanh %103 : vector<8x128xf32>
    %105 = vector.extract_strided_slice %86 {offsets = [0, 384], sizes = [8, 128], strides = [1, 1]} : vector<8x512xf32> to vector<8x128xf32>
    %cst_50 = arith.constant 5.000000e-01 : f32
    %106 = vector.broadcast %cst_50 : f32 to vector<8x128xf32>
    %107 = arith.mulf %106, %105 : vector<8x128xf32>
    %108 = math.tanh %107 : vector<8x128xf32>
    %cst_51 = arith.constant 5.000000e-01 : f32
    %109 = vector.broadcast %cst_51 : f32 to vector<8x128xf32>
    %110 = arith.mulf %109, %108 : vector<8x128xf32>
    %cst_52 = arith.constant 5.000000e-01 : f32
    %111 = vector.broadcast %cst_52 : f32 to vector<8x128xf32>
    %112 = arith.addf %110, %111 : vector<8x128xf32>
    %113 = arith.mulf %102, %78 : vector<8x128xf32>
    %114 = arith.mulf %94, %104 : vector<8x128xf32>
    %115 = arith.addf %113, %114 : vector<8x128xf32>
    %116 = math.tanh %115 : vector<8x128xf32>
    %117 = arith.mulf %112, %116 : vector<8x128xf32>
    %118 = arith.truncf %117 : vector<8x128xf32> to vector<8x128xbf16>
    %c16_53 = arith.constant 16 : index
    %c0_54 = arith.constant 0 : index
    %119 = vector.load %arg13[%c16_53, %c0_54] : memref<64x128xf32, #tpu.memory_space<vmem>>, vector<8x128xf32>
    tpu.vector_store %arg13[%c16_53, %c0_54], %117 {strides = array<i32>} : memref<64x128xf32, #tpu.memory_space<vmem>>, vector<8x128xf32>,
    %c24 = arith.constant 24 : index
    %c0_55 = arith.constant 0 : index
    %120 = vector.load %arg15[%c24, %c0_55] : memref<64x512xf32, #tpu.memory_space<vmem>>, vector<8x512xf32>
    %c0_56 = arith.constant 0 : index
    %c0_57 = arith.constant 0 : index
    %121 = vector.load %arg2[%c0_56, %c0_57] : memref<128x512xbf16, #tpu.memory_space<vmem>>, vector<128x512xbf16>
    %cst_58 = arith.constant dense<0.000000e+00> : vector<8x512xf32>
    %122 = tpu.matmul %118, %121, %cst_58 {dimension_numbers = #tpu.dot_dimension_numbers<[1], [0], [0], [1], [0, 0, 1, 1], [], []>} : vector<8x128xbf16>, vector<128x512xbf16>, vector<8x512xf32> -> vector<8x512xf32>
    %123 = arith.addf %120, %122 : vector<8x512xf32>
    %124 = vector.extract_strided_slice %123 {offsets = [0, 0], sizes = [8, 128], strides = [1, 1]} : vector<8x512xf32> to vector<8x128xf32>
    %cst_59 = arith.constant 5.000000e-01 : f32
    %125 = vector.broadcast %cst_59 : f32 to vector<8x128xf32>
    %126 = arith.mulf %125, %124 : vector<8x128xf32>
    %127 = math.tanh %126 : vector<8x128xf32>
    %cst_60 = arith.constant 5.000000e-01 : f32
    %128 = vector.broadcast %cst_60 : f32 to vector<8x128xf32>
    %129 = arith.mulf %128, %127 : vector<8x128xf32>
    %cst_61 = arith.constant 5.000000e-01 : f32
    %130 = vector.broadcast %cst_61 : f32 to vector<8x128xf32>
    %131 = arith.addf %129, %130 : vector<8x128xf32>
    %132 = vector.extract_strided_slice %123 {offsets = [0, 128], sizes = [8, 128], strides = [1, 1]} : vector<8x512xf32> to vector<8x128xf32>
    %cst_62 = arith.constant 5.000000e-01 : f32
    %133 = vector.broadcast %cst_62 : f32 to vector<8x128xf32>
    %134 = arith.mulf %133, %132 : vector<8x128xf32>
    %135 = math.tanh %134 : vector<8x128xf32>
    %cst_63 = arith.constant 5.000000e-01 : f32
    %136 = vector.broadcast %cst_63 : f32 to vector<8x128xf32>
    %137 = arith.mulf %136, %135 : vector<8x128xf32>
    %cst_64 = arith.constant 5.000000e-01 : f32
    %138 = vector.broadcast %cst_64 : f32 to vector<8x128xf32>
    %139 = arith.addf %137, %138 : vector<8x128xf32>
    %140 = vector.extract_strided_slice %123 {offsets = [0, 256], sizes = [8, 128], strides = [1, 1]} : vector<8x512xf32> to vector<8x128xf32>
    %141 = math.tanh %140 : vector<8x128xf32>
    %142 = vector.extract_strided_slice %123 {offsets = [0, 384], sizes = [8, 128], strides = [1, 1]} : vector<8x512xf32> to vector<8x128xf32>
    %cst_65 = arith.constant 5.000000e-01 : f32
    %143 = vector.broadcast %cst_65 : f32 to vector<8x128xf32>
    %144 = arith.mulf %143, %142 : vector<8x128xf32>
    %145 = math.tanh %144 : vector<8x128xf32>
    %cst_66 = arith.constant 5.000000e-01 : f32
    %146 = vector.broadcast %cst_66 : f32 to vector<8x128xf32>
    %147 = arith.mulf %146, %145 : vector<8x128xf32>
    %cst_67 = arith.constant 5.000000e-01 : f32
    %148 = vector.broadcast %cst_67 : f32 to vector<8x128xf32>
    %149 = arith.addf %147, %148 : vector<8x128xf32>
    %150 = arith.mulf %139, %115 : vector<8x128xf32>
    %151 = arith.mulf %131, %141 : vector<8x128xf32>
    %152 = arith.addf %150, %151 : vector<8x128xf32>
    %153 = math.tanh %152 : vector<8x128xf32>
    %154 = arith.mulf %149, %153 : vector<8x128xf32>
    %155 = arith.truncf %154 : vector<8x128xf32> to vector<8x128xbf16>
    %c24_68 = arith.constant 24 : index
    %c0_69 = arith.constant 0 : index
    %156 = vector.load %arg13[%c24_68, %c0_69] : memref<64x128xf32, #tpu.memory_space<vmem>>, vector<8x128xf32>
    tpu.vector_store %arg13[%c24_68, %c0_69], %154 {strides = array<i32>} : memref<64x128xf32, #tpu.memory_space<vmem>>, vector<8x128xf32>,
    %c32 = arith.constant 32 : index
    %c0_70 = arith.constant 0 : index
    %157 = vector.load %arg15[%c32, %c0_70] : memref<64x512xf32, #tpu.memory_space<vmem>>, vector<8x512xf32>
    %c0_71 = arith.constant 0 : index
    %c0_72 = arith.constant 0 : index
    %158 = vector.load %arg2[%c0_71, %c0_72] : memref<128x512xbf16, #tpu.memory_space<vmem>>, vector<128x512xbf16>
    %cst_73 = arith.constant dense<0.000000e+00> : vector<8x512xf32>
    %159 = tpu.matmul %155, %158, %cst_73 {dimension_numbers = #tpu.dot_dimension_numbers<[1], [0], [0], [1], [0, 0, 1, 1], [], []>} : vector<8x128xbf16>, vector<128x512xbf16>, vector<8x512xf32> -> vector<8x512xf32>
    %160 = arith.addf %157, %159 : vector<8x512xf32>
    %161 = vector.extract_strided_slice %160 {offsets = [0, 0], sizes = [8, 128], strides = [1, 1]} : vector<8x512xf32> to vector<8x128xf32>
    %cst_74 = arith.constant 5.000000e-01 : f32
    %162 = vector.broadcast %cst_74 : f32 to vector<8x128xf32>
    %163 = arith.mulf %162, %161 : vector<8x128xf32>
    %164 = math.tanh %163 : vector<8x128xf32>
    %cst_75 = arith.constant 5.000000e-01 : f32
    %165 = vector.broadcast %cst_75 : f32 to vector<8x128xf32>
    %166 = arith.mulf %165, %164 : vector<8x128xf32>
    %cst_76 = arith.constant 5.000000e-01 : f32
    %167 = vector.broadcast %cst_76 : f32 to vector<8x128xf32>
    %168 = arith.addf %166, %167 : vector<8x128xf32>
    %169 = vector.extract_strided_slice %160 {offsets = [0, 128], sizes = [8, 128], strides = [1, 1]} : vector<8x512xf32> to vector<8x128xf32>
    %cst_77 = arith.constant 5.000000e-01 : f32
    %170 = vector.broadcast %cst_77 : f32 to vector<8x128xf32>
    %171 = arith.mulf %170, %169 : vector<8x128xf32>
    %172 = math.tanh %171 : vector<8x128xf32>
    %cst_78 = arith.constant 5.000000e-01 : f32
    %173 = vector.broadcast %cst_78 : f32 to vector<8x128xf32>
    %174 = arith.mulf %173, %172 : vector<8x128xf32>
    %cst_79 = arith.constant 5.000000e-01 : f32
    %175 = vector.broadcast %cst_79 : f32 to vector<8x128xf32>
    %176 = arith.addf %174, %175 : vector<8x128xf32>
    %177 = vector.extract_strided_slice %160 {offsets = [0, 256], sizes = [8, 128], strides = [1, 1]} : vector<8x512xf32> to vector<8x128xf32>
    %178 = math.tanh %177 : vector<8x128xf32>
    %179 = vector.extract_strided_slice %160 {offsets = [0, 384], sizes = [8, 128], strides = [1, 1]} : vector<8x512xf32> to vector<8x128xf32>
    %cst_80 = arith.constant 5.000000e-01 : f32
    %180 = vector.broadcast %cst_80 : f32 to vector<8x128xf32>
    %181 = arith.mulf %180, %179 : vector<8x128xf32>
    %182 = math.tanh %181 : vector<8x128xf32>
    %cst_81 = arith.constant 5.000000e-01 : f32
    %183 = vector.broadcast %cst_81 : f32 to vector<8x128xf32>
    %184 = arith.mulf %183, %182 : vector<8x128xf32>
    %cst_82 = arith.constant 5.000000e-01 : f32
    %185 = vector.broadcast %cst_82 : f32 to vector<8x128xf32>
    %186 = arith.addf %184, %185 : vector<8x128xf32>
    %187 = arith.mulf %176, %152 : vector<8x128xf32>
    %188 = arith.mulf %168, %178 : vector<8x128xf32>
    %189 = arith.addf %187, %188 : vector<8x128xf32>
    %190 = math.tanh %189 : vector<8x128xf32>
    %191 = arith.mulf %186, %190 : vector<8x128xf32>
    %192 = arith.truncf %191 : vector<8x128xf32> to vector<8x128xbf16>
    %c32_83 = arith.constant 32 : index
    %c0_84 = arith.constant 0 : index
    %193 = vector.load %arg13[%c32_83, %c0_84] : memref<64x128xf32, #tpu.memory_space<vmem>>, vector<8x128xf32>
    tpu.vector_store %arg13[%c32_83, %c0_84], %191 {strides = array<i32>} : memref<64x128xf32, #tpu.memory_space<vmem>>, vector<8x128xf32>,
    %c40 = arith.constant 40 : index
    %c0_85 = arith.constant 0 : index
    %194 = vector.load %arg15[%c40, %c0_85] : memref<64x512xf32, #tpu.memory_space<vmem>>, vector<8x512xf32>
    %c0_86 = arith.constant 0 : index
    %c0_87 = arith.constant 0 : index
    %195 = vector.load %arg2[%c0_86, %c0_87] : memref<128x512xbf16, #tpu.memory_space<vmem>>, vector<128x512xbf16>
    %cst_88 = arith.constant dense<0.000000e+00> : vector<8x512xf32>
    %196 = tpu.matmul %192, %195, %cst_88 {dimension_numbers = #tpu.dot_dimension_numbers<[1], [0], [0], [1], [0, 0, 1, 1], [], []>} : vector<8x128xbf16>, vector<128x512xbf16>, vector<8x512xf32> -> vector<8x512xf32>
    %197 = arith.addf %194, %196 : vector<8x512xf32>
    %198 = vector.extract_strided_slice %197 {offsets = [0, 0], sizes = [8, 128], strides = [1, 1]} : vector<8x512xf32> to vector<8x128xf32>
    %cst_89 = arith.constant 5.000000e-01 : f32
    %199 = vector.broadcast %cst_89 : f32 to vector<8x128xf32>
    %200 = arith.mulf %199, %198 : vector<8x128xf32>
    %201 = math.tanh %200 : vector<8x128xf32>
    %cst_90 = arith.constant 5.000000e-01 : f32
    %202 = vector.broadcast %cst_90 : f32 to vector<8x128xf32>
    %203 = arith.mulf %202, %201 : vector<8x128xf32>
    %cst_91 = arith.constant 5.000000e-01 : f32
    %204 = vector.broadcast %cst_91 : f32 to vector<8x128xf32>
    %205 = arith.addf %203, %204 : vector<8x128xf32>
    %206 = vector.extract_strided_slice %197 {offsets = [0, 128], sizes = [8, 128], strides = [1, 1]} : vector<8x512xf32> to vector<8x128xf32>
    %cst_92 = arith.constant 5.000000e-01 : f32
    %207 = vector.broadcast %cst_92 : f32 to vector<8x128xf32>
    %208 = arith.mulf %207, %206 : vector<8x128xf32>
    %209 = math.tanh %208 : vector<8x128xf32>
    %cst_93 = arith.constant 5.000000e-01 : f32
    %210 = vector.broadcast %cst_93 : f32 to vector<8x128xf32>
    %211 = arith.mulf %210, %209 : vector<8x128xf32>
    %cst_94 = arith.constant 5.000000e-01 : f32
    %212 = vector.broadcast %cst_94 : f32 to vector<8x128xf32>
    %213 = arith.addf %211, %212 : vector<8x128xf32>
    %214 = vector.extract_strided_slice %197 {offsets = [0, 256], sizes = [8, 128], strides = [1, 1]} : vector<8x512xf32> to vector<8x128xf32>
    %215 = math.tanh %214 : vector<8x128xf32>
    %216 = vector.extract_strided_slice %197 {offsets = [0, 384], sizes = [8, 128], strides = [1, 1]} : vector<8x512xf32> to vector<8x128xf32>
    %cst_95 = arith.constant 5.000000e-01 : f32
    %217 = vector.broadcast %cst_95 : f32 to vector<8x128xf32>
    %218 = arith.mulf %217, %216 : vector<8x128xf32>
    %219 = math.tanh %218 : vector<8x128xf32>
    %cst_96 = arith.constant 5.000000e-01 : f32
    %220 = vector.broadcast %cst_96 : f32 to vector<8x128xf32>
    %221 = arith.mulf %220, %219 : vector<8x128xf32>
    %cst_97 = arith.constant 5.000000e-01 : f32
    %222 = vector.broadcast %cst_97 : f32 to vector<8x128xf32>
    %223 = arith.addf %221, %222 : vector<8x128xf32>
    %224 = arith.mulf %213, %189 : vector<8x128xf32>
    %225 = arith.mulf %205, %215 : vector<8x128xf32>
    %226 = arith.addf %224, %225 : vector<8x128xf32>
    %227 = math.tanh %226 : vector<8x128xf32>
    %228 = arith.mulf %223, %227 : vector<8x128xf32>
    %229 = arith.truncf %228 : vector<8x128xf32> to vector<8x128xbf16>
    %c40_98 = arith.constant 40 : index
    %c0_99 = arith.constant 0 : index
    %230 = vector.load %arg13[%c40_98, %c0_99] : memref<64x128xf32, #tpu.memory_space<vmem>>, vector<8x128xf32>
    tpu.vector_store %arg13[%c40_98, %c0_99], %228 {strides = array<i32>} : memref<64x128xf32, #tpu.memory_space<vmem>>, vector<8x128xf32>,
    %c48 = arith.constant 48 : index
    %c0_100 = arith.constant 0 : index
    %231 = vector.load %arg15[%c48, %c0_100] : memref<64x512xf32, #tpu.memory_space<vmem>>, vector<8x512xf32>
    %c0_101 = arith.constant 0 : index
    %c0_102 = arith.constant 0 : index
    %232 = vector.load %arg2[%c0_101, %c0_102] : memref<128x512xbf16, #tpu.memory_space<vmem>>, vector<128x512xbf16>
    %cst_103 = arith.constant dense<0.000000e+00> : vector<8x512xf32>
    %233 = tpu.matmul %229, %232, %cst_103 {dimension_numbers = #tpu.dot_dimension_numbers<[1], [0], [0], [1], [0, 0, 1, 1], [], []>} : vector<8x128xbf16>, vector<128x512xbf16>, vector<8x512xf32> -> vector<8x512xf32>
    %234 = arith.addf %231, %233 : vector<8x512xf32>
    %235 = vector.extract_strided_slice %234 {offsets = [0, 0], sizes = [8, 128], strides = [1, 1]} : vector<8x512xf32> to vector<8x128xf32>
    %cst_104 = arith.constant 5.000000e-01 : f32
    %236 = vector.broadcast %cst_104 : f32 to vector<8x128xf32>
    %237 = arith.mulf %236, %235 : vector<8x128xf32>
    %238 = math.tanh %237 : vector<8x128xf32>
    %cst_105 = arith.constant 5.000000e-01 : f32
    %239 = vector.broadcast %cst_105 : f32 to vector<8x128xf32>
    %240 = arith.mulf %239, %238 : vector<8x128xf32>
    %cst_106 = arith.constant 5.000000e-01 : f32
    %241 = vector.broadcast %cst_106 : f32 to vector<8x128xf32>
    %242 = arith.addf %240, %241 : vector<8x128xf32>
    %243 = vector.extract_strided_slice %234 {offsets = [0, 128], sizes = [8, 128], strides = [1, 1]} : vector<8x512xf32> to vector<8x128xf32>
    %cst_107 = arith.constant 5.000000e-01 : f32
    %244 = vector.broadcast %cst_107 : f32 to vector<8x128xf32>
    %245 = arith.mulf %244, %243 : vector<8x128xf32>
    %246 = math.tanh %245 : vector<8x128xf32>
    %cst_108 = arith.constant 5.000000e-01 : f32
    %247 = vector.broadcast %cst_108 : f32 to vector<8x128xf32>
    %248 = arith.mulf %247, %246 : vector<8x128xf32>
    %cst_109 = arith.constant 5.000000e-01 : f32
    %249 = vector.broadcast %cst_109 : f32 to vector<8x128xf32>
    %250 = arith.addf %248, %249 : vector<8x128xf32>
    %251 = vector.extract_strided_slice %234 {offsets = [0, 256], sizes = [8, 128], strides = [1, 1]} : vector<8x512xf32> to vector<8x128xf32>
    %252 = math.tanh %251 : vector<8x128xf32>
    %253 = vector.extract_strided_slice %234 {offsets = [0, 384], sizes = [8, 128], strides = [1, 1]} : vector<8x512xf32> to vector<8x128xf32>
    %cst_110 = arith.constant 5.000000e-01 : f32
    %254 = vector.broadcast %cst_110 : f32 to vector<8x128xf32>
    %255 = arith.mulf %254, %253 : vector<8x128xf32>
    %256 = math.tanh %255 : vector<8x128xf32>
    %cst_111 = arith.constant 5.000000e-01 : f32
    %257 = vector.broadcast %cst_111 : f32 to vector<8x128xf32>
    %258 = arith.mulf %257, %256 : vector<8x128xf32>
    %cst_112 = arith.constant 5.000000e-01 : f32
    %259 = vector.broadcast %cst_112 : f32 to vector<8x128xf32>
    %260 = arith.addf %258, %259 : vector<8x128xf32>
    %261 = arith.mulf %250, %226 : vector<8x128xf32>
    %262 = arith.mulf %242, %252 : vector<8x128xf32>
    %263 = arith.addf %261, %262 : vector<8x128xf32>
    %264 = math.tanh %263 : vector<8x128xf32>
    %265 = arith.mulf %260, %264 : vector<8x128xf32>
    %266 = arith.truncf %265 : vector<8x128xf32> to vector<8x128xbf16>
    %c48_113 = arith.constant 48 : index
    %c0_114 = arith.constant 0 : index
    %267 = vector.load %arg13[%c48_113, %c0_114] : memref<64x128xf32, #tpu.memory_space<vmem>>, vector<8x128xf32>
    tpu.vector_store %arg13[%c48_113, %c0_114], %265 {strides = array<i32>} : memref<64x128xf32, #tpu.memory_space<vmem>>, vector<8x128xf32>,
    %c56 = arith.constant 56 : index
    %c0_115 = arith.constant 0 : index
    %268 = vector.load %arg15[%c56, %c0_115] : memref<64x512xf32, #tpu.memory_space<vmem>>, vector<8x512xf32>
    %c0_116 = arith.constant 0 : index
    %c0_117 = arith.constant 0 : index
    %269 = vector.load %arg2[%c0_116, %c0_117] : memref<128x512xbf16, #tpu.memory_space<vmem>>, vector<128x512xbf16>
    %cst_118 = arith.constant dense<0.000000e+00> : vector<8x512xf32>
    %270 = tpu.matmul %266, %269, %cst_118 {dimension_numbers = #tpu.dot_dimension_numbers<[1], [0], [0], [1], [0, 0, 1, 1], [], []>} : vector<8x128xbf16>, vector<128x512xbf16>, vector<8x512xf32> -> vector<8x512xf32>
    %271 = arith.addf %268, %270 : vector<8x512xf32>
    %272 = vector.extract_strided_slice %271 {offsets = [0, 0], sizes = [8, 128], strides = [1, 1]} : vector<8x512xf32> to vector<8x128xf32>
    %cst_119 = arith.constant 5.000000e-01 : f32
    %273 = vector.broadcast %cst_119 : f32 to vector<8x128xf32>
    %274 = arith.mulf %273, %272 : vector<8x128xf32>
    %275 = math.tanh %274 : vector<8x128xf32>
    %cst_120 = arith.constant 5.000000e-01 : f32
    %276 = vector.broadcast %cst_120 : f32 to vector<8x128xf32>
    %277 = arith.mulf %276, %275 : vector<8x128xf32>
    %cst_121 = arith.constant 5.000000e-01 : f32
    %278 = vector.broadcast %cst_121 : f32 to vector<8x128xf32>
    %279 = arith.addf %277, %278 : vector<8x128xf32>
    %280 = vector.extract_strided_slice %271 {offsets = [0, 128], sizes = [8, 128], strides = [1, 1]} : vector<8x512xf32> to vector<8x128xf32>
    %cst_122 = arith.constant 5.000000e-01 : f32
    %281 = vector.broadcast %cst_122 : f32 to vector<8x128xf32>
    %282 = arith.mulf %281, %280 : vector<8x128xf32>
    %283 = math.tanh %282 : vector<8x128xf32>
    %cst_123 = arith.constant 5.000000e-01 : f32
    %284 = vector.broadcast %cst_123 : f32 to vector<8x128xf32>
    %285 = arith.mulf %284, %283 : vector<8x128xf32>
    %cst_124 = arith.constant 5.000000e-01 : f32
    %286 = vector.broadcast %cst_124 : f32 to vector<8x128xf32>
    %287 = arith.addf %285, %286 : vector<8x128xf32>
    %288 = vector.extract_strided_slice %271 {offsets = [0, 256], sizes = [8, 128], strides = [1, 1]} : vector<8x512xf32> to vector<8x128xf32>
    %289 = math.tanh %288 : vector<8x128xf32>
    %290 = vector.extract_strided_slice %271 {offsets = [0, 384], sizes = [8, 128], strides = [1, 1]} : vector<8x512xf32> to vector<8x128xf32>
    %cst_125 = arith.constant 5.000000e-01 : f32
    %291 = vector.broadcast %cst_125 : f32 to vector<8x128xf32>
    %292 = arith.mulf %291, %290 : vector<8x128xf32>
    %293 = math.tanh %292 : vector<8x128xf32>
    %cst_126 = arith.constant 5.000000e-01 : f32
    %294 = vector.broadcast %cst_126 : f32 to vector<8x128xf32>
    %295 = arith.mulf %294, %293 : vector<8x128xf32>
    %cst_127 = arith.constant 5.000000e-01 : f32
    %296 = vector.broadcast %cst_127 : f32 to vector<8x128xf32>
    %297 = arith.addf %295, %296 : vector<8x128xf32>
    %298 = arith.mulf %287, %263 : vector<8x128xf32>
    %299 = arith.mulf %279, %289 : vector<8x128xf32>
    %300 = arith.addf %298, %299 : vector<8x128xf32>
    %301 = math.tanh %300 : vector<8x128xf32>
    %302 = arith.mulf %297, %301 : vector<8x128xf32>
    %c56_128 = arith.constant 56 : index
    %c0_129 = arith.constant 0 : index
    %303 = vector.load %arg13[%c56_128, %c0_129] : memref<64x128xf32, #tpu.memory_space<vmem>>, vector<8x128xf32>
    tpu.vector_store %arg13[%c56_128, %c0_129], %302 {strides = array<i32>} : memref<64x128xf32, #tpu.memory_space<vmem>>, vector<8x128xf32>,
    %c0_130 = arith.constant 0 : index
    %c0_131 = arith.constant 0 : index
    %304 = vector.load %arg13[%c0_130, %c0_131] : memref<64x128xf32, #tpu.memory_space<vmem>>, vector<64x128xf32>
    %305 = arith.truncf %304 : vector<64x128xf32> to vector<64x128xbf16>
    %c0_132 = arith.constant 0 : index
    %c0_133 = arith.constant 0 : index
    %306 = vector.load %arg4[%c0_132, %c0_133] : memref<128x512xbf16, #tpu.memory_space<vmem>>, vector<128x512xbf16>
    %cst_134 = arith.constant dense<0.000000e+00> : vector<64x512xf32>
    %307 = tpu.matmul %305, %306, %cst_134 {dimension_numbers = #tpu.dot_dimension_numbers<[1], [0], [0], [1], [0, 0, 1, 1], [], []>} : vector<64x128xbf16>, vector<128x512xbf16>, vector<64x512xf32> -> vector<64x512xf32>
    %c0_135 = arith.constant 0 : index
    %c0_136 = arith.constant 0 : index
    %308 = vector.load %arg6[%c0_135, %c0_136] : memref<1x512xf32, #tpu.memory_space<vmem>>, vector<1x512xf32>
    %309 = vector.broadcast %308 : vector<1x512xf32> to vector<64x512xf32>
    %310 = arith.addf %307, %309 : vector<64x512xf32>
    %c0_137 = arith.constant 0 : index
    %c0_138 = arith.constant 0 : index
    %311 = vector.load %arg15[%c0_137, %c0_138] : memref<64x512xf32, #tpu.memory_space<vmem>>, vector<64x512xf32>
    tpu.vector_store %arg15[%c0_137, %c0_138], %310 {strides = array<i32>} : memref<64x512xf32, #tpu.memory_space<vmem>>, vector<64x512xf32>,
    %cst_139 = arith.constant 0.000000e+00 : bf16
    %312 = vector.broadcast %cst_139 : bf16 to vector<8x128xbf16>
    %cst_140 = arith.constant 0.000000e+00 : f32
    %313 = vector.broadcast %cst_140 : f32 to vector<8x128xf32>
    %c0_141 = arith.constant 0 : index
    %c0_142 = arith.constant 0 : index
    %314 = vector.load %arg15[%c0_141, %c0_142] : memref<64x512xf32, #tpu.memory_space<vmem>>, vector<8x512xf32>
    %c0_143 = arith.constant 0 : index
    %c0_144 = arith.constant 0 : index
    %315 = vector.load %arg5[%c0_143, %c0_144] : memref<128x512xbf16, #tpu.memory_space<vmem>>, vector<128x512xbf16>
    %cst_145 = arith.constant dense<0.000000e+00> : vector<8x512xf32>
    %316 = tpu.matmul %312, %315, %cst_145 {dimension_numbers = #tpu.dot_dimension_numbers<[1], [0], [0], [1], [0, 0, 1, 1], [], []>} : vector<8x128xbf16>, vector<128x512xbf16>, vector<8x512xf32> -> vector<8x512xf32>
    %317 = arith.addf %314, %316 : vector<8x512xf32>
    %318 = vector.extract_strided_slice %317 {offsets = [0, 0], sizes = [8, 128], strides = [1, 1]} : vector<8x512xf32> to vector<8x128xf32>
    %cst_146 = arith.constant 5.000000e-01 : f32
    %319 = vector.broadcast %cst_146 : f32 to vector<8x128xf32>
    %320 = arith.mulf %319, %318 : vector<8x128xf32>
    %321 = math.tanh %320 : vector<8x128xf32>
    %cst_147 = arith.constant 5.000000e-01 : f32
    %322 = vector.broadcast %cst_147 : f32 to vector<8x128xf32>
    %323 = arith.mulf %322, %321 : vector<8x128xf32>
    %cst_148 = arith.constant 5.000000e-01 : f32
    %324 = vector.broadcast %cst_148 : f32 to vector<8x128xf32>
    %325 = arith.addf %323, %324 : vector<8x128xf32>
    %326 = vector.extract_strided_slice %317 {offsets = [0, 128], sizes = [8, 128], strides = [1, 1]} : vector<8x512xf32> to vector<8x128xf32>
    %cst_149 = arith.constant 5.000000e-01 : f32
    %327 = vector.broadcast %cst_149 : f32 to vector<8x128xf32>
    %328 = arith.mulf %327, %326 : vector<8x128xf32>
    %329 = math.tanh %328 : vector<8x128xf32>
    %cst_150 = arith.constant 5.000000e-01 : f32
    %330 = vector.broadcast %cst_150 : f32 to vector<8x128xf32>
    %331 = arith.mulf %330, %329 : vector<8x128xf32>
    %cst_151 = arith.constant 5.000000e-01 : f32
    %332 = vector.broadcast %cst_151 : f32 to vector<8x128xf32>
    %333 = arith.addf %331, %332 : vector<8x128xf32>
    %334 = vector.extract_strided_slice %317 {offsets = [0, 256], sizes = [8, 128], strides = [1, 1]} : vector<8x512xf32> to vector<8x128xf32>
    %335 = math.tanh %334 : vector<8x128xf32>
    %336 = vector.extract_strided_slice %317 {offsets = [0, 384], sizes = [8, 128], strides = [1, 1]} : vector<8x512xf32> to vector<8x128xf32>
    %cst_152 = arith.constant 5.000000e-01 : f32
    %337 = vector.broadcast %cst_152 : f32 to vector<8x128xf32>
    %338 = arith.mulf %337, %336 : vector<8x128xf32>
    %339 = math.tanh %338 : vector<8x128xf32>
    %cst_153 = arith.constant 5.000000e-01 : f32
    %340 = vector.broadcast %cst_153 : f32 to vector<8x128xf32>
    %341 = arith.mulf %340, %339 : vector<8x128xf32>
    %cst_154 = arith.constant 5.000000e-01 : f32
    %342 = vector.broadcast %cst_154 : f32 to vector<8x128xf32>
    %343 = arith.addf %341, %342 : vector<8x128xf32>
    %344 = arith.mulf %333, %313 : vector<8x128xf32>
    %345 = arith.mulf %325, %335 : vector<8x128xf32>
    %346 = arith.addf %344, %345 : vector<8x128xf32>
    %347 = math.tanh %346 : vector<8x128xf32>
    %348 = arith.mulf %343, %347 : vector<8x128xf32>
    %349 = arith.truncf %348 : vector<8x128xf32> to vector<8x128xbf16>
    %c0_155 = arith.constant 0 : index
    %c0_156 = arith.constant 0 : index
    %350 = vector.load %arg14[%c0_155, %c0_156] : memref<64x128xf32, #tpu.memory_space<vmem>>, vector<8x128xf32>
    tpu.vector_store %arg14[%c0_155, %c0_156], %348 {strides = array<i32>} : memref<64x128xf32, #tpu.memory_space<vmem>>, vector<8x128xf32>,
    %c8_157 = arith.constant 8 : index
    %c0_158 = arith.constant 0 : index
    %351 = vector.load %arg15[%c8_157, %c0_158] : memref<64x512xf32, #tpu.memory_space<vmem>>, vector<8x512xf32>
    %c0_159 = arith.constant 0 : index
    %c0_160 = arith.constant 0 : index
    %352 = vector.load %arg5[%c0_159, %c0_160] : memref<128x512xbf16, #tpu.memory_space<vmem>>, vector<128x512xbf16>
    %cst_161 = arith.constant dense<0.000000e+00> : vector<8x512xf32>
    %353 = tpu.matmul %349, %352, %cst_161 {dimension_numbers = #tpu.dot_dimension_numbers<[1], [0], [0], [1], [0, 0, 1, 1], [], []>} : vector<8x128xbf16>, vector<128x512xbf16>, vector<8x512xf32> -> vector<8x512xf32>
    %354 = arith.addf %351, %353 : vector<8x512xf32>
    %355 = vector.extract_strided_slice %354 {offsets = [0, 0], sizes = [8, 128], strides = [1, 1]} : vector<8x512xf32> to vector<8x128xf32>
    %cst_162 = arith.constant 5.000000e-01 : f32
    %356 = vector.broadcast %cst_162 : f32 to vector<8x128xf32>
    %357 = arith.mulf %356, %355 : vector<8x128xf32>
    %358 = math.tanh %357 : vector<8x128xf32>
    %cst_163 = arith.constant 5.000000e-01 : f32
    %359 = vector.broadcast %cst_163 : f32 to vector<8x128xf32>
    %360 = arith.mulf %359, %358 : vector<8x128xf32>
    %cst_164 = arith.constant 5.000000e-01 : f32
    %361 = vector.broadcast %cst_164 : f32 to vector<8x128xf32>
    %362 = arith.addf %360, %361 : vector<8x128xf32>
    %363 = vector.extract_strided_slice %354 {offsets = [0, 128], sizes = [8, 128], strides = [1, 1]} : vector<8x512xf32> to vector<8x128xf32>
    %cst_165 = arith.constant 5.000000e-01 : f32
    %364 = vector.broadcast %cst_165 : f32 to vector<8x128xf32>
    %365 = arith.mulf %364, %363 : vector<8x128xf32>
    %366 = math.tanh %365 : vector<8x128xf32>
    %cst_166 = arith.constant 5.000000e-01 : f32
    %367 = vector.broadcast %cst_166 : f32 to vector<8x128xf32>
    %368 = arith.mulf %367, %366 : vector<8x128xf32>
    %cst_167 = arith.constant 5.000000e-01 : f32
    %369 = vector.broadcast %cst_167 : f32 to vector<8x128xf32>
    %370 = arith.addf %368, %369 : vector<8x128xf32>
    %371 = vector.extract_strided_slice %354 {offsets = [0, 256], sizes = [8, 128], strides = [1, 1]} : vector<8x512xf32> to vector<8x128xf32>
    %372 = math.tanh %371 : vector<8x128xf32>
    %373 = vector.extract_strided_slice %354 {offsets = [0, 384], sizes = [8, 128], strides = [1, 1]} : vector<8x512xf32> to vector<8x128xf32>
    %cst_168 = arith.constant 5.000000e-01 : f32
    %374 = vector.broadcast %cst_168 : f32 to vector<8x128xf32>
    %375 = arith.mulf %374, %373 : vector<8x128xf32>
    %376 = math.tanh %375 : vector<8x128xf32>
    %cst_169 = arith.constant 5.000000e-01 : f32
    %377 = vector.broadcast %cst_169 : f32 to vector<8x128xf32>
    %378 = arith.mulf %377, %376 : vector<8x128xf32>
    %cst_170 = arith.constant 5.000000e-01 : f32
    %379 = vector.broadcast %cst_170 : f32 to vector<8x128xf32>
    %380 = arith.addf %378, %379 : vector<8x128xf32>
    %381 = arith.mulf %370, %346 : vector<8x128xf32>
    %382 = arith.mulf %362, %372 : vector<8x128xf32>
    %383 = arith.addf %381, %382 : vector<8x128xf32>
    %384 = math.tanh %383 : vector<8x128xf32>
    %385 = arith.mulf %380, %384 : vector<8x128xf32>
    %386 = arith.truncf %385 : vector<8x128xf32> to vector<8x128xbf16>
    %c8_171 = arith.constant 8 : index
    %c0_172 = arith.constant 0 : index
    %387 = vector.load %arg14[%c8_171, %c0_172] : memref<64x128xf32, #tpu.memory_space<vmem>>, vector<8x128xf32>
    tpu.vector_store %arg14[%c8_171, %c0_172], %385 {strides = array<i32>} : memref<64x128xf32, #tpu.memory_space<vmem>>, vector<8x128xf32>,
    %c16_173 = arith.constant 16 : index
    %c0_174 = arith.constant 0 : index
    %388 = vector.load %arg15[%c16_173, %c0_174] : memref<64x512xf32, #tpu.memory_space<vmem>>, vector<8x512xf32>
    %c0_175 = arith.constant 0 : index
    %c0_176 = arith.constant 0 : index
    %389 = vector.load %arg5[%c0_175, %c0_176] : memref<128x512xbf16, #tpu.memory_space<vmem>>, vector<128x512xbf16>
    %cst_177 = arith.constant dense<0.000000e+00> : vector<8x512xf32>
    %390 = tpu.matmul %386, %389, %cst_177 {dimension_numbers = #tpu.dot_dimension_numbers<[1], [0], [0], [1], [0, 0, 1, 1], [], []>} : vector<8x128xbf16>, vector<128x512xbf16>, vector<8x512xf32> -> vector<8x512xf32>
    %391 = arith.addf %388, %390 : vector<8x512xf32>
    %392 = vector.extract_strided_slice %391 {offsets = [0, 0], sizes = [8, 128], strides = [1, 1]} : vector<8x512xf32> to vector<8x128xf32>
    %cst_178 = arith.constant 5.000000e-01 : f32
    %393 = vector.broadcast %cst_178 : f32 to vector<8x128xf32>
    %394 = arith.mulf %393, %392 : vector<8x128xf32>
    %395 = math.tanh %394 : vector<8x128xf32>
    %cst_179 = arith.constant 5.000000e-01 : f32
    %396 = vector.broadcast %cst_179 : f32 to vector<8x128xf32>
    %397 = arith.mulf %396, %395 : vector<8x128xf32>
    %cst_180 = arith.constant 5.000000e-01 : f32
    %398 = vector.broadcast %cst_180 : f32 to vector<8x128xf32>
    %399 = arith.addf %397, %398 : vector<8x128xf32>
    %400 = vector.extract_strided_slice %391 {offsets = [0, 128], sizes = [8, 128], strides = [1, 1]} : vector<8x512xf32> to vector<8x128xf32>
    %cst_181 = arith.constant 5.000000e-01 : f32
    %401 = vector.broadcast %cst_181 : f32 to vector<8x128xf32>
    %402 = arith.mulf %401, %400 : vector<8x128xf32>
    %403 = math.tanh %402 : vector<8x128xf32>
    %cst_182 = arith.constant 5.000000e-01 : f32
    %404 = vector.broadcast %cst_182 : f32 to vector<8x128xf32>
    %405 = arith.mulf %404, %403 : vector<8x128xf32>
    %cst_183 = arith.constant 5.000000e-01 : f32
    %406 = vector.broadcast %cst_183 : f32 to vector<8x128xf32>
    %407 = arith.addf %405, %406 : vector<8x128xf32>
    %408 = vector.extract_strided_slice %391 {offsets = [0, 256], sizes = [8, 128], strides = [1, 1]} : vector<8x512xf32> to vector<8x128xf32>
    %409 = math.tanh %408 : vector<8x128xf32>
    %410 = vector.extract_strided_slice %391 {offsets = [0, 384], sizes = [8, 128], strides = [1, 1]} : vector<8x512xf32> to vector<8x128xf32>
    %cst_184 = arith.constant 5.000000e-01 : f32
    %411 = vector.broadcast %cst_184 : f32 to vector<8x128xf32>
    %412 = arith.mulf %411, %410 : vector<8x128xf32>
    %413 = math.tanh %412 : vector<8x128xf32>
    %cst_185 = arith.constant 5.000000e-01 : f32
    %414 = vector.broadcast %cst_185 : f32 to vector<8x128xf32>
    %415 = arith.mulf %414, %413 : vector<8x128xf32>
    %cst_186 = arith.constant 5.000000e-01 : f32
    %416 = vector.broadcast %cst_186 : f32 to vector<8x128xf32>
    %417 = arith.addf %415, %416 : vector<8x128xf32>
    %418 = arith.mulf %407, %383 : vector<8x128xf32>
    %419 = arith.mulf %399, %409 : vector<8x128xf32>
    %420 = arith.addf %418, %419 : vector<8x128xf32>
    %421 = math.tanh %420 : vector<8x128xf32>
    %422 = arith.mulf %417, %421 : vector<8x128xf32>
    %423 = arith.truncf %422 : vector<8x128xf32> to vector<8x128xbf16>
    %c16_187 = arith.constant 16 : index
    %c0_188 = arith.constant 0 : index
    %424 = vector.load %arg14[%c16_187, %c0_188] : memref<64x128xf32, #tpu.memory_space<vmem>>, vector<8x128xf32>
    tpu.vector_store %arg14[%c16_187, %c0_188], %422 {strides = array<i32>} : memref<64x128xf32, #tpu.memory_space<vmem>>, vector<8x128xf32>,
    %c24_189 = arith.constant 24 : index
    %c0_190 = arith.constant 0 : index
    %425 = vector.load %arg15[%c24_189, %c0_190] : memref<64x512xf32, #tpu.memory_space<vmem>>, vector<8x512xf32>
    %c0_191 = arith.constant 0 : index
    %c0_192 = arith.constant 0 : index
    %426 = vector.load %arg5[%c0_191, %c0_192] : memref<128x512xbf16, #tpu.memory_space<vmem>>, vector<128x512xbf16>
    %cst_193 = arith.constant dense<0.000000e+00> : vector<8x512xf32>
    %427 = tpu.matmul %423, %426, %cst_193 {dimension_numbers = #tpu.dot_dimension_numbers<[1], [0], [0], [1], [0, 0, 1, 1], [], []>} : vector<8x128xbf16>, vector<128x512xbf16>, vector<8x512xf32> -> vector<8x512xf32>
    %428 = arith.addf %425, %427 : vector<8x512xf32>
    %429 = vector.extract_strided_slice %428 {offsets = [0, 0], sizes = [8, 128], strides = [1, 1]} : vector<8x512xf32> to vector<8x128xf32>
    %cst_194 = arith.constant 5.000000e-01 : f32
    %430 = vector.broadcast %cst_194 : f32 to vector<8x128xf32>
    %431 = arith.mulf %430, %429 : vector<8x128xf32>
    %432 = math.tanh %431 : vector<8x128xf32>
    %cst_195 = arith.constant 5.000000e-01 : f32
    %433 = vector.broadcast %cst_195 : f32 to vector<8x128xf32>
    %434 = arith.mulf %433, %432 : vector<8x128xf32>
    %cst_196 = arith.constant 5.000000e-01 : f32
    %435 = vector.broadcast %cst_196 : f32 to vector<8x128xf32>
    %436 = arith.addf %434, %435 : vector<8x128xf32>
    %437 = vector.extract_strided_slice %428 {offsets = [0, 128], sizes = [8, 128], strides = [1, 1]} : vector<8x512xf32> to vector<8x128xf32>
    %cst_197 = arith.constant 5.000000e-01 : f32
    %438 = vector.broadcast %cst_197 : f32 to vector<8x128xf32>
    %439 = arith.mulf %438, %437 : vector<8x128xf32>
    %440 = math.tanh %439 : vector<8x128xf32>
    %cst_198 = arith.constant 5.000000e-01 : f32
    %441 = vector.broadcast %cst_198 : f32 to vector<8x128xf32>
    %442 = arith.mulf %441, %440 : vector<8x128xf32>
    %cst_199 = arith.constant 5.000000e-01 : f32
    %443 = vector.broadcast %cst_199 : f32 to vector<8x128xf32>
    %444 = arith.addf %442, %443 : vector<8x128xf32>
    %445 = vector.extract_strided_slice %428 {offsets = [0, 256], sizes = [8, 128], strides = [1, 1]} : vector<8x512xf32> to vector<8x128xf32>
    %446 = math.tanh %445 : vector<8x128xf32>
    %447 = vector.extract_strided_slice %428 {offsets = [0, 384], sizes = [8, 128], strides = [1, 1]} : vector<8x512xf32> to vector<8x128xf32>
    %cst_200 = arith.constant 5.000000e-01 : f32
    %448 = vector.broadcast %cst_200 : f32 to vector<8x128xf32>
    %449 = arith.mulf %448, %447 : vector<8x128xf32>
    %450 = math.tanh %449 : vector<8x128xf32>
    %cst_201 = arith.constant 5.000000e-01 : f32
    %451 = vector.broadcast %cst_201 : f32 to vector<8x128xf32>
    %452 = arith.mulf %451, %450 : vector<8x128xf32>
    %cst_202 = arith.constant 5.000000e-01 : f32
    %453 = vector.broadcast %cst_202 : f32 to vector<8x128xf32>
    %454 = arith.addf %452, %453 : vector<8x128xf32>
    %455 = arith.mulf %444, %420 : vector<8x128xf32>
    %456 = arith.mulf %436, %446 : vector<8x128xf32>
    %457 = arith.addf %455, %456 : vector<8x128xf32>
    %458 = math.tanh %457 : vector<8x128xf32>
    %459 = arith.mulf %454, %458 : vector<8x128xf32>
    %460 = arith.truncf %459 : vector<8x128xf32> to vector<8x128xbf16>
    %c24_203 = arith.constant 24 : index
    %c0_204 = arith.constant 0 : index
    %461 = vector.load %arg14[%c24_203, %c0_204] : memref<64x128xf32, #tpu.memory_space<vmem>>, vector<8x128xf32>
    tpu.vector_store %arg14[%c24_203, %c0_204], %459 {strides = array<i32>} : memref<64x128xf32, #tpu.memory_space<vmem>>, vector<8x128xf32>,
    %c32_205 = arith.constant 32 : index
    %c0_206 = arith.constant 0 : index
    %462 = vector.load %arg15[%c32_205, %c0_206] : memref<64x512xf32, #tpu.memory_space<vmem>>, vector<8x512xf32>
    %c0_207 = arith.constant 0 : index
    %c0_208 = arith.constant 0 : index
    %463 = vector.load %arg5[%c0_207, %c0_208] : memref<128x512xbf16, #tpu.memory_space<vmem>>, vector<128x512xbf16>
    %cst_209 = arith.constant dense<0.000000e+00> : vector<8x512xf32>
    %464 = tpu.matmul %460, %463, %cst_209 {dimension_numbers = #tpu.dot_dimension_numbers<[1], [0], [0], [1], [0, 0, 1, 1], [], []>} : vector<8x128xbf16>, vector<128x512xbf16>, vector<8x512xf32> -> vector<8x512xf32>
    %465 = arith.addf %462, %464 : vector<8x512xf32>
    %466 = vector.extract_strided_slice %465 {offsets = [0, 0], sizes = [8, 128], strides = [1, 1]} : vector<8x512xf32> to vector<8x128xf32>
    %cst_210 = arith.constant 5.000000e-01 : f32
    %467 = vector.broadcast %cst_210 : f32 to vector<8x128xf32>
    %468 = arith.mulf %467, %466 : vector<8x128xf32>
    %469 = math.tanh %468 : vector<8x128xf32>
    %cst_211 = arith.constant 5.000000e-01 : f32
    %470 = vector.broadcast %cst_211 : f32 to vector<8x128xf32>
    %471 = arith.mulf %470, %469 : vector<8x128xf32>
    %cst_212 = arith.constant 5.000000e-01 : f32
    %472 = vector.broadcast %cst_212 : f32 to vector<8x128xf32>
    %473 = arith.addf %471, %472 : vector<8x128xf32>
    %474 = vector.extract_strided_slice %465 {offsets = [0, 128], sizes = [8, 128], strides = [1, 1]} : vector<8x512xf32> to vector<8x128xf32>
    %cst_213 = arith.constant 5.000000e-01 : f32
    %475 = vector.broadcast %cst_213 : f32 to vector<8x128xf32>
    %476 = arith.mulf %475, %474 : vector<8x128xf32>
    %477 = math.tanh %476 : vector<8x128xf32>
    %cst_214 = arith.constant 5.000000e-01 : f32
    %478 = vector.broadcast %cst_214 : f32 to vector<8x128xf32>
    %479 = arith.mulf %478, %477 : vector<8x128xf32>
    %cst_215 = arith.constant 5.000000e-01 : f32
    %480 = vector.broadcast %cst_215 : f32 to vector<8x128xf32>
    %481 = arith.addf %479, %480 : vector<8x128xf32>
    %482 = vector.extract_strided_slice %465 {offsets = [0, 256], sizes = [8, 128], strides = [1, 1]} : vector<8x512xf32> to vector<8x128xf32>
    %483 = math.tanh %482 : vector<8x128xf32>
    %484 = vector.extract_strided_slice %465 {offsets = [0, 384], sizes = [8, 128], strides = [1, 1]} : vector<8x512xf32> to vector<8x128xf32>
    %cst_216 = arith.constant 5.000000e-01 : f32
    %485 = vector.broadcast %cst_216 : f32 to vector<8x128xf32>
    %486 = arith.mulf %485, %484 : vector<8x128xf32>
    %487 = math.tanh %486 : vector<8x128xf32>
    %cst_217 = arith.constant 5.000000e-01 : f32
    %488 = vector.broadcast %cst_217 : f32 to vector<8x128xf32>
    %489 = arith.mulf %488, %487 : vector<8x128xf32>
    %cst_218 = arith.constant 5.000000e-01 : f32
    %490 = vector.broadcast %cst_218 : f32 to vector<8x128xf32>
    %491 = arith.addf %489, %490 : vector<8x128xf32>
    %492 = arith.mulf %481, %457 : vector<8x128xf32>
    %493 = arith.mulf %473, %483 : vector<8x128xf32>
    %494 = arith.addf %492, %493 : vector<8x128xf32>
    %495 = math.tanh %494 : vector<8x128xf32>
    %496 = arith.mulf %491, %495 : vector<8x128xf32>
    %497 = arith.truncf %496 : vector<8x128xf32> to vector<8x128xbf16>
    %c32_219 = arith.constant 32 : index
    %c0_220 = arith.constant 0 : index
    %498 = vector.load %arg14[%c32_219, %c0_220] : memref<64x128xf32, #tpu.memory_space<vmem>>, vector<8x128xf32>
    tpu.vector_store %arg14[%c32_219, %c0_220], %496 {strides = array<i32>} : memref<64x128xf32, #tpu.memory_space<vmem>>, vector<8x128xf32>,
    %c40_221 = arith.constant 40 : index
    %c0_222 = arith.constant 0 : index
    %499 = vector.load %arg15[%c40_221, %c0_222] : memref<64x512xf32, #tpu.memory_space<vmem>>, vector<8x512xf32>
    %c0_223 = arith.constant 0 : index
    %c0_224 = arith.constant 0 : index
    %500 = vector.load %arg5[%c0_223, %c0_224] : memref<128x512xbf16, #tpu.memory_space<vmem>>, vector<128x512xbf16>
    %cst_225 = arith.constant dense<0.000000e+00> : vector<8x512xf32>
    %501 = tpu.matmul %497, %500, %cst_225 {dimension_numbers = #tpu.dot_dimension_numbers<[1], [0], [0], [1], [0, 0, 1, 1], [], []>} : vector<8x128xbf16>, vector<128x512xbf16>, vector<8x512xf32> -> vector<8x512xf32>
    %502 = arith.addf %499, %501 : vector<8x512xf32>
    %503 = vector.extract_strided_slice %502 {offsets = [0, 0], sizes = [8, 128], strides = [1, 1]} : vector<8x512xf32> to vector<8x128xf32>
    %cst_226 = arith.constant 5.000000e-01 : f32
    %504 = vector.broadcast %cst_226 : f32 to vector<8x128xf32>
    %505 = arith.mulf %504, %503 : vector<8x128xf32>
    %506 = math.tanh %505 : vector<8x128xf32>
    %cst_227 = arith.constant 5.000000e-01 : f32
    %507 = vector.broadcast %cst_227 : f32 to vector<8x128xf32>
    %508 = arith.mulf %507, %506 : vector<8x128xf32>
    %cst_228 = arith.constant 5.000000e-01 : f32
    %509 = vector.broadcast %cst_228 : f32 to vector<8x128xf32>
    %510 = arith.addf %508, %509 : vector<8x128xf32>
    %511 = vector.extract_strided_slice %502 {offsets = [0, 128], sizes = [8, 128], strides = [1, 1]} : vector<8x512xf32> to vector<8x128xf32>
    %cst_229 = arith.constant 5.000000e-01 : f32
    %512 = vector.broadcast %cst_229 : f32 to vector<8x128xf32>
    %513 = arith.mulf %512, %511 : vector<8x128xf32>
    %514 = math.tanh %513 : vector<8x128xf32>
    %cst_230 = arith.constant 5.000000e-01 : f32
    %515 = vector.broadcast %cst_230 : f32 to vector<8x128xf32>
    %516 = arith.mulf %515, %514 : vector<8x128xf32>
    %cst_231 = arith.constant 5.000000e-01 : f32
    %517 = vector.broadcast %cst_231 : f32 to vector<8x128xf32>
    %518 = arith.addf %516, %517 : vector<8x128xf32>
    %519 = vector.extract_strided_slice %502 {offsets = [0, 256], sizes = [8, 128], strides = [1, 1]} : vector<8x512xf32> to vector<8x128xf32>
    %520 = math.tanh %519 : vector<8x128xf32>
    %521 = vector.extract_strided_slice %502 {offsets = [0, 384], sizes = [8, 128], strides = [1, 1]} : vector<8x512xf32> to vector<8x128xf32>
    %cst_232 = arith.constant 5.000000e-01 : f32
    %522 = vector.broadcast %cst_232 : f32 to vector<8x128xf32>
    %523 = arith.mulf %522, %521 : vector<8x128xf32>
    %524 = math.tanh %523 : vector<8x128xf32>
    %cst_233 = arith.constant 5.000000e-01 : f32
    %525 = vector.broadcast %cst_233 : f32 to vector<8x128xf32>
    %526 = arith.mulf %525, %524 : vector<8x128xf32>
    %cst_234 = arith.constant 5.000000e-01 : f32
    %527 = vector.broadcast %cst_234 : f32 to vector<8x128xf32>
    %528 = arith.addf %526, %527 : vector<8x128xf32>
    %529 = arith.mulf %518, %494 : vector<8x128xf32>
    %530 = arith.mulf %510, %520 : vector<8x128xf32>
    %531 = arith.addf %529, %530 : vector<8x128xf32>
    %532 = math.tanh %531 : vector<8x128xf32>
    %533 = arith.mulf %528, %532 : vector<8x128xf32>
    %534 = arith.truncf %533 : vector<8x128xf32> to vector<8x128xbf16>
    %c40_235 = arith.constant 40 : index
    %c0_236 = arith.constant 0 : index
    %535 = vector.load %arg14[%c40_235, %c0_236] : memref<64x128xf32, #tpu.memory_space<vmem>>, vector<8x128xf32>
    tpu.vector_store %arg14[%c40_235, %c0_236], %533 {strides = array<i32>} : memref<64x128xf32, #tpu.memory_space<vmem>>, vector<8x128xf32>,
    %c48_237 = arith.constant 48 : index
    %c0_238 = arith.constant 0 : index
    %536 = vector.load %arg15[%c48_237, %c0_238] : memref<64x512xf32, #tpu.memory_space<vmem>>, vector<8x512xf32>
    %c0_239 = arith.constant 0 : index
    %c0_240 = arith.constant 0 : index
    %537 = vector.load %arg5[%c0_239, %c0_240] : memref<128x512xbf16, #tpu.memory_space<vmem>>, vector<128x512xbf16>
    %cst_241 = arith.constant dense<0.000000e+00> : vector<8x512xf32>
    %538 = tpu.matmul %534, %537, %cst_241 {dimension_numbers = #tpu.dot_dimension_numbers<[1], [0], [0], [1], [0, 0, 1, 1], [], []>} : vector<8x128xbf16>, vector<128x512xbf16>, vector<8x512xf32> -> vector<8x512xf32>
    %539 = arith.addf %536, %538 : vector<8x512xf32>
    %540 = vector.extract_strided_slice %539 {offsets = [0, 0], sizes = [8, 128], strides = [1, 1]} : vector<8x512xf32> to vector<8x128xf32>
    %cst_242 = arith.constant 5.000000e-01 : f32
    %541 = vector.broadcast %cst_242 : f32 to vector<8x128xf32>
    %542 = arith.mulf %541, %540 : vector<8x128xf32>
    %543 = math.tanh %542 : vector<8x128xf32>
    %cst_243 = arith.constant 5.000000e-01 : f32
    %544 = vector.broadcast %cst_243 : f32 to vector<8x128xf32>
    %545 = arith.mulf %544, %543 : vector<8x128xf32>
    %cst_244 = arith.constant 5.000000e-01 : f32
    %546 = vector.broadcast %cst_244 : f32 to vector<8x128xf32>
    %547 = arith.addf %545, %546 : vector<8x128xf32>
    %548 = vector.extract_strided_slice %539 {offsets = [0, 128], sizes = [8, 128], strides = [1, 1]} : vector<8x512xf32> to vector<8x128xf32>
    %cst_245 = arith.constant 5.000000e-01 : f32
    %549 = vector.broadcast %cst_245 : f32 to vector<8x128xf32>
    %550 = arith.mulf %549, %548 : vector<8x128xf32>
    %551 = math.tanh %550 : vector<8x128xf32>
    %cst_246 = arith.constant 5.000000e-01 : f32
    %552 = vector.broadcast %cst_246 : f32 to vector<8x128xf32>
    %553 = arith.mulf %552, %551 : vector<8x128xf32>
    %cst_247 = arith.constant 5.000000e-01 : f32
    %554 = vector.broadcast %cst_247 : f32 to vector<8x128xf32>
    %555 = arith.addf %553, %554 : vector<8x128xf32>
    %556 = vector.extract_strided_slice %539 {offsets = [0, 256], sizes = [8, 128], strides = [1, 1]} : vector<8x512xf32> to vector<8x128xf32>
    %557 = math.tanh %556 : vector<8x128xf32>
    %558 = vector.extract_strided_slice %539 {offsets = [0, 384], sizes = [8, 128], strides = [1, 1]} : vector<8x512xf32> to vector<8x128xf32>
    %cst_248 = arith.constant 5.000000e-01 : f32
    %559 = vector.broadcast %cst_248 : f32 to vector<8x128xf32>
    %560 = arith.mulf %559, %558 : vector<8x128xf32>
    %561 = math.tanh %560 : vector<8x128xf32>
    %cst_249 = arith.constant 5.000000e-01 : f32
    %562 = vector.broadcast %cst_249 : f32 to vector<8x128xf32>
    %563 = arith.mulf %562, %561 : vector<8x128xf32>
    %cst_250 = arith.constant 5.000000e-01 : f32
    %564 = vector.broadcast %cst_250 : f32 to vector<8x128xf32>
    %565 = arith.addf %563, %564 : vector<8x128xf32>
    %566 = arith.mulf %555, %531 : vector<8x128xf32>
    %567 = arith.mulf %547, %557 : vector<8x128xf32>
    %568 = arith.addf %566, %567 : vector<8x128xf32>
    %569 = math.tanh %568 : vector<8x128xf32>
    %570 = arith.mulf %565, %569 : vector<8x128xf32>
    %571 = arith.truncf %570 : vector<8x128xf32> to vector<8x128xbf16>
    %c48_251 = arith.constant 48 : index
    %c0_252 = arith.constant 0 : index
    %572 = vector.load %arg14[%c48_251, %c0_252] : memref<64x128xf32, #tpu.memory_space<vmem>>, vector<8x128xf32>
    tpu.vector_store %arg14[%c48_251, %c0_252], %570 {strides = array<i32>} : memref<64x128xf32, #tpu.memory_space<vmem>>, vector<8x128xf32>,
    %c56_253 = arith.constant 56 : index
    %c0_254 = arith.constant 0 : index
    %573 = vector.load %arg15[%c56_253, %c0_254] : memref<64x512xf32, #tpu.memory_space<vmem>>, vector<8x512xf32>
    %c0_255 = arith.constant 0 : index
    %c0_256 = arith.constant 0 : index
    %574 = vector.load %arg5[%c0_255, %c0_256] : memref<128x512xbf16, #tpu.memory_space<vmem>>, vector<128x512xbf16>
    %cst_257 = arith.constant dense<0.000000e+00> : vector<8x512xf32>
    %575 = tpu.matmul %571, %574, %cst_257 {dimension_numbers = #tpu.dot_dimension_numbers<[1], [0], [0], [1], [0, 0, 1, 1], [], []>} : vector<8x128xbf16>, vector<128x512xbf16>, vector<8x512xf32> -> vector<8x512xf32>
    %576 = arith.addf %573, %575 : vector<8x512xf32>
    %577 = vector.extract_strided_slice %576 {offsets = [0, 0], sizes = [8, 128], strides = [1, 1]} : vector<8x512xf32> to vector<8x128xf32>
    %cst_258 = arith.constant 5.000000e-01 : f32
    %578 = vector.broadcast %cst_258 : f32 to vector<8x128xf32>
    %579 = arith.mulf %578, %577 : vector<8x128xf32>
    %580 = math.tanh %579 : vector<8x128xf32>
    %cst_259 = arith.constant 5.000000e-01 : f32
    %581 = vector.broadcast %cst_259 : f32 to vector<8x128xf32>
    %582 = arith.mulf %581, %580 : vector<8x128xf32>
    %cst_260 = arith.constant 5.000000e-01 : f32
    %583 = vector.broadcast %cst_260 : f32 to vector<8x128xf32>
    %584 = arith.addf %582, %583 : vector<8x128xf32>
    %585 = vector.extract_strided_slice %576 {offsets = [0, 128], sizes = [8, 128], strides = [1, 1]} : vector<8x512xf32> to vector<8x128xf32>
    %cst_261 = arith.constant 5.000000e-01 : f32
    %586 = vector.broadcast %cst_261 : f32 to vector<8x128xf32>
    %587 = arith.mulf %586, %585 : vector<8x128xf32>
    %588 = math.tanh %587 : vector<8x128xf32>
    %cst_262 = arith.constant 5.000000e-01 : f32
    %589 = vector.broadcast %cst_262 : f32 to vector<8x128xf32>
    %590 = arith.mulf %589, %588 : vector<8x128xf32>
    %cst_263 = arith.constant 5.000000e-01 : f32
    %591 = vector.broadcast %cst_263 : f32 to vector<8x128xf32>
    %592 = arith.addf %590, %591 : vector<8x128xf32>
    %593 = vector.extract_strided_slice %576 {offsets = [0, 256], sizes = [8, 128], strides = [1, 1]} : vector<8x512xf32> to vector<8x128xf32>
    %594 = math.tanh %593 : vector<8x128xf32>
    %595 = vector.extract_strided_slice %576 {offsets = [0, 384], sizes = [8, 128], strides = [1, 1]} : vector<8x512xf32> to vector<8x128xf32>
    %cst_264 = arith.constant 5.000000e-01 : f32
    %596 = vector.broadcast %cst_264 : f32 to vector<8x128xf32>
    %597 = arith.mulf %596, %595 : vector<8x128xf32>
    %598 = math.tanh %597 : vector<8x128xf32>
    %cst_265 = arith.constant 5.000000e-01 : f32
    %599 = vector.broadcast %cst_265 : f32 to vector<8x128xf32>
    %600 = arith.mulf %599, %598 : vector<8x128xf32>
    %cst_266 = arith.constant 5.000000e-01 : f32
    %601 = vector.broadcast %cst_266 : f32 to vector<8x128xf32>
    %602 = arith.addf %600, %601 : vector<8x128xf32>
    %603 = arith.mulf %592, %568 : vector<8x128xf32>
    %604 = arith.mulf %584, %594 : vector<8x128xf32>
    %605 = arith.addf %603, %604 : vector<8x128xf32>
    %606 = math.tanh %605 : vector<8x128xf32>
    %607 = arith.mulf %602, %606 : vector<8x128xf32>
    %c56_267 = arith.constant 56 : index
    %c0_268 = arith.constant 0 : index
    %608 = vector.load %arg14[%c56_267, %c0_268] : memref<64x128xf32, #tpu.memory_space<vmem>>, vector<8x128xf32>
    tpu.vector_store %arg14[%c56_267, %c0_268], %607 {strides = array<i32>} : memref<64x128xf32, #tpu.memory_space<vmem>>, vector<8x128xf32>,
    %c0_269 = arith.constant 0 : index
    %c0_270 = arith.constant 0 : index
    %609 = vector.load %arg14[%c0_269, %c0_270] : memref<64x128xf32, #tpu.memory_space<vmem>>, vector<64x128xf32>
    %610 = arith.truncf %609 : vector<64x128xf32> to vector<64x128xbf16>
    %c0_271 = arith.constant 0 : index
    %c0_272 = arith.constant 0 : index
    %611 = vector.load %arg7[%c0_271, %c0_272] : memref<128x512xbf16, #tpu.memory_space<vmem>>, vector<128x512xbf16>
    %cst_273 = arith.constant dense<0.000000e+00> : vector<64x512xf32>
    %612 = tpu.matmul %610, %611, %cst_273 {dimension_numbers = #tpu.dot_dimension_numbers<[1], [0], [0], [1], [0, 0, 1, 1], [], []>} : vector<64x128xbf16>, vector<128x512xbf16>, vector<64x512xf32> -> vector<64x512xf32>
    %c0_274 = arith.constant 0 : index
    %c0_275 = arith.constant 0 : index
    %613 = vector.load %arg9[%c0_274, %c0_275] : memref<1x512xf32, #tpu.memory_space<vmem>>, vector<1x512xf32>
    %614 = vector.broadcast %613 : vector<1x512xf32> to vector<64x512xf32>
    %615 = arith.addf %612, %614 : vector<64x512xf32>
    %c0_276 = arith.constant 0 : index
    %c0_277 = arith.constant 0 : index
    %616 = vector.load %arg15[%c0_276, %c0_277] : memref<64x512xf32, #tpu.memory_space<vmem>>, vector<64x512xf32>
    tpu.vector_store %arg15[%c0_276, %c0_277], %615 {strides = array<i32>} : memref<64x512xf32, #tpu.memory_space<vmem>>, vector<64x512xf32>,
    %cst_278 = arith.constant 0.000000e+00 : bf16
    %617 = vector.broadcast %cst_278 : bf16 to vector<8x128xbf16>
    %cst_279 = arith.constant 0.000000e+00 : f32
    %618 = vector.broadcast %cst_279 : f32 to vector<8x128xf32>
    %c0_280 = arith.constant 0 : index
    %c0_281 = arith.constant 0 : index
    %619 = vector.load %arg15[%c0_280, %c0_281] : memref<64x512xf32, #tpu.memory_space<vmem>>, vector<8x512xf32>
    %c0_282 = arith.constant 0 : index
    %c0_283 = arith.constant 0 : index
    %620 = vector.load %arg8[%c0_282, %c0_283] : memref<128x512xbf16, #tpu.memory_space<vmem>>, vector<128x512xbf16>
    %cst_284 = arith.constant dense<0.000000e+00> : vector<8x512xf32>
    %621 = tpu.matmul %617, %620, %cst_284 {dimension_numbers = #tpu.dot_dimension_numbers<[1], [0], [0], [1], [0, 0, 1, 1], [], []>} : vector<8x128xbf16>, vector<128x512xbf16>, vector<8x512xf32> -> vector<8x512xf32>
    %622 = arith.addf %619, %621 : vector<8x512xf32>
    %623 = vector.extract_strided_slice %622 {offsets = [0, 0], sizes = [8, 128], strides = [1, 1]} : vector<8x512xf32> to vector<8x128xf32>
    %cst_285 = arith.constant 5.000000e-01 : f32
    %624 = vector.broadcast %cst_285 : f32 to vector<8x128xf32>
    %625 = arith.mulf %624, %623 : vector<8x128xf32>
    %626 = math.tanh %625 : vector<8x128xf32>
    %cst_286 = arith.constant 5.000000e-01 : f32
    %627 = vector.broadcast %cst_286 : f32 to vector<8x128xf32>
    %628 = arith.mulf %627, %626 : vector<8x128xf32>
    %cst_287 = arith.constant 5.000000e-01 : f32
    %629 = vector.broadcast %cst_287 : f32 to vector<8x128xf32>
    %630 = arith.addf %628, %629 : vector<8x128xf32>
    %631 = vector.extract_strided_slice %622 {offsets = [0, 128], sizes = [8, 128], strides = [1, 1]} : vector<8x512xf32> to vector<8x128xf32>
    %cst_288 = arith.constant 5.000000e-01 : f32
    %632 = vector.broadcast %cst_288 : f32 to vector<8x128xf32>
    %633 = arith.mulf %632, %631 : vector<8x128xf32>
    %634 = math.tanh %633 : vector<8x128xf32>
    %cst_289 = arith.constant 5.000000e-01 : f32
    %635 = vector.broadcast %cst_289 : f32 to vector<8x128xf32>
    %636 = arith.mulf %635, %634 : vector<8x128xf32>
    %cst_290 = arith.constant 5.000000e-01 : f32
    %637 = vector.broadcast %cst_290 : f32 to vector<8x128xf32>
    %638 = arith.addf %636, %637 : vector<8x128xf32>
    %639 = vector.extract_strided_slice %622 {offsets = [0, 256], sizes = [8, 128], strides = [1, 1]} : vector<8x512xf32> to vector<8x128xf32>
    %640 = math.tanh %639 : vector<8x128xf32>
    %641 = vector.extract_strided_slice %622 {offsets = [0, 384], sizes = [8, 128], strides = [1, 1]} : vector<8x512xf32> to vector<8x128xf32>
    %cst_291 = arith.constant 5.000000e-01 : f32
    %642 = vector.broadcast %cst_291 : f32 to vector<8x128xf32>
    %643 = arith.mulf %642, %641 : vector<8x128xf32>
    %644 = math.tanh %643 : vector<8x128xf32>
    %cst_292 = arith.constant 5.000000e-01 : f32
    %645 = vector.broadcast %cst_292 : f32 to vector<8x128xf32>
    %646 = arith.mulf %645, %644 : vector<8x128xf32>
    %cst_293 = arith.constant 5.000000e-01 : f32
    %647 = vector.broadcast %cst_293 : f32 to vector<8x128xf32>
    %648 = arith.addf %646, %647 : vector<8x128xf32>
    %649 = arith.mulf %638, %618 : vector<8x128xf32>
    %650 = arith.mulf %630, %640 : vector<8x128xf32>
    %651 = arith.addf %649, %650 : vector<8x128xf32>
    %652 = math.tanh %651 : vector<8x128xf32>
    %653 = arith.mulf %648, %652 : vector<8x128xf32>
    %654 = arith.truncf %653 : vector<8x128xf32> to vector<8x128xbf16>
    %c8_294 = arith.constant 8 : index
    %c0_295 = arith.constant 0 : index
    %655 = vector.load %arg15[%c8_294, %c0_295] : memref<64x512xf32, #tpu.memory_space<vmem>>, vector<8x512xf32>
    %c0_296 = arith.constant 0 : index
    %c0_297 = arith.constant 0 : index
    %656 = vector.load %arg8[%c0_296, %c0_297] : memref<128x512xbf16, #tpu.memory_space<vmem>>, vector<128x512xbf16>
    %cst_298 = arith.constant dense<0.000000e+00> : vector<8x512xf32>
    %657 = tpu.matmul %654, %656, %cst_298 {dimension_numbers = #tpu.dot_dimension_numbers<[1], [0], [0], [1], [0, 0, 1, 1], [], []>} : vector<8x128xbf16>, vector<128x512xbf16>, vector<8x512xf32> -> vector<8x512xf32>
    %658 = arith.addf %655, %657 : vector<8x512xf32>
    %659 = vector.extract_strided_slice %658 {offsets = [0, 0], sizes = [8, 128], strides = [1, 1]} : vector<8x512xf32> to vector<8x128xf32>
    %cst_299 = arith.constant 5.000000e-01 : f32
    %660 = vector.broadcast %cst_299 : f32 to vector<8x128xf32>
    %661 = arith.mulf %660, %659 : vector<8x128xf32>
    %662 = math.tanh %661 : vector<8x128xf32>
    %cst_300 = arith.constant 5.000000e-01 : f32
    %663 = vector.broadcast %cst_300 : f32 to vector<8x128xf32>
    %664 = arith.mulf %663, %662 : vector<8x128xf32>
    %cst_301 = arith.constant 5.000000e-01 : f32
    %665 = vector.broadcast %cst_301 : f32 to vector<8x128xf32>
    %666 = arith.addf %664, %665 : vector<8x128xf32>
    %667 = vector.extract_strided_slice %658 {offsets = [0, 128], sizes = [8, 128], strides = [1, 1]} : vector<8x512xf32> to vector<8x128xf32>
    %cst_302 = arith.constant 5.000000e-01 : f32
    %668 = vector.broadcast %cst_302 : f32 to vector<8x128xf32>
    %669 = arith.mulf %668, %667 : vector<8x128xf32>
    %670 = math.tanh %669 : vector<8x128xf32>
    %cst_303 = arith.constant 5.000000e-01 : f32
    %671 = vector.broadcast %cst_303 : f32 to vector<8x128xf32>
    %672 = arith.mulf %671, %670 : vector<8x128xf32>
    %cst_304 = arith.constant 5.000000e-01 : f32
    %673 = vector.broadcast %cst_304 : f32 to vector<8x128xf32>
    %674 = arith.addf %672, %673 : vector<8x128xf32>
    %675 = vector.extract_strided_slice %658 {offsets = [0, 256], sizes = [8, 128], strides = [1, 1]} : vector<8x512xf32> to vector<8x128xf32>
    %676 = math.tanh %675 : vector<8x128xf32>
    %677 = vector.extract_strided_slice %658 {offsets = [0, 384], sizes = [8, 128], strides = [1, 1]} : vector<8x512xf32> to vector<8x128xf32>
    %cst_305 = arith.constant 5.000000e-01 : f32
    %678 = vector.broadcast %cst_305 : f32 to vector<8x128xf32>
    %679 = arith.mulf %678, %677 : vector<8x128xf32>
    %680 = math.tanh %679 : vector<8x128xf32>
    %cst_306 = arith.constant 5.000000e-01 : f32
    %681 = vector.broadcast %cst_306 : f32 to vector<8x128xf32>
    %682 = arith.mulf %681, %680 : vector<8x128xf32>
    %cst_307 = arith.constant 5.000000e-01 : f32
    %683 = vector.broadcast %cst_307 : f32 to vector<8x128xf32>
    %684 = arith.addf %682, %683 : vector<8x128xf32>
    %685 = arith.mulf %674, %651 : vector<8x128xf32>
    %686 = arith.mulf %666, %676 : vector<8x128xf32>
    %687 = arith.addf %685, %686 : vector<8x128xf32>
    %688 = math.tanh %687 : vector<8x128xf32>
    %689 = arith.mulf %684, %688 : vector<8x128xf32>
    %690 = arith.truncf %689 : vector<8x128xf32> to vector<8x128xbf16>
    %c16_308 = arith.constant 16 : index
    %c0_309 = arith.constant 0 : index
    %691 = vector.load %arg15[%c16_308, %c0_309] : memref<64x512xf32, #tpu.memory_space<vmem>>, vector<8x512xf32>
    %c0_310 = arith.constant 0 : index
    %c0_311 = arith.constant 0 : index
    %692 = vector.load %arg8[%c0_310, %c0_311] : memref<128x512xbf16, #tpu.memory_space<vmem>>, vector<128x512xbf16>
    %cst_312 = arith.constant dense<0.000000e+00> : vector<8x512xf32>
    %693 = tpu.matmul %690, %692, %cst_312 {dimension_numbers = #tpu.dot_dimension_numbers<[1], [0], [0], [1], [0, 0, 1, 1], [], []>} : vector<8x128xbf16>, vector<128x512xbf16>, vector<8x512xf32> -> vector<8x512xf32>
    %694 = arith.addf %691, %693 : vector<8x512xf32>
    %695 = vector.extract_strided_slice %694 {offsets = [0, 0], sizes = [8, 128], strides = [1, 1]} : vector<8x512xf32> to vector<8x128xf32>
    %cst_313 = arith.constant 5.000000e-01 : f32
    %696 = vector.broadcast %cst_313 : f32 to vector<8x128xf32>
    %697 = arith.mulf %696, %695 : vector<8x128xf32>
    %698 = math.tanh %697 : vector<8x128xf32>
    %cst_314 = arith.constant 5.000000e-01 : f32
    %699 = vector.broadcast %cst_314 : f32 to vector<8x128xf32>
    %700 = arith.mulf %699, %698 : vector<8x128xf32>
    %cst_315 = arith.constant 5.000000e-01 : f32
    %701 = vector.broadcast %cst_315 : f32 to vector<8x128xf32>
    %702 = arith.addf %700, %701 : vector<8x128xf32>
    %703 = vector.extract_strided_slice %694 {offsets = [0, 128], sizes = [8, 128], strides = [1, 1]} : vector<8x512xf32> to vector<8x128xf32>
    %cst_316 = arith.constant 5.000000e-01 : f32
    %704 = vector.broadcast %cst_316 : f32 to vector<8x128xf32>
    %705 = arith.mulf %704, %703 : vector<8x128xf32>
    %706 = math.tanh %705 : vector<8x128xf32>
    %cst_317 = arith.constant 5.000000e-01 : f32
    %707 = vector.broadcast %cst_317 : f32 to vector<8x128xf32>
    %708 = arith.mulf %707, %706 : vector<8x128xf32>
    %cst_318 = arith.constant 5.000000e-01 : f32
    %709 = vector.broadcast %cst_318 : f32 to vector<8x128xf32>
    %710 = arith.addf %708, %709 : vector<8x128xf32>
    %711 = vector.extract_strided_slice %694 {offsets = [0, 256], sizes = [8, 128], strides = [1, 1]} : vector<8x512xf32> to vector<8x128xf32>
    %712 = math.tanh %711 : vector<8x128xf32>
    %713 = vector.extract_strided_slice %694 {offsets = [0, 384], sizes = [8, 128], strides = [1, 1]} : vector<8x512xf32> to vector<8x128xf32>
    %cst_319 = arith.constant 5.000000e-01 : f32
    %714 = vector.broadcast %cst_319 : f32 to vector<8x128xf32>
    %715 = arith.mulf %714, %713 : vector<8x128xf32>
    %716 = math.tanh %715 : vector<8x128xf32>
    %cst_320 = arith.constant 5.000000e-01 : f32
    %717 = vector.broadcast %cst_320 : f32 to vector<8x128xf32>
    %718 = arith.mulf %717, %716 : vector<8x128xf32>
    %cst_321 = arith.constant 5.000000e-01 : f32
    %719 = vector.broadcast %cst_321 : f32 to vector<8x128xf32>
    %720 = arith.addf %718, %719 : vector<8x128xf32>
    %721 = arith.mulf %710, %687 : vector<8x128xf32>
    %722 = arith.mulf %702, %712 : vector<8x128xf32>
    %723 = arith.addf %721, %722 : vector<8x128xf32>
    %724 = math.tanh %723 : vector<8x128xf32>
    %725 = arith.mulf %720, %724 : vector<8x128xf32>
    %726 = arith.truncf %725 : vector<8x128xf32> to vector<8x128xbf16>
    %c24_322 = arith.constant 24 : index
    %c0_323 = arith.constant 0 : index
    %727 = vector.load %arg15[%c24_322, %c0_323] : memref<64x512xf32, #tpu.memory_space<vmem>>, vector<8x512xf32>
    %c0_324 = arith.constant 0 : index
    %c0_325 = arith.constant 0 : index
    %728 = vector.load %arg8[%c0_324, %c0_325] : memref<128x512xbf16, #tpu.memory_space<vmem>>, vector<128x512xbf16>
    %cst_326 = arith.constant dense<0.000000e+00> : vector<8x512xf32>
    %729 = tpu.matmul %726, %728, %cst_326 {dimension_numbers = #tpu.dot_dimension_numbers<[1], [0], [0], [1], [0, 0, 1, 1], [], []>} : vector<8x128xbf16>, vector<128x512xbf16>, vector<8x512xf32> -> vector<8x512xf32>
    %730 = arith.addf %727, %729 : vector<8x512xf32>
    %731 = vector.extract_strided_slice %730 {offsets = [0, 0], sizes = [8, 128], strides = [1, 1]} : vector<8x512xf32> to vector<8x128xf32>
    %cst_327 = arith.constant 5.000000e-01 : f32
    %732 = vector.broadcast %cst_327 : f32 to vector<8x128xf32>
    %733 = arith.mulf %732, %731 : vector<8x128xf32>
    %734 = math.tanh %733 : vector<8x128xf32>
    %cst_328 = arith.constant 5.000000e-01 : f32
    %735 = vector.broadcast %cst_328 : f32 to vector<8x128xf32>
    %736 = arith.mulf %735, %734 : vector<8x128xf32>
    %cst_329 = arith.constant 5.000000e-01 : f32
    %737 = vector.broadcast %cst_329 : f32 to vector<8x128xf32>
    %738 = arith.addf %736, %737 : vector<8x128xf32>
    %739 = vector.extract_strided_slice %730 {offsets = [0, 128], sizes = [8, 128], strides = [1, 1]} : vector<8x512xf32> to vector<8x128xf32>
    %cst_330 = arith.constant 5.000000e-01 : f32
    %740 = vector.broadcast %cst_330 : f32 to vector<8x128xf32>
    %741 = arith.mulf %740, %739 : vector<8x128xf32>
    %742 = math.tanh %741 : vector<8x128xf32>
    %cst_331 = arith.constant 5.000000e-01 : f32
    %743 = vector.broadcast %cst_331 : f32 to vector<8x128xf32>
    %744 = arith.mulf %743, %742 : vector<8x128xf32>
    %cst_332 = arith.constant 5.000000e-01 : f32
    %745 = vector.broadcast %cst_332 : f32 to vector<8x128xf32>
    %746 = arith.addf %744, %745 : vector<8x128xf32>
    %747 = vector.extract_strided_slice %730 {offsets = [0, 256], sizes = [8, 128], strides = [1, 1]} : vector<8x512xf32> to vector<8x128xf32>
    %748 = math.tanh %747 : vector<8x128xf32>
    %749 = vector.extract_strided_slice %730 {offsets = [0, 384], sizes = [8, 128], strides = [1, 1]} : vector<8x512xf32> to vector<8x128xf32>
    %cst_333 = arith.constant 5.000000e-01 : f32
    %750 = vector.broadcast %cst_333 : f32 to vector<8x128xf32>
    %751 = arith.mulf %750, %749 : vector<8x128xf32>
    %752 = math.tanh %751 : vector<8x128xf32>
    %cst_334 = arith.constant 5.000000e-01 : f32
    %753 = vector.broadcast %cst_334 : f32 to vector<8x128xf32>
    %754 = arith.mulf %753, %752 : vector<8x128xf32>
    %cst_335 = arith.constant 5.000000e-01 : f32
    %755 = vector.broadcast %cst_335 : f32 to vector<8x128xf32>
    %756 = arith.addf %754, %755 : vector<8x128xf32>
    %757 = arith.mulf %746, %723 : vector<8x128xf32>
    %758 = arith.mulf %738, %748 : vector<8x128xf32>
    %759 = arith.addf %757, %758 : vector<8x128xf32>
    %760 = math.tanh %759 : vector<8x128xf32>
    %761 = arith.mulf %756, %760 : vector<8x128xf32>
    %762 = arith.truncf %761 : vector<8x128xf32> to vector<8x128xbf16>
    %c32_336 = arith.constant 32 : index
    %c0_337 = arith.constant 0 : index
    %763 = vector.load %arg15[%c32_336, %c0_337] : memref<64x512xf32, #tpu.memory_space<vmem>>, vector<8x512xf32>
    %c0_338 = arith.constant 0 : index
    %c0_339 = arith.constant 0 : index
    %764 = vector.load %arg8[%c0_338, %c0_339] : memref<128x512xbf16, #tpu.memory_space<vmem>>, vector<128x512xbf16>
    %cst_340 = arith.constant dense<0.000000e+00> : vector<8x512xf32>
    %765 = tpu.matmul %762, %764, %cst_340 {dimension_numbers = #tpu.dot_dimension_numbers<[1], [0], [0], [1], [0, 0, 1, 1], [], []>} : vector<8x128xbf16>, vector<128x512xbf16>, vector<8x512xf32> -> vector<8x512xf32>
    %766 = arith.addf %763, %765 : vector<8x512xf32>
    %767 = vector.extract_strided_slice %766 {offsets = [0, 0], sizes = [8, 128], strides = [1, 1]} : vector<8x512xf32> to vector<8x128xf32>
    %cst_341 = arith.constant 5.000000e-01 : f32
    %768 = vector.broadcast %cst_341 : f32 to vector<8x128xf32>
    %769 = arith.mulf %768, %767 : vector<8x128xf32>
    %770 = math.tanh %769 : vector<8x128xf32>
    %cst_342 = arith.constant 5.000000e-01 : f32
    %771 = vector.broadcast %cst_342 : f32 to vector<8x128xf32>
    %772 = arith.mulf %771, %770 : vector<8x128xf32>
    %cst_343 = arith.constant 5.000000e-01 : f32
    %773 = vector.broadcast %cst_343 : f32 to vector<8x128xf32>
    %774 = arith.addf %772, %773 : vector<8x128xf32>
    %775 = vector.extract_strided_slice %766 {offsets = [0, 128], sizes = [8, 128], strides = [1, 1]} : vector<8x512xf32> to vector<8x128xf32>
    %cst_344 = arith.constant 5.000000e-01 : f32
    %776 = vector.broadcast %cst_344 : f32 to vector<8x128xf32>
    %777 = arith.mulf %776, %775 : vector<8x128xf32>
    %778 = math.tanh %777 : vector<8x128xf32>
    %cst_345 = arith.constant 5.000000e-01 : f32
    %779 = vector.broadcast %cst_345 : f32 to vector<8x128xf32>
    %780 = arith.mulf %779, %778 : vector<8x128xf32>
    %cst_346 = arith.constant 5.000000e-01 : f32
    %781 = vector.broadcast %cst_346 : f32 to vector<8x128xf32>
    %782 = arith.addf %780, %781 : vector<8x128xf32>
    %783 = vector.extract_strided_slice %766 {offsets = [0, 256], sizes = [8, 128], strides = [1, 1]} : vector<8x512xf32> to vector<8x128xf32>
    %784 = math.tanh %783 : vector<8x128xf32>
    %785 = vector.extract_strided_slice %766 {offsets = [0, 384], sizes = [8, 128], strides = [1, 1]} : vector<8x512xf32> to vector<8x128xf32>
    %cst_347 = arith.constant 5.000000e-01 : f32
    %786 = vector.broadcast %cst_347 : f32 to vector<8x128xf32>
    %787 = arith.mulf %786, %785 : vector<8x128xf32>
    %788 = math.tanh %787 : vector<8x128xf32>
    %cst_348 = arith.constant 5.000000e-01 : f32
    %789 = vector.broadcast %cst_348 : f32 to vector<8x128xf32>
    %790 = arith.mulf %789, %788 : vector<8x128xf32>
    %cst_349 = arith.constant 5.000000e-01 : f32
    %791 = vector.broadcast %cst_349 : f32 to vector<8x128xf32>
    %792 = arith.addf %790, %791 : vector<8x128xf32>
    %793 = arith.mulf %782, %759 : vector<8x128xf32>
    %794 = arith.mulf %774, %784 : vector<8x128xf32>
    %795 = arith.addf %793, %794 : vector<8x128xf32>
    %796 = math.tanh %795 : vector<8x128xf32>
    %797 = arith.mulf %792, %796 : vector<8x128xf32>
    %798 = arith.truncf %797 : vector<8x128xf32> to vector<8x128xbf16>
    %c40_350 = arith.constant 40 : index
    %c0_351 = arith.constant 0 : index
    %799 = vector.load %arg15[%c40_350, %c0_351] : memref<64x512xf32, #tpu.memory_space<vmem>>, vector<8x512xf32>
    %c0_352 = arith.constant 0 : index
    %c0_353 = arith.constant 0 : index
    %800 = vector.load %arg8[%c0_352, %c0_353] : memref<128x512xbf16, #tpu.memory_space<vmem>>, vector<128x512xbf16>
    %cst_354 = arith.constant dense<0.000000e+00> : vector<8x512xf32>
    %801 = tpu.matmul %798, %800, %cst_354 {dimension_numbers = #tpu.dot_dimension_numbers<[1], [0], [0], [1], [0, 0, 1, 1], [], []>} : vector<8x128xbf16>, vector<128x512xbf16>, vector<8x512xf32> -> vector<8x512xf32>
    %802 = arith.addf %799, %801 : vector<8x512xf32>
    %803 = vector.extract_strided_slice %802 {offsets = [0, 0], sizes = [8, 128], strides = [1, 1]} : vector<8x512xf32> to vector<8x128xf32>
    %cst_355 = arith.constant 5.000000e-01 : f32
    %804 = vector.broadcast %cst_355 : f32 to vector<8x128xf32>
    %805 = arith.mulf %804, %803 : vector<8x128xf32>
    %806 = math.tanh %805 : vector<8x128xf32>
    %cst_356 = arith.constant 5.000000e-01 : f32
    %807 = vector.broadcast %cst_356 : f32 to vector<8x128xf32>
    %808 = arith.mulf %807, %806 : vector<8x128xf32>
    %cst_357 = arith.constant 5.000000e-01 : f32
    %809 = vector.broadcast %cst_357 : f32 to vector<8x128xf32>
    %810 = arith.addf %808, %809 : vector<8x128xf32>
    %811 = vector.extract_strided_slice %802 {offsets = [0, 128], sizes = [8, 128], strides = [1, 1]} : vector<8x512xf32> to vector<8x128xf32>
    %cst_358 = arith.constant 5.000000e-01 : f32
    %812 = vector.broadcast %cst_358 : f32 to vector<8x128xf32>
    %813 = arith.mulf %812, %811 : vector<8x128xf32>
    %814 = math.tanh %813 : vector<8x128xf32>
    %cst_359 = arith.constant 5.000000e-01 : f32
    %815 = vector.broadcast %cst_359 : f32 to vector<8x128xf32>
    %816 = arith.mulf %815, %814 : vector<8x128xf32>
    %cst_360 = arith.constant 5.000000e-01 : f32
    %817 = vector.broadcast %cst_360 : f32 to vector<8x128xf32>
    %818 = arith.addf %816, %817 : vector<8x128xf32>
    %819 = vector.extract_strided_slice %802 {offsets = [0, 256], sizes = [8, 128], strides = [1, 1]} : vector<8x512xf32> to vector<8x128xf32>
    %820 = math.tanh %819 : vector<8x128xf32>
    %821 = vector.extract_strided_slice %802 {offsets = [0, 384], sizes = [8, 128], strides = [1, 1]} : vector<8x512xf32> to vector<8x128xf32>
    %cst_361 = arith.constant 5.000000e-01 : f32
    %822 = vector.broadcast %cst_361 : f32 to vector<8x128xf32>
    %823 = arith.mulf %822, %821 : vector<8x128xf32>
    %824 = math.tanh %823 : vector<8x128xf32>
    %cst_362 = arith.constant 5.000000e-01 : f32
    %825 = vector.broadcast %cst_362 : f32 to vector<8x128xf32>
    %826 = arith.mulf %825, %824 : vector<8x128xf32>
    %cst_363 = arith.constant 5.000000e-01 : f32
    %827 = vector.broadcast %cst_363 : f32 to vector<8x128xf32>
    %828 = arith.addf %826, %827 : vector<8x128xf32>
    %829 = arith.mulf %818, %795 : vector<8x128xf32>
    %830 = arith.mulf %810, %820 : vector<8x128xf32>
    %831 = arith.addf %829, %830 : vector<8x128xf32>
    %832 = math.tanh %831 : vector<8x128xf32>
    %833 = arith.mulf %828, %832 : vector<8x128xf32>
    %834 = arith.truncf %833 : vector<8x128xf32> to vector<8x128xbf16>
    %c48_364 = arith.constant 48 : index
    %c0_365 = arith.constant 0 : index
    %835 = vector.load %arg15[%c48_364, %c0_365] : memref<64x512xf32, #tpu.memory_space<vmem>>, vector<8x512xf32>
    %c0_366 = arith.constant 0 : index
    %c0_367 = arith.constant 0 : index
    %836 = vector.load %arg8[%c0_366, %c0_367] : memref<128x512xbf16, #tpu.memory_space<vmem>>, vector<128x512xbf16>
    %cst_368 = arith.constant dense<0.000000e+00> : vector<8x512xf32>
    %837 = tpu.matmul %834, %836, %cst_368 {dimension_numbers = #tpu.dot_dimension_numbers<[1], [0], [0], [1], [0, 0, 1, 1], [], []>} : vector<8x128xbf16>, vector<128x512xbf16>, vector<8x512xf32> -> vector<8x512xf32>
    %838 = arith.addf %835, %837 : vector<8x512xf32>
    %839 = vector.extract_strided_slice %838 {offsets = [0, 0], sizes = [8, 128], strides = [1, 1]} : vector<8x512xf32> to vector<8x128xf32>
    %cst_369 = arith.constant 5.000000e-01 : f32
    %840 = vector.broadcast %cst_369 : f32 to vector<8x128xf32>
    %841 = arith.mulf %840, %839 : vector<8x128xf32>
    %842 = math.tanh %841 : vector<8x128xf32>
    %cst_370 = arith.constant 5.000000e-01 : f32
    %843 = vector.broadcast %cst_370 : f32 to vector<8x128xf32>
    %844 = arith.mulf %843, %842 : vector<8x128xf32>
    %cst_371 = arith.constant 5.000000e-01 : f32
    %845 = vector.broadcast %cst_371 : f32 to vector<8x128xf32>
    %846 = arith.addf %844, %845 : vector<8x128xf32>
    %847 = vector.extract_strided_slice %838 {offsets = [0, 128], sizes = [8, 128], strides = [1, 1]} : vector<8x512xf32> to vector<8x128xf32>
    %cst_372 = arith.constant 5.000000e-01 : f32
    %848 = vector.broadcast %cst_372 : f32 to vector<8x128xf32>
    %849 = arith.mulf %848, %847 : vector<8x128xf32>
    %850 = math.tanh %849 : vector<8x128xf32>
    %cst_373 = arith.constant 5.000000e-01 : f32
    %851 = vector.broadcast %cst_373 : f32 to vector<8x128xf32>
    %852 = arith.mulf %851, %850 : vector<8x128xf32>
    %cst_374 = arith.constant 5.000000e-01 : f32
    %853 = vector.broadcast %cst_374 : f32 to vector<8x128xf32>
    %854 = arith.addf %852, %853 : vector<8x128xf32>
    %855 = vector.extract_strided_slice %838 {offsets = [0, 256], sizes = [8, 128], strides = [1, 1]} : vector<8x512xf32> to vector<8x128xf32>
    %856 = math.tanh %855 : vector<8x128xf32>
    %857 = vector.extract_strided_slice %838 {offsets = [0, 384], sizes = [8, 128], strides = [1, 1]} : vector<8x512xf32> to vector<8x128xf32>
    %cst_375 = arith.constant 5.000000e-01 : f32
    %858 = vector.broadcast %cst_375 : f32 to vector<8x128xf32>
    %859 = arith.mulf %858, %857 : vector<8x128xf32>
    %860 = math.tanh %859 : vector<8x128xf32>
    %cst_376 = arith.constant 5.000000e-01 : f32
    %861 = vector.broadcast %cst_376 : f32 to vector<8x128xf32>
    %862 = arith.mulf %861, %860 : vector<8x128xf32>
    %cst_377 = arith.constant 5.000000e-01 : f32
    %863 = vector.broadcast %cst_377 : f32 to vector<8x128xf32>
    %864 = arith.addf %862, %863 : vector<8x128xf32>
    %865 = arith.mulf %854, %831 : vector<8x128xf32>
    %866 = arith.mulf %846, %856 : vector<8x128xf32>
    %867 = arith.addf %865, %866 : vector<8x128xf32>
    %868 = math.tanh %867 : vector<8x128xf32>
    %869 = arith.mulf %864, %868 : vector<8x128xf32>
    %870 = arith.truncf %869 : vector<8x128xf32> to vector<8x128xbf16>
    %c56_378 = arith.constant 56 : index
    %c0_379 = arith.constant 0 : index
    %871 = vector.load %arg15[%c56_378, %c0_379] : memref<64x512xf32, #tpu.memory_space<vmem>>, vector<8x512xf32>
    %c0_380 = arith.constant 0 : index
    %c0_381 = arith.constant 0 : index
    %872 = vector.load %arg8[%c0_380, %c0_381] : memref<128x512xbf16, #tpu.memory_space<vmem>>, vector<128x512xbf16>
    %cst_382 = arith.constant dense<0.000000e+00> : vector<8x512xf32>
    %873 = tpu.matmul %870, %872, %cst_382 {dimension_numbers = #tpu.dot_dimension_numbers<[1], [0], [0], [1], [0, 0, 1, 1], [], []>} : vector<8x128xbf16>, vector<128x512xbf16>, vector<8x512xf32> -> vector<8x512xf32>
    %874 = arith.addf %871, %873 : vector<8x512xf32>
    %875 = vector.extract_strided_slice %874 {offsets = [0, 0], sizes = [8, 128], strides = [1, 1]} : vector<8x512xf32> to vector<8x128xf32>
    %cst_383 = arith.constant 5.000000e-01 : f32
    %876 = vector.broadcast %cst_383 : f32 to vector<8x128xf32>
    %877 = arith.mulf %876, %875 : vector<8x128xf32>
    %878 = math.tanh %877 : vector<8x128xf32>
    %cst_384 = arith.constant 5.000000e-01 : f32
    %879 = vector.broadcast %cst_384 : f32 to vector<8x128xf32>
    %880 = arith.mulf %879, %878 : vector<8x128xf32>
    %cst_385 = arith.constant 5.000000e-01 : f32
    %881 = vector.broadcast %cst_385 : f32 to vector<8x128xf32>
    %882 = arith.addf %880, %881 : vector<8x128xf32>
    %883 = vector.extract_strided_slice %874 {offsets = [0, 128], sizes = [8, 128], strides = [1, 1]} : vector<8x512xf32> to vector<8x128xf32>
    %cst_386 = arith.constant 5.000000e-01 : f32
    %884 = vector.broadcast %cst_386 : f32 to vector<8x128xf32>
    %885 = arith.mulf %884, %883 : vector<8x128xf32>
    %886 = math.tanh %885 : vector<8x128xf32>
    %cst_387 = arith.constant 5.000000e-01 : f32
    %887 = vector.broadcast %cst_387 : f32 to vector<8x128xf32>
    %888 = arith.mulf %887, %886 : vector<8x128xf32>
    %cst_388 = arith.constant 5.000000e-01 : f32
    %889 = vector.broadcast %cst_388 : f32 to vector<8x128xf32>
    %890 = arith.addf %888, %889 : vector<8x128xf32>
    %891 = vector.extract_strided_slice %874 {offsets = [0, 256], sizes = [8, 128], strides = [1, 1]} : vector<8x512xf32> to vector<8x128xf32>
    %892 = math.tanh %891 : vector<8x128xf32>
    %893 = vector.extract_strided_slice %874 {offsets = [0, 384], sizes = [8, 128], strides = [1, 1]} : vector<8x512xf32> to vector<8x128xf32>
    %cst_389 = arith.constant 5.000000e-01 : f32
    %894 = vector.broadcast %cst_389 : f32 to vector<8x128xf32>
    %895 = arith.mulf %894, %893 : vector<8x128xf32>
    %896 = math.tanh %895 : vector<8x128xf32>
    %cst_390 = arith.constant 5.000000e-01 : f32
    %897 = vector.broadcast %cst_390 : f32 to vector<8x128xf32>
    %898 = arith.mulf %897, %896 : vector<8x128xf32>
    %cst_391 = arith.constant 5.000000e-01 : f32
    %899 = vector.broadcast %cst_391 : f32 to vector<8x128xf32>
    %900 = arith.addf %898, %899 : vector<8x128xf32>
    %901 = arith.mulf %890, %867 : vector<8x128xf32>
    %902 = arith.mulf %882, %892 : vector<8x128xf32>
    %903 = arith.addf %901, %902 : vector<8x128xf32>
    %904 = math.tanh %903 : vector<8x128xf32>
    %905 = arith.mulf %900, %904 : vector<8x128xf32>
    %c0_392 = arith.constant 0 : index
    %c0_393 = arith.constant 0 : index
    %906 = vector.load %arg10[%c0_392, %c0_393] : memref<128x128xf32, #tpu.memory_space<vmem>>, vector<128x128xf32>
    %cst_394 = arith.constant dense<0.000000e+00> : vector<8x128xf32>
    %907 = tpu.matmul %905, %906, %cst_394 {dimension_numbers = #tpu.dot_dimension_numbers<[1], [0], [0], [1], [0, 0, 1, 1], [], []>} : vector<8x128xf32>, vector<128x128xf32>, vector<8x128xf32> -> vector<8x128xf32>
    %c0_395 = arith.constant 0 : index
    %c0_396 = arith.constant 0 : index
    %908 = vector.load %arg11[%c0_395, %c0_396] : memref<1x128xf32, #tpu.memory_space<vmem>>, vector<1x128xf32>
    %909 = vector.broadcast %908 : vector<1x128xf32> to vector<8x128xf32>
    %910 = arith.addf %907, %909 : vector<8x128xf32>
    %cst_397 = arith.constant 5.000000e-01 : f32
    %911 = vector.broadcast %cst_397 : f32 to vector<8x128xf32>
    %912 = arith.mulf %911, %910 : vector<8x128xf32>
    %913 = math.tanh %912 : vector<8x128xf32>
    %cst_398 = arith.constant 5.000000e-01 : f32
    %914 = vector.broadcast %cst_398 : f32 to vector<8x128xf32>
    %915 = arith.mulf %914, %913 : vector<8x128xf32>
    %cst_399 = arith.constant 5.000000e-01 : f32
    %916 = vector.broadcast %cst_399 : f32 to vector<8x128xf32>
    %917 = arith.addf %915, %916 : vector<8x128xf32>
    %c0_400 = arith.constant 0 : index
    %c0_401 = arith.constant 0 : index
    %918 = vector.load %arg12[%c0_400, %c0_401] : memref<8x128xf32, #tpu.memory_space<vmem>>, vector<8x128xf32>
    tpu.vector_store %arg12[%c0_400, %c0_401], %917 {strides = array<i32>} : memref<8x128xf32, #tpu.memory_space<vmem>>, vector<8x128xf32>,
    return
  }
}

</mosaic_0001>

<llo_original>
// kernel: lstm_forward.1
$region0: #{lstm_forward.1}
  #allocation0 [shape = 'u32[]', space=smem, size = 0x4, offset = 0x4, fixed_abs, tag = 'smem constant byte address 0x4 - core index']
  #allocation1 [shape = 'u32[144,128]{1,0:T(1,128)}', space=vmem, size = 0x12000, scoped, tag = 'internal scratch']
  #allocation2 [shape = 'f32[64,128]{1,0:T(8,128)}', space=vmem, size = 0x8000, scoped, tag = 'scratch operand']
  #allocation3 [shape = 'f32[64,128]{1,0:T(8,128)}', space=vmem, size = 0x8000, scoped, tag = 'scratch operand']
  #allocation4 [shape = 'f32[64,512]{1,0:T(8,128)}', space=vmem, size = 0x20000, scoped, tag = 'scratch operand']
  %s0 = inlined_call_operand.vmem [shape: bf16[64,128], index: 0, kind: input, shape index: {}]
  %s1 = inlined_call_operand.hbm [shape: bf16[128,512], index: 1, kind: input, shape index: {}]
  %s2 = inlined_call_operand.hbm [shape: bf16[128,512], index: 2, kind: input, shape index: {}]
  %s3 = inlined_call_operand.vmem [shape: f32[1,512], index: 3, kind: input, shape index: {}]
  %s4 = inlined_call_operand.hbm [shape: bf16[128,512], index: 4, kind: input, shape index: {}]
  %s5 = inlined_call_operand.hbm [shape: bf16[128,512], index: 5, kind: input, shape index: {}]
  %s6 = inlined_call_operand.vmem [shape: f32[1,512], index: 6, kind: input, shape index: {}]
  %s7 = inlined_call_operand.hbm [shape: bf16[128,512], index: 7, kind: input, shape index: {}]
  %s8 = inlined_call_operand.hbm [shape: bf16[128,512], index: 8, kind: input, shape index: {}]
  %s9 = inlined_call_operand.vmem [shape: f32[1,512], index: 9, kind: input, shape index: {}]
  %s10 = inlined_call_operand.hbm [shape: f32[128,128], index: 10, kind: input, shape index: {}]
  %s11 = inlined_call_operand.vmem [shape: f32[1,128], index: 11, kind: input, shape index: {}]
  %s12 = inlined_call_operand.vmem [shape: f32[8,128], index: 12, kind: output, shape index: {}]
  %s13 = sld [smem:[#allocation0]]
  $region86: #{lstm_forward.1} parent=0
    _
  %s15 = ssub.s32 1, %s13
  %s16 = scalar_select 0, %s15, %s13
  $region1: #{lstm_forward.1} parent=0
    #allocation5 [shape = 'u8[131072]{0}', space=vmem, size = 0x20000, scoped, tag = 'input window, operand 1, single buffered']
    #allocation6 [shape = 's32[1]{0}', space=sflag, size = 0x4, scoped, tag = 'scoped memory for lstm_forward.1']
    #allocation7 [shape = 'u8[131072]{0}', space=vmem, size = 0x20000, scoped, tag = 'input window, operand 2, single buffered']
    #allocation8 [shape = 's32[1]{0}', space=sflag, size = 0x4, scoped, tag = 'scoped memory for lstm_forward.1']
    #allocation9 [shape = 'u8[131072]{0}', space=vmem, size = 0x20000, scoped, tag = 'input window, operand 4, single buffered']
    #allocation10 [shape = 'u8[131072]{0}', space=vmem, size = 0x20000, scoped, tag = 'input window, operand 5, single buffered']
    #allocation11 [shape = 's32[1]{0}', space=sflag, size = 0x4, scoped, tag = 'scoped memory for lstm_forward.1']
    #allocation12 [shape = 'u8[131072]{0}', space=vmem, size = 0x20000, scoped, tag = 'input window, operand 7, single buffered']
    #allocation13 [shape = 'u8[131072]{0}', space=vmem, size = 0x20000, scoped, tag = 'input window, operand 8, single buffered']
    #allocation14 [shape = 's32[1]{0}', space=sflag, size = 0x4, scoped, tag = 'scoped memory for lstm_forward.1']
    #allocation15 [shape = 'u8[65536]{0}', space=vmem, size = 0x10000, scoped, tag = 'input window, operand 10, single buffered']
    %17 = vsyncpa [#allocation6], 0
    %18 = vsyncpa [#allocation8], 0
    %19 = vsyncpa [#allocation11], 0
    %20 = vsyncpa [#allocation14], 0
    // Predicated region
    $region2: #{lstm_forward.1} parent=1 // pred_check
      _
    $region3: #{lstm_forward.1} parent=1 // pred_check_branch
      %22 = sbr.rel (0) target = $region5
    $region4: #{lstm_forward.1} parent=1 // pred_region
      _
    $region5: #{lstm_forward.1} parent=1 // pred_fallthru
      _
    // Predicated region
    $region6: #{lstm_forward.1} parent=1 // pred_check
      _
    $region7: #{lstm_forward.1} parent=1 // pred_check_branch
      %24 = sbr.rel (0) target = $region9
    $region8: #{lstm_forward.1} parent=1 // pred_region
      %s26 = ssub.s32 4096, 4096
      %27 = vsyncadd [#allocation6], %s26
      %s28 = sshll.u32 [#allocation5], 4
      %s29 = int_to_ptr.vmem [resolvable:$true] %s28
      %34 = dma.hbm_to_vmem [thread:$0]  %s1, 4096, %s29, [#allocation6], 256, 256, 16
    $region9: #{lstm_forward.1} parent=1 // pred_fallthru
      _
    // Predicated region
    $region10: #{lstm_forward.1} parent=1 // pred_check
      _
    $region11: #{lstm_forward.1} parent=1 // pred_check_branch
      %36 = sbr.rel (0) target = $region13
    $region12: #{lstm_forward.1} parent=1 // pred_region
      %s38 = ssub.s32 4096, 4096
      %39 = vsyncadd [#allocation8], %s38
      %s40 = sshll.u32 [#allocation7], 4
      %s41 = int_to_ptr.vmem [resolvable:$true] %s40
      %46 = dma.hbm_to_vmem [thread:$0]  %s2, 4096, %s41, [#allocation8], 256, 256, 16
    $region13: #{lstm_forward.1} parent=1 // pred_fallthru
      _
    // Predicated region
    $region14: #{lstm_forward.1} parent=1 // pred_check
      _
    $region15: #{lstm_forward.1} parent=1 // pred_check_branch
      %48 = sbr.rel (0) target = $region17
    $region16: #{lstm_forward.1} parent=1 // pred_region
      _
    $region17: #{lstm_forward.1} parent=1 // pred_fallthru
      _
    // Predicated region
    $region18: #{lstm_forward.1} parent=1 // pred_check
      _
    $region19: #{lstm_forward.1} parent=1 // pred_check_branch
      %50 = sbr.rel (0) target = $region21
    $region20: #{lstm_forward.1} parent=1 // pred_region
      %s52 = ssub.s32 4096, 4096
      %53 = vsyncadd [#allocation8], %s52
      %s54 = sshll.u32 [#allocation9], 4
      %s55 = int_to_ptr.vmem [resolvable:$true] %s54
      %60 = dma.hbm_to_vmem [thread:$0]  %s4, 4096, %s55, [#allocation8], 256, 256, 16
    $region21: #{lstm_forward.1} parent=1 // pred_fallthru
      _
    // Predicated region
    $region22: #{lstm_forward.1} parent=1 // pred_check
      _
    $region23: #{lstm_forward.1} parent=1 // pred_check_branch
      %62 = sbr.rel (0) target = $region25
    $region24: #{lstm_forward.1} parent=1 // pred_region
      %s64 = ssub.s32 4096, 4096
      %65 = vsyncadd [#allocation11], %s64
      %s66 = sshll.u32 [#allocation10], 4
      %s67 = int_to_ptr.vmem [resolvable:$true] %s66
      %72 = dma.hbm_to_vmem [thread:$0]  %s5, 4096, %s67, [#allocation11], 256, 256, 16
    $region25: #{lstm_forward.1} parent=1 // pred_fallthru
      _
    // Predicated region
    $region26: #{lstm_forward.1} parent=1 // pred_check
      _
    $region27: #{lstm_forward.1} parent=1 // pred_check_branch
      %74 = sbr.rel (0) target = $region29
    $region28: #{lstm_forward.1} parent=1 // pred_region
      _
    $region29: #{lstm_forward.1} parent=1 // pred_fallthru
      _
    // Predicated region
    $region30: #{lstm_forward.1} parent=1 // pred_check
      _
    $region31: #{lstm_forward.1} parent=1 // pred_check_branch
      %76 = sbr.rel (0) target = $region33
    $region32: #{lstm_forward.1} parent=1 // pred_region
      %s78 = ssub.s32 4096, 4096
      %79 = vsyncadd [#allocation11], %s78
      %s80 = sshll.u32 [#allocation12], 4
      %s81 = int_to_ptr.vmem [resolvable:$true] %s80
      %86 = dma.hbm_to_vmem [thread:$0]  %s7, 4096, %s81, [#allocation11], 256, 256, 16
    $region33: #{lstm_forward.1} parent=1 // pred_fallthru
      _
    // Predicated region
    $region34: #{lstm_forward.1} parent=1 // pred_check
      _
    $region35: #{lstm_forward.1} parent=1 // pred_check_branch
      %88 = sbr.rel (0) target = $region37
    $region36: #{lstm_forward.1} parent=1 // pred_region
      %s90 = ssub.s32 4096, 4096
      %91 = vsyncadd [#allocation14], %s90
      %s92 = sshll.u32 [#allocation13], 4
      %s93 = int_to_ptr.vmem [resolvable:$true] %s92
      %98 = dma.hbm_to_vmem [thread:$0]  %s8, 4096, %s93, [#allocation14], 256, 256, 16
    $region37: #{lstm_forward.1} parent=1 // pred_fallthru
      _
    // Predicated region
    $region38: #{lstm_forward.1} parent=1 // pred_check
      _
    $region39: #{lstm_forward.1} parent=1 // pred_check_branch
      %100 = sbr.rel (0) target = $region41
    $region40: #{lstm_forward.1} parent=1 // pred_region
      _
    $region41: #{lstm_forward.1} parent=1 // pred_fallthru
      _
    // Predicated region
    $region42: #{lstm_forward.1} parent=1 // pred_check
      _
    $region43: #{lstm_forward.1} parent=1 // pred_check_branch
      %102 = sbr.rel (0) target = $region45
    $region44: #{lstm_forward.1} parent=1 // pred_region
      %s104 = ssub.s32 2048, 2048
      %105 = vsyncadd [#allocation14], %s104
      %s106 = sshll.u32 [#allocation15], 4
      %s107 = int_to_ptr.vmem [resolvable:$true] %s106
      %112 = dma.hbm_to_vmem [thread:$0]  %s10, 2048, %s107, [#allocation14], 128, 128, 8
    $region45: #{lstm_forward.1} parent=1 // pred_fallthru
      _
    // Predicated region
    $region46: #{lstm_forward.1} parent=1 // pred_check
      _
    $region47: #{lstm_forward.1} parent=1 // pred_check_branch
      %114 = sbr.rel (0) target = $region49
    $region48: #{lstm_forward.1} parent=1 // pred_region
      _
    $region49: #{lstm_forward.1} parent=1 // pred_fallthru
      _
    // Predicated region
    $region50: #{lstm_forward.1} parent=1 // pred_check
      _
    $region51: #{lstm_forward.1} parent=1 // pred_check_branch
      %116 = sbr.rel (0) target = $region53
    $region52: #{lstm_forward.1} parent=1 // pred_region
      %117 = dma.done [#allocation6], 4096
    $region53: #{lstm_forward.1} parent=1 // pred_fallthru
      _
    // Predicated region
    $region54: #{lstm_forward.1} parent=1 // pred_check
      _
    $region55: #{lstm_forward.1} parent=1 // pred_check_branch
      %119 = sbr.rel (0) target = $region57
    $region56: #{lstm_forward.1} parent=1 // pred_region
      %120 = dma.done [#allocation8], 4096
    $region57: #{lstm_forward.1} parent=1 // pred_fallthru
      _
    // Predicated region
    $region58: #{lstm_forward.1} parent=1 // pred_check
      _
    $region59: #{lstm_forward.1} parent=1 // pred_check_branch
      %122 = sbr.rel (0) target = $region61
    $region60: #{lstm_forward.1} parent=1 // pred_region
      %123 = dma.done [#allocation8], 4096
    $region61: #{lstm_forward.1} parent=1 // pred_fallthru
      _
    // Predicated region
    $region62: #{lstm_forward.1} parent=1 // pred_check
      _
    $region63: #{lstm_forward.1} parent=1 // pred_check_branch
      %125 = sbr.rel (0) target = $region65
    $region64: #{lstm_forward.1} parent=1 // pred_region
      %126 = dma.done [#allocation11], 4096
    $region65: #{lstm_forward.1} parent=1 // pred_fallthru
      _
    // Predicated region
    $region66: #{lstm_forward.1} parent=1 // pred_check
      _
    $region67: #{lstm_forward.1} parent=1 // pred_check_branch
      %128 = sbr.rel (0) target = $region69
    $region68: #{lstm_forward.1} parent=1 // pred_region
      %129 = dma.done [#allocation11], 4096
    $region69: #{lstm_forward.1} parent=1 // pred_fallthru
      _
    // Predicated region
    $region70: #{lstm_forward.1} parent=1 // pred_check
      _
    $region71: #{lstm_forward.1} parent=1 // pred_check_branch
      %131 = sbr.rel (0) target = $region73
    $region72: #{lstm_forward.1} parent=1 // pred_region
      %132 = dma.done [#allocation14], 4096
    $region73: #{lstm_forward.1} parent=1 // pred_fallthru
      _
    // Predicated region
    $region74: #{lstm_forward.1} parent=1 // pred_check
      _
    $region75: #{lstm_forward.1} parent=1 // pred_check_branch
      %134 = sbr.rel (0) target = $region77
    $region76: #{lstm_forward.1} parent=1 // pred_region
      %135 = dma.done [#allocation14], 2048
    $region77: #{lstm_forward.1} parent=1 // pred_fallthru
      _
    %v137 = vld [vmem:[%s0] sm:$0xf]
    %v138 = vld [vmem:[%s0 + $0x4] sm:$0xf]
    %v139 = vld [vmem:[%s0 + $0x8] sm:$0xf]
    %v140 = vld [vmem:[%s0 + $0xc] sm:$0xf]
    %v141 = vld [vmem:[%s0 + $0x10] sm:$0xf]
    %v142 = vld [vmem:[%s0 + $0x14] sm:$0xf]
    %v143 = vld [vmem:[%s0 + $0x18] sm:$0xf]
    %v144 = vld [vmem:[%s0 + $0x1c] sm:$0xf]
    %v145 = vld [vmem:[#allocation5] sm:$0xff]
    %v146 = vld [vmem:[#allocation5 + $0x8] sm:$0xff]
    %v147 = vld [vmem:[#allocation5 + $0x10] sm:$0xff]
    %v148 = vld [vmem:[#allocation5 + $0x18] sm:$0xff]
    %v149 = vld [vmem:[#allocation5 + $0x20] sm:$0xff]
    %v150 = vld [vmem:[#allocation5 + $0x28] sm:$0xff]
    %v151 = vld [vmem:[#allocation5 + $0x30] sm:$0xff]
    %v152 = vld [vmem:[#allocation5 + $0x38] sm:$0xff]
    %v153 = vld [vmem:[#allocation5 + $0x40] sm:$0xff]
    %v154 = vld [vmem:[#allocation5 + $0x48] sm:$0xff]
    %v155 = vld [vmem:[#allocation5 + $0x50] sm:$0xff]
    %v156 = vld [vmem:[#allocation5 + $0x58] sm:$0xff]
    %v157 = vld [vmem:[#allocation5 + $0x60] sm:$0xff]
    %v158 = vld [vmem:[#allocation5 + $0x68] sm:$0xff]
    %v159 = vld [vmem:[#allocation5 + $0x70] sm:$0xff]
    %v160 = vld [vmem:[#allocation5 + $0x78] sm:$0xff]
    %v161 = vld [vmem:[#allocation5 + $0x80] sm:$0xff]
    %v162 = vld [vmem:[#allocation5 + $0x88] sm:$0xff]
    %v163 = vld [vmem:[#allocation5 + $0x90] sm:$0xff]
    %v164 = vld [vmem:[#allocation5 + $0x98] sm:$0xff]
    %v165 = vld [vmem:[#allocation5 + $0xa0] sm:$0xff]
    %v166 = vld [vmem:[#allocation5 + $0xa8] sm:$0xff]
    %v167 = vld [vmem:[#allocation5 + $0xb0] sm:$0xff]
    %v168 = vld [vmem:[#allocation5 + $0xb8] sm:$0xff]
    %v169 = vld [vmem:[#allocation5 + $0xc0] sm:$0xff]
    %v170 = vld [vmem:[#allocation5 + $0xc8] sm:$0xff]
    %v171 = vld [vmem:[#allocation5 + $0xd0] sm:$0xff]
    %v172 = vld [vmem:[#allocation5 + $0xd8] sm:$0xff]
    %v173 = vld [vmem:[#allocation5 + $0xe0] sm:$0xff]
    %v174 = vld [vmem:[#allocation5 + $0xe8] sm:$0xff]
    %v175 = vld [vmem:[#allocation5 + $0xf0] sm:$0xff]
    %v176 = vld [vmem:[#allocation5 + $0xf8] sm:$0xff]
    %v177 = vld [vmem:[%s3] sm:$0xf]
    %v179 = vlaneseq
    %v180 = vshrl.u32 %v179, 7
    %v181 = vsub.s32 0, %v180
    %v182 = vrot.slane %v177, %v181
    %v183 = vlaneseq
    %v184 = vshrl.u32 %v183, 7
    %v185 = vsub.s32 1, %v184
    %v186 = vrot.slane %v177, %v185
    %v187 = vlaneseq
    %v188 = vshrl.u32 %v187, 7
    %v189 = vsub.s32 2, %v188
    %v190 = vrot.slane %v177, %v189
    %v191 = vlaneseq
    %v192 = vshrl.u32 %v191, 7
    %v193 = vsub.s32 3, %v192
    %v194 = vrot.slane %v177, %v193
    %v207 = vunpack.c.l.b16 %v137
    %v208 = vunpack.c.l.b16 %v138
    %v209 = vunpack.c.l.b16 %v139
    %v210 = vunpack.c.l.b16 %v140
    %v211 = vunpack.c.l.b16 %v141
    %v212 = vunpack.c.l.b16 %v142
    %v213 = vunpack.c.l.b16 %v143
    %v214 = vunpack.c.l.b16 %v144
    %v215 = vpack.c.b16 %v208, %v207
    %v216 = vpack.c.b16 %v210, %v209
    %v217 = vpack.c.b16 %v212, %v211
    %v218 = vpack.c.b16 %v214, %v213
    %v255 = vunpack.c.l.b16 %v145
    %v256 = vunpack.c.h.b16 %v145
    %v257 = vunpack.c.l.b16 %v146
    %v258 = vunpack.c.h.b16 %v146
    %v259 = vunpack.c.l.b16 %v147
    %v260 = vunpack.c.h.b16 %v147
    %v261 = vunpack.c.l.b16 %v148
    %v262 = vunpack.c.h.b16 %v148
    %v263 = vunpack.c.l.b16 %v149
    %v264 = vunpack.c.h.b16 %v149
    %v265 = vunpack.c.l.b16 %v150
    %v266 = vunpack.c.h.b16 %v150
    %v267 = vunpack.c.l.b16 %v151
    %v268 = vunpack.c.h.b16 %v151
    %v269 = vunpack.c.l.b16 %v152
    %v270 = vunpack.c.h.b16 %v152
    %v271 = vunpack.c.l.b16 %v153
    %v272 = vunpack.c.h.b16 %v153
    %v273 = vunpack.c.l.b16 %v154
    %v274 = vunpack.c.h.b16 %v154
    %v275 = vunpack.c.l.b16 %v155
    %v276 = vunpack.c.h.b16 %v155
    %v277 = vunpack.c.l.b16 %v156
    %v278 = vunpack.c.h.b16 %v156
    %v279 = vunpack.c.l.b16 %v157
    %v280 = vunpack.c.h.b16 %v157
    %v281 = vunpack.c.l.b16 %v158
    %v282 = vunpack.c.h.b16 %v158
    %v283 = vunpack.c.l.b16 %v159
    %v284 = vunpack.c.h.b16 %v159
    %v285 = vunpack.c.l.b16 %v160
    %v286 = vunpack.c.h.b16 %v160
    %v287 = vunpack.c.l.b16 %v161
    %v288 = vunpack.c.h.b16 %v161
    %v289 = vunpack.c.l.b16 %v162
    %v290 = vunpack.c.h.b16 %v162
    %v291 = vunpack.c.l.b16 %v163
    %v292 = vunpack.c.h.b16 %v163
    %v293 = vunpack.c.l.b16 %v164
    %v294 = vunpack.c.h.b16 %v164
    %v295 = vunpack.c.l.b16 %v165
    %v296 = vunpack.c.h.b16 %v165
    %v297 = vunpack.c.l.b16 %v166
    %v298 = vunpack.c.h.b16 %v166
    %v299 = vunpack.c.l.b16 %v167
    %v300 = vunpack.c.h.b16 %v167
    %v301 = vunpack.c.l.b16 %v168
    %v302 = vunpack.c.h.b16 %v168
    %v303 = vunpack.c.l.b16 %v169
    %v304 = vunpack.c.h.b16 %v169
    %v305 = vunpack.c.l.b16 %v170
    %v306 = vunpack.c.h.b16 %v170
    %v307 = vunpack.c.l.b16 %v171
    %v308 = vunpack.c.h.b16 %v171
    %v309 = vunpack.c.l.b16 %v172
    %v310 = vunpack.c.h.b16 %v172
    %v311 = vunpack.c.l.b16 %v173
    %v312 = vunpack.c.h.b16 %v173
    %v313 = vunpack.c.l.b16 %v174
    %v314 = vunpack.c.h.b16 %v174
    %v315 = vunpack.c.l.b16 %v175
    %v316 = vunpack.c.h.b16 %v175
    %v317 = vunpack.c.l.b16 %v176
    %v318 = vunpack.c.h.b16 %v176
    %v319 = vpack.c.b16 %v259, %v255
    %v320 = vpack.c.b16 %v260, %v256
    %v321 = vpack.c.b16 %v261, %v257
    %v322 = vpack.c.b16 %v262, %v258
    %v323 = vpack.c.b16 %v267, %v263
    %v324 = vpack.c.b16 %v268, %v264
    %v325 = vpack.c.b16 %v269, %v265
    %v326 = vpack.c.b16 %v270, %v266
    %v327 = vpack.c.b16 %v275, %v271
    %v328 = vpack.c.b16 %v276, %v272
    %v329 = vpack.c.b16 %v277, %v273
    %v330 = vpack.c.b16 %v278, %v274
    %v331 = vpack.c.b16 %v283, %v279
    %v332 = vpack.c.b16 %v284, %v280
    %v333 = vpack.c.b16 %v285, %v281
    %v334 = vpack.c.b16 %v286, %v282
    %v335 = vpack.c.b16 %v291, %v287
    %v336 = vpack.c.b16 %v292, %v288
    %v337 = vpack.c.b16 %v293, %v289
    %v338 = vpack.c.b16 %v294, %v290
    %v339 = vpack.c.b16 %v299, %v295
    %v340 = vpack.c.b16 %v300, %v296
    %v341 = vpack.c.b16 %v301, %v297
    %v342 = vpack.c.b16 %v302, %v298
    %v343 = vpack.c.b16 %v307, %v303
    %v344 = vpack.c.b16 %v308, %v304
    %v345 = vpack.c.b16 %v309, %v305
    %v346 = vpack.c.b16 %v310, %v306
    %v347 = vpack.c.b16 %v315, %v311
    %v348 = vpack.c.b16 %v316, %v312
    %v349 = vpack.c.b16 %v317, %v313
    %v350 = vpack.c.b16 %v318, %v314
    %383 = vmatprep.subr.bf16.mxu0 %v348
    %384 = vmatpush1.bf16.msra.mxu0 %v347
    %385 = vmatprep.subr.bf16.mxu0 %v344
    %386 = vmatpush1.bf16.msra.mxu0 %v343
    %387 = vmatprep.subr.bf16.mxu0 %v340
    %388 = vmatpush1.bf16.msra.mxu0 %v339
    %389 = vmatprep.subr.bf16.mxu0 %v336
    %390 = vmatpush1.bf16.msra.mxu0 %v335
    %391 = vmatprep.subr.bf16.mxu0 %v332
    %392 = vmatpush1.bf16.msra.mxu0 %v331
    %393 = vmatprep.subr.bf16.mxu0 %v328
    %394 = vmatpush1.bf16.msra.mxu0 %v327
    %395 = vmatprep.subr.bf16.mxu0 %v324
    %396 = vmatpush1.bf16.msra.mxu0 %v323
    %397 = vmatprep.subr.bf16.mxu0 %v320
    %398 = vmatpush1.bf16.msra.mxu0 %v319
    %399 = vmatprep.subr.bf16.mxu0 0
    %400 = vmatpush2.bf16.msra.mxu0 0
    %401 = vmatprep.subr.bf16.mxu0 0
    %402 = vmatpush2.bf16.msra.mxu0 0
    %403 = vmatprep.subr.bf16.mxu0 0
    %404 = vmatpush2.bf16.msra.mxu0 0
    %405 = vmatprep.subr.bf16.mxu0 0
    %406 = vmatpush2.bf16.msra.mxu0 0
    %407 = vmatprep.subr.bf16.mxu0 0
    %408 = vmatpush2.bf16.msra.mxu0 0
    %409 = vmatprep.subr.bf16.mxu0 0
    %410 = vmatpush2.bf16.msra.mxu0 0
    %411 = vmatprep.subr.bf16.mxu0 0
    %412 = vmatpush2.bf16.msra.mxu0 0
    %413 = vmatprep.subr.bf16.mxu0 0
    %414 = vmatpush2.bf16.msra.mxu0 0
    %415 = vmatprep.mubr.bf16.mxu0 0
    %416 = vmatmul.mubr.bf16.gmra.mxu0 %v215
    %v417 = vpop.f32.mrf.mxu0
    %v418 = vadd.f32 %v182, %v417
    %v419 = vpop.f32.mrf.mxu0
    %v420 = vadd.f32 %v186, %v419
    %v421 = vpop.f32.mrf.mxu0
    %v422 = vadd.f32 %v182, %v421
    %v423 = vpop.f32.mrf.mxu0
    %v424 = vadd.f32 %v186, %v423
    %425 = vmatprep.mubr.bf16.mxu0 0
    %426 = vmatmul.mubr.bf16.gmra.mxu0 %v216
    %v427 = vpop.f32.mrf.mxu0
    %v428 = vadd.f32 %v182, %v427
    %v429 = vpop.f32.mrf.mxu0
    %v430 = vadd.f32 %v186, %v429
    %v431 = vpop.f32.mrf.mxu0
    %v432 = vadd.f32 %v182, %v431
    %v433 = vpop.f32.mrf.mxu0
    %v434 = vadd.f32 %v186, %v433
    %435 = vmatprep.mubr.bf16.mxu0 0
    %436 = vmatmul.mubr.bf16.gmra.mxu0 %v217
    %v437 = vpop.f32.mrf.mxu0
    %v438 = vadd.f32 %v182, %v437
    %v439 = vpop.f32.mrf.mxu0
    %v440 = vadd.f32 %v186, %v439
    %v441 = vpop.f32.mrf.mxu0
    %v442 = vadd.f32 %v182, %v441
    %v443 = vpop.f32.mrf.mxu0
    %v444 = vadd.f32 %v186, %v443
    %445 = vmatprep.mubr.bf16.mxu0 0
    %446 = vmatmul.mubr.bf16.gmra.mxu0 %v218
    %v447 = vpop.f32.mrf.mxu0
    %v448 = vadd.f32 %v182, %v447
    %v449 = vpop.f32.mrf.mxu0
    %v450 = vadd.f32 %v186, %v449
    %v451 = vpop.f32.mrf.mxu0
    %v452 = vadd.f32 %v182, %v451
    %v453 = vpop.f32.mrf.mxu0
    %v454 = vadd.f32 %v186, %v453
    %455 = vdwg.mxu0
    %456 = vmatprep.subr.bf16.mxu0 %v350
    %457 = vmatpush1.bf16.msra.mxu0 %v349
    %458 = vmatprep.subr.bf16.mxu0 %v346
    %459 = vmatpush1.bf16.msra.mxu0 %v345
    %460 = vmatprep.subr.bf16.mxu0 %v342
    %461 = vmatpush1.bf16.msra.mxu0 %v341
    %462 = vmatprep.subr.bf16.mxu0 %v338
    %463 = vmatpush1.bf16.msra.mxu0 %v337
    %464 = vmatprep.subr.bf16.mxu0 %v334
    %465 = vmatpush1.bf16.msra.mxu0 %v333
    %466 = vmatprep.subr.bf16.mxu0 %v330
    %467 = vmatpush1.bf16.msra.mxu0 %v329
    %468 = vmatprep.subr.bf16.mxu0 %v326
    %469 = vmatpush1.bf16.msra.mxu0 %v325
    %470 = vmatprep.subr.bf16.mxu0 %v322
    %471 = vmatpush1.bf16.msra.mxu0 %v321
    %472 = vmatprep.subr.bf16.mxu0 0
    %473 = vmatpush2.bf16.msra.mxu0 0
    %474 = vmatprep.subr.bf16.mxu0 0
    %475 = vmatpush2.bf16.msra.mxu0 0
    %476 = vmatprep.subr.bf16.mxu0 0
    %477 = vmatpush2.bf16.msra.mxu0 0
    %478 = vmatprep.subr.bf16.mxu0 0
    %479 = vmatpush2.bf16.msra.mxu0 0
    %480 = vmatprep.subr.bf16.mxu0 0
    %481 = vmatpush2.bf16.msra.mxu0 0
    %482 = vmatprep.subr.bf16.mxu0 0
    %483 = vmatpush2.bf16.msra.mxu0 0
    %484 = vmatprep.subr.bf16.mxu0 0
    %485 = vmatpush2.bf16.msra.mxu0 0
    %486 = vmatprep.subr.bf16.mxu0 0
    %487 = vmatpush2.bf16.msra.mxu0 0
    %488 = vmatprep.mubr.bf16.mxu0 0
    %489 = vmatmul.mubr.bf16.gmra.mxu0 %v215
    %v490 = vpop.f32.mrf.mxu0
    %v491 = vadd.f32 %v190, %v490
    %v492 = vpop.f32.mrf.mxu0
    %v493 = vadd.f32 %v194, %v492
    %v494 = vpop.f32.mrf.mxu0
    %v495 = vadd.f32 %v190, %v494
    %v496 = vpop.f32.mrf.mxu0
    %v497 = vadd.f32 %v194, %v496
    %498 = vmatprep.mubr.bf16.mxu0 0
    %499 = vmatmul.mubr.bf16.gmra.mxu0 %v216
    %v500 = vpop.f32.mrf.mxu0
    %v501 = vadd.f32 %v190, %v500
    %v502 = vpop.f32.mrf.mxu0
    %v503 = vadd.f32 %v194, %v502
    %v504 = vpop.f32.mrf.mxu0
    %v505 = vadd.f32 %v190, %v504
    %v506 = vpop.f32.mrf.mxu0
    %v507 = vadd.f32 %v194, %v506
    %508 = vmatprep.mubr.bf16.mxu0 0
    %509 = vmatmul.mubr.bf16.gmra.mxu0 %v217
    %v510 = vpop.f32.mrf.mxu0
    %v511 = vadd.f32 %v190, %v510
    %v512 = vpop.f32.mrf.mxu0
    %v513 = vadd.f32 %v194, %v512
    %v514 = vpop.f32.mrf.mxu0
    %v515 = vadd.f32 %v190, %v514
    %v516 = vpop.f32.mrf.mxu0
    %v517 = vadd.f32 %v194, %v516
    %518 = vmatprep.mubr.bf16.mxu0 0
    %519 = vmatmul.mubr.bf16.gmra.mxu0 %v218
    %v520 = vpop.f32.mrf.mxu0
    %v521 = vadd.f32 %v190, %v520
    %v522 = vpop.f32.mrf.mxu0
    %v523 = vadd.f32 %v194, %v522
    %v524 = vpop.f32.mrf.mxu0
    %v525 = vadd.f32 %v190, %v524
    %v526 = vpop.f32.mrf.mxu0
    %v527 = vadd.f32 %v194, %v526
    %528 = vdwg.mxu0
    %529 = vst [vmem:[#allocation4] sm:$0xff] %v418
    %530 = vst [vmem:[#allocation4 + $0x8] sm:$0xff] %v420
    %531 = vst [vmem:[#allocation4 + $0x10] sm:$0xff] %v491
    %532 = vst [vmem:[#allocation4 + $0x18] sm:$0xff] %v493
    %533 = vst [vmem:[#allocation4 + $0x20] sm:$0xff] %v422
    %534 = vst [vmem:[#allocation4 + $0x28] sm:$0xff] %v424
    %535 = vst [vmem:[#allocation4 + $0x30] sm:$0xff] %v495
    %536 = vst [vmem:[#allocation4 + $0x38] sm:$0xff] %v497
    %537 = vst [vmem:[#allocation4 + $0x40] sm:$0xff] %v428
    %538 = vst [vmem:[#allocation4 + $0x48] sm:$0xff] %v430
    %539 = vst [vmem:[#allocation4 + $0x50] sm:$0xff] %v501
    %540 = vst [vmem:[#allocation4 + $0x58] sm:$0xff] %v503
    %541 = vst [vmem:[#allocation4 + $0x60] sm:$0xff] %v432
    %542 = vst [vmem:[#allocation4 + $0x68] sm:$0xff] %v434
    %543 = vst [vmem:[#allocation4 + $0x70] sm:$0xff] %v505
    %544 = vst [vmem:[#allocation4 + $0x78] sm:$0xff] %v507
    %545 = vst [vmem:[#allocation4 + $0x80] sm:$0xff] %v438
    %546 = vst [vmem:[#allocation4 + $0x88] sm:$0xff] %v440
    %547 = vst [vmem:[#allocation4 + $0x90] sm:$0xff] %v511
    %548 = vst [vmem:[#allocation4 + $0x98] sm:$0xff] %v513
    %549 = vst [vmem:[#allocation4 + $0xa0] sm:$0xff] %v442
    %550 = vst [vmem:[#allocation4 + $0xa8] sm:$0xff] %v444
    %551 = vst [vmem:[#allocation4 + $0xb0] sm:$0xff] %v515
    %552 = vst [vmem:[#allocation4 + $0xb8] sm:$0xff] %v517
    %553 = vst [vmem:[#allocation4 + $0xc0] sm:$0xff] %v448
    %554 = vst [vmem:[#allocation4 + $0xc8] sm:$0xff] %v450
    %555 = vst [vmem:[#allocation4 + $0xd0] sm:$0xff] %v521
    %556 = vst [vmem:[#allocation4 + $0xd8] sm:$0xff] %v523
    %557 = vst [vmem:[#allocation4 + $0xe0] sm:$0xff] %v452
    %558 = vst [vmem:[#allocation4 + $0xe8] sm:$0xff] %v454
    %559 = vst [vmem:[#allocation4 + $0xf0] sm:$0xff] %v525
    %560 = vst [vmem:[#allocation4 + $0xf8] sm:$0xff] %v527
    %v561 = vld [vmem:[#allocation4] sm:$0xff]
    %v562 = vld [vmem:[#allocation4 + $0x8] sm:$0xff]
    %v563 = vld [vmem:[#allocation4 + $0x10] sm:$0xff]
    %v564 = vld [vmem:[#allocation4 + $0x18] sm:$0xff]
    %v565 = vld [vmem:[#allocation7] sm:$0xff]
    %v566 = vld [vmem:[#allocation7 + $0x8] sm:$0xff]
    %v567 = vld [vmem:[#allocation7 + $0x10] sm:$0xff]
    %v568 = vld [vmem:[#allocation7 + $0x18] sm:$0xff]
    %v569 = vld [vmem:[#allocation7 + $0x20] sm:$0xff]
    %v570 = vld [vmem:[#allocation7 + $0x28] sm:$0xff]
    %v571 = vld [vmem:[#allocation7 + $0x30] sm:$0xff]
    %v572 = vld [vmem:[#allocation7 + $0x38] sm:$0xff]
    %v573 = vld [vmem:[#allocation7 + $0x40] sm:$0xff]
    %v574 = vld [vmem:[#allocation7 + $0x48] sm:$0xff]
    %v575 = vld [vmem:[#allocation7 + $0x50] sm:$0xff]
    %v576 = vld [vmem:[#allocation7 + $0x58] sm:$0xff]
    %v577 = vld [vmem:[#allocation7 + $0x60] sm:$0xff]
    %v578 = vld [vmem:[#allocation7 + $0x68] sm:$0xff]
    %v579 = vld [vmem:[#allocation7 + $0x70] sm:$0xff]
    %v580 = vld [vmem:[#allocation7 + $0x78] sm:$0xff]
    %v581 = vld [vmem:[#allocation7 + $0x80] sm:$0xff]
    %v582 = vld [vmem:[#allocation7 + $0x88] sm:$0xff]
    %v583 = vld [vmem:[#allocation7 + $0x90] sm:$0xff]
    %v584 = vld [vmem:[#allocation7 + $0x98] sm:$0xff]
    %v585 = vld [vmem:[#allocation7 + $0xa0] sm:$0xff]
    %v586 = vld [vmem:[#allocation7 + $0xa8] sm:$0xff]
    %v587 = vld [vmem:[#allocation7 + $0xb0] sm:$0xff]
    %v588 = vld [vmem:[#allocation7 + $0xb8] sm:$0xff]
    %v589 = vld [vmem:[#allocation7 + $0xc0] sm:$0xff]
    %v590 = vld [vmem:[#allocation7 + $0xc8] sm:$0xff]
    %v591 = vld [vmem:[#allocation7 + $0xd0] sm:$0xff]
    %v592 = vld [vmem:[#allocation7 + $0xd8] sm:$0xff]
    %v593 = vld [vmem:[#allocation7 + $0xe0] sm:$0xff]
    %v594 = vld [vmem:[#allocation7 + $0xe8] sm:$0xff]
    %v595 = vld [vmem:[#allocation7 + $0xf0] sm:$0xff]
    %v596 = vld [vmem:[#allocation7 + $0xf8] sm:$0xff]
    %v629 = vunpack.c.l.b16 %v565
    %v630 = vunpack.c.h.b16 %v565
    %v631 = vunpack.c.l.b16 %v566
    %v632 = vunpack.c.h.b16 %v566
    %v633 = vunpack.c.l.b16 %v567
    %v634 = vunpack.c.h.b16 %v567
    %v635 = vunpack.c.l.b16 %v568
    %v636 = vunpack.c.h.b16 %v568
    %v637 = vunpack.c.l.b16 %v569
    %v638 = vunpack.c.h.b16 %v569
    %v639 = vunpack.c.l.b16 %v570
    %v640 = vunpack.c.h.b16 %v570
    %v641 = vunpack.c.l.b16 %v571
    %v642 = vunpack.c.h.b16 %v571
    %v643 = vunpack.c.l.b16 %v572
    %v644 = vunpack.c.h.b16 %v572
    %v645 = vunpack.c.l.b16 %v573
    %v646 = vunpack.c.h.b16 %v573
    %v647 = vunpack.c.l.b16 %v574
    %v648 = vunpack.c.h.b16 %v574
    %v649 = vunpack.c.l.b16 %v575
    %v650 = vunpack.c.h.b16 %v575
    %v651 = vunpack.c.l.b16 %v576
    %v652 = vunpack.c.h.b16 %v576
    %v653 = vunpack.c.l.b16 %v577
    %v654 = vunpack.c.h.b16 %v577
    %v655 = vunpack.c.l.b16 %v578
    %v656 = vunpack.c.h.b16 %v578
    %v657 = vunpack.c.l.b16 %v579
    %v658 = vunpack.c.h.b16 %v579
    %v659 = vunpack.c.l.b16 %v580
    %v660 = vunpack.c.h.b16 %v580
    %v661 = vunpack.c.l.b16 %v581
    %v662 = vunpack.c.h.b16 %v581
    %v663 = vunpack.c.l.b16 %v582
    %v664 = vunpack.c.h.b16 %v582
    %v665 = vunpack.c.l.b16 %v583
    %v666 = vunpack.c.h.b16 %v583
    %v667 = vunpack.c.l.b16 %v584
    %v668 = vunpack.c.h.b16 %v584
    %v669 = vunpack.c.l.b16 %v585
    %v670 = vunpack.c.h.b16 %v585
    %v671 = vunpack.c.l.b16 %v586
    %v672 = vunpack.c.h.b16 %v586
    %v673 = vunpack.c.l.b16 %v587
    %v674 = vunpack.c.h.b16 %v587
    %v675 = vunpack.c.l.b16 %v588
    %v676 = vunpack.c.h.b16 %v588
    %v677 = vunpack.c.l.b16 %v589
    %v678 = vunpack.c.h.b16 %v589
    %v679 = vunpack.c.l.b16 %v590
    %v680 = vunpack.c.h.b16 %v590
    %v681 = vunpack.c.l.b16 %v591
    %v682 = vunpack.c.h.b16 %v591
    %v683 = vunpack.c.l.b16 %v592
    %v684 = vunpack.c.h.b16 %v592
    %v685 = vunpack.c.l.b16 %v593
    %v686 = vunpack.c.h.b16 %v593
    %v687 = vunpack.c.l.b16 %v594
    %v688 = vunpack.c.h.b16 %v594
    %v689 = vunpack.c.l.b16 %v595
    %v690 = vunpack.c.h.b16 %v595
    %v691 = vunpack.c.l.b16 %v596
    %v692 = vunpack.c.h.b16 %v596
    %v693 = vpack.c.b16 %v633, %v629
    %v694 = vpack.c.b16 %v634, %v630
    %v695 = vpack.c.b16 %v635, %v631
    %v696 = vpack.c.b16 %v636, %v632
    %v697 = vpack.c.b16 %v641, %v637
    %v698 = vpack.c.b16 %v642, %v638
    %v699 = vpack.c.b16 %v643, %v639
    %v700 = vpack.c.b16 %v644, %v640
    %v701 = vpack.c.b16 %v649, %v645
    %v702 = vpack.c.b16 %v650, %v646
    %v703 = vpack.c.b16 %v651, %v647
    %v704 = vpack.c.b16 %v652, %v648
    %v705 = vpack.c.b16 %v657, %v653
    %v706 = vpack.c.b16 %v658, %v654
    %v707 = vpack.c.b16 %v659, %v655
    %v708 = vpack.c.b16 %v660, %v656
    %v709 = vpack.c.b16 %v665, %v661
    %v710 = vpack.c.b16 %v666, %v662
    %v711 = vpack.c.b16 %v667, %v663
    %v712 = vpack.c.b16 %v668, %v664
    %v713 = vpack.c.b16 %v673, %v669
    %v714 = vpack.c.b16 %v674, %v670
    %v715 = vpack.c.b16 %v675, %v671
    %v716 = vpack.c.b16 %v676, %v672
    %v717 = vpack.c.b16 %v681, %v677
    %v718 = vpack.c.b16 %v682, %v678
    %v719 = vpack.c.b16 %v683, %v679
    %v720 = vpack.c.b16 %v684, %v680
    %v721 = vpack.c.b16 %v689, %v685
    %v722 = vpack.c.b16 %v690, %v686
    %v723 = vpack.c.b16 %v691, %v687
    %v724 = vpack.c.b16 %v692, %v688
    %757 = vmatprep.subr.bf16.mxu0 %v722
    %758 = vmatpush1.bf16.msra.mxu0 %v721
    %759 = vmatprep.subr.bf16.mxu0 %v718
    %760 = vmatpush1.bf16.msra.mxu0 %v717
    %761 = vmatprep.subr.bf16.mxu0 %v714
    %762 = vmatpush1.bf16.msra.mxu0 %v713
    %763 = vmatprep.subr.bf16.mxu0 %v710
    %764 = vmatpush1.bf16.msra.mxu0 %v709
    %765 = vmatprep.subr.bf16.mxu0 %v706
    %766 = vmatpush1.bf16.msra.mxu0 %v705
    %767 = vmatprep.subr.bf16.mxu0 %v702
    %768 = vmatpush1.bf16.msra.mxu0 %v701
    %769 = vmatprep.subr.bf16.mxu0 %v698
    %770 = vmatpush1.bf16.msra.mxu0 %v697
    %771 = vmatprep.subr.bf16.mxu0 %v694
    %772 = vmatpush1.bf16.msra.mxu0 %v693
    %773 = vmatprep.subr.bf16.mxu0 0
    %774 = vmatpush2.bf16.msra.mxu0 0
    %775 = vmatprep.subr.bf16.mxu0 0
    %776 = vmatpush2.bf16.msra.mxu0 0
    %777 = vmatprep.subr.bf16.mxu0 0
    %778 = vmatpush2.bf16.msra.mxu0 0
    %779 = vmatprep.subr.bf16.mxu0 0
    %780 = vmatpush2.bf16.msra.mxu0 0
    %781 = vmatprep.subr.bf16.mxu0 0
    %782 = vmatpush2.bf16.msra.mxu0 0
    %783 = vmatprep.subr.bf16.mxu0 0
    %784 = vmatpush2.bf16.msra.mxu0 0
    %785 = vmatprep.subr.bf16.mxu0 0
    %786 = vmatpush2.bf16.msra.mxu0 0
    %787 = vmatprep.subr.bf16.mxu0 0
    %788 = vmatpush2.bf16.msra.mxu0 0
    %789 = vmatprep.mubr.bf16.mxu0 0
    %790 = vmatmul.mubr.bf16.gmra.mxu0 0
    %v791 = vpop.f32.mrf.mxu0
    %v792 = vadd.f32 0.0, %v791
    %v793 = vpop.f32.mrf.mxu0
    %v794 = vadd.f32 0.0, %v793
    %v795 = vpop.f32.mrf.mxu0
    %v796 = vpop.f32.mrf.mxu0
    %797 = vdwg.mxu0
    %798 = vmatprep.subr.bf16.mxu0 %v724
    %799 = vmatpush1.bf16.msra.mxu0 %v723
    %800 = vmatprep.subr.bf16.mxu0 %v720
    %801 = vmatpush1.bf16.msra.mxu0 %v719
    %802 = vmatprep.subr.bf16.mxu0 %v716
    %803 = vmatpush1.bf16.msra.mxu0 %v715
    %804 = vmatprep.subr.bf16.mxu0 %v712
    %805 = vmatpush1.bf16.msra.mxu0 %v711
    %806 = vmatprep.subr.bf16.mxu0 %v708
    %807 = vmatpush1.bf16.msra.mxu0 %v707
    %808 = vmatprep.subr.bf16.mxu0 %v704
    %809 = vmatpush1.bf16.msra.mxu0 %v703
    %810 = vmatprep.subr.bf16.mxu0 %v700
    %811 = vmatpush1.bf16.msra.mxu0 %v699
    %812 = vmatprep.subr.bf16.mxu0 %v696
    %813 = vmatpush1.bf16.msra.mxu0 %v695
    %814 = vmatprep.subr.bf16.mxu0 0
    %815 = vmatpush2.bf16.msra.mxu0 0
    %816 = vmatprep.subr.bf16.mxu0 0
    %817 = vmatpush2.bf16.msra.mxu0 0
    %818 = vmatprep.subr.bf16.mxu0 0
    %819 = vmatpush2.bf16.msra.mxu0 0
    %820 = vmatprep.subr.bf16.mxu0 0
    %821 = vmatpush2.bf16.msra.mxu0 0
    %822 = vmatprep.subr.bf16.mxu0 0
    %823 = vmatpush2.bf16.msra.mxu0 0
    %824 = vmatprep.subr.bf16.mxu0 0
    %825 = vmatpush2.bf16.msra.mxu0 0
    %826 = vmatprep.subr.bf16.mxu0 0
    %827 = vmatpush2.bf16.msra.mxu0 0
    %828 = vmatprep.subr.bf16.mxu0 0
    %829 = vmatpush2.bf16.msra.mxu0 0
    %830 = vmatprep.mubr.bf16.mxu0 0
    %831 = vmatmul.mubr.bf16.gmra.mxu0 0
    %v832 = vpop.f32.mrf.mxu0
    %v833 = vadd.f32 0.0, %v832
    %v834 = vpop.f32.mrf.mxu0
    %v835 = vadd.f32 0.0, %v834
    %v836 = vpop.f32.mrf.mxu0
    %v837 = vpop.f32.mrf.mxu0
    %838 = vdwg.mxu0
    %v839 = vadd.f32 %v561, %v792
    %v840 = vadd.f32 %v562, %v794
    %v841 = vadd.f32 %v563, %v833
    %v842 = vadd.f32 %v564, %v835
    %v843 = vmul.f32 %v839, 0.5
    %v844 = vtanh.pop %v843
    %v845 = vmul.f32 %v844, 0.5
    %v846 = vadd.f32 %v845, 0.5
    %v847 = vmul.f32 %v840, 0.5
    %v848 = vtanh.pop %v847
    %v849 = vmul.f32 %v848, 0.5
    %v850 = vadd.f32 %v849, 0.5
    %v851 = vtanh.pop %v841
    %v852 = vmul.f32 %v842, 0.5
    %v853 = vtanh.pop %v852
    %v854 = vmul.f32 %v853, 0.5
    %v855 = vadd.f32 %v854, 0.5
    %v856 = vmul.f32 %v850, 0.0
    %v857 = vmul.f32 %v846, %v851
    %v858 = vadd.f32 %v856, %v857
    %v859 = vtanh.pop %v858
    %v860 = vmul.f32 %v855, %v859
    %v861 = vpack.c.bf16 %v860, %v860
    %862 = vst [vmem:[#allocation2] sm:$0xff] %v860
    %v863 = vld [vmem:[#allocation4 + $0x20] sm:$0xff]
    %v864 = vld [vmem:[#allocation4 + $0x28] sm:$0xff]
    %v865 = vld [vmem:[#allocation4 + $0x30] sm:$0xff]
    %v866 = vld [vmem:[#allocation4 + $0x38] sm:$0xff]
    %v867 = vld [vmem:[#allocation7] sm:$0xff]
    %v868 = vld [vmem:[#allocation7 + $0x8] sm:$0xff]
    %v869 = vld [vmem:[#allocation7 + $0x10] sm:$0xff]
    %v870 = vld [vmem:[#allocation7 + $0x18] sm:$0xff]
    %v871 = vld [vmem:[#allocation7 + $0x20] sm:$0xff]
    %v872 = vld [vmem:[#allocation7 + $0x28] sm:$0xff]
    %v873 = vld [vmem:[#allocation7 + $0x30] sm:$0xff]
    %v874 = vld [vmem:[#allocation7 + $0x38] sm:$0xff]
    %v875 = vld [vmem:[#allocation7 + $0x40] sm:$0xff]
    %v876 = vld [vmem:[#allocation7 + $0x48] sm:$0xff]
    %v877 = vld [vmem:[#allocation7 + $0x50] sm:$0xff]
    %v878 = vld [vmem:[#allocation7 + $0x58] sm:$0xff]
    %v879 = vld [vmem:[#allocation7 + $0x60] sm:$0xff]
    %v880 = vld [vmem:[#allocation7 + $0x68] sm:$0xff]
    %v881 = vld [vmem:[#allocation7 + $0x70] sm:$0xff]
    %v882 = vld [vmem:[#allocation7 + $0x78] sm:$0xff]
    %v883 = vld [vmem:[#allocation7 + $0x80] sm:$0xff]
    %v884 = vld [vmem:[#allocation7 + $0x88] sm:$0xff]
    %v885 = vld [vmem:[#allocation7 + $0x90] sm:$0xff]
    %v886 = vld [vmem:[#allocation7 + $0x98] sm:$0xff]
    %v887 = vld [vmem:[#allocation7 + $0xa0] sm:$0xff]
    %v888 = vld [vmem:[#allocation7 + $0xa8] sm:$0xff]
    %v889 = vld [vmem:[#allocation7 + $0xb0] sm:$0xff]
    %v890 = vld [vmem:[#allocation7 + $0xb8] sm:$0xff]
    %v891 = vld [vmem:[#allocation7 + $0xc0] sm:$0xff]
    %v892 = vld [vmem:[#allocation7 + $0xc8] sm:$0xff]
    %v893 = vld [vmem:[#allocation7 + $0xd0] sm:$0xff]
    %v894 = vld [vmem:[#allocation7 + $0xd8] sm:$0xff]
    %v895 = vld [vmem:[#allocation7 + $0xe0] sm:$0xff]
    %v896 = vld [vmem:[#allocation7 + $0xe8] sm:$0xff]
    %v897 = vld [vmem:[#allocation7 + $0xf0] sm:$0xff]
    %v898 = vld [vmem:[#allocation7 + $0xf8] sm:$0xff]
    %v931 = vunpack.c.l.b16 %v867
    %v932 = vunpack.c.h.b16 %v867
    %v933 = vunpack.c.l.b16 %v868
    %v934 = vunpack.c.h.b16 %v868
    %v935 = vunpack.c.l.b16 %v869
    %v936 = vunpack.c.h.b16 %v869
    %v937 = vunpack.c.l.b16 %v870
    %v938 = vunpack.c.h.b16 %v870
    %v939 = vunpack.c.l.b16 %v871
    %v940 = vunpack.c.h.b16 %v871
    %v941 = vunpack.c.l.b16 %v872
    %v942 = vunpack.c.h.b16 %v872
    %v943 = vunpack.c.l.b16 %v873
    %v944 = vunpack.c.h.b16 %v873
    %v945 = vunpack.c.l.b16 %v874
    %v946 = vunpack.c.h.b16 %v874
    %v947 = vunpack.c.l.b16 %v875
    %v948 = vunpack.c.h.b16 %v875
    %v949 = vunpack.c.l.b16 %v876
    %v950 = vunpack.c.h.b16 %v876
    %v951 = vunpack.c.l.b16 %v877
    %v952 = vunpack.c.h.b16 %v877
    %v953 = vunpack.c.l.b16 %v878
    %v954 = vunpack.c.h.b16 %v878
    %v955 = vunpack.c.l.b16 %v879
    %v956 = vunpack.c.h.b16 %v879
    %v957 = vunpack.c.l.b16 %v880
    %v958 = vunpack.c.h.b16 %v880
    %v959 = vunpack.c.l.b16 %v881
    %v960 = vunpack.c.h.b16 %v881
    %v961 = vunpack.c.l.b16 %v882
    %v962 = vunpack.c.h.b16 %v882
    %v963 = vunpack.c.l.b16 %v883
    %v964 = vunpack.c.h.b16 %v883
    %v965 = vunpack.c.l.b16 %v884
    %v966 = vunpack.c.h.b16 %v884
    %v967 = vunpack.c.l.b16 %v885
    %v968 = vunpack.c.h.b16 %v885
    %v969 = vunpack.c.l.b16 %v886
    %v970 = vunpack.c.h.b16 %v886
    %v971 = vunpack.c.l.b16 %v887
    %v972 = vunpack.c.h.b16 %v887
    %v973 = vunpack.c.l.b16 %v888
    %v974 = vunpack.c.h.b16 %v888
    %v975 = vunpack.c.l.b16 %v889
    %v976 = vunpack.c.h.b16 %v889
    %v977 = vunpack.c.l.b16 %v890
    %v978 = vunpack.c.h.b16 %v890
    %v979 = vunpack.c.l.b16 %v891
    %v980 = vunpack.c.h.b16 %v891
    %v981 = vunpack.c.l.b16 %v892
    %v982 = vunpack.c.h.b16 %v892
    %v983 = vunpack.c.l.b16 %v893
    %v984 = vunpack.c.h.b16 %v893
    %v985 = vunpack.c.l.b16 %v894
    %v986 = vunpack.c.h.b16 %v894
    %v987 = vunpack.c.l.b16 %v895
    %v988 = vunpack.c.h.b16 %v895
    %v989 = vunpack.c.l.b16 %v896
    %v990 = vunpack.c.h.b16 %v896
    %v991 = vunpack.c.l.b16 %v897
    %v992 = vunpack.c.h.b16 %v897
    %v993 = vunpack.c.l.b16 %v898
    %v994 = vunpack.c.h.b16 %v898
    %v995 = vpack.c.b16 %v935, %v931
    %v996 = vpack.c.b16 %v936, %v932
    %v997 = vpack.c.b16 %v937, %v933
    %v998 = vpack.c.b16 %v938, %v934
    %v999 = vpack.c.b16 %v943, %v939
    %v1000 = vpack.c.b16 %v944, %v940
    %v1001 = vpack.c.b16 %v945, %v941
    %v1002 = vpack.c.b16 %v946, %v942
    %v1003 = vpack.c.b16 %v951, %v947
    %v1004 = vpack.c.b16 %v952, %v948
    %v1005 = vpack.c.b16 %v953, %v949
    %v1006 = vpack.c.b16 %v954, %v950
    %v1007 = vpack.c.b16 %v959, %v955
    %v1008 = vpack.c.b16 %v960, %v956
    %v1009 = vpack.c.b16 %v961, %v957
    %v1010 = vpack.c.b16 %v962, %v958
    %v1011 = vpack.c.b16 %v967, %v963
    %v1012 = vpack.c.b16 %v968, %v964
    %v1013 = vpack.c.b16 %v969, %v965
    %v1014 = vpack.c.b16 %v970, %v966
    %v1015 = vpack.c.b16 %v975, %v971
    %v1016 = vpack.c.b16 %v976, %v972
    %v1017 = vpack.c.b16 %v977, %v973
    %v1018 = vpack.c.b16 %v978, %v974
    %v1019 = vpack.c.b16 %v983, %v979
    %v1020 = vpack.c.b16 %v984, %v980
    %v1021 = vpack.c.b16 %v985, %v981
    %v1022 = vpack.c.b16 %v986, %v982
    %v1023 = vpack.c.b16 %v991, %v987
    %v1024 = vpack.c.b16 %v992, %v988
    %v1025 = vpack.c.b16 %v993, %v989
    %v1026 = vpack.c.b16 %v994, %v990
    %1059 = vmatprep.subr.bf16.mxu0 %v1024
    %1060 = vmatpush1.bf16.msra.mxu0 %v1023
    %1061 = vmatprep.subr.bf16.mxu0 %v1020
    %1062 = vmatpush1.bf16.msra.mxu0 %v1019
    %1063 = vmatprep.subr.bf16.mxu0 %v1016
    %1064 = vmatpush1.bf16.msra.mxu0 %v1015
    %1065 = vmatprep.subr.bf16.mxu0 %v1012
    %1066 = vmatpush1.bf16.msra.mxu0 %v1011
    %1067 = vmatprep.subr.bf16.mxu0 %v1008
    %1068 = vmatpush1.bf16.msra.mxu0 %v1007
    %1069 = vmatprep.subr.bf16.mxu0 %v1004
    %1070 = vmatpush1.bf16.msra.mxu0 %v1003
    %1071 = vmatprep.subr.bf16.mxu0 %v1000
    %1072 = vmatpush1.bf16.msra.mxu0 %v999
    %1073 = vmatprep.subr.bf16.mxu0 %v996
    %1074 = vmatpush1.bf16.msra.mxu0 %v995
    %1075 = vmatprep.subr.bf16.mxu0 0
    %1076 = vmatpush2.bf16.msra.mxu0 0
    %1077 = vmatprep.subr.bf16.mxu0 0
    %1078 = vmatpush2.bf16.msra.mxu0 0
    %1079 = vmatprep.subr.bf16.mxu0 0
    %1080 = vmatpush2.bf16.msra.mxu0 0
    %1081 = vmatprep.subr.bf16.mxu0 0
    %1082 = vmatpush2.bf16.msra.mxu0 0
    %1083 = vmatprep.subr.bf16.mxu0 0
    %1084 = vmatpush2.bf16.msra.mxu0 0
    %1085 = vmatprep.subr.bf16.mxu0 0
    %1086 = vmatpush2.bf16.msra.mxu0 0
    %1087 = vmatprep.subr.bf16.mxu0 0
    %1088 = vmatpush2.bf16.msra.mxu0 0
    %1089 = vmatprep.subr.bf16.mxu0 0
    %1090 = vmatpush2.bf16.msra.mxu0 0
    %1091 = vmatprep.mubr.bf16.mxu0 0
    %1092 = vmatmul.mubr.bf16.gmra.mxu0 %v861
    %v1093 = vpop.f32.mrf.mxu0
    %v1094 = vadd.f32 0.0, %v1093
    %v1095 = vpop.f32.mrf.mxu0
    %v1096 = vadd.f32 0.0, %v1095
    %v1097 = vpop.f32.mrf.mxu0
    %v1098 = vpop.f32.mrf.mxu0
    %1099 = vdwg.mxu0
    %1100 = vmatprep.subr.bf16.mxu0 %v1026
    %1101 = vmatpush1.bf16.msra.mxu0 %v1025
    %1102 = vmatprep.subr.bf16.mxu0 %v1022
    %1103 = vmatpush1.bf16.msra.mxu0 %v1021
    %1104 = vmatprep.subr.bf16.mxu0 %v1018
    %1105 = vmatpush1.bf16.msra.mxu0 %v1017
    %1106 = vmatprep.subr.bf16.mxu0 %v1014
    %1107 = vmatpush1.bf16.msra.mxu0 %v1013
    %1108 = vmatprep.subr.bf16.mxu0 %v1010
    %1109 = vmatpush1.bf16.msra.mxu0 %v1009
    %1110 = vmatprep.subr.bf16.mxu0 %v1006
    %1111 = vmatpush1.bf16.msra.mxu0 %v1005
    %1112 = vmatprep.subr.bf16.mxu0 %v1002
    %1113 = vmatpush1.bf16.msra.mxu0 %v1001
    %1114 = vmatprep.subr.bf16.mxu0 %v998
    %1115 = vmatpush1.bf16.msra.mxu0 %v997
    %1116 = vmatprep.subr.bf16.mxu0 0
    %1117 = vmatpush2.bf16.msra.mxu0 0
    %1118 = vmatprep.subr.bf16.mxu0 0
    %1119 = vmatpush2.bf16.msra.mxu0 0
    %1120 = vmatprep.subr.bf16.mxu0 0
    %1121 = vmatpush2.bf16.msra.mxu0 0
    %1122 = vmatprep.subr.bf16.mxu0 0
    %1123 = vmatpush2.bf16.msra.mxu0 0
    %1124 = vmatprep.subr.bf16.mxu0 0
    %1125 = vmatpush2.bf16.msra.mxu0 0
    %1126 = vmatprep.subr.bf16.mxu0 0
    %1127 = vmatpush2.bf16.msra.mxu0 0
    %1128 = vmatprep.subr.bf16.mxu0 0
    %1129 = vmatpush2.bf16.msra.mxu0 0
    %1130 = vmatprep.subr.bf16.mxu0 0
    %1131 = vmatpush2.bf16.msra.mxu0 0
    %1132 = vmatprep.mubr.bf16.mxu0 0
    %1133 = vmatmul.mubr.bf16.gmra.mxu0 %v861
    %v1134 = vpop.f32.mrf.mxu0
    %v1135 = vadd.f32 0.0, %v1134
    %v1136 = vpop.f32.mrf.mxu0
    %v1137 = vadd.f32 0.0, %v1136
    %v1138 = vpop.f32.mrf.mxu0
    %v1139 = vpop.f32.mrf.mxu0
    %1140 = vdwg.mxu0
    %v1141 = vadd.f32 %v863, %v1094
    %v1142 = vadd.f32 %v864, %v1096
    %v1143 = vadd.f32 %v865, %v1135
    %v1144 = vadd.f32 %v866, %v1137
    %v1145 = vmul.f32 %v1141, 0.5
    %v1146 = vtanh.pop %v1145
    %v1147 = vmul.f32 %v1146, 0.5
    %v1148 = vadd.f32 %v1147, 0.5
    %v1149 = vmul.f32 %v1142, 0.5
    %v1150 = vtanh.pop %v1149
    %v1151 = vmul.f32 %v1150, 0.5
    %v1152 = vadd.f32 %v1151, 0.5
    %v1153 = vtanh.pop %v1143
    %v1154 = vmul.f32 %v1144, 0.5
    %v1155 = vtanh.pop %v1154
    %v1156 = vmul.f32 %v1155, 0.5
    %v1157 = vadd.f32 %v1156, 0.5
    %v1158 = vmul.f32 %v1152, %v858
    %v1159 = vmul.f32 %v1148, %v1153
    %v1160 = vadd.f32 %v1158, %v1159
    %v1161 = vtanh.pop %v1160
    %v1162 = vmul.f32 %v1157, %v1161
    %v1163 = vpack.c.bf16 %v1162, %v1162
    %1164 = vst [vmem:[#allocation2 + $0x8] sm:$0xff] %v1162
    %v1165 = vld [vmem:[#allocation4 + $0x40] sm:$0xff]
    %v1166 = vld [vmem:[#allocation4 + $0x48] sm:$0xff]
    %v1167 = vld [vmem:[#allocation4 + $0x50] sm:$0xff]
    %v1168 = vld [vmem:[#allocation4 + $0x58] sm:$0xff]
    %v1169 = vld [vmem:[#allocation7] sm:$0xff]
    %v1170 = vld [vmem:[#allocation7 + $0x8] sm:$0xff]
    %v1171 = vld [vmem:[#allocation7 + $0x10] sm:$0xff]
    %v1172 = vld [vmem:[#allocation7 + $0x18] sm:$0xff]
    %v1173 = vld [vmem:[#allocation7 + $0x20] sm:$0xff]
    %v1174 = vld [vmem:[#allocation7 + $0x28] sm:$0xff]
    %v1175 = vld [vmem:[#allocation7 + $0x30] sm:$0xff]
    %v1176 = vld [vmem:[#allocation7 + $0x38] sm:$0xff]
    %v1177 = vld [vmem:[#allocation7 + $0x40] sm:$0xff]
    %v1178 = vld [vmem:[#allocation7 + $0x48] sm:$0xff]
    %v1179 = vld [vmem:[#allocation7 + $0x50] sm:$0xff]
    %v1180 = vld [vmem:[#allocation7 + $0x58] sm:$0xff]
    %v1181 = vld [vmem:[#allocation7 + $0x60] sm:$0xff]
    %v1182 = vld [vmem:[#allocation7 + $0x68] sm:$0xff]
    %v1183 = vld [vmem:[#allocation7 + $0x70] sm:$0xff]
    %v1184 = vld [vmem:[#allocation7 + $0x78] sm:$0xff]
    %v1185 = vld [vmem:[#allocation7 + $0x80] sm:$0xff]
    %v1186 = vld [vmem:[#allocation7 + $0x88] sm:$0xff]
    %v1187 = vld [vmem:[#allocation7 + $0x90] sm:$0xff]
    %v1188 = vld [vmem:[#allocation7 + $0x98] sm:$0xff]
    %v1189 = vld [vmem:[#allocation7 + $0xa0] sm:$0xff]
    %v1190 = vld [vmem:[#allocation7 + $0xa8] sm:$0xff]
    %v1191 = vld [vmem:[#allocation7 + $0xb0] sm:$0xff]
    %v1192 = vld [vmem:[#allocation7 + $0xb8] sm:$0xff]
    %v1193 = vld [vmem:[#allocation7 + $0xc0] sm:$0xff]
    %v1194 = vld [vmem:[#allocation7 + $0xc8] sm:$0xff]
    %v1195 = vld [vmem:[#allocation7 + $0xd0] sm:$0xff]
    %v1196 = vld [vmem:[#allocation7 + $0xd8] sm:$0xff]
    %v1197 = vld [vmem:[#allocation7 + $0xe0] sm:$0xff]
    %v1198 = vld [vmem:[#allocation7 + $0xe8] sm:$0xff]
    %v1199 = vld [vmem:[#allocation7 + $0xf0] sm:$0xff]
    %v1200 = vld [vmem:[#allocation7 + $0xf8] sm:$0xff]
    %v1233 = vunpack.c.l.b16 %v1169
    %v1234 = vunpack.c.h.b16 %v1169
    %v1235 = vunpack.c.l.b16 %v1170
    %v1236 = vunpack.c.h.b16 %v1170
    %v1237 = vunpack.c.l.b16 %v1171
    %v1238 = vunpack.c.h.b16 %v1171
    %v1239 = vunpack.c.l.b16 %v1172
    %v1240 = vunpack.c.h.b16 %v1172
    %v1241 = vunpack.c.l.b16 %v1173
    %v1242 = vunpack.c.h.b16 %v1173
    %v1243 = vunpack.c.l.b16 %v1174
    %v1244 = vunpack.c.h.b16 %v1174
    %v1245 = vunpack.c.l.b16 %v1175
    %v1246 = vunpack.c.h.b16 %v1175
    %v1247 = vunpack.c.l.b16 %v1176
    %v1248 = vunpack.c.h.b16 %v1176
    %v1249 = vunpack.c.l.b16 %v1177
    %v1250 = vunpack.c.h.b16 %v1177
    %v1251 = vunpack.c.l.b16 %v1178
    %v1252 = vunpack.c.h.b16 %v1178
    %v1253 = vunpack.c.l.b16 %v1179
    %v1254 = vunpack.c.h.b16 %v1179
    %v1255 = vunpack.c.l.b16 %v1180
    %v1256 = vunpack.c.h.b16 %v1180
    %v1257 = vunpack.c.l.b16 %v1181
    %v1258 = vunpack.c.h.b16 %v1181
    %v1259 = vunpack.c.l.b16 %v1182
    %v1260 = vunpack.c.h.b16 %v1182
    %v1261 = vunpack.c.l.b16 %v1183
    %v1262 = vunpack.c.h.b16 %v1183
    %v1263 = vunpack.c.l.b16 %v1184
    %v1264 = vunpack.c.h.b16 %v1184
    %v1265 = vunpack.c.l.b16 %v1185
    %v1266 = vunpack.c.h.b16 %v1185
    %v1267 = vunpack.c.l.b16 %v1186
    %v1268 = vunpack.c.h.b16 %v1186
    %v1269 = vunpack.c.l.b16 %v1187
    %v1270 = vunpack.c.h.b16 %v1187
    %v1271 = vunpack.c.l.b16 %v1188
    %v1272 = vunpack.c.h.b16 %v1188
    %v1273 = vunpack.c.l.b16 %v1189
    %v1274 = vunpack.c.h.b16 %v1189
    %v1275 = vunpack.c.l.b16 %v1190
    %v1276 = vunpack.c.h.b16 %v1190
    %v1277 = vunpack.c.l.b16 %v1191
    %v1278 = vunpack.c.h.b16 %v1191
    %v1279 = vunpack.c.l.b16 %v1192
    %v1280 = vunpack.c.h.b16 %v1192
    %v1281 = vunpack.c.l.b16 %v1193
    %v1282 = vunpack.c.h.b16 %v1193
    %v1283 = vunpack.c.l.b16 %v1194
    %v1284 = vunpack.c.h.b16 %v1194
    %v1285 = vunpack.c.l.b16 %v1195
    %v1286 = vunpack.c.h.b16 %v1195
    %v1287 = vunpack.c.l.b16 %v1196
    %v1288 = vunpack.c.h.b16 %v1196
    %v1289 = vunpack.c.l.b16 %v1197
    %v1290 = vunpack.c.h.b16 %v1197
    %v1291 = vunpack.c.l.b16 %v1198
    %v1292 = vunpack.c.h.b16 %v1198
    %v1293 = vunpack.c.l.b16 %v1199
    %v1294 = vunpack.c.h.b16 %v1199
    %v1295 = vunpack.c.l.b16 %v1200
    %v1296 = vunpack.c.h.b16 %v1200
    %v1297 = vpack.c.b16 %v1237, %v1233
    %v1298 = vpack.c.b16 %v1238, %v1234
    %v1299 = vpack.c.b16 %v1239, %v1235
    %v1300 = vpack.c.b16 %v1240, %v1236
    %v1301 = vpack.c.b16 %v1245, %v1241
    %v1302 = vpack.c.b16 %v1246, %v1242
    %v1303 = vpack.c.b16 %v1247, %v1243
    %v1304 = vpack.c.b16 %v1248, %v1244
    %v1305 = vpack.c.b16 %v1253, %v1249
    %v1306 = vpack.c.b16 %v1254, %v1250
    %v1307 = vpack.c.b16 %v1255, %v1251
    %v1308 = vpack.c.b16 %v1256, %v1252
    %v1309 = vpack.c.b16 %v1261, %v1257
    %v1310 = vpack.c.b16 %v1262, %v1258
    %v1311 = vpack.c.b16 %v1263, %v1259
    %v1312 = vpack.c.b16 %v1264, %v1260
    %v1313 = vpack.c.b16 %v1269, %v1265
    %v1314 = vpack.c.b16 %v1270, %v1266
    %v1315 = vpack.c.b16 %v1271, %v1267
    %v1316 = vpack.c.b16 %v1272, %v1268
    %v1317 = vpack.c.b16 %v1277, %v1273
    %v1318 = vpack.c.b16 %v1278, %v1274
    %v1319 = vpack.c.b16 %v1279, %v1275
    %v1320 = vpack.c.b16 %v1280, %v1276
    %v1321 = vpack.c.b16 %v1285, %v1281
    %v1322 = vpack.c.b16 %v1286, %v1282
    %v1323 = vpack.c.b16 %v1287, %v1283
    %v1324 = vpack.c.b16 %v1288, %v1284
    %v1325 = vpack.c.b16 %v1293, %v1289
    %v1326 = vpack.c.b16 %v1294, %v1290
    %v1327 = vpack.c.b16 %v1295, %v1291
    %v1328 = vpack.c.b16 %v1296, %v1292
    %1361 = vmatprep.subr.bf16.mxu0 %v1326
    %1362 = vmatpush1.bf16.msra.mxu0 %v1325
    %1363 = vmatprep.subr.bf16.mxu0 %v1322
    %1364 = vmatpush1.bf16.msra.mxu0 %v1321
    %1365 = vmatprep.subr.bf16.mxu0 %v1318
    %1366 = vmatpush1.bf16.msra.mxu0 %v1317
    %1367 = vmatprep.subr.bf16.mxu0 %v1314
    %1368 = vmatpush1.bf16.msra.mxu0 %v1313
    %1369 = vmatprep.subr.bf16.mxu0 %v1310
    %1370 = vmatpush1.bf16.msra.mxu0 %v1309
    %1371 = vmatprep.subr.bf16.mxu0 %v1306
    %1372 = vmatpush1.bf16.msra.mxu0 %v1305
    %1373 = vmatprep.subr.bf16.mxu0 %v1302
    %1374 = vmatpush1.bf16.msra.mxu0 %v1301
    %1375 = vmatprep.subr.bf16.mxu0 %v1298
    %1376 = vmatpush1.bf16.msra.mxu0 %v1297
    %1377 = vmatprep.subr.bf16.mxu0 0
    %1378 = vmatpush2.bf16.msra.mxu0 0
    %1379 = vmatprep.subr.bf16.mxu0 0
    %1380 = vmatpush2.bf16.msra.mxu0 0
    %1381 = vmatprep.subr.bf16.mxu0 0
    %1382 = vmatpush2.bf16.msra.mxu0 0
    %1383 = vmatprep.subr.bf16.mxu0 0
    %1384 = vmatpush2.bf16.msra.mxu0 0
    %1385 = vmatprep.subr.bf16.mxu0 0
    %1386 = vmatpush2.bf16.msra.mxu0 0
    %1387 = vmatprep.subr.bf16.mxu0 0
    %1388 = vmatpush2.bf16.msra.mxu0 0
    %1389 = vmatprep.subr.bf16.mxu0 0
    %1390 = vmatpush2.bf16.msra.mxu0 0
    %1391 = vmatprep.subr.bf16.mxu0 0
    %1392 = vmatpush2.bf16.msra.mxu0 0
    %1393 = vmatprep.mubr.bf16.mxu0 0
    %1394 = vmatmul.mubr.bf16.gmra.mxu0 %v1163
    %v1395 = vpop.f32.mrf.mxu0
    %v1396 = vadd.f32 0.0, %v1395
    %v1397 = vpop.f32.mrf.mxu0
    %v1398 = vadd.f32 0.0, %v1397
    %v1399 = vpop.f32.mrf.mxu0
    %v1400 = vpop.f32.mrf.mxu0
    %1401 = vdwg.mxu0
    %1402 = vmatprep.subr.bf16.mxu0 %v1328
    %1403 = vmatpush1.bf16.msra.mxu0 %v1327
    %1404 = vmatprep.subr.bf16.mxu0 %v1324
    %1405 = vmatpush1.bf16.msra.mxu0 %v1323
    %1406 = vmatprep.subr.bf16.mxu0 %v1320
    %1407 = vmatpush1.bf16.msra.mxu0 %v1319
    %1408 = vmatprep.subr.bf16.mxu0 %v1316
    %1409 = vmatpush1.bf16.msra.mxu0 %v1315
    %1410 = vmatprep.subr.bf16.mxu0 %v1312
    %1411 = vmatpush1.bf16.msra.mxu0 %v1311
    %1412 = vmatprep.subr.bf16.mxu0 %v1308
    %1413 = vmatpush1.bf16.msra.mxu0 %v1307
    %1414 = vmatprep.subr.bf16.mxu0 %v1304
    %1415 = vmatpush1.bf16.msra.mxu0 %v1303
    %1416 = vmatprep.subr.bf16.mxu0 %v1300
    %1417 = vmatpush1.bf16.msra.mxu0 %v1299
    %1418 = vmatprep.subr.bf16.mxu0 0
    %1419 = vmatpush2.bf16.msra.mxu0 0
    %1420 = vmatprep.subr.bf16.mxu0 0
    %1421 = vmatpush2.bf16.msra.mxu0 0
    %1422 = vmatprep.subr.bf16.mxu0 0
    %1423 = vmatpush2.bf16.msra.mxu0 0
    %1424 = vmatprep.subr.bf16.mxu0 0
    %1425 = vmatpush2.bf16.msra.mxu0 0
    %1426 = vmatprep.subr.bf16.mxu0 0
    %1427 = vmatpush2.bf16.msra.mxu0 0
    %1428 = vmatprep.subr.bf16.mxu0 0
    %1429 = vmatpush2.bf16.msra.mxu0 0
    %1430 = vmatprep.subr.bf16.mxu0 0
    %1431 = vmatpush2.bf16.msra.mxu0 0
    %1432 = vmatprep.subr.bf16.mxu0 0
    %1433 = vmatpush2.bf16.msra.mxu0 0
    %1434 = vmatprep.mubr.bf16.mxu0 0
    %1435 = vmatmul.mubr.bf16.gmra.mxu0 %v1163
    %v1436 = vpop.f32.mrf.mxu0
    %v1437 = vadd.f32 0.0, %v1436
    %v1438 = vpop.f32.mrf.mxu0
    %v1439 = vadd.f32 0.0, %v1438
    %v1440 = vpop.f32.mrf.mxu0
    %v1441 = vpop.f32.mrf.mxu0
    %1442 = vdwg.mxu0
    %v1443 = vadd.f32 %v1165, %v1396
    %v1444 = vadd.f32 %v1166, %v1398
    %v1445 = vadd.f32 %v1167, %v1437
    %v1446 = vadd.f32 %v1168, %v1439
    %v1447 = vmul.f32 %v1443, 0.5
    %v1448 = vtanh.pop %v1447
    %v1449 = vmul.f32 %v1448, 0.5
    %v1450 = vadd.f32 %v1449, 0.5
    %v1451 = vmul.f32 %v1444, 0.5
    %v1452 = vtanh.pop %v1451
    %v1453 = vmul.f32 %v1452, 0.5
    %v1454 = vadd.f32 %v1453, 0.5
    %v1455 = vtanh.pop %v1445
    %v1456 = vmul.f32 %v1446, 0.5
    %v1457 = vtanh.pop %v1456
    %v1458 = vmul.f32 %v1457, 0.5
    %v1459 = vadd.f32 %v1458, 0.5
    %v1460 = vmul.f32 %v1454, %v1160
    %v1461 = vmul.f32 %v1450, %v1455
    %v1462 = vadd.f32 %v1460, %v1461
    %v1463 = vtanh.pop %v1462
    %v1464 = vmul.f32 %v1459, %v1463
    %v1465 = vpack.c.bf16 %v1464, %v1464
    %1466 = vst [vmem:[#allocation2 + $0x10] sm:$0xff] %v1464
    %v1467 = vld [vmem:[#allocation4 + $0x60] sm:$0xff]
    %v1468 = vld [vmem:[#allocation4 + $0x68] sm:$0xff]
    %v1469 = vld [vmem:[#allocation4 + $0x70] sm:$0xff]
    %v1470 = vld [vmem:[#allocation4 + $0x78] sm:$0xff]
    %v1471 = vld [vmem:[#allocation7] sm:$0xff]
    %v1472 = vld [vmem:[#allocation7 + $0x8] sm:$0xff]
    %v1473 = vld [vmem:[#allocation7 + $0x10] sm:$0xff]
    %v1474 = vld [vmem:[#allocation7 + $0x18] sm:$0xff]
    %v1475 = vld [vmem:[#allocation7 + $0x20] sm:$0xff]
    %v1476 = vld [vmem:[#allocation7 + $0x28] sm:$0xff]
    %v1477 = vld [vmem:[#allocation7 + $0x30] sm:$0xff]
    %v1478 = vld [vmem:[#allocation7 + $0x38] sm:$0xff]
    %v1479 = vld [vmem:[#allocation7 + $0x40] sm:$0xff]
    %v1480 = vld [vmem:[#allocation7 + $0x48] sm:$0xff]
    %v1481 = vld [vmem:[#allocation7 + $0x50] sm:$0xff]
    %v1482 = vld [vmem:[#allocation7 + $0x58] sm:$0xff]
    %v1483 = vld [vmem:[#allocation7 + $0x60] sm:$0xff]
    %v1484 = vld [vmem:[#allocation7 + $0x68] sm:$0xff]
    %v1485 = vld [vmem:[#allocation7 + $0x70] sm:$0xff]
    %v1486 = vld [vmem:[#allocation7 + $0x78] sm:$0xff]
    %v1487 = vld [vmem:[#allocation7 + $0x80] sm:$0xff]
    %v1488 = vld [vmem:[#allocation7 + $0x88] sm:$0xff]
    %v1489 = vld [vmem:[#allocation7 + $0x90] sm:$0xff]
    %v1490 = vld [vmem:[#allocation7 + $0x98] sm:$0xff]
    %v1491 = vld [vmem:[#allocation7 + $0xa0] sm:$0xff]
    %v1492 = vld [vmem:[#allocation7 + $0xa8] sm:$0xff]
    %v1493 = vld [vmem:[#allocation7 + $0xb0] sm:$0xff]
    %v1494 = vld [vmem:[#allocation7 + $0xb8] sm:$0xff]
    %v1495 = vld [vmem:[#allocation7 + $0xc0] sm:$0xff]
    %v1496 = vld [vmem:[#allocation7 + $0xc8] sm:$0xff]
    %v1497 = vld [vmem:[#allocation7 + $0xd0] sm:$0xff]
    %v1498 = vld [vmem:[#allocation7 + $0xd8] sm:$0xff]
    %v1499 = vld [vmem:[#allocation7 + $0xe0] sm:$0xff]
    %v1500 = vld [vmem:[#allocation7 + $0xe8] sm:$0xff]
    %v1501 = vld [vmem:[#allocation7 + $0xf0] sm:$0xff]
    %v1502 = vld [vmem:[#allocation7 + $0xf8] sm:$0xff]
    %v1535 = vunpack.c.l.b16 %v1471
    %v1536 = vunpack.c.h.b16 %v1471
    %v1537 = vunpack.c.l.b16 %v1472
    %v1538 = vunpack.c.h.b16 %v1472
    %v1539 = vunpack.c.l.b16 %v1473
    %v1540 = vunpack.c.h.b16 %v1473
    %v1541 = vunpack.c.l.b16 %v1474
    %v1542 = vunpack.c.h.b16 %v1474
    %v1543 = vunpack.c.l.b16 %v1475
    %v1544 = vunpack.c.h.b16 %v1475
    %v1545 = vunpack.c.l.b16 %v1476
    %v1546 = vunpack.c.h.b16 %v1476
    %v1547 = vunpack.c.l.b16 %v1477
    %v1548 = vunpack.c.h.b16 %v1477
    %v1549 = vunpack.c.l.b16 %v1478
    %v1550 = vunpack.c.h.b16 %v1478
    %v1551 = vunpack.c.l.b16 %v1479
    %v1552 = vunpack.c.h.b16 %v1479
    %v1553 = vunpack.c.l.b16 %v1480
    %v1554 = vunpack.c.h.b16 %v1480
    %v1555 = vunpack.c.l.b16 %v1481
    %v1556 = vunpack.c.h.b16 %v1481
    %v1557 = vunpack.c.l.b16 %v1482
    %v1558 = vunpack.c.h.b16 %v1482
    %v1559 = vunpack.c.l.b16 %v1483
    %v1560 = vunpack.c.h.b16 %v1483
    %v1561 = vunpack.c.l.b16 %v1484
    %v1562 = vunpack.c.h.b16 %v1484
    %v1563 = vunpack.c.l.b16 %v1485
    %v1564 = vunpack.c.h.b16 %v1485
    %v1565 = vunpack.c.l.b16 %v1486
    %v1566 = vunpack.c.h.b16 %v1486
    %v1567 = vunpack.c.l.b16 %v1487
    %v1568 = vunpack.c.h.b16 %v1487
    %v1569 = vunpack.c.l.b16 %v1488
    %v1570 = vunpack.c.h.b16 %v1488
    %v1571 = vunpack.c.l.b16 %v1489
    %v1572 = vunpack.c.h.b16 %v1489
    %v1573 = vunpack.c.l.b16 %v1490
    %v1574 = vunpack.c.h.b16 %v1490
    %v1575 = vunpack.c.l.b16 %v1491
    %v1576 = vunpack.c.h.b16 %v1491
    %v1577 = vunpack.c.l.b16 %v1492
    %v1578 = vunpack.c.h.b16 %v1492
    %v1579 = vunpack.c.l.b16 %v1493
    %v1580 = vunpack.c.h.b16 %v1493
    %v1581 = vunpack.c.l.b16 %v1494
    %v1582 = vunpack.c.h.b16 %v1494
    %v1583 = vunpack.c.l.b16 %v1495
    %v1584 = vunpack.c.h.b16 %v1495
    %v1585 = vunpack.c.l.b16 %v1496
    %v1586 = vunpack.c.h.b16 %v1496
    %v1587 = vunpack.c.l.b16 %v1497
    %v1588 = vunpack.c.h.b16 %v1497
    %v1589 = vunpack.c.l.b16 %v1498
    %v1590 = vunpack.c.h.b16 %v1498
    %v1591 = vunpack.c.l.b16 %v1499
    %v1592 = vunpack.c.h.b16 %v1499
    %v1593 = vunpack.c.l.b16 %v1500
    %v1594 = vunpack.c.h.b16 %v1500
    %v1595 = vunpack.c.l.b16 %v1501
    %v1596 = vunpack.c.h.b16 %v1501
    %v1597 = vunpack.c.l.b16 %v1502
    %v1598 = vunpack.c.h.b16 %v1502
    %v1599 = vpack.c.b16 %v1539, %v1535
    %v1600 = vpack.c.b16 %v1540, %v1536
    %v1601 = vpack.c.b16 %v1541, %v1537
    %v1602 = vpack.c.b16 %v1542, %v1538
    %v1603 = vpack.c.b16 %v1547, %v1543
    %v1604 = vpack.c.b16 %v1548, %v1544
    %v1605 = vpack.c.b16 %v1549, %v1545
    %v1606 = vpack.c.b16 %v1550, %v1546
    %v1607 = vpack.c.b16 %v1555, %v1551
    %v1608 = vpack.c.b16 %v1556, %v1552
    %v1609 = vpack.c.b16 %v1557, %v1553
    %v1610 = vpack.c.b16 %v1558, %v1554
    %v1611 = vpack.c.b16 %v1563, %v1559
    %v1612 = vpack.c.b16 %v1564, %v1560
    %v1613 = vpack.c.b16 %v1565, %v1561
    %v1614 = vpack.c.b16 %v1566, %v1562
    %v1615 = vpack.c.b16 %v1571, %v1567
    %v1616 = vpack.c.b16 %v1572, %v1568
    %v1617 = vpack.c.b16 %v1573, %v1569
    %v1618 = vpack.c.b16 %v1574, %v1570
    %v1619 = vpack.c.b16 %v1579, %v1575
    %v1620 = vpack.c.b16 %v1580, %v1576
    %v1621 = vpack.c.b16 %v1581, %v1577
    %v1622 = vpack.c.b16 %v1582, %v1578
    %v1623 = vpack.c.b16 %v1587, %v1583
    %v1624 = vpack.c.b16 %v1588, %v1584
    %v1625 = vpack.c.b16 %v1589, %v1585
    %v1626 = vpack.c.b16 %v1590, %v1586
    %v1627 = vpack.c.b16 %v1595, %v1591
    %v1628 = vpack.c.b16 %v1596, %v1592
    %v1629 = vpack.c.b16 %v1597, %v1593
    %v1630 = vpack.c.b16 %v1598, %v1594
    %1663 = vmatprep.subr.bf16.mxu0 %v1628
    %1664 = vmatpush1.bf16.msra.mxu0 %v1627
    %1665 = vmatprep.subr.bf16.mxu0 %v1624
    %1666 = vmatpush1.bf16.msra.mxu0 %v1623
    %1667 = vmatprep.subr.bf16.mxu0 %v1620
    %1668 = vmatpush1.bf16.msra.mxu0 %v1619
    %1669 = vmatprep.subr.bf16.mxu0 %v1616
    %1670 = vmatpush1.bf16.msra.mxu0 %v1615
    %1671 = vmatprep.subr.bf16.mxu0 %v1612
    %1672 = vmatpush1.bf16.msra.mxu0 %v1611
    %1673 = vmatprep.subr.bf16.mxu0 %v1608
    %1674 = vmatpush1.bf16.msra.mxu0 %v1607
    %1675 = vmatprep.subr.bf16.mxu0 %v1604
    %1676 = vmatpush1.bf16.msra.mxu0 %v1603
    %1677 = vmatprep.subr.bf16.mxu0 %v1600
    %1678 = vmatpush1.bf16.msra.mxu0 %v1599
    %1679 = vmatprep.subr.bf16.mxu0 0
    %1680 = vmatpush2.bf16.msra.mxu0 0
    %1681 = vmatprep.subr.bf16.mxu0 0
    %1682 = vmatpush2.bf16.msra.mxu0 0
    %1683 = vmatprep.subr.bf16.mxu0 0
    %1684 = vmatpush2.bf16.msra.mxu0 0
    %1685 = vmatprep.subr.bf16.mxu0 0
    %1686 = vmatpush2.bf16.msra.mxu0 0
    %1687 = vmatprep.subr.bf16.mxu0 0
    %1688 = vmatpush2.bf16.msra.mxu0 0
    %1689 = vmatprep.subr.bf16.mxu0 0
    %1690 = vmatpush2.bf16.msra.mxu0 0
    %1691 = vmatprep.subr.bf16.mxu0 0
    %1692 = vmatpush2.bf16.msra.mxu0 0
    %1693 = vmatprep.subr.bf16.mxu0 0
    %1694 = vmatpush2.bf16.msra.mxu0 0
    %1695 = vmatprep.mubr.bf16.mxu0 0
    %1696 = vmatmul.mubr.bf16.gmra.mxu0 %v1465
    %v1697 = vpop.f32.mrf.mxu0
    %v1698 = vadd.f32 0.0, %v1697
    %v1699 = vpop.f32.mrf.mxu0
    %v1700 = vadd.f32 0.0, %v1699
    %v1701 = vpop.f32.mrf.mxu0
    %v1702 = vpop.f32.mrf.mxu0
    %1703 = vdwg.mxu0
    %1704 = vmatprep.subr.bf16.mxu0 %v1630
    %1705 = vmatpush1.bf16.msra.mxu0 %v1629
    %1706 = vmatprep.subr.bf16.mxu0 %v1626
    %1707 = vmatpush1.bf16.msra.mxu0 %v1625
    %1708 = vmatprep.subr.bf16.mxu0 %v1622
    %1709 = vmatpush1.bf16.msra.mxu0 %v1621
    %1710 = vmatprep.subr.bf16.mxu0 %v1618
    %1711 = vmatpush1.bf16.msra.mxu0 %v1617
    %1712 = vmatprep.subr.bf16.mxu0 %v1614
    %1713 = vmatpush1.bf16.msra.mxu0 %v1613
    %1714 = vmatprep.subr.bf16.mxu0 %v1610
    %1715 = vmatpush1.bf16.msra.mxu0 %v1609
    %1716 = vmatprep.subr.bf16.mxu0 %v1606
    %1717 = vmatpush1.bf16.msra.mxu0 %v1605
    %1718 = vmatprep.subr.bf16.mxu0 %v1602
    %1719 = vmatpush1.bf16.msra.mxu0 %v1601
    %1720 = vmatprep.subr.bf16.mxu0 0
    %1721 = vmatpush2.bf16.msra.mxu0 0
    %1722 = vmatprep.subr.bf16.mxu0 0
    %1723 = vmatpush2.bf16.msra.mxu0 0
    %1724 = vmatprep.subr.bf16.mxu0 0
    %1725 = vmatpush2.bf16.msra.mxu0 0
    %1726 = vmatprep.subr.bf16.mxu0 0
    %1727 = vmatpush2.bf16.msra.mxu0 0
    %1728 = vmatprep.subr.bf16.mxu0 0
    %1729 = vmatpush2.bf16.msra.mxu0 0
    %1730 = vmatprep.subr.bf16.mxu0 0
    %1731 = vmatpush2.bf16.msra.mxu0 0
    %1732 = vmatprep.subr.bf16.mxu0 0
    %1733 = vmatpush2.bf16.msra.mxu0 0
    %1734 = vmatprep.subr.bf16.mxu0 0
    %1735 = vmatpush2.bf16.msra.mxu0 0
    %1736 = vmatprep.mubr.bf16.mxu0 0
    %1737 = vmatmul.mubr.bf16.gmra.mxu0 %v1465
    %v1738 = vpop.f32.mrf.mxu0
    %v1739 = vadd.f32 0.0, %v1738
    %v1740 = vpop.f32.mrf.mxu0
    %v1741 = vadd.f32 0.0, %v1740
    %v1742 = vpop.f32.mrf.mxu0
    %v1743 = vpop.f32.mrf.mxu0
    %1744 = vdwg.mxu0
    %v1745 = vadd.f32 %v1467, %v1698
    %v1746 = vadd.f32 %v1468, %v1700
    %v1747 = vadd.f32 %v1469, %v1739
    %v1748 = vadd.f32 %v1470, %v1741
    %v1749 = vmul.f32 %v1745, 0.5
    %v1750 = vtanh.pop %v1749
    %v1751 = vmul.f32 %v1750, 0.5
    %v1752 = vadd.f32 %v1751, 0.5
    %v1753 = vmul.f32 %v1746, 0.5
    %v1754 = vtanh.pop %v1753
    %v1755 = vmul.f32 %v1754, 0.5
    %v1756 = vadd.f32 %v1755, 0.5
    %v1757 = vtanh.pop %v1747
    %v1758 = vmul.f32 %v1748, 0.5
    %v1759 = vtanh.pop %v1758
    %v1760 = vmul.f32 %v1759, 0.5
    %v1761 = vadd.f32 %v1760, 0.5
    %v1762 = vmul.f32 %v1756, %v1462
    %v1763 = vmul.f32 %v1752, %v1757
    %v1764 = vadd.f32 %v1762, %v1763
    %v1765 = vtanh.pop %v1764
    %v1766 = vmul.f32 %v1761, %v1765
    %v1767 = vpack.c.bf16 %v1766, %v1766
    %1768 = vst [vmem:[#allocation2 + $0x18] sm:$0xff] %v1766
    %v1769 = vld [vmem:[#allocation4 + $0x80] sm:$0xff]
    %v1770 = vld [vmem:[#allocation4 + $0x88] sm:$0xff]
    %v1771 = vld [vmem:[#allocation4 + $0x90] sm:$0xff]
    %v1772 = vld [vmem:[#allocation4 + $0x98] sm:$0xff]
    %v1773 = vld [vmem:[#allocation7] sm:$0xff]
    %v1774 = vld [vmem:[#allocation7 + $0x8] sm:$0xff]
    %v1775 = vld [vmem:[#allocation7 + $0x10] sm:$0xff]
    %v1776 = vld [vmem:[#allocation7 + $0x18] sm:$0xff]
    %v1777 = vld [vmem:[#allocation7 + $0x20] sm:$0xff]
    %v1778 = vld [vmem:[#allocation7 + $0x28] sm:$0xff]
    %v1779 = vld [vmem:[#allocation7 + $0x30] sm:$0xff]
    %v1780 = vld [vmem:[#allocation7 + $0x38] sm:$0xff]
    %v1781 = vld [vmem:[#allocation7 + $0x40] sm:$0xff]
    %v1782 = vld [vmem:[#allocation7 + $0x48] sm:$0xff]
    %v1783 = vld [vmem:[#allocation7 + $0x50] sm:$0xff]
    %v1784 = vld [vmem:[#allocation7 + $0x58] sm:$0xff]
    %v1785 = vld [vmem:[#allocation7 + $0x60] sm:$0xff]
    %v1786 = vld [vmem:[#allocation7 + $0x68] sm:$0xff]
    %v1787 = vld [vmem:[#allocation7 + $0x70] sm:$0xff]
    %v1788 = vld [vmem:[#allocation7 + $0x78] sm:$0xff]
    %v1789 = vld [vmem:[#allocation7 + $0x80] sm:$0xff]
    %v1790 = vld [vmem:[#allocation7 + $0x88] sm:$0xff]
    %v1791 = vld [vmem:[#allocation7 + $0x90] sm:$0xff]
    %v1792 = vld [vmem:[#allocation7 + $0x98] sm:$0xff]
    %v1793 = vld [vmem:[#allocation7 + $0xa0] sm:$0xff]
    %v1794 = vld [vmem:[#allocation7 + $0xa8] sm:$0xff]
    %v1795 = vld [vmem:[#allocation7 + $0xb0] sm:$0xff]
    %v1796 = vld [vmem:[#allocation7 + $0xb8] sm:$0xff]
    %v1797 = vld [vmem:[#allocation7 + $0xc0] sm:$0xff]
    %v1798 = vld [vmem:[#allocation7 + $0xc8] sm:$0xff]
    %v1799 = vld [vmem:[#allocation7 + $0xd0] sm:$0xff]
    %v1800 = vld [vmem:[#allocation7 + $0xd8] sm:$0xff]
    %v1801 = vld [vmem:[#allocation7 + $0xe0] sm:$0xff]
    %v1802 = vld [vmem:[#allocation7 + $0xe8] sm:$0xff]
    %v1803 = vld [vmem:[#allocation7 + $0xf0] sm:$0xff]
    %v1804 = vld [vmem:[#allocation7 + $0xf8] sm:$0xff]
    %v1837 = vunpack.c.l.b16 %v1773
    %v1838 = vunpack.c.h.b16 %v1773
    %v1839 = vunpack.c.l.b16 %v1774
    %v1840 = vunpack.c.h.b16 %v1774
    %v1841 = vunpack.c.l.b16 %v1775
    %v1842 = vunpack.c.h.b16 %v1775
    %v1843 = vunpack.c.l.b16 %v1776
    %v1844 = vunpack.c.h.b16 %v1776
    %v1845 = vunpack.c.l.b16 %v1777
    %v1846 = vunpack.c.h.b16 %v1777
    %v1847 = vunpack.c.l.b16 %v1778
    %v1848 = vunpack.c.h.b16 %v1778
    %v1849 = vunpack.c.l.b16 %v1779
    %v1850 = vunpack.c.h.b16 %v1779
    %v1851 = vunpack.c.l.b16 %v1780
    %v1852 = vunpack.c.h.b16 %v1780
    %v1853 = vunpack.c.l.b16 %v1781
    %v1854 = vunpack.c.h.b16 %v1781
    %v1855 = vunpack.c.l.b16 %v1782
    %v1856 = vunpack.c.h.b16 %v1782
    %v1857 = vunpack.c.l.b16 %v1783
    %v1858 = vunpack.c.h.b16 %v1783
    %v1859 = vunpack.c.l.b16 %v1784
    %v1860 = vunpack.c.h.b16 %v1784
    %v1861 = vunpack.c.l.b16 %v1785
    %v1862 = vunpack.c.h.b16 %v1785
    %v1863 = vunpack.c.l.b16 %v1786
    %v1864 = vunpack.c.h.b16 %v1786
    %v1865 = vunpack.c.l.b16 %v1787
    %v1866 = vunpack.c.h.b16 %v1787
    %v1867 = vunpack.c.l.b16 %v1788
    %v1868 = vunpack.c.h.b16 %v1788
    %v1869 = vunpack.c.l.b16 %v1789
    %v1870 = vunpack.c.h.b16 %v1789
    %v1871 = vunpack.c.l.b16 %v1790
    %v1872 = vunpack.c.h.b16 %v1790
    %v1873 = vunpack.c.l.b16 %v1791
    %v1874 = vunpack.c.h.b16 %v1791
    %v1875 = vunpack.c.l.b16 %v1792
    %v1876 = vunpack.c.h.b16 %v1792
    %v1877 = vunpack.c.l.b16 %v1793
    %v1878 = vunpack.c.h.b16 %v1793
    %v1879 = vunpack.c.l.b16 %v1794
    %v1880 = vunpack.c.h.b16 %v1794
    %v1881 = vunpack.c.l.b16 %v1795
    %v1882 = vunpack.c.h.b16 %v1795
    %v1883 = vunpack.c.l.b16 %v1796
    %v1884 = vunpack.c.h.b16 %v1796
    %v1885 = vunpack.c.l.b16 %v1797
    %v1886 = vunpack.c.h.b16 %v1797
    %v1887 = vunpack.c.l.b16 %v1798
    %v1888 = vunpack.c.h.b16 %v1798
    %v1889 = vunpack.c.l.b16 %v1799
    %v1890 = vunpack.c.h.b16 %v1799
    %v1891 = vunpack.c.l.b16 %v1800
    %v1892 = vunpack.c.h.b16 %v1800
    %v1893 = vunpack.c.l.b16 %v1801
    %v1894 = vunpack.c.h.b16 %v1801
    %v1895 = vunpack.c.l.b16 %v1802
    %v1896 = vunpack.c.h.b16 %v1802
    %v1897 = vunpack.c.l.b16 %v1803
    %v1898 = vunpack.c.h.b16 %v1803
    %v1899 = vunpack.c.l.b16 %v1804
    %v1900 = vunpack.c.h.b16 %v1804
    %v1901 = vpack.c.b16 %v1841, %v1837
    %v1902 = vpack.c.b16 %v1842, %v1838
    %v1903 = vpack.c.b16 %v1843, %v1839
    %v1904 = vpack.c.b16 %v1844, %v1840
    %v1905 = vpack.c.b16 %v1849, %v1845
    %v1906 = vpack.c.b16 %v1850, %v1846
    %v1907 = vpack.c.b16 %v1851, %v1847
    %v1908 = vpack.c.b16 %v1852, %v1848
    %v1909 = vpack.c.b16 %v1857, %v1853
    %v1910 = vpack.c.b16 %v1858, %v1854
    %v1911 = vpack.c.b16 %v1859, %v1855
    %v1912 = vpack.c.b16 %v1860, %v1856
    %v1913 = vpack.c.b16 %v1865, %v1861
    %v1914 = vpack.c.b16 %v1866, %v1862
    %v1915 = vpack.c.b16 %v1867, %v1863
    %v1916 = vpack.c.b16 %v1868, %v1864
    %v1917 = vpack.c.b16 %v1873, %v1869
    %v1918 = vpack.c.b16 %v1874, %v1870
    %v1919 = vpack.c.b16 %v1875, %v1871
    %v1920 = vpack.c.b16 %v1876, %v1872
    %v1921 = vpack.c.b16 %v1881, %v1877
    %v1922 = vpack.c.b16 %v1882, %v1878
    %v1923 = vpack.c.b16 %v1883, %v1879
    %v1924 = vpack.c.b16 %v1884, %v1880
    %v1925 = vpack.c.b16 %v1889, %v1885
    %v1926 = vpack.c.b16 %v1890, %v1886
    %v1927 = vpack.c.b16 %v1891, %v1887
    %v1928 = vpack.c.b16 %v1892, %v1888
    %v1929 = vpack.c.b16 %v1897, %v1893
    %v1930 = vpack.c.b16 %v1898, %v1894
    %v1931 = vpack.c.b16 %v1899, %v1895
    %v1932 = vpack.c.b16 %v1900, %v1896
    %1965 = vmatprep.subr.bf16.mxu0 %v1930
    %1966 = vmatpush1.bf16.msra.mxu0 %v1929
    %1967 = vmatprep.subr.bf16.mxu0 %v1926
    %1968 = vmatpush1.bf16.msra.mxu0 %v1925
    %1969 = vmatprep.subr.bf16.mxu0 %v1922
    %1970 = vmatpush1.bf16.msra.mxu0 %v1921
    %1971 = vmatprep.subr.bf16.mxu0 %v1918
    %1972 = vmatpush1.bf16.msra.mxu0 %v1917
    %1973 = vmatprep.subr.bf16.mxu0 %v1914
    %1974 = vmatpush1.bf16.msra.mxu0 %v1913
    %1975 = vmatprep.subr.bf16.mxu0 %v1910
    %1976 = vmatpush1.bf16.msra.mxu0 %v1909
    %1977 = vmatprep.subr.bf16.mxu0 %v1906
    %1978 = vmatpush1.bf16.msra.mxu0 %v1905
    %1979 = vmatprep.subr.bf16.mxu0 %v1902
    %1980 = vmatpush1.bf16.msra.mxu0 %v1901
    %1981 = vmatprep.subr.bf16.mxu0 0
    %1982 = vmatpush2.bf16.msra.mxu0 0
    %1983 = vmatprep.subr.bf16.mxu0 0
    %1984 = vmatpush2.bf16.msra.mxu0 0
    %1985 = vmatprep.subr.bf16.mxu0 0
    %1986 = vmatpush2.bf16.msra.mxu0 0
    %1987 = vmatprep.subr.bf16.mxu0 0
    %1988 = vmatpush2.bf16.msra.mxu0 0
    %1989 = vmatprep.subr.bf16.mxu0 0
    %1990 = vmatpush2.bf16.msra.mxu0 0
    %1991 = vmatprep.subr.bf16.mxu0 0
    %1992 = vmatpush2.bf16.msra.mxu0 0
    %1993 = vmatprep.subr.bf16.mxu0 0
    %1994 = vmatpush2.bf16.msra.mxu0 0
    %1995 = vmatprep.subr.bf16.mxu0 0
    %1996 = vmatpush2.bf16.msra.mxu0 0
    %1997 = vmatprep.mubr.bf16.mxu0 0
    %1998 = vmatmul.mubr.bf16.gmra.mxu0 %v1767
    %v1999 = vpop.f32.mrf.mxu0
    %v2000 = vadd.f32 0.0, %v1999
    %v2001 = vpop.f32.mrf.mxu0
    %v2002 = vadd.f32 0.0, %v2001
    %v2003 = vpop.f32.mrf.mxu0
    %v2004 = vpop.f32.mrf.mxu0
    %2005 = vdwg.mxu0
    %2006 = vmatprep.subr.bf16.mxu0 %v1932
    %2007 = vmatpush1.bf16.msra.mxu0 %v1931
    %2008 = vmatprep.subr.bf16.mxu0 %v1928
    %2009 = vmatpush1.bf16.msra.mxu0 %v1927
    %2010 = vmatprep.subr.bf16.mxu0 %v1924
    %2011 = vmatpush1.bf16.msra.mxu0 %v1923
    %2012 = vmatprep.subr.bf16.mxu0 %v1920
    %2013 = vmatpush1.bf16.msra.mxu0 %v1919
    %2014 = vmatprep.subr.bf16.mxu0 %v1916
    %2015 = vmatpush1.bf16.msra.mxu0 %v1915
    %2016 = vmatprep.subr.bf16.mxu0 %v1912
    %2017 = vmatpush1.bf16.msra.mxu0 %v1911
    %2018 = vmatprep.subr.bf16.mxu0 %v1908
    %2019 = vmatpush1.bf16.msra.mxu0 %v1907
    %2020 = vmatprep.subr.bf16.mxu0 %v1904
    %2021 = vmatpush1.bf16.msra.mxu0 %v1903
    %2022 = vmatprep.subr.bf16.mxu0 0
    %2023 = vmatpush2.bf16.msra.mxu0 0
    %2024 = vmatprep.subr.bf16.mxu0 0
    %2025 = vmatpush2.bf16.msra.mxu0 0
    %2026 = vmatprep.subr.bf16.mxu0 0
    %2027 = vmatpush2.bf16.msra.mxu0 0
    %2028 = vmatprep.subr.bf16.mxu0 0
    %2029 = vmatpush2.bf16.msra.mxu0 0
    %2030 = vmatprep.subr.bf16.mxu0 0
    %2031 = vmatpush2.bf16.msra.mxu0 0
    %2032 = vmatprep.subr.bf16.mxu0 0
    %2033 = vmatpush2.bf16.msra.mxu0 0
    %2034 = vmatprep.subr.bf16.mxu0 0
    %2035 = vmatpush2.bf16.msra.mxu0 0
    %2036 = vmatprep.subr.bf16.mxu0 0
    %2037 = vmatpush2.bf16.msra.mxu0 0
    %2038 = vmatprep.mubr.bf16.mxu0 0
    %2039 = vmatmul.mubr.bf16.gmra.mxu0 %v1767
    %v2040 = vpop.f32.mrf.mxu0
    %v2041 = vadd.f32 0.0, %v2040
    %v2042 = vpop.f32.mrf.mxu0
    %v2043 = vadd.f32 0.0, %v2042
    %v2044 = vpop.f32.mrf.mxu0
    %v2045 = vpop.f32.mrf.mxu0
    %2046 = vdwg.mxu0
    %v2047 = vadd.f32 %v1769, %v2000
    %v2048 = vadd.f32 %v1770, %v2002
    %v2049 = vadd.f32 %v1771, %v2041
    %v2050 = vadd.f32 %v1772, %v2043
    %v2051 = vmul.f32 %v2047, 0.5
    %v2052 = vtanh.pop %v2051
    %v2053 = vmul.f32 %v2052, 0.5
    %v2054 = vadd.f32 %v2053, 0.5
    %v2055 = vmul.f32 %v2048, 0.5
    %v2056 = vtanh.pop %v2055
    %v2057 = vmul.f32 %v2056, 0.5
    %v2058 = vadd.f32 %v2057, 0.5
    %v2059 = vtanh.pop %v2049
    %v2060 = vmul.f32 %v2050, 0.5
    %v2061 = vtanh.pop %v2060
    %v2062 = vmul.f32 %v2061, 0.5
    %v2063 = vadd.f32 %v2062, 0.5
    %v2064 = vmul.f32 %v2058, %v1764
    %v2065 = vmul.f32 %v2054, %v2059
    %v2066 = vadd.f32 %v2064, %v2065
    %v2067 = vtanh.pop %v2066
    %v2068 = vmul.f32 %v2063, %v2067
    %v2069 = vpack.c.bf16 %v2068, %v2068
    %2070 = vst [vmem:[#allocation2 + $0x20] sm:$0xff] %v2068
    %v2071 = vld [vmem:[#allocation4 + $0xa0] sm:$0xff]
    %v2072 = vld [vmem:[#allocation4 + $0xa8] sm:$0xff]
    %v2073 = vld [vmem:[#allocation4 + $0xb0] sm:$0xff]
    %v2074 = vld [vmem:[#allocation4 + $0xb8] sm:$0xff]
    %v2075 = vld [vmem:[#allocation7] sm:$0xff]
    %v2076 = vld [vmem:[#allocation7 + $0x8] sm:$0xff]
    %v2077 = vld [vmem:[#allocation7 + $0x10] sm:$0xff]
    %v2078 = vld [vmem:[#allocation7 + $0x18] sm:$0xff]
    %v2079 = vld [vmem:[#allocation7 + $0x20] sm:$0xff]
    %v2080 = vld [vmem:[#allocation7 + $0x28] sm:$0xff]
    %v2081 = vld [vmem:[#allocation7 + $0x30] sm:$0xff]
    %v2082 = vld [vmem:[#allocation7 + $0x38] sm:$0xff]
    %v2083 = vld [vmem:[#allocation7 + $0x40] sm:$0xff]
    %v2084 = vld [vmem:[#allocation7 + $0x48] sm:$0xff]
    %v2085 = vld [vmem:[#allocation7 + $0x50] sm:$0xff]
    %v2086 = vld [vmem:[#allocation7 + $0x58] sm:$0xff]
    %v2087 = vld [vmem:[#allocation7 + $0x60] sm:$0xff]
    %v2088 = vld [vmem:[#allocation7 + $0x68] sm:$0xff]
    %v2089 = vld [vmem:[#allocation7 + $0x70] sm:$0xff]
    %v2090 = vld [vmem:[#allocation7 + $0x78] sm:$0xff]
    %v2091 = vld [vmem:[#allocation7 + $0x80] sm:$0xff]
    %v2092 = vld [vmem:[#allocation7 + $0x88] sm:$0xff]
    %v2093 = vld [vmem:[#allocation7 + $0x90] sm:$0xff]
    %v2094 = vld [vmem:[#allocation7 + $0x98] sm:$0xff]
    %v2095 = vld [vmem:[#allocation7 + $0xa0] sm:$0xff]
    %v2096 = vld [vmem:[#allocation7 + $0xa8] sm:$0xff]
    %v2097 = vld [vmem:[#allocation7 + $0xb0] sm:$0xff]
    %v2098 = vld [vmem:[#allocation7 + $0xb8] sm:$0xff]
    %v2099 = vld [vmem:[#allocation7 + $0xc0] sm:$0xff]
    %v2100 = vld [vmem:[#allocation7 + $0xc8] sm:$0xff]
    %v2101 = vld [vmem:[#allocation7 + $0xd0] sm:$0xff]
    %v2102 = vld [vmem:[#allocation7 + $0xd8] sm:$0xff]
    %v2103 = vld [vmem:[#allocation7 + $0xe0] sm:$0xff]
    %v2104 = vld [vmem:[#allocation7 + $0xe8] sm:$0xff]
    %v2105 = vld [vmem:[#allocation7 + $0xf0] sm:$0xff]
    %v2106 = vld [vmem:[#allocation7 + $0xf8] sm:$0xff]
    %v2139 = vunpack.c.l.b16 %v2075
    %v2140 = vunpack.c.h.b16 %v2075
    %v2141 = vunpack.c.l.b16 %v2076
    %v2142 = vunpack.c.h.b16 %v2076
    %v2143 = vunpack.c.l.b16 %v2077
    %v2144 = vunpack.c.h.b16 %v2077
    %v2145 = vunpack.c.l.b16 %v2078
    %v2146 = vunpack.c.h.b16 %v2078
    %v2147 = vunpack.c.l.b16 %v2079
    %v2148 = vunpack.c.h.b16 %v2079
    %v2149 = vunpack.c.l.b16 %v2080
    %v2150 = vunpack.c.h.b16 %v2080
    %v2151 = vunpack.c.l.b16 %v2081
    %v2152 = vunpack.c.h.b16 %v2081
    %v2153 = vunpack.c.l.b16 %v2082
    %v2154 = vunpack.c.h.b16 %v2082
    %v2155 = vunpack.c.l.b16 %v2083
    %v2156 = vunpack.c.h.b16 %v2083
    %v2157 = vunpack.c.l.b16 %v2084
    %v2158 = vunpack.c.h.b16 %v2084
    %v2159 = vunpack.c.l.b16 %v2085
    %v2160 = vunpack.c.h.b16 %v2085
    %v2161 = vunpack.c.l.b16 %v2086
    %v2162 = vunpack.c.h.b16 %v2086
    %v2163 = vunpack.c.l.b16 %v2087
    %v2164 = vunpack.c.h.b16 %v2087
    %v2165 = vunpack.c.l.b16 %v2088
    %v2166 = vunpack.c.h.b16 %v2088
    %v2167 = vunpack.c.l.b16 %v2089
    %v2168 = vunpack.c.h.b16 %v2089
    %v2169 = vunpack.c.l.b16 %v2090
    %v2170 = vunpack.c.h.b16 %v2090
    %v2171 = vunpack.c.l.b16 %v2091
    %v2172 = vunpack.c.h.b16 %v2091
    %v2173 = vunpack.c.l.b16 %v2092
    %v2174 = vunpack.c.h.b16 %v2092
    %v2175 = vunpack.c.l.b16 %v2093
    %v2176 = vunpack.c.h.b16 %v2093
    %v2177 = vunpack.c.l.b16 %v2094
    %v2178 = vunpack.c.h.b16 %v2094
    %v2179 = vunpack.c.l.b16 %v2095
    %v2180 = vunpack.c.h.b16 %v2095
    %v2181 = vunpack.c.l.b16 %v2096
    %v2182 = vunpack.c.h.b16 %v2096
    %v2183 = vunpack.c.l.b16 %v2097
    %v2184 = vunpack.c.h.b16 %v2097
    %v2185 = vunpack.c.l.b16 %v2098
    %v2186 = vunpack.c.h.b16 %v2098
    %v2187 = vunpack.c.l.b16 %v2099
    %v2188 = vunpack.c.h.b16 %v2099
    %v2189 = vunpack.c.l.b16 %v2100
    %v2190 = vunpack.c.h.b16 %v2100
    %v2191 = vunpack.c.l.b16 %v2101
    %v2192 = vunpack.c.h.b16 %v2101
    %v2193 = vunpack.c.l.b16 %v2102
    %v2194 = vunpack.c.h.b16 %v2102
    %v2195 = vunpack.c.l.b16 %v2103
    %v2196 = vunpack.c.h.b16 %v2103
    %v2197 = vunpack.c.l.b16 %v2104
    %v2198 = vunpack.c.h.b16 %v2104
    %v2199 = vunpack.c.l.b16 %v2105
    %v2200 = vunpack.c.h.b16 %v2105
    %v2201 = vunpack.c.l.b16 %v2106
    %v2202 = vunpack.c.h.b16 %v2106
    %v2203 = vpack.c.b16 %v2143, %v2139
    %v2204 = vpack.c.b16 %v2144, %v2140
    %v2205 = vpack.c.b16 %v2145, %v2141
    %v2206 = vpack.c.b16 %v2146, %v2142
    %v2207 = vpack.c.b16 %v2151, %v2147
    %v2208 = vpack.c.b16 %v2152, %v2148
    %v2209 = vpack.c.b16 %v2153, %v2149
    %v2210 = vpack.c.b16 %v2154, %v2150
    %v2211 = vpack.c.b16 %v2159, %v2155
    %v2212 = vpack.c.b16 %v2160, %v2156
    %v2213 = vpack.c.b16 %v2161, %v2157
    %v2214 = vpack.c.b16 %v2162, %v2158
    %v2215 = vpack.c.b16 %v2167, %v2163
    %v2216 = vpack.c.b16 %v2168, %v2164
    %v2217 = vpack.c.b16 %v2169, %v2165
    %v2218 = vpack.c.b16 %v2170, %v2166
    %v2219 = vpack.c.b16 %v2175, %v2171
    %v2220 = vpack.c.b16 %v2176, %v2172
    %v2221 = vpack.c.b16 %v2177, %v2173
    %v2222 = vpack.c.b16 %v2178, %v2174
    %v2223 = vpack.c.b16 %v2183, %v2179
    %v2224 = vpack.c.b16 %v2184, %v2180
    %v2225 = vpack.c.b16 %v2185, %v2181
    %v2226 = vpack.c.b16 %v2186, %v2182
    %v2227 = vpack.c.b16 %v2191, %v2187
    %v2228 = vpack.c.b16 %v2192, %v2188
    %v2229 = vpack.c.b16 %v2193, %v2189
    %v2230 = vpack.c.b16 %v2194, %v2190
    %v2231 = vpack.c.b16 %v2199, %v2195
    %v2232 = vpack.c.b16 %v2200, %v2196
    %v2233 = vpack.c.b16 %v2201, %v2197
    %v2234 = vpack.c.b16 %v2202, %v2198
    %2267 = vmatprep.subr.bf16.mxu0 %v2232
    %2268 = vmatpush1.bf16.msra.mxu0 %v2231
    %2269 = vmatprep.subr.bf16.mxu0 %v2228
    %2270 = vmatpush1.bf16.msra.mxu0 %v2227
    %2271 = vmatprep.subr.bf16.mxu0 %v2224
    %2272 = vmatpush1.bf16.msra.mxu0 %v2223
    %2273 = vmatprep.subr.bf16.mxu0 %v2220
    %2274 = vmatpush1.bf16.msra.mxu0 %v2219
    %2275 = vmatprep.subr.bf16.mxu0 %v2216
    %2276 = vmatpush1.bf16.msra.mxu0 %v2215
    %2277 = vmatprep.subr.bf16.mxu0 %v2212
    %2278 = vmatpush1.bf16.msra.mxu0 %v2211
    %2279 = vmatprep.subr.bf16.mxu0 %v2208
    %2280 = vmatpush1.bf16.msra.mxu0 %v2207
    %2281 = vmatprep.subr.bf16.mxu0 %v2204
    %2282 = vmatpush1.bf16.msra.mxu0 %v2203
    %2283 = vmatprep.subr.bf16.mxu0 0
    %2284 = vmatpush2.bf16.msra.mxu0 0
    %2285 = vmatprep.subr.bf16.mxu0 0
    %2286 = vmatpush2.bf16.msra.mxu0 0
    %2287 = vmatprep.subr.bf16.mxu0 0
    %2288 = vmatpush2.bf16.msra.mxu0 0
    %2289 = vmatprep.subr.bf16.mxu0 0
    %2290 = vmatpush2.bf16.msra.mxu0 0
    %2291 = vmatprep.subr.bf16.mxu0 0
    %2292 = vmatpush2.bf16.msra.mxu0 0
    %2293 = vmatprep.subr.bf16.mxu0 0
    %2294 = vmatpush2.bf16.msra.mxu0 0
    %2295 = vmatprep.subr.bf16.mxu0 0
    %2296 = vmatpush2.bf16.msra.mxu0 0
    %2297 = vmatprep.subr.bf16.mxu0 0
    %2298 = vmatpush2.bf16.msra.mxu0 0
    %2299 = vmatprep.mubr.bf16.mxu0 0
    %2300 = vmatmul.mubr.bf16.gmra.mxu0 %v2069
    %v2301 = vpop.f32.mrf.mxu0
    %v2302 = vadd.f32 0.0, %v2301
    %v2303 = vpop.f32.mrf.mxu0
    %v2304 = vadd.f32 0.0, %v2303
    %v2305 = vpop.f32.mrf.mxu0
    %v2306 = vpop.f32.mrf.mxu0
    %2307 = vdwg.mxu0
    %2308 = vmatprep.subr.bf16.mxu0 %v2234
    %2309 = vmatpush1.bf16.msra.mxu0 %v2233
    %2310 = vmatprep.subr.bf16.mxu0 %v2230
    %2311 = vmatpush1.bf16.msra.mxu0 %v2229
    %2312 = vmatprep.subr.bf16.mxu0 %v2226
    %2313 = vmatpush1.bf16.msra.mxu0 %v2225
    %2314 = vmatprep.subr.bf16.mxu0 %v2222
    %2315 = vmatpush1.bf16.msra.mxu0 %v2221
    %2316 = vmatprep.subr.bf16.mxu0 %v2218
    %2317 = vmatpush1.bf16.msra.mxu0 %v2217
    %2318 = vmatprep.subr.bf16.mxu0 %v2214
    %2319 = vmatpush1.bf16.msra.mxu0 %v2213
    %2320 = vmatprep.subr.bf16.mxu0 %v2210
    %2321 = vmatpush1.bf16.msra.mxu0 %v2209
    %2322 = vmatprep.subr.bf16.mxu0 %v2206
    %2323 = vmatpush1.bf16.msra.mxu0 %v2205
    %2324 = vmatprep.subr.bf16.mxu0 0
    %2325 = vmatpush2.bf16.msra.mxu0 0
    %2326 = vmatprep.subr.bf16.mxu0 0
    %2327 = vmatpush2.bf16.msra.mxu0 0
    %2328 = vmatprep.subr.bf16.mxu0 0
    %2329 = vmatpush2.bf16.msra.mxu0 0
    %2330 = vmatprep.subr.bf16.mxu0 0
    %2331 = vmatpush2.bf16.msra.mxu0 0
    %2332 = vmatprep.subr.bf16.mxu0 0
    %2333 = vmatpush2.bf16.msra.mxu0 0
    %2334 = vmatprep.subr.bf16.mxu0 0
    %2335 = vmatpush2.bf16.msra.mxu0 0
    %2336 = vmatprep.subr.bf16.mxu0 0
    %2337 = vmatpush2.bf16.msra.mxu0 0
    %2338 = vmatprep.subr.bf16.mxu0 0
    %2339 = vmatpush2.bf16.msra.mxu0 0
    %2340 = vmatprep.mubr.bf16.mxu0 0
    %2341 = vmatmul.mubr.bf16.gmra.mxu0 %v2069
    %v2342 = vpop.f32.mrf.mxu0
    %v2343 = vadd.f32 0.0, %v2342
    %v2344 = vpop.f32.mrf.mxu0
    %v2345 = vadd.f32 0.0, %v2344
    %v2346 = vpop.f32.mrf.mxu0
    %v2347 = vpop.f32.mrf.mxu0
    %2348 = vdwg.mxu0
    %v2349 = vadd.f32 %v2071, %v2302
    %v2350 = vadd.f32 %v2072, %v2304
    %v2351 = vadd.f32 %v2073, %v2343
    %v2352 = vadd.f32 %v2074, %v2345
    %v2353 = vmul.f32 %v2349, 0.5
    %v2354 = vtanh.pop %v2353
    %v2355 = vmul.f32 %v2354, 0.5
    %v2356 = vadd.f32 %v2355, 0.5
    %v2357 = vmul.f32 %v2350, 0.5
    %v2358 = vtanh.pop %v2357
    %v2359 = vmul.f32 %v2358, 0.5
    %v2360 = vadd.f32 %v2359, 0.5
    %v2361 = vtanh.pop %v2351
    %v2362 = vmul.f32 %v2352, 0.5
    %v2363 = vtanh.pop %v2362
    %v2364 = vmul.f32 %v2363, 0.5
    %v2365 = vadd.f32 %v2364, 0.5
    %v2366 = vmul.f32 %v2360, %v2066
    %v2367 = vmul.f32 %v2356, %v2361
    %v2368 = vadd.f32 %v2366, %v2367
    %v2369 = vtanh.pop %v2368
    %v2370 = vmul.f32 %v2365, %v2369
    %v2371 = vpack.c.bf16 %v2370, %v2370
    %2372 = vst [vmem:[#allocation2 + $0x28] sm:$0xff] %v2370
    %v2373 = vld [vmem:[#allocation4 + $0xc0] sm:$0xff]
    %v2374 = vld [vmem:[#allocation4 + $0xc8] sm:$0xff]
    %v2375 = vld [vmem:[#allocation4 + $0xd0] sm:$0xff]
    %v2376 = vld [vmem:[#allocation4 + $0xd8] sm:$0xff]
    %v2377 = vld [vmem:[#allocation7] sm:$0xff]
    %v2378 = vld [vmem:[#allocation7 + $0x8] sm:$0xff]
    %v2379 = vld [vmem:[#allocation7 + $0x10] sm:$0xff]
    %v2380 = vld [vmem:[#allocation7 + $0x18] sm:$0xff]
    %v2381 = vld [vmem:[#allocation7 + $0x20] sm:$0xff]
    %v2382 = vld [vmem:[#allocation7 + $0x28] sm:$0xff]
    %v2383 = vld [vmem:[#allocation7 + $0x30] sm:$0xff]
    %v2384 = vld [vmem:[#allocation7 + $0x38] sm:$0xff]
    %v2385 = vld [vmem:[#allocation7 + $0x40] sm:$0xff]
    %v2386 = vld [vmem:[#allocation7 + $0x48] sm:$0xff]
    %v2387 = vld [vmem:[#allocation7 + $0x50] sm:$0xff]
    %v2388 = vld [vmem:[#allocation7 + $0x58] sm:$0xff]
    %v2389 = vld [vmem:[#allocation7 + $0x60] sm:$0xff]
    %v2390 = vld [vmem:[#allocation7 + $0x68] sm:$0xff]
    %v2391 = vld [vmem:[#allocation7 + $0x70] sm:$0xff]
    %v2392 = vld [vmem:[#allocation7 + $0x78] sm:$0xff]
    %v2393 = vld [vmem:[#allocation7 + $0x80] sm:$0xff]
    %v2394 = vld [vmem:[#allocation7 + $0x88] sm:$0xff]
    %v2395 = vld [vmem:[#allocation7 + $0x90] sm:$0xff]
    %v2396 = vld [vmem:[#allocation7 + $0x98] sm:$0xff]
    %v2397 = vld [vmem:[#allocation7 + $0xa0] sm:$0xff]
    %v2398 = vld [vmem:[#allocation7 + $0xa8] sm:$0xff]
    %v2399 = vld [vmem:[#allocation7 + $0xb0] sm:$0xff]
    %v2400 = vld [vmem:[#allocation7 + $0xb8] sm:$0xff]
    %v2401 = vld [vmem:[#allocation7 + $0xc0] sm:$0xff]
    %v2402 = vld [vmem:[#allocation7 + $0xc8] sm:$0xff]
    %v2403 = vld [vmem:[#allocation7 + $0xd0] sm:$0xff]
    %v2404 = vld [vmem:[#allocation7 + $0xd8] sm:$0xff]
    %v2405 = vld [vmem:[#allocation7 + $0xe0] sm:$0xff]
    %v2406 = vld [vmem:[#allocation7 + $0xe8] sm:$0xff]
    %v2407 = vld [vmem:[#allocation7 + $0xf0] sm:$0xff]
    %v2408 = vld [vmem:[#allocation7 + $0xf8] sm:$0xff]
    %v2441 = vunpack.c.l.b16 %v2377
    %v2442 = vunpack.c.h.b16 %v2377
    %v2443 = vunpack.c.l.b16 %v2378
    %v2444 = vunpack.c.h.b16 %v2378
    %v2445 = vunpack.c.l.b16 %v2379
    %v2446 = vunpack.c.h.b16 %v2379
    %v2447 = vunpack.c.l.b16 %v2380
    %v2448 = vunpack.c.h.b16 %v2380
    %v2449 = vunpack.c.l.b16 %v2381
    %v2450 = vunpack.c.h.b16 %v2381
    %v2451 = vunpack.c.l.b16 %v2382
    %v2452 = vunpack.c.h.b16 %v2382
    %v2453 = vunpack.c.l.b16 %v2383
    %v2454 = vunpack.c.h.b16 %v2383
    %v2455 = vunpack.c.l.b16 %v2384
    %v2456 = vunpack.c.h.b16 %v2384
    %v2457 = vunpack.c.l.b16 %v2385
    %v2458 = vunpack.c.h.b16 %v2385
    %v2459 = vunpack.c.l.b16 %v2386
    %v2460 = vunpack.c.h.b16 %v2386
    %v2461 = vunpack.c.l.b16 %v2387
    %v2462 = vunpack.c.h.b16 %v2387
    %v2463 = vunpack.c.l.b16 %v2388
    %v2464 = vunpack.c.h.b16 %v2388
    %v2465 = vunpack.c.l.b16 %v2389
    %v2466 = vunpack.c.h.b16 %v2389
    %v2467 = vunpack.c.l.b16 %v2390
    %v2468 = vunpack.c.h.b16 %v2390
    %v2469 = vunpack.c.l.b16 %v2391
    %v2470 = vunpack.c.h.b16 %v2391
    %v2471 = vunpack.c.l.b16 %v2392
    %v2472 = vunpack.c.h.b16 %v2392
    %v2473 = vunpack.c.l.b16 %v2393
    %v2474 = vunpack.c.h.b16 %v2393
    %v2475 = vunpack.c.l.b16 %v2394
    %v2476 = vunpack.c.h.b16 %v2394
    %v2477 = vunpack.c.l.b16 %v2395
    %v2478 = vunpack.c.h.b16 %v2395
    %v2479 = vunpack.c.l.b16 %v2396
    %v2480 = vunpack.c.h.b16 %v2396
    %v2481 = vunpack.c.l.b16 %v2397
    %v2482 = vunpack.c.h.b16 %v2397
    %v2483 = vunpack.c.l.b16 %v2398
    %v2484 = vunpack.c.h.b16 %v2398
    %v2485 = vunpack.c.l.b16 %v2399
    %v2486 = vunpack.c.h.b16 %v2399
    %v2487 = vunpack.c.l.b16 %v2400
    %v2488 = vunpack.c.h.b16 %v2400
    %v2489 = vunpack.c.l.b16 %v2401
    %v2490 = vunpack.c.h.b16 %v2401
    %v2491 = vunpack.c.l.b16 %v2402
    %v2492 = vunpack.c.h.b16 %v2402
    %v2493 = vunpack.c.l.b16 %v2403
    %v2494 = vunpack.c.h.b16 %v2403
    %v2495 = vunpack.c.l.b16 %v2404
    %v2496 = vunpack.c.h.b16 %v2404
    %v2497 = vunpack.c.l.b16 %v2405
    %v2498 = vunpack.c.h.b16 %v2405
    %v2499 = vunpack.c.l.b16 %v2406
    %v2500 = vunpack.c.h.b16 %v2406
    %v2501 = vunpack.c.l.b16 %v2407
    %v2502 = vunpack.c.h.b16 %v2407
    %v2503 = vunpack.c.l.b16 %v2408
    %v2504 = vunpack.c.h.b16 %v2408
    %v2505 = vpack.c.b16 %v2445, %v2441
    %v2506 = vpack.c.b16 %v2446, %v2442
    %v2507 = vpack.c.b16 %v2447, %v2443
    %v2508 = vpack.c.b16 %v2448, %v2444
    %v2509 = vpack.c.b16 %v2453, %v2449
    %v2510 = vpack.c.b16 %v2454, %v2450
    %v2511 = vpack.c.b16 %v2455, %v2451
    %v2512 = vpack.c.b16 %v2456, %v2452
    %v2513 = vpack.c.b16 %v2461, %v2457
    %v2514 = vpack.c.b16 %v2462, %v2458
    %v2515 = vpack.c.b16 %v2463, %v2459
    %v2516 = vpack.c.b16 %v2464, %v2460
    %v2517 = vpack.c.b16 %v2469, %v2465
    %v2518 = vpack.c.b16 %v2470, %v2466
    %v2519 = vpack.c.b16 %v2471, %v2467
    %v2520 = vpack.c.b16 %v2472, %v2468
    %v2521 = vpack.c.b16 %v2477, %v2473
    %v2522 = vpack.c.b16 %v2478, %v2474
    %v2523 = vpack.c.b16 %v2479, %v2475
    %v2524 = vpack.c.b16 %v2480, %v2476
    %v2525 = vpack.c.b16 %v2485, %v2481
    %v2526 = vpack.c.b16 %v2486, %v2482
    %v2527 = vpack.c.b16 %v2487, %v2483
    %v2528 = vpack.c.b16 %v2488, %v2484
    %v2529 = vpack.c.b16 %v2493, %v2489
    %v2530 = vpack.c.b16 %v2494, %v2490
    %v2531 = vpack.c.b16 %v2495, %v2491
    %v2532 = vpack.c.b16 %v2496, %v2492
    %v2533 = vpack.c.b16 %v2501, %v2497
    %v2534 = vpack.c.b16 %v2502, %v2498
    %v2535 = vpack.c.b16 %v2503, %v2499
    %v2536 = vpack.c.b16 %v2504, %v2500
    %2569 = vmatprep.subr.bf16.mxu0 %v2534
    %2570 = vmatpush1.bf16.msra.mxu0 %v2533
    %2571 = vmatprep.subr.bf16.mxu0 %v2530
    %2572 = vmatpush1.bf16.msra.mxu0 %v2529
    %2573 = vmatprep.subr.bf16.mxu0 %v2526
    %2574 = vmatpush1.bf16.msra.mxu0 %v2525
    %2575 = vmatprep.subr.bf16.mxu0 %v2522
    %2576 = vmatpush1.bf16.msra.mxu0 %v2521
    %2577 = vmatprep.subr.bf16.mxu0 %v2518
    %2578 = vmatpush1.bf16.msra.mxu0 %v2517
    %2579 = vmatprep.subr.bf16.mxu0 %v2514
    %2580 = vmatpush1.bf16.msra.mxu0 %v2513
    %2581 = vmatprep.subr.bf16.mxu0 %v2510
    %2582 = vmatpush1.bf16.msra.mxu0 %v2509
    %2583 = vmatprep.subr.bf16.mxu0 %v2506
    %2584 = vmatpush1.bf16.msra.mxu0 %v2505
    %2585 = vmatprep.subr.bf16.mxu0 0
    %2586 = vmatpush2.bf16.msra.mxu0 0
    %2587 = vmatprep.subr.bf16.mxu0 0
    %2588 = vmatpush2.bf16.msra.mxu0 0
    %2589 = vmatprep.subr.bf16.mxu0 0
    %2590 = vmatpush2.bf16.msra.mxu0 0
    %2591 = vmatprep.subr.bf16.mxu0 0
    %2592 = vmatpush2.bf16.msra.mxu0 0
    %2593 = vmatprep.subr.bf16.mxu0 0
    %2594 = vmatpush2.bf16.msra.mxu0 0
    %2595 = vmatprep.subr.bf16.mxu0 0
    %2596 = vmatpush2.bf16.msra.mxu0 0
    %2597 = vmatprep.subr.bf16.mxu0 0
    %2598 = vmatpush2.bf16.msra.mxu0 0
    %2599 = vmatprep.subr.bf16.mxu0 0
    %2600 = vmatpush2.bf16.msra.mxu0 0
    %2601 = vmatprep.mubr.bf16.mxu0 0
    %2602 = vmatmul.mubr.bf16.gmra.mxu0 %v2371
    %v2603 = vpop.f32.mrf.mxu0
    %v2604 = vadd.f32 0.0, %v2603
    %v2605 = vpop.f32.mrf.mxu0
    %v2606 = vadd.f32 0.0, %v2605
    %v2607 = vpop.f32.mrf.mxu0
    %v2608 = vpop.f32.mrf.mxu0
    %2609 = vdwg.mxu0
    %2610 = vmatprep.subr.bf16.mxu0 %v2536
    %2611 = vmatpush1.bf16.msra.mxu0 %v2535
    %2612 = vmatprep.subr.bf16.mxu0 %v2532
    %2613 = vmatpush1.bf16.msra.mxu0 %v2531
    %2614 = vmatprep.subr.bf16.mxu0 %v2528
    %2615 = vmatpush1.bf16.msra.mxu0 %v2527
    %2616 = vmatprep.subr.bf16.mxu0 %v2524
    %2617 = vmatpush1.bf16.msra.mxu0 %v2523
    %2618 = vmatprep.subr.bf16.mxu0 %v2520
    %2619 = vmatpush1.bf16.msra.mxu0 %v2519
    %2620 = vmatprep.subr.bf16.mxu0 %v2516
    %2621 = vmatpush1.bf16.msra.mxu0 %v2515
    %2622 = vmatprep.subr.bf16.mxu0 %v2512
    %2623 = vmatpush1.bf16.msra.mxu0 %v2511
    %2624 = vmatprep.subr.bf16.mxu0 %v2508
    %2625 = vmatpush1.bf16.msra.mxu0 %v2507
    %2626 = vmatprep.subr.bf16.mxu0 0
    %2627 = vmatpush2.bf16.msra.mxu0 0
    %2628 = vmatprep.subr.bf16.mxu0 0
    %2629 = vmatpush2.bf16.msra.mxu0 0
    %2630 = vmatprep.subr.bf16.mxu0 0
    %2631 = vmatpush2.bf16.msra.mxu0 0
    %2632 = vmatprep.subr.bf16.mxu0 0
    %2633 = vmatpush2.bf16.msra.mxu0 0
    %2634 = vmatprep.subr.bf16.mxu0 0
    %2635 = vmatpush2.bf16.msra.mxu0 0
    %2636 = vmatprep.subr.bf16.mxu0 0
    %2637 = vmatpush2.bf16.msra.mxu0 0
    %2638 = vmatprep.subr.bf16.mxu0 0
    %2639 = vmatpush2.bf16.msra.mxu0 0
    %2640 = vmatprep.subr.bf16.mxu0 0
    %2641 = vmatpush2.bf16.msra.mxu0 0
    %2642 = vmatprep.mubr.bf16.mxu0 0
    %2643 = vmatmul.mubr.bf16.gmra.mxu0 %v2371
    %v2644 = vpop.f32.mrf.mxu0
    %v2645 = vadd.f32 0.0, %v2644
    %v2646 = vpop.f32.mrf.mxu0
    %v2647 = vadd.f32 0.0, %v2646
    %v2648 = vpop.f32.mrf.mxu0
    %v2649 = vpop.f32.mrf.mxu0
    %2650 = vdwg.mxu0
    %v2651 = vadd.f32 %v2373, %v2604
    %v2652 = vadd.f32 %v2374, %v2606
    %v2653 = vadd.f32 %v2375, %v2645
    %v2654 = vadd.f32 %v2376, %v2647
    %v2655 = vmul.f32 %v2651, 0.5
    %v2656 = vtanh.pop %v2655
    %v2657 = vmul.f32 %v2656, 0.5
    %v2658 = vadd.f32 %v2657, 0.5
    %v2659 = vmul.f32 %v2652, 0.5
    %v2660 = vtanh.pop %v2659
    %v2661 = vmul.f32 %v2660, 0.5
    %v2662 = vadd.f32 %v2661, 0.5
    %v2663 = vtanh.pop %v2653
    %v2664 = vmul.f32 %v2654, 0.5
    %v2665 = vtanh.pop %v2664
    %v2666 = vmul.f32 %v2665, 0.5
    %v2667 = vadd.f32 %v2666, 0.5
    %v2668 = vmul.f32 %v2662, %v2368
    %v2669 = vmul.f32 %v2658, %v2663
    %v2670 = vadd.f32 %v2668, %v2669
    %v2671 = vtanh.pop %v2670
    %v2672 = vmul.f32 %v2667, %v2671
    %v2673 = vpack.c.bf16 %v2672, %v2672
    %2674 = vst [vmem:[#allocation2 + $0x30] sm:$0xff] %v2672
    %v2675 = vld [vmem:[#allocation4 + $0xe0] sm:$0xff]
    %v2676 = vld [vmem:[#allocation4 + $0xe8] sm:$0xff]
    %v2677 = vld [vmem:[#allocation4 + $0xf0] sm:$0xff]
    %v2678 = vld [vmem:[#allocation4 + $0xf8] sm:$0xff]
    %v2679 = vld [vmem:[#allocation7] sm:$0xff]
    %v2680 = vld [vmem:[#allocation7 + $0x8] sm:$0xff]
    %v2681 = vld [vmem:[#allocation7 + $0x10] sm:$0xff]
    %v2682 = vld [vmem:[#allocation7 + $0x18] sm:$0xff]
    %v2683 = vld [vmem:[#allocation7 + $0x20] sm:$0xff]
    %v2684 = vld [vmem:[#allocation7 + $0x28] sm:$0xff]
    %v2685 = vld [vmem:[#allocation7 + $0x30] sm:$0xff]
    %v2686 = vld [vmem:[#allocation7 + $0x38] sm:$0xff]
    %v2687 = vld [vmem:[#allocation7 + $0x40] sm:$0xff]
    %v2688 = vld [vmem:[#allocation7 + $0x48] sm:$0xff]
    %v2689 = vld [vmem:[#allocation7 + $0x50] sm:$0xff]
    %v2690 = vld [vmem:[#allocation7 + $0x58] sm:$0xff]
    %v2691 = vld [vmem:[#allocation7 + $0x60] sm:$0xff]
    %v2692 = vld [vmem:[#allocation7 + $0x68] sm:$0xff]
    %v2693 = vld [vmem:[#allocation7 + $0x70] sm:$0xff]
    %v2694 = vld [vmem:[#allocation7 + $0x78] sm:$0xff]
    %v2695 = vld [vmem:[#allocation7 + $0x80] sm:$0xff]
    %v2696 = vld [vmem:[#allocation7 + $0x88] sm:$0xff]
    %v2697 = vld [vmem:[#allocation7 + $0x90] sm:$0xff]
    %v2698 = vld [vmem:[#allocation7 + $0x98] sm:$0xff]
    %v2699 = vld [vmem:[#allocation7 + $0xa0] sm:$0xff]
    %v2700 = vld [vmem:[#allocation7 + $0xa8] sm:$0xff]
    %v2701 = vld [vmem:[#allocation7 + $0xb0] sm:$0xff]
    %v2702 = vld [vmem:[#allocation7 + $0xb8] sm:$0xff]
    %v2703 = vld [vmem:[#allocation7 + $0xc0] sm:$0xff]
    %v2704 = vld [vmem:[#allocation7 + $0xc8] sm:$0xff]
    %v2705 = vld [vmem:[#allocation7 + $0xd0] sm:$0xff]
    %v2706 = vld [vmem:[#allocation7 + $0xd8] sm:$0xff]
    %v2707 = vld [vmem:[#allocation7 + $0xe0] sm:$0xff]
    %v2708 = vld [vmem:[#allocation7 + $0xe8] sm:$0xff]
    %v2709 = vld [vmem:[#allocation7 + $0xf0] sm:$0xff]
    %v2710 = vld [vmem:[#allocation7 + $0xf8] sm:$0xff]
    %v2743 = vunpack.c.l.b16 %v2679
    %v2744 = vunpack.c.h.b16 %v2679
    %v2745 = vunpack.c.l.b16 %v2680
    %v2746 = vunpack.c.h.b16 %v2680
    %v2747 = vunpack.c.l.b16 %v2681
    %v2748 = vunpack.c.h.b16 %v2681
    %v2749 = vunpack.c.l.b16 %v2682
    %v2750 = vunpack.c.h.b16 %v2682
    %v2751 = vunpack.c.l.b16 %v2683
    %v2752 = vunpack.c.h.b16 %v2683
    %v2753 = vunpack.c.l.b16 %v2684
    %v2754 = vunpack.c.h.b16 %v2684
    %v2755 = vunpack.c.l.b16 %v2685
    %v2756 = vunpack.c.h.b16 %v2685
    %v2757 = vunpack.c.l.b16 %v2686
    %v2758 = vunpack.c.h.b16 %v2686
    %v2759 = vunpack.c.l.b16 %v2687
    %v2760 = vunpack.c.h.b16 %v2687
    %v2761 = vunpack.c.l.b16 %v2688
    %v2762 = vunpack.c.h.b16 %v2688
    %v2763 = vunpack.c.l.b16 %v2689
    %v2764 = vunpack.c.h.b16 %v2689
    %v2765 = vunpack.c.l.b16 %v2690
    %v2766 = vunpack.c.h.b16 %v2690
    %v2767 = vunpack.c.l.b16 %v2691
    %v2768 = vunpack.c.h.b16 %v2691
    %v2769 = vunpack.c.l.b16 %v2692
    %v2770 = vunpack.c.h.b16 %v2692
    %v2771 = vunpack.c.l.b16 %v2693
    %v2772 = vunpack.c.h.b16 %v2693
    %v2773 = vunpack.c.l.b16 %v2694
    %v2774 = vunpack.c.h.b16 %v2694
    %v2775 = vunpack.c.l.b16 %v2695
    %v2776 = vunpack.c.h.b16 %v2695
    %v2777 = vunpack.c.l.b16 %v2696
    %v2778 = vunpack.c.h.b16 %v2696
    %v2779 = vunpack.c.l.b16 %v2697
    %v2780 = vunpack.c.h.b16 %v2697
    %v2781 = vunpack.c.l.b16 %v2698
    %v2782 = vunpack.c.h.b16 %v2698
    %v2783 = vunpack.c.l.b16 %v2699
    %v2784 = vunpack.c.h.b16 %v2699
    %v2785 = vunpack.c.l.b16 %v2700
    %v2786 = vunpack.c.h.b16 %v2700
    %v2787 = vunpack.c.l.b16 %v2701
    %v2788 = vunpack.c.h.b16 %v2701
    %v2789 = vunpack.c.l.b16 %v2702
    %v2790 = vunpack.c.h.b16 %v2702
    %v2791 = vunpack.c.l.b16 %v2703
    %v2792 = vunpack.c.h.b16 %v2703
    %v2793 = vunpack.c.l.b16 %v2704
    %v2794 = vunpack.c.h.b16 %v2704
    %v2795 = vunpack.c.l.b16 %v2705
    %v2796 = vunpack.c.h.b16 %v2705
    %v2797 = vunpack.c.l.b16 %v2706
    %v2798 = vunpack.c.h.b16 %v2706
    %v2799 = vunpack.c.l.b16 %v2707
    %v2800 = vunpack.c.h.b16 %v2707
    %v2801 = vunpack.c.l.b16 %v2708
    %v2802 = vunpack.c.h.b16 %v2708
    %v2803 = vunpack.c.l.b16 %v2709
    %v2804 = vunpack.c.h.b16 %v2709
    %v2805 = vunpack.c.l.b16 %v2710
    %v2806 = vunpack.c.h.b16 %v2710
    %v2807 = vpack.c.b16 %v2747, %v2743
    %v2808 = vpack.c.b16 %v2748, %v2744
    %v2809 = vpack.c.b16 %v2749, %v2745
    %v2810 = vpack.c.b16 %v2750, %v2746
    %v2811 = vpack.c.b16 %v2755, %v2751
    %v2812 = vpack.c.b16 %v2756, %v2752
    %v2813 = vpack.c.b16 %v2757, %v2753
    %v2814 = vpack.c.b16 %v2758, %v2754
    %v2815 = vpack.c.b16 %v2763, %v2759
    %v2816 = vpack.c.b16 %v2764, %v2760
    %v2817 = vpack.c.b16 %v2765, %v2761
    %v2818 = vpack.c.b16 %v2766, %v2762
    %v2819 = vpack.c.b16 %v2771, %v2767
    %v2820 = vpack.c.b16 %v2772, %v2768
    %v2821 = vpack.c.b16 %v2773, %v2769
    %v2822 = vpack.c.b16 %v2774, %v2770
    %v2823 = vpack.c.b16 %v2779, %v2775
    %v2824 = vpack.c.b16 %v2780, %v2776
    %v2825 = vpack.c.b16 %v2781, %v2777
    %v2826 = vpack.c.b16 %v2782, %v2778
    %v2827 = vpack.c.b16 %v2787, %v2783
    %v2828 = vpack.c.b16 %v2788, %v2784
    %v2829 = vpack.c.b16 %v2789, %v2785
    %v2830 = vpack.c.b16 %v2790, %v2786
    %v2831 = vpack.c.b16 %v2795, %v2791
    %v2832 = vpack.c.b16 %v2796, %v2792
    %v2833 = vpack.c.b16 %v2797, %v2793
    %v2834 = vpack.c.b16 %v2798, %v2794
    %v2835 = vpack.c.b16 %v2803, %v2799
    %v2836 = vpack.c.b16 %v2804, %v2800
    %v2837 = vpack.c.b16 %v2805, %v2801
    %v2838 = vpack.c.b16 %v2806, %v2802
    %2871 = vmatprep.subr.bf16.mxu0 %v2836
    %2872 = vmatpush1.bf16.msra.mxu0 %v2835
    %2873 = vmatprep.subr.bf16.mxu0 %v2832
    %2874 = vmatpush1.bf16.msra.mxu0 %v2831
    %2875 = vmatprep.subr.bf16.mxu0 %v2828
    %2876 = vmatpush1.bf16.msra.mxu0 %v2827
    %2877 = vmatprep.subr.bf16.mxu0 %v2824
    %2878 = vmatpush1.bf16.msra.mxu0 %v2823
    %2879 = vmatprep.subr.bf16.mxu0 %v2820
    %2880 = vmatpush1.bf16.msra.mxu0 %v2819
    %2881 = vmatprep.subr.bf16.mxu0 %v2816
    %2882 = vmatpush1.bf16.msra.mxu0 %v2815
    %2883 = vmatprep.subr.bf16.mxu0 %v2812
    %2884 = vmatpush1.bf16.msra.mxu0 %v2811
    %2885 = vmatprep.subr.bf16.mxu0 %v2808
    %2886 = vmatpush1.bf16.msra.mxu0 %v2807
    %2887 = vmatprep.subr.bf16.mxu0 0
    %2888 = vmatpush2.bf16.msra.mxu0 0
    %2889 = vmatprep.subr.bf16.mxu0 0
    %2890 = vmatpush2.bf16.msra.mxu0 0
    %2891 = vmatprep.subr.bf16.mxu0 0
    %2892 = vmatpush2.bf16.msra.mxu0 0
    %2893 = vmatprep.subr.bf16.mxu0 0
    %2894 = vmatpush2.bf16.msra.mxu0 0
    %2895 = vmatprep.subr.bf16.mxu0 0
    %2896 = vmatpush2.bf16.msra.mxu0 0
    %2897 = vmatprep.subr.bf16.mxu0 0
    %2898 = vmatpush2.bf16.msra.mxu0 0
    %2899 = vmatprep.subr.bf16.mxu0 0
    %2900 = vmatpush2.bf16.msra.mxu0 0
    %2901 = vmatprep.subr.bf16.mxu0 0
    %2902 = vmatpush2.bf16.msra.mxu0 0
    %2903 = vmatprep.mubr.bf16.mxu0 0
    %2904 = vmatmul.mubr.bf16.gmra.mxu0 %v2673
    %v2905 = vpop.f32.mrf.mxu0
    %v2906 = vadd.f32 0.0, %v2905
    %v2907 = vpop.f32.mrf.mxu0
    %v2908 = vadd.f32 0.0, %v2907
    %v2909 = vpop.f32.mrf.mxu0
    %v2910 = vpop.f32.mrf.mxu0
    %2911 = vdwg.mxu0
    %2912 = vmatprep.subr.bf16.mxu0 %v2838
    %2913 = vmatpush1.bf16.msra.mxu0 %v2837
    %2914 = vmatprep.subr.bf16.mxu0 %v2834
    %2915 = vmatpush1.bf16.msra.mxu0 %v2833
    %2916 = vmatprep.subr.bf16.mxu0 %v2830
    %2917 = vmatpush1.bf16.msra.mxu0 %v2829
    %2918 = vmatprep.subr.bf16.mxu0 %v2826
    %2919 = vmatpush1.bf16.msra.mxu0 %v2825
    %2920 = vmatprep.subr.bf16.mxu0 %v2822
    %2921 = vmatpush1.bf16.msra.mxu0 %v2821
    %2922 = vmatprep.subr.bf16.mxu0 %v2818
    %2923 = vmatpush1.bf16.msra.mxu0 %v2817
    %2924 = vmatprep.subr.bf16.mxu0 %v2814
    %2925 = vmatpush1.bf16.msra.mxu0 %v2813
    %2926 = vmatprep.subr.bf16.mxu0 %v2810
    %2927 = vmatpush1.bf16.msra.mxu0 %v2809
    %2928 = vmatprep.subr.bf16.mxu0 0
    %2929 = vmatpush2.bf16.msra.mxu0 0
    %2930 = vmatprep.subr.bf16.mxu0 0
    %2931 = vmatpush2.bf16.msra.mxu0 0
    %2932 = vmatprep.subr.bf16.mxu0 0
    %2933 = vmatpush2.bf16.msra.mxu0 0
    %2934 = vmatprep.subr.bf16.mxu0 0
    %2935 = vmatpush2.bf16.msra.mxu0 0
    %2936 = vmatprep.subr.bf16.mxu0 0
    %2937 = vmatpush2.bf16.msra.mxu0 0
    %2938 = vmatprep.subr.bf16.mxu0 0
    %2939 = vmatpush2.bf16.msra.mxu0 0
    %2940 = vmatprep.subr.bf16.mxu0 0
    %2941 = vmatpush2.bf16.msra.mxu0 0
    %2942 = vmatprep.subr.bf16.mxu0 0
    %2943 = vmatpush2.bf16.msra.mxu0 0
    %2944 = vmatprep.mubr.bf16.mxu0 0
    %2945 = vmatmul.mubr.bf16.gmra.mxu0 %v2673
    %v2946 = vpop.f32.mrf.mxu0
    %v2947 = vadd.f32 0.0, %v2946
    %v2948 = vpop.f32.mrf.mxu0
    %v2949 = vadd.f32 0.0, %v2948
    %v2950 = vpop.f32.mrf.mxu0
    %v2951 = vpop.f32.mrf.mxu0
    %2952 = vdwg.mxu0
    %v2953 = vadd.f32 %v2675, %v2906
    %v2954 = vadd.f32 %v2676, %v2908
    %v2955 = vadd.f32 %v2677, %v2947
    %v2956 = vadd.f32 %v2678, %v2949
    %v2957 = vmul.f32 %v2953, 0.5
    %v2958 = vtanh.pop %v2957
    %v2959 = vmul.f32 %v2958, 0.5
    %v2960 = vadd.f32 %v2959, 0.5
    %v2961 = vmul.f32 %v2954, 0.5
    %v2962 = vtanh.pop %v2961
    %v2963 = vmul.f32 %v2962, 0.5
    %v2964 = vadd.f32 %v2963, 0.5
    %v2965 = vtanh.pop %v2955
    %v2966 = vmul.f32 %v2956, 0.5
    %v2967 = vtanh.pop %v2966
    %v2968 = vmul.f32 %v2967, 0.5
    %v2969 = vadd.f32 %v2968, 0.5
    %v2970 = vmul.f32 %v2964, %v2670
    %v2971 = vmul.f32 %v2960, %v2965
    %v2972 = vadd.f32 %v2970, %v2971
    %v2973 = vtanh.pop %v2972
    %v2974 = vmul.f32 %v2969, %v2973
    %2975 = vst [vmem:[#allocation2 + $0x38] sm:$0xff] %v2974
    %v2976 = vld [vmem:[#allocation2] sm:$0xff]
    %v2977 = vld [vmem:[#allocation2 + $0x8] sm:$0xff]
    %v2978 = vld [vmem:[#allocation2 + $0x10] sm:$0xff]
    %v2979 = vld [vmem:[#allocation2 + $0x18] sm:$0xff]
    %v2980 = vld [vmem:[#allocation2 + $0x20] sm:$0xff]
    %v2981 = vld [vmem:[#allocation2 + $0x28] sm:$0xff]
    %v2982 = vld [vmem:[#allocation2 + $0x30] sm:$0xff]
    %v2983 = vld [vmem:[#allocation2 + $0x38] sm:$0xff]
    %v2984 = vpack.c.bf16 %v2977, %v2976
    %v2985 = vpack.c.bf16 %v2979, %v2978
    %v2986 = vpack.c.bf16 %v2981, %v2980
    %v2987 = vpack.c.bf16 %v2983, %v2982
    %v2988 = vld [vmem:[#allocation9] sm:$0xff]
    %v2989 = vld [vmem:[#allocation9 + $0x8] sm:$0xff]
    %v2990 = vld [vmem:[#allocation9 + $0x10] sm:$0xff]
    %v2991 = vld [vmem:[#allocation9 + $0x18] sm:$0xff]
    %v2992 = vld [vmem:[#allocation9 + $0x20] sm:$0xff]
    %v2993 = vld [vmem:[#allocation9 + $0x28] sm:$0xff]
    %v2994 = vld [vmem:[#allocation9 + $0x30] sm:$0xff]
    %v2995 = vld [vmem:[#allocation9 + $0x38] sm:$0xff]
    %v2996 = vld [vmem:[#allocation9 + $0x40] sm:$0xff]
    %v2997 = vld [vmem:[#allocation9 + $0x48] sm:$0xff]
    %v2998 = vld [vmem:[#allocation9 + $0x50] sm:$0xff]
    %v2999 = vld [vmem:[#allocation9 + $0x58] sm:$0xff]
    %v3000 = vld [vmem:[#allocation9 + $0x60] sm:$0xff]
    %v3001 = vld [vmem:[#allocation9 + $0x68] sm:$0xff]
    %v3002 = vld [vmem:[#allocation9 + $0x70] sm:$0xff]
    %v3003 = vld [vmem:[#allocation9 + $0x78] sm:$0xff]
    %v3004 = vld [vmem:[#allocation9 + $0x80] sm:$0xff]
    %v3005 = vld [vmem:[#allocation9 + $0x88] sm:$0xff]
    %v3006 = vld [vmem:[#allocation9 + $0x90] sm:$0xff]
    %v3007 = vld [vmem:[#allocation9 + $0x98] sm:$0xff]
    %v3008 = vld [vmem:[#allocation9 + $0xa0] sm:$0xff]
    %v3009 = vld [vmem:[#allocation9 + $0xa8] sm:$0xff]
    %v3010 = vld [vmem:[#allocation9 + $0xb0] sm:$0xff]
    %v3011 = vld [vmem:[#allocation9 + $0xb8] sm:$0xff]
    %v3012 = vld [vmem:[#allocation9 + $0xc0] sm:$0xff]
    %v3013 = vld [vmem:[#allocation9 + $0xc8] sm:$0xff]
    %v3014 = vld [vmem:[#allocation9 + $0xd0] sm:$0xff]
    %v3015 = vld [vmem:[#allocation9 + $0xd8] sm:$0xff]
    %v3016 = vld [vmem:[#allocation9 + $0xe0] sm:$0xff]
    %v3017 = vld [vmem:[#allocation9 + $0xe8] sm:$0xff]
    %v3018 = vld [vmem:[#allocation9 + $0xf0] sm:$0xff]
    %v3019 = vld [vmem:[#allocation9 + $0xf8] sm:$0xff]
    %v3020 = vld [vmem:[%s6] sm:$0xf]
    %v3022 = vlaneseq
    %v3023 = vshrl.u32 %v3022, 7
    %v3024 = vsub.s32 0, %v3023
    %v3025 = vrot.slane %v3020, %v3024
    %v3026 = vlaneseq
    %v3027 = vshrl.u32 %v3026, 7
    %v3028 = vsub.s32 1, %v3027
    %v3029 = vrot.slane %v3020, %v3028
    %v3030 = vlaneseq
    %v3031 = vshrl.u32 %v3030, 7
    %v3032 = vsub.s32 2, %v3031
    %v3033 = vrot.slane %v3020, %v3032
    %v3034 = vlaneseq
    %v3035 = vshrl.u32 %v3034, 7
    %v3036 = vsub.s32 3, %v3035
    %v3037 = vrot.slane %v3020, %v3036
    %v3074 = vunpack.c.l.b16 %v2988
    %v3075 = vunpack.c.h.b16 %v2988
    %v3076 = vunpack.c.l.b16 %v2989
    %v3077 = vunpack.c.h.b16 %v2989
    %v3078 = vunpack.c.l.b16 %v2990
    %v3079 = vunpack.c.h.b16 %v2990
    %v3080 = vunpack.c.l.b16 %v2991
    %v3081 = vunpack.c.h.b16 %v2991
    %v3082 = vunpack.c.l.b16 %v2992
    %v3083 = vunpack.c.h.b16 %v2992
    %v3084 = vunpack.c.l.b16 %v2993
    %v3085 = vunpack.c.h.b16 %v2993
    %v3086 = vunpack.c.l.b16 %v2994
    %v3087 = vunpack.c.h.b16 %v2994
    %v3088 = vunpack.c.l.b16 %v2995
    %v3089 = vunpack.c.h.b16 %v2995
    %v3090 = vunpack.c.l.b16 %v2996
    %v3091 = vunpack.c.h.b16 %v2996
    %v3092 = vunpack.c.l.b16 %v2997
    %v3093 = vunpack.c.h.b16 %v2997
    %v3094 = vunpack.c.l.b16 %v2998
    %v3095 = vunpack.c.h.b16 %v2998
    %v3096 = vunpack.c.l.b16 %v2999
    %v3097 = vunpack.c.h.b16 %v2999
    %v3098 = vunpack.c.l.b16 %v3000
    %v3099 = vunpack.c.h.b16 %v3000
    %v3100 = vunpack.c.l.b16 %v3001
    %v3101 = vunpack.c.h.b16 %v3001
    %v3102 = vunpack.c.l.b16 %v3002
    %v3103 = vunpack.c.h.b16 %v3002
    %v3104 = vunpack.c.l.b16 %v3003
    %v3105 = vunpack.c.h.b16 %v3003
    %v3106 = vunpack.c.l.b16 %v3004
    %v3107 = vunpack.c.h.b16 %v3004
    %v3108 = vunpack.c.l.b16 %v3005
    %v3109 = vunpack.c.h.b16 %v3005
    %v3110 = vunpack.c.l.b16 %v3006
    %v3111 = vunpack.c.h.b16 %v3006
    %v3112 = vunpack.c.l.b16 %v3007
    %v3113 = vunpack.c.h.b16 %v3007
    %v3114 = vunpack.c.l.b16 %v3008
    %v3115 = vunpack.c.h.b16 %v3008
    %v3116 = vunpack.c.l.b16 %v3009
    %v3117 = vunpack.c.h.b16 %v3009
    %v3118 = vunpack.c.l.b16 %v3010
    %v3119 = vunpack.c.h.b16 %v3010
    %v3120 = vunpack.c.l.b16 %v3011
    %v3121 = vunpack.c.h.b16 %v3011
    %v3122 = vunpack.c.l.b16 %v3012
    %v3123 = vunpack.c.h.b16 %v3012
    %v3124 = vunpack.c.l.b16 %v3013
    %v3125 = vunpack.c.h.b16 %v3013
    %v3126 = vunpack.c.l.b16 %v3014
    %v3127 = vunpack.c.h.b16 %v3014
    %v3128 = vunpack.c.l.b16 %v3015
    %v3129 = vunpack.c.h.b16 %v3015
    %v3130 = vunpack.c.l.b16 %v3016
    %v3131 = vunpack.c.h.b16 %v3016
    %v3132 = vunpack.c.l.b16 %v3017
    %v3133 = vunpack.c.h.b16 %v3017
    %v3134 = vunpack.c.l.b16 %v3018
    %v3135 = vunpack.c.h.b16 %v3018
    %v3136 = vunpack.c.l.b16 %v3019
    %v3137 = vunpack.c.h.b16 %v3019
    %v3138 = vpack.c.b16 %v3078, %v3074
    %v3139 = vpack.c.b16 %v3079, %v3075
    %v3140 = vpack.c.b16 %v3080, %v3076
    %v3141 = vpack.c.b16 %v3081, %v3077
    %v3142 = vpack.c.b16 %v3086, %v3082
    %v3143 = vpack.c.b16 %v3087, %v3083
    %v3144 = vpack.c.b16 %v3088, %v3084
    %v3145 = vpack.c.b16 %v3089, %v3085
    %v3146 = vpack.c.b16 %v3094, %v3090
    %v3147 = vpack.c.b16 %v3095, %v3091
    %v3148 = vpack.c.b16 %v3096, %v3092
    %v3149 = vpack.c.b16 %v3097, %v3093
    %v3150 = vpack.c.b16 %v3102, %v3098
    %v3151 = vpack.c.b16 %v3103, %v3099
    %v3152 = vpack.c.b16 %v3104, %v3100
    %v3153 = vpack.c.b16 %v3105, %v3101
    %v3154 = vpack.c.b16 %v3110, %v3106
    %v3155 = vpack.c.b16 %v3111, %v3107
    %v3156 = vpack.c.b16 %v3112, %v3108
    %v3157 = vpack.c.b16 %v3113, %v3109
    %v3158 = vpack.c.b16 %v3118, %v3114
    %v3159 = vpack.c.b16 %v3119, %v3115
    %v3160 = vpack.c.b16 %v3120, %v3116
    %v3161 = vpack.c.b16 %v3121, %v3117
    %v3162 = vpack.c.b16 %v3126, %v3122
    %v3163 = vpack.c.b16 %v3127, %v3123
    %v3164 = vpack.c.b16 %v3128, %v3124
    %v3165 = vpack.c.b16 %v3129, %v3125
    %v3166 = vpack.c.b16 %v3134, %v3130
    %v3167 = vpack.c.b16 %v3135, %v3131
    %v3168 = vpack.c.b16 %v3136, %v3132
    %v3169 = vpack.c.b16 %v3137, %v3133
    %3202 = vmatprep.subr.bf16.mxu0 %v3167
    %3203 = vmatpush1.bf16.msra.mxu0 %v3166
    %3204 = vmatprep.subr.bf16.mxu0 %v3163
    %3205 = vmatpush1.bf16.msra.mxu0 %v3162
    %3206 = vmatprep.subr.bf16.mxu0 %v3159
    %3207 = vmatpush1.bf16.msra.mxu0 %v3158
    %3208 = vmatprep.subr.bf16.mxu0 %v3155
    %3209 = vmatpush1.bf16.msra.mxu0 %v3154
    %3210 = vmatprep.subr.bf16.mxu0 %v3151
    %3211 = vmatpush1.bf16.msra.mxu0 %v3150
    %3212 = vmatprep.subr.bf16.mxu0 %v3147
    %3213 = vmatpush1.bf16.msra.mxu0 %v3146
    %3214 = vmatprep.subr.bf16.mxu0 %v3143
    %3215 = vmatpush1.bf16.msra.mxu0 %v3142
    %3216 = vmatprep.subr.bf16.mxu0 %v3139
    %3217 = vmatpush1.bf16.msra.mxu0 %v3138
    %3218 = vmatprep.subr.bf16.mxu0 0
    %3219 = vmatpush2.bf16.msra.mxu0 0
    %3220 = vmatprep.subr.bf16.mxu0 0
    %3221 = vmatpush2.bf16.msra.mxu0 0
    %3222 = vmatprep.subr.bf16.mxu0 0
    %3223 = vmatpush2.bf16.msra.mxu0 0
    %3224 = vmatprep.subr.bf16.mxu0 0
    %3225 = vmatpush2.bf16.msra.mxu0 0
    %3226 = vmatprep.subr.bf16.mxu0 0
    %3227 = vmatpush2.bf16.msra.mxu0 0
    %3228 = vmatprep.subr.bf16.mxu0 0
    %3229 = vmatpush2.bf16.msra.mxu0 0
    %3230 = vmatprep.subr.bf16.mxu0 0
    %3231 = vmatpush2.bf16.msra.mxu0 0
    %3232 = vmatprep.subr.bf16.mxu0 0
    %3233 = vmatpush2.bf16.msra.mxu0 0
    %3234 = vmatprep.mubr.bf16.mxu0 0
    %3235 = vmatmul.mubr.bf16.gmra.mxu0 %v2984
    %v3236 = vpop.f32.mrf.mxu0
    %v3237 = vadd.f32 %v3025, %v3236
    %v3238 = vpop.f32.mrf.mxu0
    %v3239 = vadd.f32 %v3029, %v3238
    %v3240 = vpop.f32.mrf.mxu0
    %v3241 = vadd.f32 %v3025, %v3240
    %v3242 = vpop.f32.mrf.mxu0
    %v3243 = vadd.f32 %v3029, %v3242
    %3244 = vmatprep.mubr.bf16.mxu0 0
    %3245 = vmatmul.mubr.bf16.gmra.mxu0 %v2985
    %v3246 = vpop.f32.mrf.mxu0
    %v3247 = vadd.f32 %v3025, %v3246
    %v3248 = vpop.f32.mrf.mxu0
    %v3249 = vadd.f32 %v3029, %v3248
    %v3250 = vpop.f32.mrf.mxu0
    %v3251 = vadd.f32 %v3025, %v3250
    %v3252 = vpop.f32.mrf.mxu0
    %v3253 = vadd.f32 %v3029, %v3252
    %3254 = vmatprep.mubr.bf16.mxu0 0
    %3255 = vmatmul.mubr.bf16.gmra.mxu0 %v2986
    %v3256 = vpop.f32.mrf.mxu0
    %v3257 = vadd.f32 %v3025, %v3256
    %v3258 = vpop.f32.mrf.mxu0
    %v3259 = vadd.f32 %v3029, %v3258
    %v3260 = vpop.f32.mrf.mxu0
    %v3261 = vadd.f32 %v3025, %v3260
    %v3262 = vpop.f32.mrf.mxu0
    %v3263 = vadd.f32 %v3029, %v3262
    %3264 = vmatprep.mubr.bf16.mxu0 0
    %3265 = vmatmul.mubr.bf16.gmra.mxu0 %v2987
    %v3266 = vpop.f32.mrf.mxu0
    %v3267 = vadd.f32 %v3025, %v3266
    %v3268 = vpop.f32.mrf.mxu0
    %v3269 = vadd.f32 %v3029, %v3268
    %v3270 = vpop.f32.mrf.mxu0
    %v3271 = vadd.f32 %v3025, %v3270
    %v3272 = vpop.f32.mrf.mxu0
    %v3273 = vadd.f32 %v3029, %v3272
    %3274 = vdwg.mxu0
    %3275 = vmatprep.subr.bf16.mxu0 %v3169
    %3276 = vmatpush1.bf16.msra.mxu0 %v3168
    %3277 = vmatprep.subr.bf16.mxu0 %v3165
    %3278 = vmatpush1.bf16.msra.mxu0 %v3164
    %3279 = vmatprep.subr.bf16.mxu0 %v3161
    %3280 = vmatpush1.bf16.msra.mxu0 %v3160
    %3281 = vmatprep.subr.bf16.mxu0 %v3157
    %3282 = vmatpush1.bf16.msra.mxu0 %v3156
    %3283 = vmatprep.subr.bf16.mxu0 %v3153
    %3284 = vmatpush1.bf16.msra.mxu0 %v3152
    %3285 = vmatprep.subr.bf16.mxu0 %v3149
    %3286 = vmatpush1.bf16.msra.mxu0 %v3148
    %3287 = vmatprep.subr.bf16.mxu0 %v3145
    %3288 = vmatpush1.bf16.msra.mxu0 %v3144
    %3289 = vmatprep.subr.bf16.mxu0 %v3141
    %3290 = vmatpush1.bf16.msra.mxu0 %v3140
    %3291 = vmatprep.subr.bf16.mxu0 0
    %3292 = vmatpush2.bf16.msra.mxu0 0
    %3293 = vmatprep.subr.bf16.mxu0 0
    %3294 = vmatpush2.bf16.msra.mxu0 0
    %3295 = vmatprep.subr.bf16.mxu0 0
    %3296 = vmatpush2.bf16.msra.mxu0 0
    %3297 = vmatprep.subr.bf16.mxu0 0
    %3298 = vmatpush2.bf16.msra.mxu0 0
    %3299 = vmatprep.subr.bf16.mxu0 0
    %3300 = vmatpush2.bf16.msra.mxu0 0
    %3301 = vmatprep.subr.bf16.mxu0 0
    %3302 = vmatpush2.bf16.msra.mxu0 0
    %3303 = vmatprep.subr.bf16.mxu0 0
    %3304 = vmatpush2.bf16.msra.mxu0 0
    %3305 = vmatprep.subr.bf16.mxu0 0
    %3306 = vmatpush2.bf16.msra.mxu0 0
    %3307 = vmatprep.mubr.bf16.mxu0 0
    %3308 = vmatmul.mubr.bf16.gmra.mxu0 %v2984
    %v3309 = vpop.f32.mrf.mxu0
    %v3310 = vadd.f32 %v3033, %v3309
    %v3311 = vpop.f32.mrf.mxu0
    %v3312 = vadd.f32 %v3037, %v3311
    %v3313 = vpop.f32.mrf.mxu0
    %v3314 = vadd.f32 %v3033, %v3313
    %v3315 = vpop.f32.mrf.mxu0
    %v3316 = vadd.f32 %v3037, %v3315
    %3317 = vmatprep.mubr.bf16.mxu0 0
    %3318 = vmatmul.mubr.bf16.gmra.mxu0 %v2985
    %v3319 = vpop.f32.mrf.mxu0
    %v3320 = vadd.f32 %v3033, %v3319
    %v3321 = vpop.f32.mrf.mxu0
    %v3322 = vadd.f32 %v3037, %v3321
    %v3323 = vpop.f32.mrf.mxu0
    %v3324 = vadd.f32 %v3033, %v3323
    %v3325 = vpop.f32.mrf.mxu0
    %v3326 = vadd.f32 %v3037, %v3325
    %3327 = vmatprep.mubr.bf16.mxu0 0
    %3328 = vmatmul.mubr.bf16.gmra.mxu0 %v2986
    %v3329 = vpop.f32.mrf.mxu0
    %v3330 = vadd.f32 %v3033, %v3329
    %v3331 = vpop.f32.mrf.mxu0
    %v3332 = vadd.f32 %v3037, %v3331
    %v3333 = vpop.f32.mrf.mxu0
    %v3334 = vadd.f32 %v3033, %v3333
    %v3335 = vpop.f32.mrf.mxu0
    %v3336 = vadd.f32 %v3037, %v3335
    %3337 = vmatprep.mubr.bf16.mxu0 0
    %3338 = vmatmul.mubr.bf16.gmra.mxu0 %v2987
    %v3339 = vpop.f32.mrf.mxu0
    %v3340 = vadd.f32 %v3033, %v3339
    %v3341 = vpop.f32.mrf.mxu0
    %v3342 = vadd.f32 %v3037, %v3341
    %v3343 = vpop.f32.mrf.mxu0
    %v3344 = vadd.f32 %v3033, %v3343
    %v3345 = vpop.f32.mrf.mxu0
    %v3346 = vadd.f32 %v3037, %v3345
    %3347 = vdwg.mxu0
    %3348 = vst [vmem:[#allocation4] sm:$0xff] %v3237
    %3349 = vst [vmem:[#allocation4 + $0x8] sm:$0xff] %v3239
    %3350 = vst [vmem:[#allocation4 + $0x10] sm:$0xff] %v3310
    %3351 = vst [vmem:[#allocation4 + $0x18] sm:$0xff] %v3312
    %3352 = vst [vmem:[#allocation4 + $0x20] sm:$0xff] %v3241
    %3353 = vst [vmem:[#allocation4 + $0x28] sm:$0xff] %v3243
    %3354 = vst [vmem:[#allocation4 + $0x30] sm:$0xff] %v3314
    %3355 = vst [vmem:[#allocation4 + $0x38] sm:$0xff] %v3316
    %3356 = vst [vmem:[#allocation4 + $0x40] sm:$0xff] %v3247
    %3357 = vst [vmem:[#allocation4 + $0x48] sm:$0xff] %v3249
    %3358 = vst [vmem:[#allocation4 + $0x50] sm:$0xff] %v3320
    %3359 = vst [vmem:[#allocation4 + $0x58] sm:$0xff] %v3322
    %3360 = vst [vmem:[#allocation4 + $0x60] sm:$0xff] %v3251
    %3361 = vst [vmem:[#allocation4 + $0x68] sm:$0xff] %v3253
    %3362 = vst [vmem:[#allocation4 + $0x70] sm:$0xff] %v3324
    %3363 = vst [vmem:[#allocation4 + $0x78] sm:$0xff] %v3326
    %3364 = vst [vmem:[#allocation4 + $0x80] sm:$0xff] %v3257
    %3365 = vst [vmem:[#allocation4 + $0x88] sm:$0xff] %v3259
    %3366 = vst [vmem:[#allocation4 + $0x90] sm:$0xff] %v3330
    %3367 = vst [vmem:[#allocation4 + $0x98] sm:$0xff] %v3332
    %3368 = vst [vmem:[#allocation4 + $0xa0] sm:$0xff] %v3261
    %3369 = vst [vmem:[#allocation4 + $0xa8] sm:$0xff] %v3263
    %3370 = vst [vmem:[#allocation4 + $0xb0] sm:$0xff] %v3334
    %3371 = vst [vmem:[#allocation4 + $0xb8] sm:$0xff] %v3336
    %3372 = vst [vmem:[#allocation4 + $0xc0] sm:$0xff] %v3267
    %3373 = vst [vmem:[#allocation4 + $0xc8] sm:$0xff] %v3269
    %3374 = vst [vmem:[#allocation4 + $0xd0] sm:$0xff] %v3340
    %3375 = vst [vmem:[#allocation4 + $0xd8] sm:$0xff] %v3342
    %3376 = vst [vmem:[#allocation4 + $0xe0] sm:$0xff] %v3271
    %3377 = vst [vmem:[#allocation4 + $0xe8] sm:$0xff] %v3273
    %3378 = vst [vmem:[#allocation4 + $0xf0] sm:$0xff] %v3344
    %3379 = vst [vmem:[#allocation4 + $0xf8] sm:$0xff] %v3346
    %v3380 = vld [vmem:[#allocation4] sm:$0xff]
    %v3381 = vld [vmem:[#allocation4 + $0x8] sm:$0xff]
    %v3382 = vld [vmem:[#allocation4 + $0x10] sm:$0xff]
    %v3383 = vld [vmem:[#allocation4 + $0x18] sm:$0xff]
    %v3384 = vld [vmem:[#allocation10] sm:$0xff]
    %v3385 = vld [vmem:[#allocation10 + $0x8] sm:$0xff]
    %v3386 = vld [vmem:[#allocation10 + $0x10] sm:$0xff]
    %v3387 = vld [vmem:[#allocation10 + $0x18] sm:$0xff]
    %v3388 = vld [vmem:[#allocation10 + $0x20] sm:$0xff]
    %v3389 = vld [vmem:[#allocation10 + $0x28] sm:$0xff]
    %v3390 = vld [vmem:[#allocation10 + $0x30] sm:$0xff]
    %v3391 = vld [vmem:[#allocation10 + $0x38] sm:$0xff]
    %v3392 = vld [vmem:[#allocation10 + $0x40] sm:$0xff]
    %v3393 = vld [vmem:[#allocation10 + $0x48] sm:$0xff]
    %v3394 = vld [vmem:[#allocation10 + $0x50] sm:$0xff]
    %v3395 = vld [vmem:[#allocation10 + $0x58] sm:$0xff]
    %v3396 = vld [vmem:[#allocation10 + $0x60] sm:$0xff]
    %v3397 = vld [vmem:[#allocation10 + $0x68] sm:$0xff]
    %v3398 = vld [vmem:[#allocation10 + $0x70] sm:$0xff]
    %v3399 = vld [vmem:[#allocation10 + $0x78] sm:$0xff]
    %v3400 = vld [vmem:[#allocation10 + $0x80] sm:$0xff]
    %v3401 = vld [vmem:[#allocation10 + $0x88] sm:$0xff]
    %v3402 = vld [vmem:[#allocation10 + $0x90] sm:$0xff]
    %v3403 = vld [vmem:[#allocation10 + $0x98] sm:$0xff]
    %v3404 = vld [vmem:[#allocation10 + $0xa0] sm:$0xff]
    %v3405 = vld [vmem:[#allocation10 + $0xa8] sm:$0xff]
    %v3406 = vld [vmem:[#allocation10 + $0xb0] sm:$0xff]
    %v3407 = vld [vmem:[#allocation10 + $0xb8] sm:$0xff]
    %v3408 = vld [vmem:[#allocation10 + $0xc0] sm:$0xff]
    %v3409 = vld [vmem:[#allocation10 + $0xc8] sm:$0xff]
    %v3410 = vld [vmem:[#allocation10 + $0xd0] sm:$0xff]
    %v3411 = vld [vmem:[#allocation10 + $0xd8] sm:$0xff]
    %v3412 = vld [vmem:[#allocation10 + $0xe0] sm:$0xff]
    %v3413 = vld [vmem:[#allocation10 + $0xe8] sm:$0xff]
    %v3414 = vld [vmem:[#allocation10 + $0xf0] sm:$0xff]
    %v3415 = vld [vmem:[#allocation10 + $0xf8] sm:$0xff]
    %v3448 = vunpack.c.l.b16 %v3384
    %v3449 = vunpack.c.h.b16 %v3384
    %v3450 = vunpack.c.l.b16 %v3385
    %v3451 = vunpack.c.h.b16 %v3385
    %v3452 = vunpack.c.l.b16 %v3386
    %v3453 = vunpack.c.h.b16 %v3386
    %v3454 = vunpack.c.l.b16 %v3387
    %v3455 = vunpack.c.h.b16 %v3387
    %v3456 = vunpack.c.l.b16 %v3388
    %v3457 = vunpack.c.h.b16 %v3388
    %v3458 = vunpack.c.l.b16 %v3389
    %v3459 = vunpack.c.h.b16 %v3389
    %v3460 = vunpack.c.l.b16 %v3390
    %v3461 = vunpack.c.h.b16 %v3390
    %v3462 = vunpack.c.l.b16 %v3391
    %v3463 = vunpack.c.h.b16 %v3391
    %v3464 = vunpack.c.l.b16 %v3392
    %v3465 = vunpack.c.h.b16 %v3392
    %v3466 = vunpack.c.l.b16 %v3393
    %v3467 = vunpack.c.h.b16 %v3393
    %v3468 = vunpack.c.l.b16 %v3394
    %v3469 = vunpack.c.h.b16 %v3394
    %v3470 = vunpack.c.l.b16 %v3395
    %v3471 = vunpack.c.h.b16 %v3395
    %v3472 = vunpack.c.l.b16 %v3396
    %v3473 = vunpack.c.h.b16 %v3396
    %v3474 = vunpack.c.l.b16 %v3397
    %v3475 = vunpack.c.h.b16 %v3397
    %v3476 = vunpack.c.l.b16 %v3398
    %v3477 = vunpack.c.h.b16 %v3398
    %v3478 = vunpack.c.l.b16 %v3399
    %v3479 = vunpack.c.h.b16 %v3399
    %v3480 = vunpack.c.l.b16 %v3400
    %v3481 = vunpack.c.h.b16 %v3400
    %v3482 = vunpack.c.l.b16 %v3401
    %v3483 = vunpack.c.h.b16 %v3401
    %v3484 = vunpack.c.l.b16 %v3402
    %v3485 = vunpack.c.h.b16 %v3402
    %v3486 = vunpack.c.l.b16 %v3403
    %v3487 = vunpack.c.h.b16 %v3403
    %v3488 = vunpack.c.l.b16 %v3404
    %v3489 = vunpack.c.h.b16 %v3404
    %v3490 = vunpack.c.l.b16 %v3405
    %v3491 = vunpack.c.h.b16 %v3405
    %v3492 = vunpack.c.l.b16 %v3406
    %v3493 = vunpack.c.h.b16 %v3406
    %v3494 = vunpack.c.l.b16 %v3407
    %v3495 = vunpack.c.h.b16 %v3407
    %v3496 = vunpack.c.l.b16 %v3408
    %v3497 = vunpack.c.h.b16 %v3408
    %v3498 = vunpack.c.l.b16 %v3409
    %v3499 = vunpack.c.h.b16 %v3409
    %v3500 = vunpack.c.l.b16 %v3410
    %v3501 = vunpack.c.h.b16 %v3410
    %v3502 = vunpack.c.l.b16 %v3411
    %v3503 = vunpack.c.h.b16 %v3411
    %v3504 = vunpack.c.l.b16 %v3412
    %v3505 = vunpack.c.h.b16 %v3412
    %v3506 = vunpack.c.l.b16 %v3413
    %v3507 = vunpack.c.h.b16 %v3413
    %v3508 = vunpack.c.l.b16 %v3414
    %v3509 = vunpack.c.h.b16 %v3414
    %v3510 = vunpack.c.l.b16 %v3415
    %v3511 = vunpack.c.h.b16 %v3415
    %v3512 = vpack.c.b16 %v3452, %v3448
    %v3513 = vpack.c.b16 %v3453, %v3449
    %v3514 = vpack.c.b16 %v3454, %v3450
    %v3515 = vpack.c.b16 %v3455, %v3451
    %v3516 = vpack.c.b16 %v3460, %v3456
    %v3517 = vpack.c.b16 %v3461, %v3457
    %v3518 = vpack.c.b16 %v3462, %v3458
    %v3519 = vpack.c.b16 %v3463, %v3459
    %v3520 = vpack.c.b16 %v3468, %v3464
    %v3521 = vpack.c.b16 %v3469, %v3465
    %v3522 = vpack.c.b16 %v3470, %v3466
    %v3523 = vpack.c.b16 %v3471, %v3467
    %v3524 = vpack.c.b16 %v3476, %v3472
    %v3525 = vpack.c.b16 %v3477, %v3473
    %v3526 = vpack.c.b16 %v3478, %v3474
    %v3527 = vpack.c.b16 %v3479, %v3475
    %v3528 = vpack.c.b16 %v3484, %v3480
    %v3529 = vpack.c.b16 %v3485, %v3481
    %v3530 = vpack.c.b16 %v3486, %v3482
    %v3531 = vpack.c.b16 %v3487, %v3483
    %v3532 = vpack.c.b16 %v3492, %v3488
    %v3533 = vpack.c.b16 %v3493, %v3489
    %v3534 = vpack.c.b16 %v3494, %v3490
    %v3535 = vpack.c.b16 %v3495, %v3491
    %v3536 = vpack.c.b16 %v3500, %v3496
    %v3537 = vpack.c.b16 %v3501, %v3497
    %v3538 = vpack.c.b16 %v3502, %v3498
    %v3539 = vpack.c.b16 %v3503, %v3499
    %v3540 = vpack.c.b16 %v3508, %v3504
    %v3541 = vpack.c.b16 %v3509, %v3505
    %v3542 = vpack.c.b16 %v3510, %v3506
    %v3543 = vpack.c.b16 %v3511, %v3507
    %3576 = vmatprep.subr.bf16.mxu0 %v3541
    %3577 = vmatpush1.bf16.msra.mxu0 %v3540
    %3578 = vmatprep.subr.bf16.mxu0 %v3537
    %3579 = vmatpush1.bf16.msra.mxu0 %v3536
    %3580 = vmatprep.subr.bf16.mxu0 %v3533
    %3581 = vmatpush1.bf16.msra.mxu0 %v3532
    %3582 = vmatprep.subr.bf16.mxu0 %v3529
    %3583 = vmatpush1.bf16.msra.mxu0 %v3528
    %3584 = vmatprep.subr.bf16.mxu0 %v3525
    %3585 = vmatpush1.bf16.msra.mxu0 %v3524
    %3586 = vmatprep.subr.bf16.mxu0 %v3521
    %3587 = vmatpush1.bf16.msra.mxu0 %v3520
    %3588 = vmatprep.subr.bf16.mxu0 %v3517
    %3589 = vmatpush1.bf16.msra.mxu0 %v3516
    %3590 = vmatprep.subr.bf16.mxu0 %v3513
    %3591 = vmatpush1.bf16.msra.mxu0 %v3512
    %3592 = vmatprep.subr.bf16.mxu0 0
    %3593 = vmatpush2.bf16.msra.mxu0 0
    %3594 = vmatprep.subr.bf16.mxu0 0
    %3595 = vmatpush2.bf16.msra.mxu0 0
    %3596 = vmatprep.subr.bf16.mxu0 0
    %3597 = vmatpush2.bf16.msra.mxu0 0
    %3598 = vmatprep.subr.bf16.mxu0 0
    %3599 = vmatpush2.bf16.msra.mxu0 0
    %3600 = vmatprep.subr.bf16.mxu0 0
    %3601 = vmatpush2.bf16.msra.mxu0 0
    %3602 = vmatprep.subr.bf16.mxu0 0
    %3603 = vmatpush2.bf16.msra.mxu0 0
    %3604 = vmatprep.subr.bf16.mxu0 0
    %3605 = vmatpush2.bf16.msra.mxu0 0
    %3606 = vmatprep.subr.bf16.mxu0 0
    %3607 = vmatpush2.bf16.msra.mxu0 0
    %3608 = vmatprep.mubr.bf16.mxu0 0
    %3609 = vmatmul.mubr.bf16.gmra.mxu0 0
    %v3610 = vpop.f32.mrf.mxu0
    %v3611 = vadd.f32 0.0, %v3610
    %v3612 = vpop.f32.mrf.mxu0
    %v3613 = vadd.f32 0.0, %v3612
    %v3614 = vpop.f32.mrf.mxu0
    %v3615 = vpop.f32.mrf.mxu0
    %3616 = vdwg.mxu0
    %3617 = vmatprep.subr.bf16.mxu0 %v3543
    %3618 = vmatpush1.bf16.msra.mxu0 %v3542
    %3619 = vmatprep.subr.bf16.mxu0 %v3539
    %3620 = vmatpush1.bf16.msra.mxu0 %v3538
    %3621 = vmatprep.subr.bf16.mxu0 %v3535
    %3622 = vmatpush1.bf16.msra.mxu0 %v3534
    %3623 = vmatprep.subr.bf16.mxu0 %v3531
    %3624 = vmatpush1.bf16.msra.mxu0 %v3530
    %3625 = vmatprep.subr.bf16.mxu0 %v3527
    %3626 = vmatpush1.bf16.msra.mxu0 %v3526
    %3627 = vmatprep.subr.bf16.mxu0 %v3523
    %3628 = vmatpush1.bf16.msra.mxu0 %v3522
    %3629 = vmatprep.subr.bf16.mxu0 %v3519
    %3630 = vmatpush1.bf16.msra.mxu0 %v3518
    %3631 = vmatprep.subr.bf16.mxu0 %v3515
    %3632 = vmatpush1.bf16.msra.mxu0 %v3514
    %3633 = vmatprep.subr.bf16.mxu0 0
    %3634 = vmatpush2.bf16.msra.mxu0 0
    %3635 = vmatprep.subr.bf16.mxu0 0
    %3636 = vmatpush2.bf16.msra.mxu0 0
    %3637 = vmatprep.subr.bf16.mxu0 0
    %3638 = vmatpush2.bf16.msra.mxu0 0
    %3639 = vmatprep.subr.bf16.mxu0 0
    %3640 = vmatpush2.bf16.msra.mxu0 0
    %3641 = vmatprep.subr.bf16.mxu0 0
    %3642 = vmatpush2.bf16.msra.mxu0 0
    %3643 = vmatprep.subr.bf16.mxu0 0
    %3644 = vmatpush2.bf16.msra.mxu0 0
    %3645 = vmatprep.subr.bf16.mxu0 0
    %3646 = vmatpush2.bf16.msra.mxu0 0
    %3647 = vmatprep.subr.bf16.mxu0 0
    %3648 = vmatpush2.bf16.msra.mxu0 0
    %3649 = vmatprep.mubr.bf16.mxu0 0
    %3650 = vmatmul.mubr.bf16.gmra.mxu0 0
    %v3651 = vpop.f32.mrf.mxu0
    %v3652 = vadd.f32 0.0, %v3651
    %v3653 = vpop.f32.mrf.mxu0
    %v3654 = vadd.f32 0.0, %v3653
    %v3655 = vpop.f32.mrf.mxu0
    %v3656 = vpop.f32.mrf.mxu0
    %3657 = vdwg.mxu0
    %v3658 = vadd.f32 %v3380, %v3611
    %v3659 = vadd.f32 %v3381, %v3613
    %v3660 = vadd.f32 %v3382, %v3652
    %v3661 = vadd.f32 %v3383, %v3654
    %v3662 = vmul.f32 %v3658, 0.5
    %v3663 = vtanh.pop %v3662
    %v3664 = vmul.f32 %v3663, 0.5
    %v3665 = vadd.f32 %v3664, 0.5
    %v3666 = vmul.f32 %v3659, 0.5
    %v3667 = vtanh.pop %v3666
    %v3668 = vmul.f32 %v3667, 0.5
    %v3669 = vadd.f32 %v3668, 0.5
    %v3670 = vtanh.pop %v3660
    %v3671 = vmul.f32 %v3661, 0.5
    %v3672 = vtanh.pop %v3671
    %v3673 = vmul.f32 %v3672, 0.5
    %v3674 = vadd.f32 %v3673, 0.5
    %v3675 = vmul.f32 %v3669, 0.0
    %v3676 = vmul.f32 %v3665, %v3670
    %v3677 = vadd.f32 %v3675, %v3676
    %v3678 = vtanh.pop %v3677
    %v3679 = vmul.f32 %v3674, %v3678
    %v3680 = vpack.c.bf16 %v3679, %v3679
    %3681 = vst [vmem:[#allocation3] sm:$0xff] %v3679
    %v3682 = vld [vmem:[#allocation4 + $0x20] sm:$0xff]
    %v3683 = vld [vmem:[#allocation4 + $0x28] sm:$0xff]
    %v3684 = vld [vmem:[#allocation4 + $0x30] sm:$0xff]
    %v3685 = vld [vmem:[#allocation4 + $0x38] sm:$0xff]
    %v3686 = vld [vmem:[#allocation10] sm:$0xff]
    %v3687 = vld [vmem:[#allocation10 + $0x8] sm:$0xff]
    %v3688 = vld [vmem:[#allocation10 + $0x10] sm:$0xff]
    %v3689 = vld [vmem:[#allocation10 + $0x18] sm:$0xff]
    %v3690 = vld [vmem:[#allocation10 + $0x20] sm:$0xff]
    %v3691 = vld [vmem:[#allocation10 + $0x28] sm:$0xff]
    %v3692 = vld [vmem:[#allocation10 + $0x30] sm:$0xff]
    %v3693 = vld [vmem:[#allocation10 + $0x38] sm:$0xff]
    %v3694 = vld [vmem:[#allocation10 + $0x40] sm:$0xff]
    %v3695 = vld [vmem:[#allocation10 + $0x48] sm:$0xff]
    %v3696 = vld [vmem:[#allocation10 + $0x50] sm:$0xff]
    %v3697 = vld [vmem:[#allocation10 + $0x58] sm:$0xff]
    %v3698 = vld [vmem:[#allocation10 + $0x60] sm:$0xff]
    %v3699 = vld [vmem:[#allocation10 + $0x68] sm:$0xff]
    %v3700 = vld [vmem:[#allocation10 + $0x70] sm:$0xff]
    %v3701 = vld [vmem:[#allocation10 + $0x78] sm:$0xff]
    %v3702 = vld [vmem:[#allocation10 + $0x80] sm:$0xff]
    %v3703 = vld [vmem:[#allocation10 + $0x88] sm:$0xff]
    %v3704 = vld [vmem:[#allocation10 + $0x90] sm:$0xff]
    %v3705 = vld [vmem:[#allocation10 + $0x98] sm:$0xff]
    %v3706 = vld [vmem:[#allocation10 + $0xa0] sm:$0xff]
    %v3707 = vld [vmem:[#allocation10 + $0xa8] sm:$0xff]
    %v3708 = vld [vmem:[#allocation10 + $0xb0] sm:$0xff]
    %v3709 = vld [vmem:[#allocation10 + $0xb8] sm:$0xff]
    %v3710 = vld [vmem:[#allocation10 + $0xc0] sm:$0xff]
    %v3711 = vld [vmem:[#allocation10 + $0xc8] sm:$0xff]
    %v3712 = vld [vmem:[#allocation10 + $0xd0] sm:$0xff]
    %v3713 = vld [vmem:[#allocation10 + $0xd8] sm:$0xff]
    %v3714 = vld [vmem:[#allocation10 + $0xe0] sm:$0xff]
    %v3715 = vld [vmem:[#allocation10 + $0xe8] sm:$0xff]
    %v3716 = vld [vmem:[#allocation10 + $0xf0] sm:$0xff]
    %v3717 = vld [vmem:[#allocation10 + $0xf8] sm:$0xff]
    %v3750 = vunpack.c.l.b16 %v3686
    %v3751 = vunpack.c.h.b16 %v3686
    %v3752 = vunpack.c.l.b16 %v3687
    %v3753 = vunpack.c.h.b16 %v3687
    %v3754 = vunpack.c.l.b16 %v3688
    %v3755 = vunpack.c.h.b16 %v3688
    %v3756 = vunpack.c.l.b16 %v3689
    %v3757 = vunpack.c.h.b16 %v3689
    %v3758 = vunpack.c.l.b16 %v3690
    %v3759 = vunpack.c.h.b16 %v3690
    %v3760 = vunpack.c.l.b16 %v3691
    %v3761 = vunpack.c.h.b16 %v3691
    %v3762 = vunpack.c.l.b16 %v3692
    %v3763 = vunpack.c.h.b16 %v3692
    %v3764 = vunpack.c.l.b16 %v3693
    %v3765 = vunpack.c.h.b16 %v3693
    %v3766 = vunpack.c.l.b16 %v3694
    %v3767 = vunpack.c.h.b16 %v3694
    %v3768 = vunpack.c.l.b16 %v3695
    %v3769 = vunpack.c.h.b16 %v3695
    %v3770 = vunpack.c.l.b16 %v3696
    %v3771 = vunpack.c.h.b16 %v3696
    %v3772 = vunpack.c.l.b16 %v3697
    %v3773 = vunpack.c.h.b16 %v3697
    %v3774 = vunpack.c.l.b16 %v3698
    %v3775 = vunpack.c.h.b16 %v3698
    %v3776 = vunpack.c.l.b16 %v3699
    %v3777 = vunpack.c.h.b16 %v3699
    %v3778 = vunpack.c.l.b16 %v3700
    %v3779 = vunpack.c.h.b16 %v3700
    %v3780 = vunpack.c.l.b16 %v3701
    %v3781 = vunpack.c.h.b16 %v3701
    %v3782 = vunpack.c.l.b16 %v3702
    %v3783 = vunpack.c.h.b16 %v3702
    %v3784 = vunpack.c.l.b16 %v3703
    %v3785 = vunpack.c.h.b16 %v3703
    %v3786 = vunpack.c.l.b16 %v3704
    %v3787 = vunpack.c.h.b16 %v3704
    %v3788 = vunpack.c.l.b16 %v3705
    %v3789 = vunpack.c.h.b16 %v3705
    %v3790 = vunpack.c.l.b16 %v3706
    %v3791 = vunpack.c.h.b16 %v3706
    %v3792 = vunpack.c.l.b16 %v3707
    %v3793 = vunpack.c.h.b16 %v3707
    %v3794 = vunpack.c.l.b16 %v3708
    %v3795 = vunpack.c.h.b16 %v3708
    %v3796 = vunpack.c.l.b16 %v3709
    %v3797 = vunpack.c.h.b16 %v3709
    %v3798 = vunpack.c.l.b16 %v3710
    %v3799 = vunpack.c.h.b16 %v3710
    %v3800 = vunpack.c.l.b16 %v3711
    %v3801 = vunpack.c.h.b16 %v3711
    %v3802 = vunpack.c.l.b16 %v3712
    %v3803 = vunpack.c.h.b16 %v3712
    %v3804 = vunpack.c.l.b16 %v3713
    %v3805 = vunpack.c.h.b16 %v3713
    %v3806 = vunpack.c.l.b16 %v3714
    %v3807 = vunpack.c.h.b16 %v3714
    %v3808 = vunpack.c.l.b16 %v3715
    %v3809 = vunpack.c.h.b16 %v3715
    %v3810 = vunpack.c.l.b16 %v3716
    %v3811 = vunpack.c.h.b16 %v3716
    %v3812 = vunpack.c.l.b16 %v3717
    %v3813 = vunpack.c.h.b16 %v3717
    %v3814 = vpack.c.b16 %v3754, %v3750
    %v3815 = vpack.c.b16 %v3755, %v3751
    %v3816 = vpack.c.b16 %v3756, %v3752
    %v3817 = vpack.c.b16 %v3757, %v3753
    %v3818 = vpack.c.b16 %v3762, %v3758
    %v3819 = vpack.c.b16 %v3763, %v3759
    %v3820 = vpack.c.b16 %v3764, %v3760
    %v3821 = vpack.c.b16 %v3765, %v3761
    %v3822 = vpack.c.b16 %v3770, %v3766
    %v3823 = vpack.c.b16 %v3771, %v3767
    %v3824 = vpack.c.b16 %v3772, %v3768
    %v3825 = vpack.c.b16 %v3773, %v3769
    %v3826 = vpack.c.b16 %v3778, %v3774
    %v3827 = vpack.c.b16 %v3779, %v3775
    %v3828 = vpack.c.b16 %v3780, %v3776
    %v3829 = vpack.c.b16 %v3781, %v3777
    %v3830 = vpack.c.b16 %v3786, %v3782
    %v3831 = vpack.c.b16 %v3787, %v3783
    %v3832 = vpack.c.b16 %v3788, %v3784
    %v3833 = vpack.c.b16 %v3789, %v3785
    %v3834 = vpack.c.b16 %v3794, %v3790
    %v3835 = vpack.c.b16 %v3795, %v3791
    %v3836 = vpack.c.b16 %v3796, %v3792
    %v3837 = vpack.c.b16 %v3797, %v3793
    %v3838 = vpack.c.b16 %v3802, %v3798
    %v3839 = vpack.c.b16 %v3803, %v3799
    %v3840 = vpack.c.b16 %v3804, %v3800
    %v3841 = vpack.c.b16 %v3805, %v3801
    %v3842 = vpack.c.b16 %v3810, %v3806
    %v3843 = vpack.c.b16 %v3811, %v3807
    %v3844 = vpack.c.b16 %v3812, %v3808
    %v3845 = vpack.c.b16 %v3813, %v3809
    %3878 = vmatprep.subr.bf16.mxu0 %v3843
    %3879 = vmatpush1.bf16.msra.mxu0 %v3842
    %3880 = vmatprep.subr.bf16.mxu0 %v3839
    %3881 = vmatpush1.bf16.msra.mxu0 %v3838
    %3882 = vmatprep.subr.bf16.mxu0 %v3835
    %3883 = vmatpush1.bf16.msra.mxu0 %v3834
    %3884 = vmatprep.subr.bf16.mxu0 %v3831
    %3885 = vmatpush1.bf16.msra.mxu0 %v3830
    %3886 = vmatprep.subr.bf16.mxu0 %v3827
    %3887 = vmatpush1.bf16.msra.mxu0 %v3826
    %3888 = vmatprep.subr.bf16.mxu0 %v3823
    %3889 = vmatpush1.bf16.msra.mxu0 %v3822
    %3890 = vmatprep.subr.bf16.mxu0 %v3819
    %3891 = vmatpush1.bf16.msra.mxu0 %v3818
    %3892 = vmatprep.subr.bf16.mxu0 %v3815
    %3893 = vmatpush1.bf16.msra.mxu0 %v3814
    %3894 = vmatprep.subr.bf16.mxu0 0
    %3895 = vmatpush2.bf16.msra.mxu0 0
    %3896 = vmatprep.subr.bf16.mxu0 0
    %3897 = vmatpush2.bf16.msra.mxu0 0
    %3898 = vmatprep.subr.bf16.mxu0 0
    %3899 = vmatpush2.bf16.msra.mxu0 0
    %3900 = vmatprep.subr.bf16.mxu0 0
    %3901 = vmatpush2.bf16.msra.mxu0 0
    %3902 = vmatprep.subr.bf16.mxu0 0
    %3903 = vmatpush2.bf16.msra.mxu0 0
    %3904 = vmatprep.subr.bf16.mxu0 0
    %3905 = vmatpush2.bf16.msra.mxu0 0
    %3906 = vmatprep.subr.bf16.mxu0 0
    %3907 = vmatpush2.bf16.msra.mxu0 0
    %3908 = vmatprep.subr.bf16.mxu0 0
    %3909 = vmatpush2.bf16.msra.mxu0 0
    %3910 = vmatprep.mubr.bf16.mxu0 0
    %3911 = vmatmul.mubr.bf16.gmra.mxu0 %v3680
    %v3912 = vpop.f32.mrf.mxu0
    %v3913 = vadd.f32 0.0, %v3912
    %v3914 = vpop.f32.mrf.mxu0
    %v3915 = vadd.f32 0.0, %v3914
    %v3916 = vpop.f32.mrf.mxu0
    %v3917 = vpop.f32.mrf.mxu0
    %3918 = vdwg.mxu0
    %3919 = vmatprep.subr.bf16.mxu0 %v3845
    %3920 = vmatpush1.bf16.msra.mxu0 %v3844
    %3921 = vmatprep.subr.bf16.mxu0 %v3841
    %3922 = vmatpush1.bf16.msra.mxu0 %v3840
    %3923 = vmatprep.subr.bf16.mxu0 %v3837
    %3924 = vmatpush1.bf16.msra.mxu0 %v3836
    %3925 = vmatprep.subr.bf16.mxu0 %v3833
    %3926 = vmatpush1.bf16.msra.mxu0 %v3832
    %3927 = vmatprep.subr.bf16.mxu0 %v3829
    %3928 = vmatpush1.bf16.msra.mxu0 %v3828
    %3929 = vmatprep.subr.bf16.mxu0 %v3825
    %3930 = vmatpush1.bf16.msra.mxu0 %v3824
    %3931 = vmatprep.subr.bf16.mxu0 %v3821
    %3932 = vmatpush1.bf16.msra.mxu0 %v3820
    %3933 = vmatprep.subr.bf16.mxu0 %v3817
    %3934 = vmatpush1.bf16.msra.mxu0 %v3816
    %3935 = vmatprep.subr.bf16.mxu0 0
    %3936 = vmatpush2.bf16.msra.mxu0 0
    %3937 = vmatprep.subr.bf16.mxu0 0
    %3938 = vmatpush2.bf16.msra.mxu0 0
    %3939 = vmatprep.subr.bf16.mxu0 0
    %3940 = vmatpush2.bf16.msra.mxu0 0
    %3941 = vmatprep.subr.bf16.mxu0 0
    %3942 = vmatpush2.bf16.msra.mxu0 0
    %3943 = vmatprep.subr.bf16.mxu0 0
    %3944 = vmatpush2.bf16.msra.mxu0 0
    %3945 = vmatprep.subr.bf16.mxu0 0
    %3946 = vmatpush2.bf16.msra.mxu0 0
    %3947 = vmatprep.subr.bf16.mxu0 0
    %3948 = vmatpush2.bf16.msra.mxu0 0
    %3949 = vmatprep.subr.bf16.mxu0 0
    %3950 = vmatpush2.bf16.msra.mxu0 0
    %3951 = vmatprep.mubr.bf16.mxu0 0
    %3952 = vmatmul.mubr.bf16.gmra.mxu0 %v3680
    %v3953 = vpop.f32.mrf.mxu0
    %v3954 = vadd.f32 0.0, %v3953
    %v3955 = vpop.f32.mrf.mxu0
    %v3956 = vadd.f32 0.0, %v3955
    %v3957 = vpop.f32.mrf.mxu0
    %v3958 = vpop.f32.mrf.mxu0
    %3959 = vdwg.mxu0
    %v3960 = vadd.f32 %v3682, %v3913
    %v3961 = vadd.f32 %v3683, %v3915
    %v3962 = vadd.f32 %v3684, %v3954
    %v3963 = vadd.f32 %v3685, %v3956
    %v3964 = vmul.f32 %v3960, 0.5
    %v3965 = vtanh.pop %v3964
    %v3966 = vmul.f32 %v3965, 0.5
    %v3967 = vadd.f32 %v3966, 0.5
    %v3968 = vmul.f32 %v3961, 0.5
    %v3969 = vtanh.pop %v3968
    %v3970 = vmul.f32 %v3969, 0.5
    %v3971 = vadd.f32 %v3970, 0.5
    %v3972 = vtanh.pop %v3962
    %v3973 = vmul.f32 %v3963, 0.5
    %v3974 = vtanh.pop %v3973
    %v3975 = vmul.f32 %v3974, 0.5
    %v3976 = vadd.f32 %v3975, 0.5
    %v3977 = vmul.f32 %v3971, %v3677
    %v3978 = vmul.f32 %v3967, %v3972
    %v3979 = vadd.f32 %v3977, %v3978
    %v3980 = vtanh.pop %v3979
    %v3981 = vmul.f32 %v3976, %v3980
    %v3982 = vpack.c.bf16 %v3981, %v3981
    %3983 = vst [vmem:[#allocation3 + $0x8] sm:$0xff] %v3981
    %v3984 = vld [vmem:[#allocation4 + $0x40] sm:$0xff]
    %v3985 = vld [vmem:[#allocation4 + $0x48] sm:$0xff]
    %v3986 = vld [vmem:[#allocation4 + $0x50] sm:$0xff]
    %v3987 = vld [vmem:[#allocation4 + $0x58] sm:$0xff]
    %v3988 = vld [vmem:[#allocation10] sm:$0xff]
    %v3989 = vld [vmem:[#allocation10 + $0x8] sm:$0xff]
    %v3990 = vld [vmem:[#allocation10 + $0x10] sm:$0xff]
    %v3991 = vld [vmem:[#allocation10 + $0x18] sm:$0xff]
    %v3992 = vld [vmem:[#allocation10 + $0x20] sm:$0xff]
    %v3993 = vld [vmem:[#allocation10 + $0x28] sm:$0xff]
    %v3994 = vld [vmem:[#allocation10 + $0x30] sm:$0xff]
    %v3995 = vld [vmem:[#allocation10 + $0x38] sm:$0xff]
    %v3996 = vld [vmem:[#allocation10 + $0x40] sm:$0xff]
    %v3997 = vld [vmem:[#allocation10 + $0x48] sm:$0xff]
    %v3998 = vld [vmem:[#allocation10 + $0x50] sm:$0xff]
    %v3999 = vld [vmem:[#allocation10 + $0x58] sm:$0xff]
    %v4000 = vld [vmem:[#allocation10 + $0x60] sm:$0xff]
    %v4001 = vld [vmem:[#allocation10 + $0x68] sm:$0xff]
    %v4002 = vld [vmem:[#allocation10 + $0x70] sm:$0xff]
    %v4003 = vld [vmem:[#allocation10 + $0x78] sm:$0xff]
    %v4004 = vld [vmem:[#allocation10 + $0x80] sm:$0xff]
    %v4005 = vld [vmem:[#allocation10 + $0x88] sm:$0xff]
    %v4006 = vld [vmem:[#allocation10 + $0x90] sm:$0xff]
    %v4007 = vld [vmem:[#allocation10 + $0x98] sm:$0xff]
    %v4008 = vld [vmem:[#allocation10 + $0xa0] sm:$0xff]
    %v4009 = vld [vmem:[#allocation10 + $0xa8] sm:$0xff]
    %v4010 = vld [vmem:[#allocation10 + $0xb0] sm:$0xff]
    %v4011 = vld [vmem:[#allocation10 + $0xb8] sm:$0xff]
    %v4012 = vld [vmem:[#allocation10 + $0xc0] sm:$0xff]
    %v4013 = vld [vmem:[#allocation10 + $0xc8] sm:$0xff]
    %v4014 = vld [vmem:[#allocation10 + $0xd0] sm:$0xff]
    %v4015 = vld [vmem:[#allocation10 + $0xd8] sm:$0xff]
    %v4016 = vld [vmem:[#allocation10 + $0xe0] sm:$0xff]
    %v4017 = vld [vmem:[#allocation10 + $0xe8] sm:$0xff]
    %v4018 = vld [vmem:[#allocation10 + $0xf0] sm:$0xff]
    %v4019 = vld [vmem:[#allocation10 + $0xf8] sm:$0xff]
    %v4052 = vunpack.c.l.b16 %v3988
    %v4053 = vunpack.c.h.b16 %v3988
    %v4054 = vunpack.c.l.b16 %v3989
    %v4055 = vunpack.c.h.b16 %v3989
    %v4056 = vunpack.c.l.b16 %v3990
    %v4057 = vunpack.c.h.b16 %v3990
    %v4058 = vunpack.c.l.b16 %v3991
    %v4059 = vunpack.c.h.b16 %v3991
    %v4060 = vunpack.c.l.b16 %v3992
    %v4061 = vunpack.c.h.b16 %v3992
    %v4062 = vunpack.c.l.b16 %v3993
    %v4063 = vunpack.c.h.b16 %v3993
    %v4064 = vunpack.c.l.b16 %v3994
    %v4065 = vunpack.c.h.b16 %v3994
    %v4066 = vunpack.c.l.b16 %v3995
    %v4067 = vunpack.c.h.b16 %v3995
    %v4068 = vunpack.c.l.b16 %v3996
    %v4069 = vunpack.c.h.b16 %v3996
    %v4070 = vunpack.c.l.b16 %v3997
    %v4071 = vunpack.c.h.b16 %v3997
    %v4072 = vunpack.c.l.b16 %v3998
    %v4073 = vunpack.c.h.b16 %v3998
    %v4074 = vunpack.c.l.b16 %v3999
    %v4075 = vunpack.c.h.b16 %v3999
    %v4076 = vunpack.c.l.b16 %v4000
    %v4077 = vunpack.c.h.b16 %v4000
    %v4078 = vunpack.c.l.b16 %v4001
    %v4079 = vunpack.c.h.b16 %v4001
    %v4080 = vunpack.c.l.b16 %v4002
    %v4081 = vunpack.c.h.b16 %v4002
    %v4082 = vunpack.c.l.b16 %v4003
    %v4083 = vunpack.c.h.b16 %v4003
    %v4084 = vunpack.c.l.b16 %v4004
    %v4085 = vunpack.c.h.b16 %v4004
    %v4086 = vunpack.c.l.b16 %v4005
    %v4087 = vunpack.c.h.b16 %v4005
    %v4088 = vunpack.c.l.b16 %v4006
    %v4089 = vunpack.c.h.b16 %v4006
    %v4090 = vunpack.c.l.b16 %v4007
    %v4091 = vunpack.c.h.b16 %v4007
    %v4092 = vunpack.c.l.b16 %v4008
    %v4093 = vunpack.c.h.b16 %v4008
    %v4094 = vunpack.c.l.b16 %v4009
    %v4095 = vunpack.c.h.b16 %v4009
    %v4096 = vunpack.c.l.b16 %v4010
    %v4097 = vunpack.c.h.b16 %v4010
    %v4098 = vunpack.c.l.b16 %v4011
    %v4099 = vunpack.c.h.b16 %v4011
    %v4100 = vunpack.c.l.b16 %v4012
    %v4101 = vunpack.c.h.b16 %v4012
    %v4102 = vunpack.c.l.b16 %v4013
    %v4103 = vunpack.c.h.b16 %v4013
    %v4104 = vunpack.c.l.b16 %v4014
    %v4105 = vunpack.c.h.b16 %v4014
    %v4106 = vunpack.c.l.b16 %v4015
    %v4107 = vunpack.c.h.b16 %v4015
    %v4108 = vunpack.c.l.b16 %v4016
    %v4109 = vunpack.c.h.b16 %v4016
    %v4110 = vunpack.c.l.b16 %v4017
    %v4111 = vunpack.c.h.b16 %v4017
    %v4112 = vunpack.c.l.b16 %v4018
    %v4113 = vunpack.c.h.b16 %v4018
    %v4114 = vunpack.c.l.b16 %v4019
    %v4115 = vunpack.c.h.b16 %v4019
    %v4116 = vpack.c.b16 %v4056, %v4052
    %v4117 = vpack.c.b16 %v4057, %v4053
    %v4118 = vpack.c.b16 %v4058, %v4054
    %v4119 = vpack.c.b16 %v4059, %v4055
    %v4120 = vpack.c.b16 %v4064, %v4060
    %v4121 = vpack.c.b16 %v4065, %v4061
    %v4122 = vpack.c.b16 %v4066, %v4062
    %v4123 = vpack.c.b16 %v4067, %v4063
    %v4124 = vpack.c.b16 %v4072, %v4068
    %v4125 = vpack.c.b16 %v4073, %v4069
    %v4126 = vpack.c.b16 %v4074, %v4070
    %v4127 = vpack.c.b16 %v4075, %v4071
    %v4128 = vpack.c.b16 %v4080, %v4076
    %v4129 = vpack.c.b16 %v4081, %v4077
    %v4130 = vpack.c.b16 %v4082, %v4078
    %v4131 = vpack.c.b16 %v4083, %v4079
    %v4132 = vpack.c.b16 %v4088, %v4084
    %v4133 = vpack.c.b16 %v4089, %v4085
    %v4134 = vpack.c.b16 %v4090, %v4086
    %v4135 = vpack.c.b16 %v4091, %v4087
    %v4136 = vpack.c.b16 %v4096, %v4092
    %v4137 = vpack.c.b16 %v4097, %v4093
    %v4138 = vpack.c.b16 %v4098, %v4094
    %v4139 = vpack.c.b16 %v4099, %v4095
    %v4140 = vpack.c.b16 %v4104, %v4100
    %v4141 = vpack.c.b16 %v4105, %v4101
    %v4142 = vpack.c.b16 %v4106, %v4102
    %v4143 = vpack.c.b16 %v4107, %v4103
    %v4144 = vpack.c.b16 %v4112, %v4108
    %v4145 = vpack.c.b16 %v4113, %v4109
    %v4146 = vpack.c.b16 %v4114, %v4110
    %v4147 = vpack.c.b16 %v4115, %v4111
    %4180 = vmatprep.subr.bf16.mxu0 %v4145
    %4181 = vmatpush1.bf16.msra.mxu0 %v4144
    %4182 = vmatprep.subr.bf16.mxu0 %v4141
    %4183 = vmatpush1.bf16.msra.mxu0 %v4140
    %4184 = vmatprep.subr.bf16.mxu0 %v4137
    %4185 = vmatpush1.bf16.msra.mxu0 %v4136
    %4186 = vmatprep.subr.bf16.mxu0 %v4133
    %4187 = vmatpush1.bf16.msra.mxu0 %v4132
    %4188 = vmatprep.subr.bf16.mxu0 %v4129
    %4189 = vmatpush1.bf16.msra.mxu0 %v4128
    %4190 = vmatprep.subr.bf16.mxu0 %v4125
    %4191 = vmatpush1.bf16.msra.mxu0 %v4124
    %4192 = vmatprep.subr.bf16.mxu0 %v4121
    %4193 = vmatpush1.bf16.msra.mxu0 %v4120
    %4194 = vmatprep.subr.bf16.mxu0 %v4117
    %4195 = vmatpush1.bf16.msra.mxu0 %v4116
    %4196 = vmatprep.subr.bf16.mxu0 0
    %4197 = vmatpush2.bf16.msra.mxu0 0
    %4198 = vmatprep.subr.bf16.mxu0 0
    %4199 = vmatpush2.bf16.msra.mxu0 0
    %4200 = vmatprep.subr.bf16.mxu0 0
    %4201 = vmatpush2.bf16.msra.mxu0 0
    %4202 = vmatprep.subr.bf16.mxu0 0
    %4203 = vmatpush2.bf16.msra.mxu0 0
    %4204 = vmatprep.subr.bf16.mxu0 0
    %4205 = vmatpush2.bf16.msra.mxu0 0
    %4206 = vmatprep.subr.bf16.mxu0 0
    %4207 = vmatpush2.bf16.msra.mxu0 0
    %4208 = vmatprep.subr.bf16.mxu0 0
    %4209 = vmatpush2.bf16.msra.mxu0 0
    %4210 = vmatprep.subr.bf16.mxu0 0
    %4211 = vmatpush2.bf16.msra.mxu0 0
    %4212 = vmatprep.mubr.bf16.mxu0 0
    %4213 = vmatmul.mubr.bf16.gmra.mxu0 %v3982
    %v4214 = vpop.f32.mrf.mxu0
    %v4215 = vadd.f32 0.0, %v4214
    %v4216 = vpop.f32.mrf.mxu0
    %v4217 = vadd.f32 0.0, %v4216
    %v4218 = vpop.f32.mrf.mxu0
    %v4219 = vpop.f32.mrf.mxu0
    %4220 = vdwg.mxu0
    %4221 = vmatprep.subr.bf16.mxu0 %v4147
    %4222 = vmatpush1.bf16.msra.mxu0 %v4146
    %4223 = vmatprep.subr.bf16.mxu0 %v4143
    %4224 = vmatpush1.bf16.msra.mxu0 %v4142
    %4225 = vmatprep.subr.bf16.mxu0 %v4139
    %4226 = vmatpush1.bf16.msra.mxu0 %v4138
    %4227 = vmatprep.subr.bf16.mxu0 %v4135
    %4228 = vmatpush1.bf16.msra.mxu0 %v4134
    %4229 = vmatprep.subr.bf16.mxu0 %v4131
    %4230 = vmatpush1.bf16.msra.mxu0 %v4130
    %4231 = vmatprep.subr.bf16.mxu0 %v4127
    %4232 = vmatpush1.bf16.msra.mxu0 %v4126
    %4233 = vmatprep.subr.bf16.mxu0 %v4123
    %4234 = vmatpush1.bf16.msra.mxu0 %v4122
    %4235 = vmatprep.subr.bf16.mxu0 %v4119
    %4236 = vmatpush1.bf16.msra.mxu0 %v4118
    %4237 = vmatprep.subr.bf16.mxu0 0
    %4238 = vmatpush2.bf16.msra.mxu0 0
    %4239 = vmatprep.subr.bf16.mxu0 0
    %4240 = vmatpush2.bf16.msra.mxu0 0
    %4241 = vmatprep.subr.bf16.mxu0 0
    %4242 = vmatpush2.bf16.msra.mxu0 0
    %4243 = vmatprep.subr.bf16.mxu0 0
    %4244 = vmatpush2.bf16.msra.mxu0 0
    %4245 = vmatprep.subr.bf16.mxu0 0
    %4246 = vmatpush2.bf16.msra.mxu0 0
    %4247 = vmatprep.subr.bf16.mxu0 0
    %4248 = vmatpush2.bf16.msra.mxu0 0
    %4249 = vmatprep.subr.bf16.mxu0 0
    %4250 = vmatpush2.bf16.msra.mxu0 0
    %4251 = vmatprep.subr.bf16.mxu0 0
    %4252 = vmatpush2.bf16.msra.mxu0 0
    %4253 = vmatprep.mubr.bf16.mxu0 0
    %4254 = vmatmul.mubr.bf16.gmra.mxu0 %v3982
    %v4255 = vpop.f32.mrf.mxu0
    %v4256 = vadd.f32 0.0, %v4255
    %v4257 = vpop.f32.mrf.mxu0
    %v4258 = vadd.f32 0.0, %v4257
    %v4259 = vpop.f32.mrf.mxu0
    %v4260 = vpop.f32.mrf.mxu0
    %4261 = vdwg.mxu0
    %v4262 = vadd.f32 %v3984, %v4215
    %v4263 = vadd.f32 %v3985, %v4217
    %v4264 = vadd.f32 %v3986, %v4256
    %v4265 = vadd.f32 %v3987, %v4258
    %v4266 = vmul.f32 %v4262, 0.5
    %v4267 = vtanh.pop %v4266
    %v4268 = vmul.f32 %v4267, 0.5
    %v4269 = vadd.f32 %v4268, 0.5
    %v4270 = vmul.f32 %v4263, 0.5
    %v4271 = vtanh.pop %v4270
    %v4272 = vmul.f32 %v4271, 0.5
    %v4273 = vadd.f32 %v4272, 0.5
    %v4274 = vtanh.pop %v4264
    %v4275 = vmul.f32 %v4265, 0.5
    %v4276 = vtanh.pop %v4275
    %v4277 = vmul.f32 %v4276, 0.5
    %v4278 = vadd.f32 %v4277, 0.5
    %v4279 = vmul.f32 %v4273, %v3979
    %v4280 = vmul.f32 %v4269, %v4274
    %v4281 = vadd.f32 %v4279, %v4280
    %v4282 = vtanh.pop %v4281
    %v4283 = vmul.f32 %v4278, %v4282
    %v4284 = vpack.c.bf16 %v4283, %v4283
    %4285 = vst [vmem:[#allocation3 + $0x10] sm:$0xff] %v4283
    %v4286 = vld [vmem:[#allocation4 + $0x60] sm:$0xff]
    %v4287 = vld [vmem:[#allocation4 + $0x68] sm:$0xff]
    %v4288 = vld [vmem:[#allocation4 + $0x70] sm:$0xff]
    %v4289 = vld [vmem:[#allocation4 + $0x78] sm:$0xff]
    %v4290 = vld [vmem:[#allocation10] sm:$0xff]
    %v4291 = vld [vmem:[#allocation10 + $0x8] sm:$0xff]
    %v4292 = vld [vmem:[#allocation10 + $0x10] sm:$0xff]
    %v4293 = vld [vmem:[#allocation10 + $0x18] sm:$0xff]
    %v4294 = vld [vmem:[#allocation10 + $0x20] sm:$0xff]
    %v4295 = vld [vmem:[#allocation10 + $0x28] sm:$0xff]
    %v4296 = vld [vmem:[#allocation10 + $0x30] sm:$0xff]
    %v4297 = vld [vmem:[#allocation10 + $0x38] sm:$0xff]
    %v4298 = vld [vmem:[#allocation10 + $0x40] sm:$0xff]
    %v4299 = vld [vmem:[#allocation10 + $0x48] sm:$0xff]
    %v4300 = vld [vmem:[#allocation10 + $0x50] sm:$0xff]
    %v4301 = vld [vmem:[#allocation10 + $0x58] sm:$0xff]
    %v4302 = vld [vmem:[#allocation10 + $0x60] sm:$0xff]
    %v4303 = vld [vmem:[#allocation10 + $0x68] sm:$0xff]
    %v4304 = vld [vmem:[#allocation10 + $0x70] sm:$0xff]
    %v4305 = vld [vmem:[#allocation10 + $0x78] sm:$0xff]
    %v4306 = vld [vmem:[#allocation10 + $0x80] sm:$0xff]
    %v4307 = vld [vmem:[#allocation10 + $0x88] sm:$0xff]
    %v4308 = vld [vmem:[#allocation10 + $0x90] sm:$0xff]
    %v4309 = vld [vmem:[#allocation10 + $0x98] sm:$0xff]
    %v4310 = vld [vmem:[#allocation10 + $0xa0] sm:$0xff]
    %v4311 = vld [vmem:[#allocation10 + $0xa8] sm:$0xff]
    %v4312 = vld [vmem:[#allocation10 + $0xb0] sm:$0xff]
    %v4313 = vld [vmem:[#allocation10 + $0xb8] sm:$0xff]
    %v4314 = vld [vmem:[#allocation10 + $0xc0] sm:$0xff]
    %v4315 = vld [vmem:[#allocation10 + $0xc8] sm:$0xff]
    %v4316 = vld [vmem:[#allocation10 + $0xd0] sm:$0xff]
    %v4317 = vld [vmem:[#allocation10 + $0xd8] sm:$0xff]
    %v4318 = vld [vmem:[#allocation10 + $0xe0] sm:$0xff]
    %v4319 = vld [vmem:[#allocation10 + $0xe8] sm:$0xff]
    %v4320 = vld [vmem:[#allocation10 + $0xf0] sm:$0xff]
    %v4321 = vld [vmem:[#allocation10 + $0xf8] sm:$0xff]
    %v4354 = vunpack.c.l.b16 %v4290
    %v4355 = vunpack.c.h.b16 %v4290
    %v4356 = vunpack.c.l.b16 %v4291
    %v4357 = vunpack.c.h.b16 %v4291
    %v4358 = vunpack.c.l.b16 %v4292
    %v4359 = vunpack.c.h.b16 %v4292
    %v4360 = vunpack.c.l.b16 %v4293
    %v4361 = vunpack.c.h.b16 %v4293
    %v4362 = vunpack.c.l.b16 %v4294
    %v4363 = vunpack.c.h.b16 %v4294
    %v4364 = vunpack.c.l.b16 %v4295
    %v4365 = vunpack.c.h.b16 %v4295
    %v4366 = vunpack.c.l.b16 %v4296
    %v4367 = vunpack.c.h.b16 %v4296
    %v4368 = vunpack.c.l.b16 %v4297
    %v4369 = vunpack.c.h.b16 %v4297
    %v4370 = vunpack.c.l.b16 %v4298
    %v4371 = vunpack.c.h.b16 %v4298
    %v4372 = vunpack.c.l.b16 %v4299
    %v4373 = vunpack.c.h.b16 %v4299
    %v4374 = vunpack.c.l.b16 %v4300
    %v4375 = vunpack.c.h.b16 %v4300
    %v4376 = vunpack.c.l.b16 %v4301
    %v4377 = vunpack.c.h.b16 %v4301
    %v4378 = vunpack.c.l.b16 %v4302
    %v4379 = vunpack.c.h.b16 %v4302
    %v4380 = vunpack.c.l.b16 %v4303
    %v4381 = vunpack.c.h.b16 %v4303
    %v4382 = vunpack.c.l.b16 %v4304
    %v4383 = vunpack.c.h.b16 %v4304
    %v4384 = vunpack.c.l.b16 %v4305
    %v4385 = vunpack.c.h.b16 %v4305
    %v4386 = vunpack.c.l.b16 %v4306
    %v4387 = vunpack.c.h.b16 %v4306
    %v4388 = vunpack.c.l.b16 %v4307
    %v4389 = vunpack.c.h.b16 %v4307
    %v4390 = vunpack.c.l.b16 %v4308
    %v4391 = vunpack.c.h.b16 %v4308
    %v4392 = vunpack.c.l.b16 %v4309
    %v4393 = vunpack.c.h.b16 %v4309
    %v4394 = vunpack.c.l.b16 %v4310
    %v4395 = vunpack.c.h.b16 %v4310
    %v4396 = vunpack.c.l.b16 %v4311
    %v4397 = vunpack.c.h.b16 %v4311
    %v4398 = vunpack.c.l.b16 %v4312
    %v4399 = vunpack.c.h.b16 %v4312
    %v4400 = vunpack.c.l.b16 %v4313
    %v4401 = vunpack.c.h.b16 %v4313
    %v4402 = vunpack.c.l.b16 %v4314
    %v4403 = vunpack.c.h.b16 %v4314
    %v4404 = vunpack.c.l.b16 %v4315
    %v4405 = vunpack.c.h.b16 %v4315
    %v4406 = vunpack.c.l.b16 %v4316
    %v4407 = vunpack.c.h.b16 %v4316
    %v4408 = vunpack.c.l.b16 %v4317
    %v4409 = vunpack.c.h.b16 %v4317
    %v4410 = vunpack.c.l.b16 %v4318
    %v4411 = vunpack.c.h.b16 %v4318
    %v4412 = vunpack.c.l.b16 %v4319
    %v4413 = vunpack.c.h.b16 %v4319
    %v4414 = vunpack.c.l.b16 %v4320
    %v4415 = vunpack.c.h.b16 %v4320
    %v4416 = vunpack.c.l.b16 %v4321
    %v4417 = vunpack.c.h.b16 %v4321
    %v4418 = vpack.c.b16 %v4358, %v4354
    %v4419 = vpack.c.b16 %v4359, %v4355
    %v4420 = vpack.c.b16 %v4360, %v4356
    %v4421 = vpack.c.b16 %v4361, %v4357
    %v4422 = vpack.c.b16 %v4366, %v4362
    %v4423 = vpack.c.b16 %v4367, %v4363
    %v4424 = vpack.c.b16 %v4368, %v4364
    %v4425 = vpack.c.b16 %v4369, %v4365
    %v4426 = vpack.c.b16 %v4374, %v4370
    %v4427 = vpack.c.b16 %v4375, %v4371
    %v4428 = vpack.c.b16 %v4376, %v4372
    %v4429 = vpack.c.b16 %v4377, %v4373
    %v4430 = vpack.c.b16 %v4382, %v4378
    %v4431 = vpack.c.b16 %v4383, %v4379
    %v4432 = vpack.c.b16 %v4384, %v4380
    %v4433 = vpack.c.b16 %v4385, %v4381
    %v4434 = vpack.c.b16 %v4390, %v4386
    %v4435 = vpack.c.b16 %v4391, %v4387
    %v4436 = vpack.c.b16 %v4392, %v4388
    %v4437 = vpack.c.b16 %v4393, %v4389
    %v4438 = vpack.c.b16 %v4398, %v4394
    %v4439 = vpack.c.b16 %v4399, %v4395
    %v4440 = vpack.c.b16 %v4400, %v4396
    %v4441 = vpack.c.b16 %v4401, %v4397
    %v4442 = vpack.c.b16 %v4406, %v4402
    %v4443 = vpack.c.b16 %v4407, %v4403
    %v4444 = vpack.c.b16 %v4408, %v4404
    %v4445 = vpack.c.b16 %v4409, %v4405
    %v4446 = vpack.c.b16 %v4414, %v4410
    %v4447 = vpack.c.b16 %v4415, %v4411
    %v4448 = vpack.c.b16 %v4416, %v4412
    %v4449 = vpack.c.b16 %v4417, %v4413
    %4482 = vmatprep.subr.bf16.mxu0 %v4447
    %4483 = vmatpush1.bf16.msra.mxu0 %v4446
    %4484 = vmatprep.subr.bf16.mxu0 %v4443
    %4485 = vmatpush1.bf16.msra.mxu0 %v4442
    %4486 = vmatprep.subr.bf16.mxu0 %v4439
    %4487 = vmatpush1.bf16.msra.mxu0 %v4438
    %4488 = vmatprep.subr.bf16.mxu0 %v4435
    %4489 = vmatpush1.bf16.msra.mxu0 %v4434
    %4490 = vmatprep.subr.bf16.mxu0 %v4431
    %4491 = vmatpush1.bf16.msra.mxu0 %v4430
    %4492 = vmatprep.subr.bf16.mxu0 %v4427
    %4493 = vmatpush1.bf16.msra.mxu0 %v4426
    %4494 = vmatprep.subr.bf16.mxu0 %v4423
    %4495 = vmatpush1.bf16.msra.mxu0 %v4422
    %4496 = vmatprep.subr.bf16.mxu0 %v4419
    %4497 = vmatpush1.bf16.msra.mxu0 %v4418
    %4498 = vmatprep.subr.bf16.mxu0 0
    %4499 = vmatpush2.bf16.msra.mxu0 0
    %4500 = vmatprep.subr.bf16.mxu0 0
    %4501 = vmatpush2.bf16.msra.mxu0 0
    %4502 = vmatprep.subr.bf16.mxu0 0
    %4503 = vmatpush2.bf16.msra.mxu0 0
    %4504 = vmatprep.subr.bf16.mxu0 0
    %4505 = vmatpush2.bf16.msra.mxu0 0
    %4506 = vmatprep.subr.bf16.mxu0 0
    %4507 = vmatpush2.bf16.msra.mxu0 0
    %4508 = vmatprep.subr.bf16.mxu0 0
    %4509 = vmatpush2.bf16.msra.mxu0 0
    %4510 = vmatprep.subr.bf16.mxu0 0
    %4511 = vmatpush2.bf16.msra.mxu0 0
    %4512 = vmatprep.subr.bf16.mxu0 0
    %4513 = vmatpush2.bf16.msra.mxu0 0
    %4514 = vmatprep.mubr.bf16.mxu0 0
    %4515 = vmatmul.mubr.bf16.gmra.mxu0 %v4284
    %v4516 = vpop.f32.mrf.mxu0
    %v4517 = vadd.f32 0.0, %v4516
    %v4518 = vpop.f32.mrf.mxu0
    %v4519 = vadd.f32 0.0, %v4518
    %v4520 = vpop.f32.mrf.mxu0
    %v4521 = vpop.f32.mrf.mxu0
    %4522 = vdwg.mxu0
    %4523 = vmatprep.subr.bf16.mxu0 %v4449
    %4524 = vmatpush1.bf16.msra.mxu0 %v4448
    %4525 = vmatprep.subr.bf16.mxu0 %v4445
    %4526 = vmatpush1.bf16.msra.mxu0 %v4444
    %4527 = vmatprep.subr.bf16.mxu0 %v4441
    %4528 = vmatpush1.bf16.msra.mxu0 %v4440
    %4529 = vmatprep.subr.bf16.mxu0 %v4437
    %4530 = vmatpush1.bf16.msra.mxu0 %v4436
    %4531 = vmatprep.subr.bf16.mxu0 %v4433
    %4532 = vmatpush1.bf16.msra.mxu0 %v4432
    %4533 = vmatprep.subr.bf16.mxu0 %v4429
    %4534 = vmatpush1.bf16.msra.mxu0 %v4428
    %4535 = vmatprep.subr.bf16.mxu0 %v4425
    %4536 = vmatpush1.bf16.msra.mxu0 %v4424
    %4537 = vmatprep.subr.bf16.mxu0 %v4421
    %4538 = vmatpush1.bf16.msra.mxu0 %v4420
    %4539 = vmatprep.subr.bf16.mxu0 0
    %4540 = vmatpush2.bf16.msra.mxu0 0
    %4541 = vmatprep.subr.bf16.mxu0 0
    %4542 = vmatpush2.bf16.msra.mxu0 0
    %4543 = vmatprep.subr.bf16.mxu0 0
    %4544 = vmatpush2.bf16.msra.mxu0 0
    %4545 = vmatprep.subr.bf16.mxu0 0
    %4546 = vmatpush2.bf16.msra.mxu0 0
    %4547 = vmatprep.subr.bf16.mxu0 0
    %4548 = vmatpush2.bf16.msra.mxu0 0
    %4549 = vmatprep.subr.bf16.mxu0 0
    %4550 = vmatpush2.bf16.msra.mxu0 0
    %4551 = vmatprep.subr.bf16.mxu0 0
    %4552 = vmatpush2.bf16.msra.mxu0 0
    %4553 = vmatprep.subr.bf16.mxu0 0
    %4554 = vmatpush2.bf16.msra.mxu0 0
    %4555 = vmatprep.mubr.bf16.mxu0 0
    %4556 = vmatmul.mubr.bf16.gmra.mxu0 %v4284
    %v4557 = vpop.f32.mrf.mxu0
    %v4558 = vadd.f32 0.0, %v4557
    %v4559 = vpop.f32.mrf.mxu0
    %v4560 = vadd.f32 0.0, %v4559
    %v4561 = vpop.f32.mrf.mxu0
    %v4562 = vpop.f32.mrf.mxu0
    %4563 = vdwg.mxu0
    %v4564 = vadd.f32 %v4286, %v4517
    %v4565 = vadd.f32 %v4287, %v4519
    %v4566 = vadd.f32 %v4288, %v4558
    %v4567 = vadd.f32 %v4289, %v4560
    %v4568 = vmul.f32 %v4564, 0.5
    %v4569 = vtanh.pop %v4568
    %v4570 = vmul.f32 %v4569, 0.5
    %v4571 = vadd.f32 %v4570, 0.5
    %v4572 = vmul.f32 %v4565, 0.5
    %v4573 = vtanh.pop %v4572
    %v4574 = vmul.f32 %v4573, 0.5
    %v4575 = vadd.f32 %v4574, 0.5
    %v4576 = vtanh.pop %v4566
    %v4577 = vmul.f32 %v4567, 0.5
    %v4578 = vtanh.pop %v4577
    %v4579 = vmul.f32 %v4578, 0.5
    %v4580 = vadd.f32 %v4579, 0.5
    %v4581 = vmul.f32 %v4575, %v4281
    %v4582 = vmul.f32 %v4571, %v4576
    %v4583 = vadd.f32 %v4581, %v4582
    %v4584 = vtanh.pop %v4583
    %v4585 = vmul.f32 %v4580, %v4584
    %v4586 = vpack.c.bf16 %v4585, %v4585
    %4587 = vst [vmem:[#allocation3 + $0x18] sm:$0xff] %v4585
    %v4588 = vld [vmem:[#allocation4 + $0x80] sm:$0xff]
    %v4589 = vld [vmem:[#allocation4 + $0x88] sm:$0xff]
    %v4590 = vld [vmem:[#allocation4 + $0x90] sm:$0xff]
    %v4591 = vld [vmem:[#allocation4 + $0x98] sm:$0xff]
    %v4592 = vld [vmem:[#allocation10] sm:$0xff]
    %v4593 = vld [vmem:[#allocation10 + $0x8] sm:$0xff]
    %v4594 = vld [vmem:[#allocation10 + $0x10] sm:$0xff]
    %v4595 = vld [vmem:[#allocation10 + $0x18] sm:$0xff]
    %v4596 = vld [vmem:[#allocation10 + $0x20] sm:$0xff]
    %v4597 = vld [vmem:[#allocation10 + $0x28] sm:$0xff]
    %v4598 = vld [vmem:[#allocation10 + $0x30] sm:$0xff]
    %v4599 = vld [vmem:[#allocation10 + $0x38] sm:$0xff]
    %v4600 = vld [vmem:[#allocation10 + $0x40] sm:$0xff]
    %v4601 = vld [vmem:[#allocation10 + $0x48] sm:$0xff]
    %v4602 = vld [vmem:[#allocation10 + $0x50] sm:$0xff]
    %v4603 = vld [vmem:[#allocation10 + $0x58] sm:$0xff]
    %v4604 = vld [vmem:[#allocation10 + $0x60] sm:$0xff]
    %v4605 = vld [vmem:[#allocation10 + $0x68] sm:$0xff]
    %v4606 = vld [vmem:[#allocation10 + $0x70] sm:$0xff]
    %v4607 = vld [vmem:[#allocation10 + $0x78] sm:$0xff]
    %v4608 = vld [vmem:[#allocation10 + $0x80] sm:$0xff]
    %v4609 = vld [vmem:[#allocation10 + $0x88] sm:$0xff]
    %v4610 = vld [vmem:[#allocation10 + $0x90] sm:$0xff]
    %v4611 = vld [vmem:[#allocation10 + $0x98] sm:$0xff]
    %v4612 = vld [vmem:[#allocation10 + $0xa0] sm:$0xff]
    %v4613 = vld [vmem:[#allocation10 + $0xa8] sm:$0xff]
    %v4614 = vld [vmem:[#allocation10 + $0xb0] sm:$0xff]
    %v4615 = vld [vmem:[#allocation10 + $0xb8] sm:$0xff]
    %v4616 = vld [vmem:[#allocation10 + $0xc0] sm:$0xff]
    %v4617 = vld [vmem:[#allocation10 + $0xc8] sm:$0xff]
    %v4618 = vld [vmem:[#allocation10 + $0xd0] sm:$0xff]
    %v4619 = vld [vmem:[#allocation10 + $0xd8] sm:$0xff]
    %v4620 = vld [vmem:[#allocation10 + $0xe0] sm:$0xff]
    %v4621 = vld [vmem:[#allocation10 + $0xe8] sm:$0xff]
    %v4622 = vld [vmem:[#allocation10 + $0xf0] sm:$0xff]
    %v4623 = vld [vmem:[#allocation10 + $0xf8] sm:$0xff]
    %v4656 = vunpack.c.l.b16 %v4592
    %v4657 = vunpack.c.h.b16 %v4592
    %v4658 = vunpack.c.l.b16 %v4593
    %v4659 = vunpack.c.h.b16 %v4593
    %v4660 = vunpack.c.l.b16 %v4594
    %v4661 = vunpack.c.h.b16 %v4594
    %v4662 = vunpack.c.l.b16 %v4595
    %v4663 = vunpack.c.h.b16 %v4595
    %v4664 = vunpack.c.l.b16 %v4596
    %v4665 = vunpack.c.h.b16 %v4596
    %v4666 = vunpack.c.l.b16 %v4597
    %v4667 = vunpack.c.h.b16 %v4597
    %v4668 = vunpack.c.l.b16 %v4598
    %v4669 = vunpack.c.h.b16 %v4598
    %v4670 = vunpack.c.l.b16 %v4599
    %v4671 = vunpack.c.h.b16 %v4599
    %v4672 = vunpack.c.l.b16 %v4600
    %v4673 = vunpack.c.h.b16 %v4600
    %v4674 = vunpack.c.l.b16 %v4601
    %v4675 = vunpack.c.h.b16 %v4601
    %v4676 = vunpack.c.l.b16 %v4602
    %v4677 = vunpack.c.h.b16 %v4602
    %v4678 = vunpack.c.l.b16 %v4603
    %v4679 = vunpack.c.h.b16 %v4603
    %v4680 = vunpack.c.l.b16 %v4604
    %v4681 = vunpack.c.h.b16 %v4604
    %v4682 = vunpack.c.l.b16 %v4605
    %v4683 = vunpack.c.h.b16 %v4605
    %v4684 = vunpack.c.l.b16 %v4606
    %v4685 = vunpack.c.h.b16 %v4606
    %v4686 = vunpack.c.l.b16 %v4607
    %v4687 = vunpack.c.h.b16 %v4607
    %v4688 = vunpack.c.l.b16 %v4608
    %v4689 = vunpack.c.h.b16 %v4608
    %v4690 = vunpack.c.l.b16 %v4609
    %v4691 = vunpack.c.h.b16 %v4609
    %v4692 = vunpack.c.l.b16 %v4610
    %v4693 = vunpack.c.h.b16 %v4610
    %v4694 = vunpack.c.l.b16 %v4611
    %v4695 = vunpack.c.h.b16 %v4611
    %v4696 = vunpack.c.l.b16 %v4612
    %v4697 = vunpack.c.h.b16 %v4612
    %v4698 = vunpack.c.l.b16 %v4613
    %v4699 = vunpack.c.h.b16 %v4613
    %v4700 = vunpack.c.l.b16 %v4614
    %v4701 = vunpack.c.h.b16 %v4614
    %v4702 = vunpack.c.l.b16 %v4615
    %v4703 = vunpack.c.h.b16 %v4615
    %v4704 = vunpack.c.l.b16 %v4616
    %v4705 = vunpack.c.h.b16 %v4616
    %v4706 = vunpack.c.l.b16 %v4617
    %v4707 = vunpack.c.h.b16 %v4617
    %v4708 = vunpack.c.l.b16 %v4618
    %v4709 = vunpack.c.h.b16 %v4618
    %v4710 = vunpack.c.l.b16 %v4619
    %v4711 = vunpack.c.h.b16 %v4619
    %v4712 = vunpack.c.l.b16 %v4620
    %v4713 = vunpack.c.h.b16 %v4620
    %v4714 = vunpack.c.l.b16 %v4621
    %v4715 = vunpack.c.h.b16 %v4621
    %v4716 = vunpack.c.l.b16 %v4622
    %v4717 = vunpack.c.h.b16 %v4622
    %v4718 = vunpack.c.l.b16 %v4623
    %v4719 = vunpack.c.h.b16 %v4623
    %v4720 = vpack.c.b16 %v4660, %v4656
    %v4721 = vpack.c.b16 %v4661, %v4657
    %v4722 = vpack.c.b16 %v4662, %v4658
    %v4723 = vpack.c.b16 %v4663, %v4659
    %v4724 = vpack.c.b16 %v4668, %v4664
    %v4725 = vpack.c.b16 %v4669, %v4665
    %v4726 = vpack.c.b16 %v4670, %v4666
    %v4727 = vpack.c.b16 %v4671, %v4667
    %v4728 = vpack.c.b16 %v4676, %v4672
    %v4729 = vpack.c.b16 %v4677, %v4673
    %v4730 = vpack.c.b16 %v4678, %v4674
    %v4731 = vpack.c.b16 %v4679, %v4675
    %v4732 = vpack.c.b16 %v4684, %v4680
    %v4733 = vpack.c.b16 %v4685, %v4681
    %v4734 = vpack.c.b16 %v4686, %v4682
    %v4735 = vpack.c.b16 %v4687, %v4683
    %v4736 = vpack.c.b16 %v4692, %v4688
    %v4737 = vpack.c.b16 %v4693, %v4689
    %v4738 = vpack.c.b16 %v4694, %v4690
    %v4739 = vpack.c.b16 %v4695, %v4691
    %v4740 = vpack.c.b16 %v4700, %v4696
    %v4741 = vpack.c.b16 %v4701, %v4697
    %v4742 = vpack.c.b16 %v4702, %v4698
    %v4743 = vpack.c.b16 %v4703, %v4699
    %v4744 = vpack.c.b16 %v4708, %v4704
    %v4745 = vpack.c.b16 %v4709, %v4705
    %v4746 = vpack.c.b16 %v4710, %v4706
    %v4747 = vpack.c.b16 %v4711, %v4707
    %v4748 = vpack.c.b16 %v4716, %v4712
    %v4749 = vpack.c.b16 %v4717, %v4713
    %v4750 = vpack.c.b16 %v4718, %v4714
    %v4751 = vpack.c.b16 %v4719, %v4715
    %4784 = vmatprep.subr.bf16.mxu0 %v4749
    %4785 = vmatpush1.bf16.msra.mxu0 %v4748
    %4786 = vmatprep.subr.bf16.mxu0 %v4745
    %4787 = vmatpush1.bf16.msra.mxu0 %v4744
    %4788 = vmatprep.subr.bf16.mxu0 %v4741
    %4789 = vmatpush1.bf16.msra.mxu0 %v4740
    %4790 = vmatprep.subr.bf16.mxu0 %v4737
    %4791 = vmatpush1.bf16.msra.mxu0 %v4736
    %4792 = vmatprep.subr.bf16.mxu0 %v4733
    %4793 = vmatpush1.bf16.msra.mxu0 %v4732
    %4794 = vmatprep.subr.bf16.mxu0 %v4729
    %4795 = vmatpush1.bf16.msra.mxu0 %v4728
    %4796 = vmatprep.subr.bf16.mxu0 %v4725
    %4797 = vmatpush1.bf16.msra.mxu0 %v4724
    %4798 = vmatprep.subr.bf16.mxu0 %v4721
    %4799 = vmatpush1.bf16.msra.mxu0 %v4720
    %4800 = vmatprep.subr.bf16.mxu0 0
    %4801 = vmatpush2.bf16.msra.mxu0 0
    %4802 = vmatprep.subr.bf16.mxu0 0
    %4803 = vmatpush2.bf16.msra.mxu0 0
    %4804 = vmatprep.subr.bf16.mxu0 0
    %4805 = vmatpush2.bf16.msra.mxu0 0
    %4806 = vmatprep.subr.bf16.mxu0 0
    %4807 = vmatpush2.bf16.msra.mxu0 0
    %4808 = vmatprep.subr.bf16.mxu0 0
    %4809 = vmatpush2.bf16.msra.mxu0 0
    %4810 = vmatprep.subr.bf16.mxu0 0
    %4811 = vmatpush2.bf16.msra.mxu0 0
    %4812 = vmatprep.subr.bf16.mxu0 0
    %4813 = vmatpush2.bf16.msra.mxu0 0
    %4814 = vmatprep.subr.bf16.mxu0 0
    %4815 = vmatpush2.bf16.msra.mxu0 0
    %4816 = vmatprep.mubr.bf16.mxu0 0
    %4817 = vmatmul.mubr.bf16.gmra.mxu0 %v4586
    %v4818 = vpop.f32.mrf.mxu0
    %v4819 = vadd.f32 0.0, %v4818
    %v4820 = vpop.f32.mrf.mxu0
    %v4821 = vadd.f32 0.0, %v4820
    %v4822 = vpop.f32.mrf.mxu0
    %v4823 = vpop.f32.mrf.mxu0
    %4824 = vdwg.mxu0
    %4825 = vmatprep.subr.bf16.mxu0 %v4751
    %4826 = vmatpush1.bf16.msra.mxu0 %v4750
    %4827 = vmatprep.subr.bf16.mxu0 %v4747
    %4828 = vmatpush1.bf16.msra.mxu0 %v4746
    %4829 = vmatprep.subr.bf16.mxu0 %v4743
    %4830 = vmatpush1.bf16.msra.mxu0 %v4742
    %4831 = vmatprep.subr.bf16.mxu0 %v4739
    %4832 = vmatpush1.bf16.msra.mxu0 %v4738
    %4833 = vmatprep.subr.bf16.mxu0 %v4735
    %4834 = vmatpush1.bf16.msra.mxu0 %v4734
    %4835 = vmatprep.subr.bf16.mxu0 %v4731
    %4836 = vmatpush1.bf16.msra.mxu0 %v4730
    %4837 = vmatprep.subr.bf16.mxu0 %v4727
    %4838 = vmatpush1.bf16.msra.mxu0 %v4726
    %4839 = vmatprep.subr.bf16.mxu0 %v4723
    %4840 = vmatpush1.bf16.msra.mxu0 %v4722
    %4841 = vmatprep.subr.bf16.mxu0 0
    %4842 = vmatpush2.bf16.msra.mxu0 0
    %4843 = vmatprep.subr.bf16.mxu0 0
    %4844 = vmatpush2.bf16.msra.mxu0 0
    %4845 = vmatprep.subr.bf16.mxu0 0
    %4846 = vmatpush2.bf16.msra.mxu0 0
    %4847 = vmatprep.subr.bf16.mxu0 0
    %4848 = vmatpush2.bf16.msra.mxu0 0
    %4849 = vmatprep.subr.bf16.mxu0 0
    %4850 = vmatpush2.bf16.msra.mxu0 0
    %4851 = vmatprep.subr.bf16.mxu0 0
    %4852 = vmatpush2.bf16.msra.mxu0 0
    %4853 = vmatprep.subr.bf16.mxu0 0
    %4854 = vmatpush2.bf16.msra.mxu0 0
    %4855 = vmatprep.subr.bf16.mxu0 0
    %4856 = vmatpush2.bf16.msra.mxu0 0
    %4857 = vmatprep.mubr.bf16.mxu0 0
    %4858 = vmatmul.mubr.bf16.gmra.mxu0 %v4586
    %v4859 = vpop.f32.mrf.mxu0
    %v4860 = vadd.f32 0.0, %v4859
    %v4861 = vpop.f32.mrf.mxu0
    %v4862 = vadd.f32 0.0, %v4861
    %v4863 = vpop.f32.mrf.mxu0
    %v4864 = vpop.f32.mrf.mxu0
    %4865 = vdwg.mxu0
    %v4866 = vadd.f32 %v4588, %v4819
    %v4867 = vadd.f32 %v4589, %v4821
    %v4868 = vadd.f32 %v4590, %v4860
    %v4869 = vadd.f32 %v4591, %v4862
    %v4870 = vmul.f32 %v4866, 0.5
    %v4871 = vtanh.pop %v4870
    %v4872 = vmul.f32 %v4871, 0.5
    %v4873 = vadd.f32 %v4872, 0.5
    %v4874 = vmul.f32 %v4867, 0.5
    %v4875 = vtanh.pop %v4874
    %v4876 = vmul.f32 %v4875, 0.5
    %v4877 = vadd.f32 %v4876, 0.5
    %v4878 = vtanh.pop %v4868
    %v4879 = vmul.f32 %v4869, 0.5
    %v4880 = vtanh.pop %v4879
    %v4881 = vmul.f32 %v4880, 0.5
    %v4882 = vadd.f32 %v4881, 0.5
    %v4883 = vmul.f32 %v4877, %v4583
    %v4884 = vmul.f32 %v4873, %v4878
    %v4885 = vadd.f32 %v4883, %v4884
    %v4886 = vtanh.pop %v4885
    %v4887 = vmul.f32 %v4882, %v4886
    %v4888 = vpack.c.bf16 %v4887, %v4887
    %4889 = vst [vmem:[#allocation3 + $0x20] sm:$0xff] %v4887
    %v4890 = vld [vmem:[#allocation4 + $0xa0] sm:$0xff]
    %v4891 = vld [vmem:[#allocation4 + $0xa8] sm:$0xff]
    %v4892 = vld [vmem:[#allocation4 + $0xb0] sm:$0xff]
    %v4893 = vld [vmem:[#allocation4 + $0xb8] sm:$0xff]
    %v4894 = vld [vmem:[#allocation10] sm:$0xff]
    %v4895 = vld [vmem:[#allocation10 + $0x8] sm:$0xff]
    %v4896 = vld [vmem:[#allocation10 + $0x10] sm:$0xff]
    %v4897 = vld [vmem:[#allocation10 + $0x18] sm:$0xff]
    %v4898 = vld [vmem:[#allocation10 + $0x20] sm:$0xff]
    %v4899 = vld [vmem:[#allocation10 + $0x28] sm:$0xff]
    %v4900 = vld [vmem:[#allocation10 + $0x30] sm:$0xff]
    %v4901 = vld [vmem:[#allocation10 + $0x38] sm:$0xff]
    %v4902 = vld [vmem:[#allocation10 + $0x40] sm:$0xff]
    %v4903 = vld [vmem:[#allocation10 + $0x48] sm:$0xff]
    %v4904 = vld [vmem:[#allocation10 + $0x50] sm:$0xff]
    %v4905 = vld [vmem:[#allocation10 + $0x58] sm:$0xff]
    %v4906 = vld [vmem:[#allocation10 + $0x60] sm:$0xff]
    %v4907 = vld [vmem:[#allocation10 + $0x68] sm:$0xff]
    %v4908 = vld [vmem:[#allocation10 + $0x70] sm:$0xff]
    %v4909 = vld [vmem:[#allocation10 + $0x78] sm:$0xff]
    %v4910 = vld [vmem:[#allocation10 + $0x80] sm:$0xff]
    %v4911 = vld [vmem:[#allocation10 + $0x88] sm:$0xff]
    %v4912 = vld [vmem:[#allocation10 + $0x90] sm:$0xff]
    %v4913 = vld [vmem:[#allocation10 + $0x98] sm:$0xff]
    %v4914 = vld [vmem:[#allocation10 + $0xa0] sm:$0xff]
    %v4915 = vld [vmem:[#allocation10 + $0xa8] sm:$0xff]
    %v4916 = vld [vmem:[#allocation10 + $0xb0] sm:$0xff]
    %v4917 = vld [vmem:[#allocation10 + $0xb8] sm:$0xff]
    %v4918 = vld [vmem:[#allocation10 + $0xc0] sm:$0xff]
    %v4919 = vld [vmem:[#allocation10 + $0xc8] sm:$0xff]
    %v4920 = vld [vmem:[#allocation10 + $0xd0] sm:$0xff]
    %v4921 = vld [vmem:[#allocation10 + $0xd8] sm:$0xff]
    %v4922 = vld [vmem:[#allocation10 + $0xe0] sm:$0xff]
    %v4923 = vld [vmem:[#allocation10 + $0xe8] sm:$0xff]
    %v4924 = vld [vmem:[#allocation10 + $0xf0] sm:$0xff]
    %v4925 = vld [vmem:[#allocation10 + $0xf8] sm:$0xff]
    %v4958 = vunpack.c.l.b16 %v4894
    %v4959 = vunpack.c.h.b16 %v4894
    %v4960 = vunpack.c.l.b16 %v4895
    %v4961 = vunpack.c.h.b16 %v4895
    %v4962 = vunpack.c.l.b16 %v4896
    %v4963 = vunpack.c.h.b16 %v4896
    %v4964 = vunpack.c.l.b16 %v4897
    %v4965 = vunpack.c.h.b16 %v4897
    %v4966 = vunpack.c.l.b16 %v4898
    %v4967 = vunpack.c.h.b16 %v4898
    %v4968 = vunpack.c.l.b16 %v4899
    %v4969 = vunpack.c.h.b16 %v4899
    %v4970 = vunpack.c.l.b16 %v4900
    %v4971 = vunpack.c.h.b16 %v4900
    %v4972 = vunpack.c.l.b16 %v4901
    %v4973 = vunpack.c.h.b16 %v4901
    %v4974 = vunpack.c.l.b16 %v4902
    %v4975 = vunpack.c.h.b16 %v4902
    %v4976 = vunpack.c.l.b16 %v4903
    %v4977 = vunpack.c.h.b16 %v4903
    %v4978 = vunpack.c.l.b16 %v4904
    %v4979 = vunpack.c.h.b16 %v4904
    %v4980 = vunpack.c.l.b16 %v4905
    %v4981 = vunpack.c.h.b16 %v4905
    %v4982 = vunpack.c.l.b16 %v4906
    %v4983 = vunpack.c.h.b16 %v4906
    %v4984 = vunpack.c.l.b16 %v4907
    %v4985 = vunpack.c.h.b16 %v4907
    %v4986 = vunpack.c.l.b16 %v4908
    %v4987 = vunpack.c.h.b16 %v4908
    %v4988 = vunpack.c.l.b16 %v4909
    %v4989 = vunpack.c.h.b16 %v4909
    %v4990 = vunpack.c.l.b16 %v4910
    %v4991 = vunpack.c.h.b16 %v4910
    %v4992 = vunpack.c.l.b16 %v4911
    %v4993 = vunpack.c.h.b16 %v4911
    %v4994 = vunpack.c.l.b16 %v4912
    %v4995 = vunpack.c.h.b16 %v4912
    %v4996 = vunpack.c.l.b16 %v4913
    %v4997 = vunpack.c.h.b16 %v4913
    %v4998 = vunpack.c.l.b16 %v4914
    %v4999 = vunpack.c.h.b16 %v4914
    %v5000 = vunpack.c.l.b16 %v4915
    %v5001 = vunpack.c.h.b16 %v4915
    %v5002 = vunpack.c.l.b16 %v4916
    %v5003 = vunpack.c.h.b16 %v4916
    %v5004 = vunpack.c.l.b16 %v4917
    %v5005 = vunpack.c.h.b16 %v4917
    %v5006 = vunpack.c.l.b16 %v4918
    %v5007 = vunpack.c.h.b16 %v4918
    %v5008 = vunpack.c.l.b16 %v4919
    %v5009 = vunpack.c.h.b16 %v4919
    %v5010 = vunpack.c.l.b16 %v4920
    %v5011 = vunpack.c.h.b16 %v4920
    %v5012 = vunpack.c.l.b16 %v4921
    %v5013 = vunpack.c.h.b16 %v4921
    %v5014 = vunpack.c.l.b16 %v4922
    %v5015 = vunpack.c.h.b16 %v4922
    %v5016 = vunpack.c.l.b16 %v4923
    %v5017 = vunpack.c.h.b16 %v4923
    %v5018 = vunpack.c.l.b16 %v4924
    %v5019 = vunpack.c.h.b16 %v4924
    %v5020 = vunpack.c.l.b16 %v4925
    %v5021 = vunpack.c.h.b16 %v4925
    %v5022 = vpack.c.b16 %v4962, %v4958
    %v5023 = vpack.c.b16 %v4963, %v4959
    %v5024 = vpack.c.b16 %v4964, %v4960
    %v5025 = vpack.c.b16 %v4965, %v4961
    %v5026 = vpack.c.b16 %v4970, %v4966
    %v5027 = vpack.c.b16 %v4971, %v4967
    %v5028 = vpack.c.b16 %v4972, %v4968
    %v5029 = vpack.c.b16 %v4973, %v4969
    %v5030 = vpack.c.b16 %v4978, %v4974
    %v5031 = vpack.c.b16 %v4979, %v4975
    %v5032 = vpack.c.b16 %v4980, %v4976
    %v5033 = vpack.c.b16 %v4981, %v4977
    %v5034 = vpack.c.b16 %v4986, %v4982
    %v5035 = vpack.c.b16 %v4987, %v4983
    %v5036 = vpack.c.b16 %v4988, %v4984
    %v5037 = vpack.c.b16 %v4989, %v4985
    %v5038 = vpack.c.b16 %v4994, %v4990
    %v5039 = vpack.c.b16 %v4995, %v4991
    %v5040 = vpack.c.b16 %v4996, %v4992
    %v5041 = vpack.c.b16 %v4997, %v4993
    %v5042 = vpack.c.b16 %v5002, %v4998
    %v5043 = vpack.c.b16 %v5003, %v4999
    %v5044 = vpack.c.b16 %v5004, %v5000
    %v5045 = vpack.c.b16 %v5005, %v5001
    %v5046 = vpack.c.b16 %v5010, %v5006
    %v5047 = vpack.c.b16 %v5011, %v5007
    %v5048 = vpack.c.b16 %v5012, %v5008
    %v5049 = vpack.c.b16 %v5013, %v5009
    %v5050 = vpack.c.b16 %v5018, %v5014
    %v5051 = vpack.c.b16 %v5019, %v5015
    %v5052 = vpack.c.b16 %v5020, %v5016
    %v5053 = vpack.c.b16 %v5021, %v5017
    %5086 = vmatprep.subr.bf16.mxu0 %v5051
    %5087 = vmatpush1.bf16.msra.mxu0 %v5050
    %5088 = vmatprep.subr.bf16.mxu0 %v5047
    %5089 = vmatpush1.bf16.msra.mxu0 %v5046
    %5090 = vmatprep.subr.bf16.mxu0 %v5043
    %5091 = vmatpush1.bf16.msra.mxu0 %v5042
    %5092 = vmatprep.subr.bf16.mxu0 %v5039
    %5093 = vmatpush1.bf16.msra.mxu0 %v5038
    %5094 = vmatprep.subr.bf16.mxu0 %v5035
    %5095 = vmatpush1.bf16.msra.mxu0 %v5034
    %5096 = vmatprep.subr.bf16.mxu0 %v5031
    %5097 = vmatpush1.bf16.msra.mxu0 %v5030
    %5098 = vmatprep.subr.bf16.mxu0 %v5027
    %5099 = vmatpush1.bf16.msra.mxu0 %v5026
    %5100 = vmatprep.subr.bf16.mxu0 %v5023
    %5101 = vmatpush1.bf16.msra.mxu0 %v5022
    %5102 = vmatprep.subr.bf16.mxu0 0
    %5103 = vmatpush2.bf16.msra.mxu0 0
    %5104 = vmatprep.subr.bf16.mxu0 0
    %5105 = vmatpush2.bf16.msra.mxu0 0
    %5106 = vmatprep.subr.bf16.mxu0 0
    %5107 = vmatpush2.bf16.msra.mxu0 0
    %5108 = vmatprep.subr.bf16.mxu0 0
    %5109 = vmatpush2.bf16.msra.mxu0 0
    %5110 = vmatprep.subr.bf16.mxu0 0
    %5111 = vmatpush2.bf16.msra.mxu0 0
    %5112 = vmatprep.subr.bf16.mxu0 0
    %5113 = vmatpush2.bf16.msra.mxu0 0
    %5114 = vmatprep.subr.bf16.mxu0 0
    %5115 = vmatpush2.bf16.msra.mxu0 0
    %5116 = vmatprep.subr.bf16.mxu0 0
    %5117 = vmatpush2.bf16.msra.mxu0 0
    %5118 = vmatprep.mubr.bf16.mxu0 0
    %5119 = vmatmul.mubr.bf16.gmra.mxu0 %v4888
    %v5120 = vpop.f32.mrf.mxu0
    %v5121 = vadd.f32 0.0, %v5120
    %v5122 = vpop.f32.mrf.mxu0
    %v5123 = vadd.f32 0.0, %v5122
    %v5124 = vpop.f32.mrf.mxu0
    %v5125 = vpop.f32.mrf.mxu0
    %5126 = vdwg.mxu0
    %5127 = vmatprep.subr.bf16.mxu0 %v5053
    %5128 = vmatpush1.bf16.msra.mxu0 %v5052
    %5129 = vmatprep.subr.bf16.mxu0 %v5049
    %5130 = vmatpush1.bf16.msra.mxu0 %v5048
    %5131 = vmatprep.subr.bf16.mxu0 %v5045
    %5132 = vmatpush1.bf16.msra.mxu0 %v5044
    %5133 = vmatprep.subr.bf16.mxu0 %v5041
    %5134 = vmatpush1.bf16.msra.mxu0 %v5040
    %5135 = vmatprep.subr.bf16.mxu0 %v5037
    %5136 = vmatpush1.bf16.msra.mxu0 %v5036
    %5137 = vmatprep.subr.bf16.mxu0 %v5033
    %5138 = vmatpush1.bf16.msra.mxu0 %v5032
    %5139 = vmatprep.subr.bf16.mxu0 %v5029
    %5140 = vmatpush1.bf16.msra.mxu0 %v5028
    %5141 = vmatprep.subr.bf16.mxu0 %v5025
    %5142 = vmatpush1.bf16.msra.mxu0 %v5024
    %5143 = vmatprep.subr.bf16.mxu0 0
    %5144 = vmatpush2.bf16.msra.mxu0 0
    %5145 = vmatprep.subr.bf16.mxu0 0
    %5146 = vmatpush2.bf16.msra.mxu0 0
    %5147 = vmatprep.subr.bf16.mxu0 0
    %5148 = vmatpush2.bf16.msra.mxu0 0
    %5149 = vmatprep.subr.bf16.mxu0 0
    %5150 = vmatpush2.bf16.msra.mxu0 0
    %5151 = vmatprep.subr.bf16.mxu0 0
    %5152 = vmatpush2.bf16.msra.mxu0 0
    %5153 = vmatprep.subr.bf16.mxu0 0
    %5154 = vmatpush2.bf16.msra.mxu0 0
    %5155 = vmatprep.subr.bf16.mxu0 0
    %5156 = vmatpush2.bf16.msra.mxu0 0
    %5157 = vmatprep.subr.bf16.mxu0 0
    %5158 = vmatpush2.bf16.msra.mxu0 0
    %5159 = vmatprep.mubr.bf16.mxu0 0
    %5160 = vmatmul.mubr.bf16.gmra.mxu0 %v4888
    %v5161 = vpop.f32.mrf.mxu0
    %v5162 = vadd.f32 0.0, %v5161
    %v5163 = vpop.f32.mrf.mxu0
    %v5164 = vadd.f32 0.0, %v5163
    %v5165 = vpop.f32.mrf.mxu0
    %v5166 = vpop.f32.mrf.mxu0
    %5167 = vdwg.mxu0
    %v5168 = vadd.f32 %v4890, %v5121
    %v5169 = vadd.f32 %v4891, %v5123
    %v5170 = vadd.f32 %v4892, %v5162
    %v5171 = vadd.f32 %v4893, %v5164
    %v5172 = vmul.f32 %v5168, 0.5
    %v5173 = vtanh.pop %v5172
    %v5174 = vmul.f32 %v5173, 0.5
    %v5175 = vadd.f32 %v5174, 0.5
    %v5176 = vmul.f32 %v5169, 0.5
    %v5177 = vtanh.pop %v5176
    %v5178 = vmul.f32 %v5177, 0.5
    %v5179 = vadd.f32 %v5178, 0.5
    %v5180 = vtanh.pop %v5170
    %v5181 = vmul.f32 %v5171, 0.5
    %v5182 = vtanh.pop %v5181
    %v5183 = vmul.f32 %v5182, 0.5
    %v5184 = vadd.f32 %v5183, 0.5
    %v5185 = vmul.f32 %v5179, %v4885
    %v5186 = vmul.f32 %v5175, %v5180
    %v5187 = vadd.f32 %v5185, %v5186
    %v5188 = vtanh.pop %v5187
    %v5189 = vmul.f32 %v5184, %v5188
    %v5190 = vpack.c.bf16 %v5189, %v5189
    %5191 = vst [vmem:[#allocation3 + $0x28] sm:$0xff] %v5189
    %v5192 = vld [vmem:[#allocation4 + $0xc0] sm:$0xff]
    %v5193 = vld [vmem:[#allocation4 + $0xc8] sm:$0xff]
    %v5194 = vld [vmem:[#allocation4 + $0xd0] sm:$0xff]
    %v5195 = vld [vmem:[#allocation4 + $0xd8] sm:$0xff]
    %v5196 = vld [vmem:[#allocation10] sm:$0xff]
    %v5197 = vld [vmem:[#allocation10 + $0x8] sm:$0xff]
    %v5198 = vld [vmem:[#allocation10 + $0x10] sm:$0xff]
    %v5199 = vld [vmem:[#allocation10 + $0x18] sm:$0xff]
    %v5200 = vld [vmem:[#allocation10 + $0x20] sm:$0xff]
    %v5201 = vld [vmem:[#allocation10 + $0x28] sm:$0xff]
    %v5202 = vld [vmem:[#allocation10 + $0x30] sm:$0xff]
    %v5203 = vld [vmem:[#allocation10 + $0x38] sm:$0xff]
    %v5204 = vld [vmem:[#allocation10 + $0x40] sm:$0xff]
    %v5205 = vld [vmem:[#allocation10 + $0x48] sm:$0xff]
    %v5206 = vld [vmem:[#allocation10 + $0x50] sm:$0xff]
    %v5207 = vld [vmem:[#allocation10 + $0x58] sm:$0xff]
    %v5208 = vld [vmem:[#allocation10 + $0x60] sm:$0xff]
    %v5209 = vld [vmem:[#allocation10 + $0x68] sm:$0xff]
    %v5210 = vld [vmem:[#allocation10 + $0x70] sm:$0xff]
    %v5211 = vld [vmem:[#allocation10 + $0x78] sm:$0xff]
    %v5212 = vld [vmem:[#allocation10 + $0x80] sm:$0xff]
    %v5213 = vld [vmem:[#allocation10 + $0x88] sm:$0xff]
    %v5214 = vld [vmem:[#allocation10 + $0x90] sm:$0xff]
    %v5215 = vld [vmem:[#allocation10 + $0x98] sm:$0xff]
    %v5216 = vld [vmem:[#allocation10 + $0xa0] sm:$0xff]
    %v5217 = vld [vmem:[#allocation10 + $0xa8] sm:$0xff]
    %v5218 = vld [vmem:[#allocation10 + $0xb0] sm:$0xff]
    %v5219 = vld [vmem:[#allocation10 + $0xb8] sm:$0xff]
    %v5220 = vld [vmem:[#allocation10 + $0xc0] sm:$0xff]
    %v5221 = vld [vmem:[#allocation10 + $0xc8] sm:$0xff]
    %v5222 = vld [vmem:[#allocation10 + $0xd0] sm:$0xff]
    %v5223 = vld [vmem:[#allocation10 + $0xd8] sm:$0xff]
    %v5224 = vld [vmem:[#allocation10 + $0xe0] sm:$0xff]
    %v5225 = vld [vmem:[#allocation10 + $0xe8] sm:$0xff]
    %v5226 = vld [vmem:[#allocation10 + $0xf0] sm:$0xff]
    %v5227 = vld [vmem:[#allocation10 + $0xf8] sm:$0xff]
    %v5260 = vunpack.c.l.b16 %v5196
    %v5261 = vunpack.c.h.b16 %v5196
    %v5262 = vunpack.c.l.b16 %v5197
    %v5263 = vunpack.c.h.b16 %v5197
    %v5264 = vunpack.c.l.b16 %v5198
    %v5265 = vunpack.c.h.b16 %v5198
    %v5266 = vunpack.c.l.b16 %v5199
    %v5267 = vunpack.c.h.b16 %v5199
    %v5268 = vunpack.c.l.b16 %v5200
    %v5269 = vunpack.c.h.b16 %v5200
    %v5270 = vunpack.c.l.b16 %v5201
    %v5271 = vunpack.c.h.b16 %v5201
    %v5272 = vunpack.c.l.b16 %v5202
    %v5273 = vunpack.c.h.b16 %v5202
    %v5274 = vunpack.c.l.b16 %v5203
    %v5275 = vunpack.c.h.b16 %v5203
    %v5276 = vunpack.c.l.b16 %v5204
    %v5277 = vunpack.c.h.b16 %v5204
    %v5278 = vunpack.c.l.b16 %v5205
    %v5279 = vunpack.c.h.b16 %v5205
    %v5280 = vunpack.c.l.b16 %v5206
    %v5281 = vunpack.c.h.b16 %v5206
    %v5282 = vunpack.c.l.b16 %v5207
    %v5283 = vunpack.c.h.b16 %v5207
    %v5284 = vunpack.c.l.b16 %v5208
    %v5285 = vunpack.c.h.b16 %v5208
    %v5286 = vunpack.c.l.b16 %v5209
    %v5287 = vunpack.c.h.b16 %v5209
    %v5288 = vunpack.c.l.b16 %v5210
    %v5289 = vunpack.c.h.b16 %v5210
    %v5290 = vunpack.c.l.b16 %v5211
    %v5291 = vunpack.c.h.b16 %v5211
    %v5292 = vunpack.c.l.b16 %v5212
    %v5293 = vunpack.c.h.b16 %v5212
    %v5294 = vunpack.c.l.b16 %v5213
    %v5295 = vunpack.c.h.b16 %v5213
    %v5296 = vunpack.c.l.b16 %v5214
    %v5297 = vunpack.c.h.b16 %v5214
    %v5298 = vunpack.c.l.b16 %v5215
    %v5299 = vunpack.c.h.b16 %v5215
    %v5300 = vunpack.c.l.b16 %v5216
    %v5301 = vunpack.c.h.b16 %v5216
    %v5302 = vunpack.c.l.b16 %v5217
    %v5303 = vunpack.c.h.b16 %v5217
    %v5304 = vunpack.c.l.b16 %v5218
    %v5305 = vunpack.c.h.b16 %v5218
    %v5306 = vunpack.c.l.b16 %v5219
    %v5307 = vunpack.c.h.b16 %v5219
    %v5308 = vunpack.c.l.b16 %v5220
    %v5309 = vunpack.c.h.b16 %v5220
    %v5310 = vunpack.c.l.b16 %v5221
    %v5311 = vunpack.c.h.b16 %v5221
    %v5312 = vunpack.c.l.b16 %v5222
    %v5313 = vunpack.c.h.b16 %v5222
    %v5314 = vunpack.c.l.b16 %v5223
    %v5315 = vunpack.c.h.b16 %v5223
    %v5316 = vunpack.c.l.b16 %v5224
    %v5317 = vunpack.c.h.b16 %v5224
    %v5318 = vunpack.c.l.b16 %v5225
    %v5319 = vunpack.c.h.b16 %v5225
    %v5320 = vunpack.c.l.b16 %v5226
    %v5321 = vunpack.c.h.b16 %v5226
    %v5322 = vunpack.c.l.b16 %v5227
    %v5323 = vunpack.c.h.b16 %v5227
    %v5324 = vpack.c.b16 %v5264, %v5260
    %v5325 = vpack.c.b16 %v5265, %v5261
    %v5326 = vpack.c.b16 %v5266, %v5262
    %v5327 = vpack.c.b16 %v5267, %v5263
    %v5328 = vpack.c.b16 %v5272, %v5268
    %v5329 = vpack.c.b16 %v5273, %v5269
    %v5330 = vpack.c.b16 %v5274, %v5270
    %v5331 = vpack.c.b16 %v5275, %v5271
    %v5332 = vpack.c.b16 %v5280, %v5276
    %v5333 = vpack.c.b16 %v5281, %v5277
    %v5334 = vpack.c.b16 %v5282, %v5278
    %v5335 = vpack.c.b16 %v5283, %v5279
    %v5336 = vpack.c.b16 %v5288, %v5284
    %v5337 = vpack.c.b16 %v5289, %v5285
    %v5338 = vpack.c.b16 %v5290, %v5286
    %v5339 = vpack.c.b16 %v5291, %v5287
    %v5340 = vpack.c.b16 %v5296, %v5292
    %v5341 = vpack.c.b16 %v5297, %v5293
    %v5342 = vpack.c.b16 %v5298, %v5294
    %v5343 = vpack.c.b16 %v5299, %v5295
    %v5344 = vpack.c.b16 %v5304, %v5300
    %v5345 = vpack.c.b16 %v5305, %v5301
    %v5346 = vpack.c.b16 %v5306, %v5302
    %v5347 = vpack.c.b16 %v5307, %v5303
    %v5348 = vpack.c.b16 %v5312, %v5308
    %v5349 = vpack.c.b16 %v5313, %v5309
    %v5350 = vpack.c.b16 %v5314, %v5310
    %v5351 = vpack.c.b16 %v5315, %v5311
    %v5352 = vpack.c.b16 %v5320, %v5316
    %v5353 = vpack.c.b16 %v5321, %v5317
    %v5354 = vpack.c.b16 %v5322, %v5318
    %v5355 = vpack.c.b16 %v5323, %v5319
    %5388 = vmatprep.subr.bf16.mxu0 %v5353
    %5389 = vmatpush1.bf16.msra.mxu0 %v5352
    %5390 = vmatprep.subr.bf16.mxu0 %v5349
    %5391 = vmatpush1.bf16.msra.mxu0 %v5348
    %5392 = vmatprep.subr.bf16.mxu0 %v5345
    %5393 = vmatpush1.bf16.msra.mxu0 %v5344
    %5394 = vmatprep.subr.bf16.mxu0 %v5341
    %5395 = vmatpush1.bf16.msra.mxu0 %v5340
    %5396 = vmatprep.subr.bf16.mxu0 %v5337
    %5397 = vmatpush1.bf16.msra.mxu0 %v5336
    %5398 = vmatprep.subr.bf16.mxu0 %v5333
    %5399 = vmatpush1.bf16.msra.mxu0 %v5332
    %5400 = vmatprep.subr.bf16.mxu0 %v5329
    %5401 = vmatpush1.bf16.msra.mxu0 %v5328
    %5402 = vmatprep.subr.bf16.mxu0 %v5325
    %5403 = vmatpush1.bf16.msra.mxu0 %v5324
    %5404 = vmatprep.subr.bf16.mxu0 0
    %5405 = vmatpush2.bf16.msra.mxu0 0
    %5406 = vmatprep.subr.bf16.mxu0 0
    %5407 = vmatpush2.bf16.msra.mxu0 0
    %5408 = vmatprep.subr.bf16.mxu0 0
    %5409 = vmatpush2.bf16.msra.mxu0 0
    %5410 = vmatprep.subr.bf16.mxu0 0
    %5411 = vmatpush2.bf16.msra.mxu0 0
    %5412 = vmatprep.subr.bf16.mxu0 0
    %5413 = vmatpush2.bf16.msra.mxu0 0
    %5414 = vmatprep.subr.bf16.mxu0 0
    %5415 = vmatpush2.bf16.msra.mxu0 0
    %5416 = vmatprep.subr.bf16.mxu0 0
    %5417 = vmatpush2.bf16.msra.mxu0 0
    %5418 = vmatprep.subr.bf16.mxu0 0
    %5419 = vmatpush2.bf16.msra.mxu0 0
    %5420 = vmatprep.mubr.bf16.mxu0 0
    %5421 = vmatmul.mubr.bf16.gmra.mxu0 %v5190
    %v5422 = vpop.f32.mrf.mxu0
    %v5423 = vadd.f32 0.0, %v5422
    %v5424 = vpop.f32.mrf.mxu0
    %v5425 = vadd.f32 0.0, %v5424
    %v5426 = vpop.f32.mrf.mxu0
    %v5427 = vpop.f32.mrf.mxu0
    %5428 = vdwg.mxu0
    %5429 = vmatprep.subr.bf16.mxu0 %v5355
    %5430 = vmatpush1.bf16.msra.mxu0 %v5354
    %5431 = vmatprep.subr.bf16.mxu0 %v5351
    %5432 = vmatpush1.bf16.msra.mxu0 %v5350
    %5433 = vmatprep.subr.bf16.mxu0 %v5347
    %5434 = vmatpush1.bf16.msra.mxu0 %v5346
    %5435 = vmatprep.subr.bf16.mxu0 %v5343
    %5436 = vmatpush1.bf16.msra.mxu0 %v5342
    %5437 = vmatprep.subr.bf16.mxu0 %v5339
    %5438 = vmatpush1.bf16.msra.mxu0 %v5338
    %5439 = vmatprep.subr.bf16.mxu0 %v5335
    %5440 = vmatpush1.bf16.msra.mxu0 %v5334
    %5441 = vmatprep.subr.bf16.mxu0 %v5331
    %5442 = vmatpush1.bf16.msra.mxu0 %v5330
    %5443 = vmatprep.subr.bf16.mxu0 %v5327
    %5444 = vmatpush1.bf16.msra.mxu0 %v5326
    %5445 = vmatprep.subr.bf16.mxu0 0
    %5446 = vmatpush2.bf16.msra.mxu0 0
    %5447 = vmatprep.subr.bf16.mxu0 0
    %5448 = vmatpush2.bf16.msra.mxu0 0
    %5449 = vmatprep.subr.bf16.mxu0 0
    %5450 = vmatpush2.bf16.msra.mxu0 0
    %5451 = vmatprep.subr.bf16.mxu0 0
    %5452 = vmatpush2.bf16.msra.mxu0 0
    %5453 = vmatprep.subr.bf16.mxu0 0
    %5454 = vmatpush2.bf16.msra.mxu0 0
    %5455 = vmatprep.subr.bf16.mxu0 0
    %5456 = vmatpush2.bf16.msra.mxu0 0
    %5457 = vmatprep.subr.bf16.mxu0 0
    %5458 = vmatpush2.bf16.msra.mxu0 0
    %5459 = vmatprep.subr.bf16.mxu0 0
    %5460 = vmatpush2.bf16.msra.mxu0 0
    %5461 = vmatprep.mubr.bf16.mxu0 0
    %5462 = vmatmul.mubr.bf16.gmra.mxu0 %v5190
    %v5463 = vpop.f32.mrf.mxu0
    %v5464 = vadd.f32 0.0, %v5463
    %v5465 = vpop.f32.mrf.mxu0
    %v5466 = vadd.f32 0.0, %v5465
    %v5467 = vpop.f32.mrf.mxu0
    %v5468 = vpop.f32.mrf.mxu0
    %5469 = vdwg.mxu0
    %v5470 = vadd.f32 %v5192, %v5423
    %v5471 = vadd.f32 %v5193, %v5425
    %v5472 = vadd.f32 %v5194, %v5464
    %v5473 = vadd.f32 %v5195, %v5466
    %v5474 = vmul.f32 %v5470, 0.5
    %v5475 = vtanh.pop %v5474
    %v5476 = vmul.f32 %v5475, 0.5
    %v5477 = vadd.f32 %v5476, 0.5
    %v5478 = vmul.f32 %v5471, 0.5
    %v5479 = vtanh.pop %v5478
    %v5480 = vmul.f32 %v5479, 0.5
    %v5481 = vadd.f32 %v5480, 0.5
    %v5482 = vtanh.pop %v5472
    %v5483 = vmul.f32 %v5473, 0.5
    %v5484 = vtanh.pop %v5483
    %v5485 = vmul.f32 %v5484, 0.5
    %v5486 = vadd.f32 %v5485, 0.5
    %v5487 = vmul.f32 %v5481, %v5187
    %v5488 = vmul.f32 %v5477, %v5482
    %v5489 = vadd.f32 %v5487, %v5488
    %v5490 = vtanh.pop %v5489
    %v5491 = vmul.f32 %v5486, %v5490
    %v5492 = vpack.c.bf16 %v5491, %v5491
    %5493 = vst [vmem:[#allocation3 + $0x30] sm:$0xff] %v5491
    %v5494 = vld [vmem:[#allocation4 + $0xe0] sm:$0xff]
    %v5495 = vld [vmem:[#allocation4 + $0xe8] sm:$0xff]
    %v5496 = vld [vmem:[#allocation4 + $0xf0] sm:$0xff]
    %v5497 = vld [vmem:[#allocation4 + $0xf8] sm:$0xff]
    %v5498 = vld [vmem:[#allocation10] sm:$0xff]
    %v5499 = vld [vmem:[#allocation10 + $0x8] sm:$0xff]
    %v5500 = vld [vmem:[#allocation10 + $0x10] sm:$0xff]
    %v5501 = vld [vmem:[#allocation10 + $0x18] sm:$0xff]
    %v5502 = vld [vmem:[#allocation10 + $0x20] sm:$0xff]
    %v5503 = vld [vmem:[#allocation10 + $0x28] sm:$0xff]
    %v5504 = vld [vmem:[#allocation10 + $0x30] sm:$0xff]
    %v5505 = vld [vmem:[#allocation10 + $0x38] sm:$0xff]
    %v5506 = vld [vmem:[#allocation10 + $0x40] sm:$0xff]
    %v5507 = vld [vmem:[#allocation10 + $0x48] sm:$0xff]
    %v5508 = vld [vmem:[#allocation10 + $0x50] sm:$0xff]
    %v5509 = vld [vmem:[#allocation10 + $0x58] sm:$0xff]
    %v5510 = vld [vmem:[#allocation10 + $0x60] sm:$0xff]
    %v5511 = vld [vmem:[#allocation10 + $0x68] sm:$0xff]
    %v5512 = vld [vmem:[#allocation10 + $0x70] sm:$0xff]
    %v5513 = vld [vmem:[#allocation10 + $0x78] sm:$0xff]
    %v5514 = vld [vmem:[#allocation10 + $0x80] sm:$0xff]
    %v5515 = vld [vmem:[#allocation10 + $0x88] sm:$0xff]
    %v5516 = vld [vmem:[#allocation10 + $0x90] sm:$0xff]
    %v5517 = vld [vmem:[#allocation10 + $0x98] sm:$0xff]
    %v5518 = vld [vmem:[#allocation10 + $0xa0] sm:$0xff]
    %v5519 = vld [vmem:[#allocation10 + $0xa8] sm:$0xff]
    %v5520 = vld [vmem:[#allocation10 + $0xb0] sm:$0xff]
    %v5521 = vld [vmem:[#allocation10 + $0xb8] sm:$0xff]
    %v5522 = vld [vmem:[#allocation10 + $0xc0] sm:$0xff]
    %v5523 = vld [vmem:[#allocation10 + $0xc8] sm:$0xff]
    %v5524 = vld [vmem:[#allocation10 + $0xd0] sm:$0xff]
    %v5525 = vld [vmem:[#allocation10 + $0xd8] sm:$0xff]
    %v5526 = vld [vmem:[#allocation10 + $0xe0] sm:$0xff]
    %v5527 = vld [vmem:[#allocation10 + $0xe8] sm:$0xff]
    %v5528 = vld [vmem:[#allocation10 + $0xf0] sm:$0xff]
    %v5529 = vld [vmem:[#allocation10 + $0xf8] sm:$0xff]
    %v5562 = vunpack.c.l.b16 %v5498
    %v5563 = vunpack.c.h.b16 %v5498
    %v5564 = vunpack.c.l.b16 %v5499
    %v5565 = vunpack.c.h.b16 %v5499
    %v5566 = vunpack.c.l.b16 %v5500
    %v5567 = vunpack.c.h.b16 %v5500
    %v5568 = vunpack.c.l.b16 %v5501
    %v5569 = vunpack.c.h.b16 %v5501
    %v5570 = vunpack.c.l.b16 %v5502
    %v5571 = vunpack.c.h.b16 %v5502
    %v5572 = vunpack.c.l.b16 %v5503
    %v5573 = vunpack.c.h.b16 %v5503
    %v5574 = vunpack.c.l.b16 %v5504
    %v5575 = vunpack.c.h.b16 %v5504
    %v5576 = vunpack.c.l.b16 %v5505
    %v5577 = vunpack.c.h.b16 %v5505
    %v5578 = vunpack.c.l.b16 %v5506
    %v5579 = vunpack.c.h.b16 %v5506
    %v5580 = vunpack.c.l.b16 %v5507
    %v5581 = vunpack.c.h.b16 %v5507
    %v5582 = vunpack.c.l.b16 %v5508
    %v5583 = vunpack.c.h.b16 %v5508
    %v5584 = vunpack.c.l.b16 %v5509
    %v5585 = vunpack.c.h.b16 %v5509
    %v5586 = vunpack.c.l.b16 %v5510
    %v5587 = vunpack.c.h.b16 %v5510
    %v5588 = vunpack.c.l.b16 %v5511
    %v5589 = vunpack.c.h.b16 %v5511
    %v5590 = vunpack.c.l.b16 %v5512
    %v5591 = vunpack.c.h.b16 %v5512
    %v5592 = vunpack.c.l.b16 %v5513
    %v5593 = vunpack.c.h.b16 %v5513
    %v5594 = vunpack.c.l.b16 %v5514
    %v5595 = vunpack.c.h.b16 %v5514
    %v5596 = vunpack.c.l.b16 %v5515
    %v5597 = vunpack.c.h.b16 %v5515
    %v5598 = vunpack.c.l.b16 %v5516
    %v5599 = vunpack.c.h.b16 %v5516
    %v5600 = vunpack.c.l.b16 %v5517
    %v5601 = vunpack.c.h.b16 %v5517
    %v5602 = vunpack.c.l.b16 %v5518
    %v5603 = vunpack.c.h.b16 %v5518
    %v5604 = vunpack.c.l.b16 %v5519
    %v5605 = vunpack.c.h.b16 %v5519
    %v5606 = vunpack.c.l.b16 %v5520
    %v5607 = vunpack.c.h.b16 %v5520
    %v5608 = vunpack.c.l.b16 %v5521
    %v5609 = vunpack.c.h.b16 %v5521
    %v5610 = vunpack.c.l.b16 %v5522
    %v5611 = vunpack.c.h.b16 %v5522
    %v5612 = vunpack.c.l.b16 %v5523
    %v5613 = vunpack.c.h.b16 %v5523
    %v5614 = vunpack.c.l.b16 %v5524
    %v5615 = vunpack.c.h.b16 %v5524
    %v5616 = vunpack.c.l.b16 %v5525
    %v5617 = vunpack.c.h.b16 %v5525
    %v5618 = vunpack.c.l.b16 %v5526
    %v5619 = vunpack.c.h.b16 %v5526
    %v5620 = vunpack.c.l.b16 %v5527
    %v5621 = vunpack.c.h.b16 %v5527
    %v5622 = vunpack.c.l.b16 %v5528
    %v5623 = vunpack.c.h.b16 %v5528
    %v5624 = vunpack.c.l.b16 %v5529
    %v5625 = vunpack.c.h.b16 %v5529
    %v5626 = vpack.c.b16 %v5566, %v5562
    %v5627 = vpack.c.b16 %v5567, %v5563
    %v5628 = vpack.c.b16 %v5568, %v5564
    %v5629 = vpack.c.b16 %v5569, %v5565
    %v5630 = vpack.c.b16 %v5574, %v5570
    %v5631 = vpack.c.b16 %v5575, %v5571
    %v5632 = vpack.c.b16 %v5576, %v5572
    %v5633 = vpack.c.b16 %v5577, %v5573
    %v5634 = vpack.c.b16 %v5582, %v5578
    %v5635 = vpack.c.b16 %v5583, %v5579
    %v5636 = vpack.c.b16 %v5584, %v5580
    %v5637 = vpack.c.b16 %v5585, %v5581
    %v5638 = vpack.c.b16 %v5590, %v5586
    %v5639 = vpack.c.b16 %v5591, %v5587
    %v5640 = vpack.c.b16 %v5592, %v5588
    %v5641 = vpack.c.b16 %v5593, %v5589
    %v5642 = vpack.c.b16 %v5598, %v5594
    %v5643 = vpack.c.b16 %v5599, %v5595
    %v5644 = vpack.c.b16 %v5600, %v5596
    %v5645 = vpack.c.b16 %v5601, %v5597
    %v5646 = vpack.c.b16 %v5606, %v5602
    %v5647 = vpack.c.b16 %v5607, %v5603
    %v5648 = vpack.c.b16 %v5608, %v5604
    %v5649 = vpack.c.b16 %v5609, %v5605
    %v5650 = vpack.c.b16 %v5614, %v5610
    %v5651 = vpack.c.b16 %v5615, %v5611
    %v5652 = vpack.c.b16 %v5616, %v5612
    %v5653 = vpack.c.b16 %v5617, %v5613
    %v5654 = vpack.c.b16 %v5622, %v5618
    %v5655 = vpack.c.b16 %v5623, %v5619
    %v5656 = vpack.c.b16 %v5624, %v5620
    %v5657 = vpack.c.b16 %v5625, %v5621
    %5690 = vmatprep.subr.bf16.mxu0 %v5655
    %5691 = vmatpush1.bf16.msra.mxu0 %v5654
    %5692 = vmatprep.subr.bf16.mxu0 %v5651
    %5693 = vmatpush1.bf16.msra.mxu0 %v5650
    %5694 = vmatprep.subr.bf16.mxu0 %v5647
    %5695 = vmatpush1.bf16.msra.mxu0 %v5646
    %5696 = vmatprep.subr.bf16.mxu0 %v5643
    %5697 = vmatpush1.bf16.msra.mxu0 %v5642
    %5698 = vmatprep.subr.bf16.mxu0 %v5639
    %5699 = vmatpush1.bf16.msra.mxu0 %v5638
    %5700 = vmatprep.subr.bf16.mxu0 %v5635
    %5701 = vmatpush1.bf16.msra.mxu0 %v5634
    %5702 = vmatprep.subr.bf16.mxu0 %v5631
    %5703 = vmatpush1.bf16.msra.mxu0 %v5630
    %5704 = vmatprep.subr.bf16.mxu0 %v5627
    %5705 = vmatpush1.bf16.msra.mxu0 %v5626
    %5706 = vmatprep.subr.bf16.mxu0 0
    %5707 = vmatpush2.bf16.msra.mxu0 0
    %5708 = vmatprep.subr.bf16.mxu0 0
    %5709 = vmatpush2.bf16.msra.mxu0 0
    %5710 = vmatprep.subr.bf16.mxu0 0
    %5711 = vmatpush2.bf16.msra.mxu0 0
    %5712 = vmatprep.subr.bf16.mxu0 0
    %5713 = vmatpush2.bf16.msra.mxu0 0
    %5714 = vmatprep.subr.bf16.mxu0 0
    %5715 = vmatpush2.bf16.msra.mxu0 0
    %5716 = vmatprep.subr.bf16.mxu0 0
    %5717 = vmatpush2.bf16.msra.mxu0 0
    %5718 = vmatprep.subr.bf16.mxu0 0
    %5719 = vmatpush2.bf16.msra.mxu0 0
    %5720 = vmatprep.subr.bf16.mxu0 0
    %5721 = vmatpush2.bf16.msra.mxu0 0
    %5722 = vmatprep.mubr.bf16.mxu0 0
    %5723 = vmatmul.mubr.bf16.gmra.mxu0 %v5492
    %v5724 = vpop.f32.mrf.mxu0
    %v5725 = vadd.f32 0.0, %v5724
    %v5726 = vpop.f32.mrf.mxu0
    %v5727 = vadd.f32 0.0, %v5726
    %v5728 = vpop.f32.mrf.mxu0
    %v5729 = vpop.f32.mrf.mxu0
    %5730 = vdwg.mxu0
    %5731 = vmatprep.subr.bf16.mxu0 %v5657
    %5732 = vmatpush1.bf16.msra.mxu0 %v5656
    %5733 = vmatprep.subr.bf16.mxu0 %v5653
    %5734 = vmatpush1.bf16.msra.mxu0 %v5652
    %5735 = vmatprep.subr.bf16.mxu0 %v5649
    %5736 = vmatpush1.bf16.msra.mxu0 %v5648
    %5737 = vmatprep.subr.bf16.mxu0 %v5645
    %5738 = vmatpush1.bf16.msra.mxu0 %v5644
    %5739 = vmatprep.subr.bf16.mxu0 %v5641
    %5740 = vmatpush1.bf16.msra.mxu0 %v5640
    %5741 = vmatprep.subr.bf16.mxu0 %v5637
    %5742 = vmatpush1.bf16.msra.mxu0 %v5636
    %5743 = vmatprep.subr.bf16.mxu0 %v5633
    %5744 = vmatpush1.bf16.msra.mxu0 %v5632
    %5745 = vmatprep.subr.bf16.mxu0 %v5629
    %5746 = vmatpush1.bf16.msra.mxu0 %v5628
    %5747 = vmatprep.subr.bf16.mxu0 0
    %5748 = vmatpush2.bf16.msra.mxu0 0
    %5749 = vmatprep.subr.bf16.mxu0 0
    %5750 = vmatpush2.bf16.msra.mxu0 0
    %5751 = vmatprep.subr.bf16.mxu0 0
    %5752 = vmatpush2.bf16.msra.mxu0 0
    %5753 = vmatprep.subr.bf16.mxu0 0
    %5754 = vmatpush2.bf16.msra.mxu0 0
    %5755 = vmatprep.subr.bf16.mxu0 0
    %5756 = vmatpush2.bf16.msra.mxu0 0
    %5757 = vmatprep.subr.bf16.mxu0 0
    %5758 = vmatpush2.bf16.msra.mxu0 0
    %5759 = vmatprep.subr.bf16.mxu0 0
    %5760 = vmatpush2.bf16.msra.mxu0 0
    %5761 = vmatprep.subr.bf16.mxu0 0
    %5762 = vmatpush2.bf16.msra.mxu0 0
    %5763 = vmatprep.mubr.bf16.mxu0 0
    %5764 = vmatmul.mubr.bf16.gmra.mxu0 %v5492
    %v5765 = vpop.f32.mrf.mxu0
    %v5766 = vadd.f32 0.0, %v5765
    %v5767 = vpop.f32.mrf.mxu0
    %v5768 = vadd.f32 0.0, %v5767
    %v5769 = vpop.f32.mrf.mxu0
    %v5770 = vpop.f32.mrf.mxu0
    %5771 = vdwg.mxu0
    %v5772 = vadd.f32 %v5494, %v5725
    %v5773 = vadd.f32 %v5495, %v5727
    %v5774 = vadd.f32 %v5496, %v5766
    %v5775 = vadd.f32 %v5497, %v5768
    %v5776 = vmul.f32 %v5772, 0.5
    %v5777 = vtanh.pop %v5776
    %v5778 = vmul.f32 %v5777, 0.5
    %v5779 = vadd.f32 %v5778, 0.5
    %v5780 = vmul.f32 %v5773, 0.5
    %v5781 = vtanh.pop %v5780
    %v5782 = vmul.f32 %v5781, 0.5
    %v5783 = vadd.f32 %v5782, 0.5
    %v5784 = vtanh.pop %v5774
    %v5785 = vmul.f32 %v5775, 0.5
    %v5786 = vtanh.pop %v5785
    %v5787 = vmul.f32 %v5786, 0.5
    %v5788 = vadd.f32 %v5787, 0.5
    %v5789 = vmul.f32 %v5783, %v5489
    %v5790 = vmul.f32 %v5779, %v5784
    %v5791 = vadd.f32 %v5789, %v5790
    %v5792 = vtanh.pop %v5791
    %v5793 = vmul.f32 %v5788, %v5792
    %5794 = vst [vmem:[#allocation3 + $0x38] sm:$0xff] %v5793
    %v5795 = vld [vmem:[#allocation3] sm:$0xff]
    %v5796 = vld [vmem:[#allocation3 + $0x8] sm:$0xff]
    %v5797 = vld [vmem:[#allocation3 + $0x10] sm:$0xff]
    %v5798 = vld [vmem:[#allocation3 + $0x18] sm:$0xff]
    %v5799 = vld [vmem:[#allocation3 + $0x20] sm:$0xff]
    %v5800 = vld [vmem:[#allocation3 + $0x28] sm:$0xff]
    %v5801 = vld [vmem:[#allocation3 + $0x30] sm:$0xff]
    %v5802 = vld [vmem:[#allocation3 + $0x38] sm:$0xff]
    %v5803 = vpack.c.bf16 %v5796, %v5795
    %v5804 = vpack.c.bf16 %v5798, %v5797
    %v5805 = vpack.c.bf16 %v5800, %v5799
    %v5806 = vpack.c.bf16 %v5802, %v5801
    %v5807 = vld [vmem:[#allocation12] sm:$0xff]
    %v5808 = vld [vmem:[#allocation12 + $0x8] sm:$0xff]
    %v5809 = vld [vmem:[#allocation12 + $0x10] sm:$0xff]
    %v5810 = vld [vmem:[#allocation12 + $0x18] sm:$0xff]
    %v5811 = vld [vmem:[#allocation12 + $0x20] sm:$0xff]
    %v5812 = vld [vmem:[#allocation12 + $0x28] sm:$0xff]
    %v5813 = vld [vmem:[#allocation12 + $0x30] sm:$0xff]
    %v5814 = vld [vmem:[#allocation12 + $0x38] sm:$0xff]
    %v5815 = vld [vmem:[#allocation12 + $0x40] sm:$0xff]
    %v5816 = vld [vmem:[#allocation12 + $0x48] sm:$0xff]
    %v5817 = vld [vmem:[#allocation12 + $0x50] sm:$0xff]
    %v5818 = vld [vmem:[#allocation12 + $0x58] sm:$0xff]
    %v5819 = vld [vmem:[#allocation12 + $0x60] sm:$0xff]
    %v5820 = vld [vmem:[#allocation12 + $0x68] sm:$0xff]
    %v5821 = vld [vmem:[#allocation12 + $0x70] sm:$0xff]
    %v5822 = vld [vmem:[#allocation12 + $0x78] sm:$0xff]
    %v5823 = vld [vmem:[#allocation12 + $0x80] sm:$0xff]
    %v5824 = vld [vmem:[#allocation12 + $0x88] sm:$0xff]
    %v5825 = vld [vmem:[#allocation12 + $0x90] sm:$0xff]
    %v5826 = vld [vmem:[#allocation12 + $0x98] sm:$0xff]
    %v5827 = vld [vmem:[#allocation12 + $0xa0] sm:$0xff]
    %v5828 = vld [vmem:[#allocation12 + $0xa8] sm:$0xff]
    %v5829 = vld [vmem:[#allocation12 + $0xb0] sm:$0xff]
    %v5830 = vld [vmem:[#allocation12 + $0xb8] sm:$0xff]
    %v5831 = vld [vmem:[#allocation12 + $0xc0] sm:$0xff]
    %v5832 = vld [vmem:[#allocation12 + $0xc8] sm:$0xff]
    %v5833 = vld [vmem:[#allocation12 + $0xd0] sm:$0xff]
    %v5834 = vld [vmem:[#allocation12 + $0xd8] sm:$0xff]
    %v5835 = vld [vmem:[#allocation12 + $0xe0] sm:$0xff]
    %v5836 = vld [vmem:[#allocation12 + $0xe8] sm:$0xff]
    %v5837 = vld [vmem:[#allocation12 + $0xf0] sm:$0xff]
    %v5838 = vld [vmem:[#allocation12 + $0xf8] sm:$0xff]
    %v5839 = vld [vmem:[%s9] sm:$0xf]
    %v5841 = vlaneseq
    %v5842 = vshrl.u32 %v5841, 7
    %v5843 = vsub.s32 0, %v5842
    %v5844 = vrot.slane %v5839, %v5843
    %v5845 = vlaneseq
    %v5846 = vshrl.u32 %v5845, 7
    %v5847 = vsub.s32 1, %v5846
    %v5848 = vrot.slane %v5839, %v5847
    %v5849 = vlaneseq
    %v5850 = vshrl.u32 %v5849, 7
    %v5851 = vsub.s32 2, %v5850
    %v5852 = vrot.slane %v5839, %v5851
    %v5853 = vlaneseq
    %v5854 = vshrl.u32 %v5853, 7
    %v5855 = vsub.s32 3, %v5854
    %v5856 = vrot.slane %v5839, %v5855
    %v5893 = vunpack.c.l.b16 %v5807
    %v5894 = vunpack.c.h.b16 %v5807
    %v5895 = vunpack.c.l.b16 %v5808
    %v5896 = vunpack.c.h.b16 %v5808
    %v5897 = vunpack.c.l.b16 %v5809
    %v5898 = vunpack.c.h.b16 %v5809
    %v5899 = vunpack.c.l.b16 %v5810
    %v5900 = vunpack.c.h.b16 %v5810
    %v5901 = vunpack.c.l.b16 %v5811
    %v5902 = vunpack.c.h.b16 %v5811
    %v5903 = vunpack.c.l.b16 %v5812
    %v5904 = vunpack.c.h.b16 %v5812
    %v5905 = vunpack.c.l.b16 %v5813
    %v5906 = vunpack.c.h.b16 %v5813
    %v5907 = vunpack.c.l.b16 %v5814
    %v5908 = vunpack.c.h.b16 %v5814
    %v5909 = vunpack.c.l.b16 %v5815
    %v5910 = vunpack.c.h.b16 %v5815
    %v5911 = vunpack.c.l.b16 %v5816
    %v5912 = vunpack.c.h.b16 %v5816
    %v5913 = vunpack.c.l.b16 %v5817
    %v5914 = vunpack.c.h.b16 %v5817
    %v5915 = vunpack.c.l.b16 %v5818
    %v5916 = vunpack.c.h.b16 %v5818
    %v5917 = vunpack.c.l.b16 %v5819
    %v5918 = vunpack.c.h.b16 %v5819
    %v5919 = vunpack.c.l.b16 %v5820
    %v5920 = vunpack.c.h.b16 %v5820
    %v5921 = vunpack.c.l.b16 %v5821
    %v5922 = vunpack.c.h.b16 %v5821
    %v5923 = vunpack.c.l.b16 %v5822
    %v5924 = vunpack.c.h.b16 %v5822
    %v5925 = vunpack.c.l.b16 %v5823
    %v5926 = vunpack.c.h.b16 %v5823
    %v5927 = vunpack.c.l.b16 %v5824
    %v5928 = vunpack.c.h.b16 %v5824
    %v5929 = vunpack.c.l.b16 %v5825
    %v5930 = vunpack.c.h.b16 %v5825
    %v5931 = vunpack.c.l.b16 %v5826
    %v5932 = vunpack.c.h.b16 %v5826
    %v5933 = vunpack.c.l.b16 %v5827
    %v5934 = vunpack.c.h.b16 %v5827
    %v5935 = vunpack.c.l.b16 %v5828
    %v5936 = vunpack.c.h.b16 %v5828
    %v5937 = vunpack.c.l.b16 %v5829
    %v5938 = vunpack.c.h.b16 %v5829
    %v5939 = vunpack.c.l.b16 %v5830
    %v5940 = vunpack.c.h.b16 %v5830
    %v5941 = vunpack.c.l.b16 %v5831
    %v5942 = vunpack.c.h.b16 %v5831
    %v5943 = vunpack.c.l.b16 %v5832
    %v5944 = vunpack.c.h.b16 %v5832
    %v5945 = vunpack.c.l.b16 %v5833
    %v5946 = vunpack.c.h.b16 %v5833
    %v5947 = vunpack.c.l.b16 %v5834
    %v5948 = vunpack.c.h.b16 %v5834
    %v5949 = vunpack.c.l.b16 %v5835
    %v5950 = vunpack.c.h.b16 %v5835
    %v5951 = vunpack.c.l.b16 %v5836
    %v5952 = vunpack.c.h.b16 %v5836
    %v5953 = vunpack.c.l.b16 %v5837
    %v5954 = vunpack.c.h.b16 %v5837
    %v5955 = vunpack.c.l.b16 %v5838
    %v5956 = vunpack.c.h.b16 %v5838
    %v5957 = vpack.c.b16 %v5897, %v5893
    %v5958 = vpack.c.b16 %v5898, %v5894
    %v5959 = vpack.c.b16 %v5899, %v5895
    %v5960 = vpack.c.b16 %v5900, %v5896
    %v5961 = vpack.c.b16 %v5905, %v5901
    %v5962 = vpack.c.b16 %v5906, %v5902
    %v5963 = vpack.c.b16 %v5907, %v5903
    %v5964 = vpack.c.b16 %v5908, %v5904
    %v5965 = vpack.c.b16 %v5913, %v5909
    %v5966 = vpack.c.b16 %v5914, %v5910
    %v5967 = vpack.c.b16 %v5915, %v5911
    %v5968 = vpack.c.b16 %v5916, %v5912
    %v5969 = vpack.c.b16 %v5921, %v5917
    %v5970 = vpack.c.b16 %v5922, %v5918
    %v5971 = vpack.c.b16 %v5923, %v5919
    %v5972 = vpack.c.b16 %v5924, %v5920
    %v5973 = vpack.c.b16 %v5929, %v5925
    %v5974 = vpack.c.b16 %v5930, %v5926
    %v5975 = vpack.c.b16 %v5931, %v5927
    %v5976 = vpack.c.b16 %v5932, %v5928
    %v5977 = vpack.c.b16 %v5937, %v5933
    %v5978 = vpack.c.b16 %v5938, %v5934
    %v5979 = vpack.c.b16 %v5939, %v5935
    %v5980 = vpack.c.b16 %v5940, %v5936
    %v5981 = vpack.c.b16 %v5945, %v5941
    %v5982 = vpack.c.b16 %v5946, %v5942
    %v5983 = vpack.c.b16 %v5947, %v5943
    %v5984 = vpack.c.b16 %v5948, %v5944
    %v5985 = vpack.c.b16 %v5953, %v5949
    %v5986 = vpack.c.b16 %v5954, %v5950
    %v5987 = vpack.c.b16 %v5955, %v5951
    %v5988 = vpack.c.b16 %v5956, %v5952
    %6021 = vmatprep.subr.bf16.mxu0 %v5986
    %6022 = vmatpush1.bf16.msra.mxu0 %v5985
    %6023 = vmatprep.subr.bf16.mxu0 %v5982
    %6024 = vmatpush1.bf16.msra.mxu0 %v5981
    %6025 = vmatprep.subr.bf16.mxu0 %v5978
    %6026 = vmatpush1.bf16.msra.mxu0 %v5977
    %6027 = vmatprep.subr.bf16.mxu0 %v5974
    %6028 = vmatpush1.bf16.msra.mxu0 %v5973
    %6029 = vmatprep.subr.bf16.mxu0 %v5970
    %6030 = vmatpush1.bf16.msra.mxu0 %v5969
    %6031 = vmatprep.subr.bf16.mxu0 %v5966
    %6032 = vmatpush1.bf16.msra.mxu0 %v5965
    %6033 = vmatprep.subr.bf16.mxu0 %v5962
    %6034 = vmatpush1.bf16.msra.mxu0 %v5961
    %6035 = vmatprep.subr.bf16.mxu0 %v5958
    %6036 = vmatpush1.bf16.msra.mxu0 %v5957
    %6037 = vmatprep.subr.bf16.mxu0 0
    %6038 = vmatpush2.bf16.msra.mxu0 0
    %6039 = vmatprep.subr.bf16.mxu0 0
    %6040 = vmatpush2.bf16.msra.mxu0 0
    %6041 = vmatprep.subr.bf16.mxu0 0
    %6042 = vmatpush2.bf16.msra.mxu0 0
    %6043 = vmatprep.subr.bf16.mxu0 0
    %6044 = vmatpush2.bf16.msra.mxu0 0
    %6045 = vmatprep.subr.bf16.mxu0 0
    %6046 = vmatpush2.bf16.msra.mxu0 0
    %6047 = vmatprep.subr.bf16.mxu0 0
    %6048 = vmatpush2.bf16.msra.mxu0 0
    %6049 = vmatprep.subr.bf16.mxu0 0
    %6050 = vmatpush2.bf16.msra.mxu0 0
    %6051 = vmatprep.subr.bf16.mxu0 0
    %6052 = vmatpush2.bf16.msra.mxu0 0
    %6053 = vmatprep.mubr.bf16.mxu0 0
    %6054 = vmatmul.mubr.bf16.gmra.mxu0 %v5803
    %v6055 = vpop.f32.mrf.mxu0
    %v6056 = vadd.f32 %v5844, %v6055
    %v6057 = vpop.f32.mrf.mxu0
    %v6058 = vadd.f32 %v5848, %v6057
    %v6059 = vpop.f32.mrf.mxu0
    %v6060 = vadd.f32 %v5844, %v6059
    %v6061 = vpop.f32.mrf.mxu0
    %v6062 = vadd.f32 %v5848, %v6061
    %6063 = vmatprep.mubr.bf16.mxu0 0
    %6064 = vmatmul.mubr.bf16.gmra.mxu0 %v5804
    %v6065 = vpop.f32.mrf.mxu0
    %v6066 = vadd.f32 %v5844, %v6065
    %v6067 = vpop.f32.mrf.mxu0
    %v6068 = vadd.f32 %v5848, %v6067
    %v6069 = vpop.f32.mrf.mxu0
    %v6070 = vadd.f32 %v5844, %v6069
    %v6071 = vpop.f32.mrf.mxu0
    %v6072 = vadd.f32 %v5848, %v6071
    %6073 = vmatprep.mubr.bf16.mxu0 0
    %6074 = vmatmul.mubr.bf16.gmra.mxu0 %v5805
    %v6075 = vpop.f32.mrf.mxu0
    %v6076 = vadd.f32 %v5844, %v6075
    %v6077 = vpop.f32.mrf.mxu0
    %v6078 = vadd.f32 %v5848, %v6077
    %v6079 = vpop.f32.mrf.mxu0
    %v6080 = vadd.f32 %v5844, %v6079
    %v6081 = vpop.f32.mrf.mxu0
    %v6082 = vadd.f32 %v5848, %v6081
    %6083 = vmatprep.mubr.bf16.mxu0 0
    %6084 = vmatmul.mubr.bf16.gmra.mxu0 %v5806
    %v6085 = vpop.f32.mrf.mxu0
    %v6086 = vadd.f32 %v5844, %v6085
    %v6087 = vpop.f32.mrf.mxu0
    %v6088 = vadd.f32 %v5848, %v6087
    %v6089 = vpop.f32.mrf.mxu0
    %v6090 = vadd.f32 %v5844, %v6089
    %v6091 = vpop.f32.mrf.mxu0
    %v6092 = vadd.f32 %v5848, %v6091
    %6093 = vdwg.mxu0
    %6094 = vmatprep.subr.bf16.mxu0 %v5988
    %6095 = vmatpush1.bf16.msra.mxu0 %v5987
    %6096 = vmatprep.subr.bf16.mxu0 %v5984
    %6097 = vmatpush1.bf16.msra.mxu0 %v5983
    %6098 = vmatprep.subr.bf16.mxu0 %v5980
    %6099 = vmatpush1.bf16.msra.mxu0 %v5979
    %6100 = vmatprep.subr.bf16.mxu0 %v5976
    %6101 = vmatpush1.bf16.msra.mxu0 %v5975
    %6102 = vmatprep.subr.bf16.mxu0 %v5972
    %6103 = vmatpush1.bf16.msra.mxu0 %v5971
    %6104 = vmatprep.subr.bf16.mxu0 %v5968
    %6105 = vmatpush1.bf16.msra.mxu0 %v5967
    %6106 = vmatprep.subr.bf16.mxu0 %v5964
    %6107 = vmatpush1.bf16.msra.mxu0 %v5963
    %6108 = vmatprep.subr.bf16.mxu0 %v5960
    %6109 = vmatpush1.bf16.msra.mxu0 %v5959
    %6110 = vmatprep.subr.bf16.mxu0 0
    %6111 = vmatpush2.bf16.msra.mxu0 0
    %6112 = vmatprep.subr.bf16.mxu0 0
    %6113 = vmatpush2.bf16.msra.mxu0 0
    %6114 = vmatprep.subr.bf16.mxu0 0
    %6115 = vmatpush2.bf16.msra.mxu0 0
    %6116 = vmatprep.subr.bf16.mxu0 0
    %6117 = vmatpush2.bf16.msra.mxu0 0
    %6118 = vmatprep.subr.bf16.mxu0 0
    %6119 = vmatpush2.bf16.msra.mxu0 0
    %6120 = vmatprep.subr.bf16.mxu0 0
    %6121 = vmatpush2.bf16.msra.mxu0 0
    %6122 = vmatprep.subr.bf16.mxu0 0
    %6123 = vmatpush2.bf16.msra.mxu0 0
    %6124 = vmatprep.subr.bf16.mxu0 0
    %6125 = vmatpush2.bf16.msra.mxu0 0
    %6126 = vmatprep.mubr.bf16.mxu0 0
    %6127 = vmatmul.mubr.bf16.gmra.mxu0 %v5803
    %v6128 = vpop.f32.mrf.mxu0
    %v6129 = vadd.f32 %v5852, %v6128
    %v6130 = vpop.f32.mrf.mxu0
    %v6131 = vadd.f32 %v5856, %v6130
    %v6132 = vpop.f32.mrf.mxu0
    %v6133 = vadd.f32 %v5852, %v6132
    %v6134 = vpop.f32.mrf.mxu0
    %v6135 = vadd.f32 %v5856, %v6134
    %6136 = vmatprep.mubr.bf16.mxu0 0
    %6137 = vmatmul.mubr.bf16.gmra.mxu0 %v5804
    %v6138 = vpop.f32.mrf.mxu0
    %v6139 = vadd.f32 %v5852, %v6138
    %v6140 = vpop.f32.mrf.mxu0
    %v6141 = vadd.f32 %v5856, %v6140
    %v6142 = vpop.f32.mrf.mxu0
    %v6143 = vadd.f32 %v5852, %v6142
    %v6144 = vpop.f32.mrf.mxu0
    %v6145 = vadd.f32 %v5856, %v6144
    %6146 = vmatprep.mubr.bf16.mxu0 0
    %6147 = vmatmul.mubr.bf16.gmra.mxu0 %v5805
    %v6148 = vpop.f32.mrf.mxu0
    %v6149 = vadd.f32 %v5852, %v6148
    %v6150 = vpop.f32.mrf.mxu0
    %v6151 = vadd.f32 %v5856, %v6150
    %v6152 = vpop.f32.mrf.mxu0
    %v6153 = vadd.f32 %v5852, %v6152
    %v6154 = vpop.f32.mrf.mxu0
    %v6155 = vadd.f32 %v5856, %v6154
    %6156 = vmatprep.mubr.bf16.mxu0 0
    %6157 = vmatmul.mubr.bf16.gmra.mxu0 %v5806
    %v6158 = vpop.f32.mrf.mxu0
    %v6159 = vadd.f32 %v5852, %v6158
    %v6160 = vpop.f32.mrf.mxu0
    %v6161 = vadd.f32 %v5856, %v6160
    %v6162 = vpop.f32.mrf.mxu0
    %v6163 = vadd.f32 %v5852, %v6162
    %v6164 = vpop.f32.mrf.mxu0
    %v6165 = vadd.f32 %v5856, %v6164
    %6166 = vdwg.mxu0
    %6167 = vst [vmem:[#allocation4] sm:$0xff] %v6056
    %6168 = vst [vmem:[#allocation4 + $0x8] sm:$0xff] %v6058
    %6169 = vst [vmem:[#allocation4 + $0x10] sm:$0xff] %v6129
    %6170 = vst [vmem:[#allocation4 + $0x18] sm:$0xff] %v6131
    %6171 = vst [vmem:[#allocation4 + $0x20] sm:$0xff] %v6060
    %6172 = vst [vmem:[#allocation4 + $0x28] sm:$0xff] %v6062
    %6173 = vst [vmem:[#allocation4 + $0x30] sm:$0xff] %v6133
    %6174 = vst [vmem:[#allocation4 + $0x38] sm:$0xff] %v6135
    %6175 = vst [vmem:[#allocation4 + $0x40] sm:$0xff] %v6066
    %6176 = vst [vmem:[#allocation4 + $0x48] sm:$0xff] %v6068
    %6177 = vst [vmem:[#allocation4 + $0x50] sm:$0xff] %v6139
    %6178 = vst [vmem:[#allocation4 + $0x58] sm:$0xff] %v6141
    %6179 = vst [vmem:[#allocation4 + $0x60] sm:$0xff] %v6070
    %6180 = vst [vmem:[#allocation4 + $0x68] sm:$0xff] %v6072
    %6181 = vst [vmem:[#allocation4 + $0x70] sm:$0xff] %v6143
    %6182 = vst [vmem:[#allocation4 + $0x78] sm:$0xff] %v6145
    %6183 = vst [vmem:[#allocation4 + $0x80] sm:$0xff] %v6076
    %6184 = vst [vmem:[#allocation4 + $0x88] sm:$0xff] %v6078
    %6185 = vst [vmem:[#allocation4 + $0x90] sm:$0xff] %v6149
    %6186 = vst [vmem:[#allocation4 + $0x98] sm:$0xff] %v6151
    %6187 = vst [vmem:[#allocation4 + $0xa0] sm:$0xff] %v6080
    %6188 = vst [vmem:[#allocation4 + $0xa8] sm:$0xff] %v6082
    %6189 = vst [vmem:[#allocation4 + $0xb0] sm:$0xff] %v6153
    %6190 = vst [vmem:[#allocation4 + $0xb8] sm:$0xff] %v6155
    %6191 = vst [vmem:[#allocation4 + $0xc0] sm:$0xff] %v6086
    %6192 = vst [vmem:[#allocation4 + $0xc8] sm:$0xff] %v6088
    %6193 = vst [vmem:[#allocation4 + $0xd0] sm:$0xff] %v6159
    %6194 = vst [vmem:[#allocation4 + $0xd8] sm:$0xff] %v6161
    %6195 = vst [vmem:[#allocation4 + $0xe0] sm:$0xff] %v6090
    %6196 = vst [vmem:[#allocation4 + $0xe8] sm:$0xff] %v6092
    %6197 = vst [vmem:[#allocation4 + $0xf0] sm:$0xff] %v6163
    %6198 = vst [vmem:[#allocation4 + $0xf8] sm:$0xff] %v6165
    %v6199 = vld [vmem:[#allocation4] sm:$0xff]
    %v6200 = vld [vmem:[#allocation4 + $0x8] sm:$0xff]
    %v6201 = vld [vmem:[#allocation4 + $0x10] sm:$0xff]
    %v6202 = vld [vmem:[#allocation4 + $0x18] sm:$0xff]
    %v6203 = vld [vmem:[#allocation13] sm:$0xff]
    %v6204 = vld [vmem:[#allocation13 + $0x8] sm:$0xff]
    %v6205 = vld [vmem:[#allocation13 + $0x10] sm:$0xff]
    %v6206 = vld [vmem:[#allocation13 + $0x18] sm:$0xff]
    %v6207 = vld [vmem:[#allocation13 + $0x20] sm:$0xff]
    %v6208 = vld [vmem:[#allocation13 + $0x28] sm:$0xff]
    %v6209 = vld [vmem:[#allocation13 + $0x30] sm:$0xff]
    %v6210 = vld [vmem:[#allocation13 + $0x38] sm:$0xff]
    %v6211 = vld [vmem:[#allocation13 + $0x40] sm:$0xff]
    %v6212 = vld [vmem:[#allocation13 + $0x48] sm:$0xff]
    %v6213 = vld [vmem:[#allocation13 + $0x50] sm:$0xff]
    %v6214 = vld [vmem:[#allocation13 + $0x58] sm:$0xff]
    %v6215 = vld [vmem:[#allocation13 + $0x60] sm:$0xff]
    %v6216 = vld [vmem:[#allocation13 + $0x68] sm:$0xff]
    %v6217 = vld [vmem:[#allocation13 + $0x70] sm:$0xff]
    %v6218 = vld [vmem:[#allocation13 + $0x78] sm:$0xff]
    %v6219 = vld [vmem:[#allocation13 + $0x80] sm:$0xff]
    %v6220 = vld [vmem:[#allocation13 + $0x88] sm:$0xff]
    %v6221 = vld [vmem:[#allocation13 + $0x90] sm:$0xff]
    %v6222 = vld [vmem:[#allocation13 + $0x98] sm:$0xff]
    %v6223 = vld [vmem:[#allocation13 + $0xa0] sm:$0xff]
    %v6224 = vld [vmem:[#allocation13 + $0xa8] sm:$0xff]
    %v6225 = vld [vmem:[#allocation13 + $0xb0] sm:$0xff]
    %v6226 = vld [vmem:[#allocation13 + $0xb8] sm:$0xff]
    %v6227 = vld [vmem:[#allocation13 + $0xc0] sm:$0xff]
    %v6228 = vld [vmem:[#allocation13 + $0xc8] sm:$0xff]
    %v6229 = vld [vmem:[#allocation13 + $0xd0] sm:$0xff]
    %v6230 = vld [vmem:[#allocation13 + $0xd8] sm:$0xff]
    %v6231 = vld [vmem:[#allocation13 + $0xe0] sm:$0xff]
    %v6232 = vld [vmem:[#allocation13 + $0xe8] sm:$0xff]
    %v6233 = vld [vmem:[#allocation13 + $0xf0] sm:$0xff]
    %v6234 = vld [vmem:[#allocation13 + $0xf8] sm:$0xff]
    %v6267 = vunpack.c.l.b16 %v6203
    %v6268 = vunpack.c.h.b16 %v6203
    %v6269 = vunpack.c.l.b16 %v6204
    %v6270 = vunpack.c.h.b16 %v6204
    %v6271 = vunpack.c.l.b16 %v6205
    %v6272 = vunpack.c.h.b16 %v6205
    %v6273 = vunpack.c.l.b16 %v6206
    %v6274 = vunpack.c.h.b16 %v6206
    %v6275 = vunpack.c.l.b16 %v6207
    %v6276 = vunpack.c.h.b16 %v6207
    %v6277 = vunpack.c.l.b16 %v6208
    %v6278 = vunpack.c.h.b16 %v6208
    %v6279 = vunpack.c.l.b16 %v6209
    %v6280 = vunpack.c.h.b16 %v6209
    %v6281 = vunpack.c.l.b16 %v6210
    %v6282 = vunpack.c.h.b16 %v6210
    %v6283 = vunpack.c.l.b16 %v6211
    %v6284 = vunpack.c.h.b16 %v6211
    %v6285 = vunpack.c.l.b16 %v6212
    %v6286 = vunpack.c.h.b16 %v6212
    %v6287 = vunpack.c.l.b16 %v6213
    %v6288 = vunpack.c.h.b16 %v6213
    %v6289 = vunpack.c.l.b16 %v6214
    %v6290 = vunpack.c.h.b16 %v6214
    %v6291 = vunpack.c.l.b16 %v6215
    %v6292 = vunpack.c.h.b16 %v6215
    %v6293 = vunpack.c.l.b16 %v6216
    %v6294 = vunpack.c.h.b16 %v6216
    %v6295 = vunpack.c.l.b16 %v6217
    %v6296 = vunpack.c.h.b16 %v6217
    %v6297 = vunpack.c.l.b16 %v6218
    %v6298 = vunpack.c.h.b16 %v6218
    %v6299 = vunpack.c.l.b16 %v6219
    %v6300 = vunpack.c.h.b16 %v6219
    %v6301 = vunpack.c.l.b16 %v6220
    %v6302 = vunpack.c.h.b16 %v6220
    %v6303 = vunpack.c.l.b16 %v6221
    %v6304 = vunpack.c.h.b16 %v6221
    %v6305 = vunpack.c.l.b16 %v6222
    %v6306 = vunpack.c.h.b16 %v6222
    %v6307 = vunpack.c.l.b16 %v6223
    %v6308 = vunpack.c.h.b16 %v6223
    %v6309 = vunpack.c.l.b16 %v6224
    %v6310 = vunpack.c.h.b16 %v6224
    %v6311 = vunpack.c.l.b16 %v6225
    %v6312 = vunpack.c.h.b16 %v6225
    %v6313 = vunpack.c.l.b16 %v6226
    %v6314 = vunpack.c.h.b16 %v6226
    %v6315 = vunpack.c.l.b16 %v6227
    %v6316 = vunpack.c.h.b16 %v6227
    %v6317 = vunpack.c.l.b16 %v6228
    %v6318 = vunpack.c.h.b16 %v6228
    %v6319 = vunpack.c.l.b16 %v6229
    %v6320 = vunpack.c.h.b16 %v6229
    %v6321 = vunpack.c.l.b16 %v6230
    %v6322 = vunpack.c.h.b16 %v6230
    %v6323 = vunpack.c.l.b16 %v6231
    %v6324 = vunpack.c.h.b16 %v6231
    %v6325 = vunpack.c.l.b16 %v6232
    %v6326 = vunpack.c.h.b16 %v6232
    %v6327 = vunpack.c.l.b16 %v6233
    %v6328 = vunpack.c.h.b16 %v6233
    %v6329 = vunpack.c.l.b16 %v6234
    %v6330 = vunpack.c.h.b16 %v6234
    %v6331 = vpack.c.b16 %v6271, %v6267
    %v6332 = vpack.c.b16 %v6272, %v6268
    %v6333 = vpack.c.b16 %v6273, %v6269
    %v6334 = vpack.c.b16 %v6274, %v6270
    %v6335 = vpack.c.b16 %v6279, %v6275
    %v6336 = vpack.c.b16 %v6280, %v6276
    %v6337 = vpack.c.b16 %v6281, %v6277
    %v6338 = vpack.c.b16 %v6282, %v6278
    %v6339 = vpack.c.b16 %v6287, %v6283
    %v6340 = vpack.c.b16 %v6288, %v6284
    %v6341 = vpack.c.b16 %v6289, %v6285
    %v6342 = vpack.c.b16 %v6290, %v6286
    %v6343 = vpack.c.b16 %v6295, %v6291
    %v6344 = vpack.c.b16 %v6296, %v6292
    %v6345 = vpack.c.b16 %v6297, %v6293
    %v6346 = vpack.c.b16 %v6298, %v6294
    %v6347 = vpack.c.b16 %v6303, %v6299
    %v6348 = vpack.c.b16 %v6304, %v6300
    %v6349 = vpack.c.b16 %v6305, %v6301
    %v6350 = vpack.c.b16 %v6306, %v6302
    %v6351 = vpack.c.b16 %v6311, %v6307
    %v6352 = vpack.c.b16 %v6312, %v6308
    %v6353 = vpack.c.b16 %v6313, %v6309
    %v6354 = vpack.c.b16 %v6314, %v6310
    %v6355 = vpack.c.b16 %v6319, %v6315
    %v6356 = vpack.c.b16 %v6320, %v6316
    %v6357 = vpack.c.b16 %v6321, %v6317
    %v6358 = vpack.c.b16 %v6322, %v6318
    %v6359 = vpack.c.b16 %v6327, %v6323
    %v6360 = vpack.c.b16 %v6328, %v6324
    %v6361 = vpack.c.b16 %v6329, %v6325
    %v6362 = vpack.c.b16 %v6330, %v6326
    %6395 = vmatprep.subr.bf16.mxu0 %v6360
    %6396 = vmatpush1.bf16.msra.mxu0 %v6359
    %6397 = vmatprep.subr.bf16.mxu0 %v6356
    %6398 = vmatpush1.bf16.msra.mxu0 %v6355
    %6399 = vmatprep.subr.bf16.mxu0 %v6352
    %6400 = vmatpush1.bf16.msra.mxu0 %v6351
    %6401 = vmatprep.subr.bf16.mxu0 %v6348
    %6402 = vmatpush1.bf16.msra.mxu0 %v6347
    %6403 = vmatprep.subr.bf16.mxu0 %v6344
    %6404 = vmatpush1.bf16.msra.mxu0 %v6343
    %6405 = vmatprep.subr.bf16.mxu0 %v6340
    %6406 = vmatpush1.bf16.msra.mxu0 %v6339
    %6407 = vmatprep.subr.bf16.mxu0 %v6336
    %6408 = vmatpush1.bf16.msra.mxu0 %v6335
    %6409 = vmatprep.subr.bf16.mxu0 %v6332
    %6410 = vmatpush1.bf16.msra.mxu0 %v6331
    %6411 = vmatprep.subr.bf16.mxu0 0
    %6412 = vmatpush2.bf16.msra.mxu0 0
    %6413 = vmatprep.subr.bf16.mxu0 0
    %6414 = vmatpush2.bf16.msra.mxu0 0
    %6415 = vmatprep.subr.bf16.mxu0 0
    %6416 = vmatpush2.bf16.msra.mxu0 0
    %6417 = vmatprep.subr.bf16.mxu0 0
    %6418 = vmatpush2.bf16.msra.mxu0 0
    %6419 = vmatprep.subr.bf16.mxu0 0
    %6420 = vmatpush2.bf16.msra.mxu0 0
    %6421 = vmatprep.subr.bf16.mxu0 0
    %6422 = vmatpush2.bf16.msra.mxu0 0
    %6423 = vmatprep.subr.bf16.mxu0 0
    %6424 = vmatpush2.bf16.msra.mxu0 0
    %6425 = vmatprep.subr.bf16.mxu0 0
    %6426 = vmatpush2.bf16.msra.mxu0 0
    %6427 = vmatprep.mubr.bf16.mxu0 0
    %6428 = vmatmul.mubr.bf16.gmra.mxu0 0
    %v6429 = vpop.f32.mrf.mxu0
    %v6430 = vadd.f32 0.0, %v6429
    %v6431 = vpop.f32.mrf.mxu0
    %v6432 = vadd.f32 0.0, %v6431
    %v6433 = vpop.f32.mrf.mxu0
    %v6434 = vpop.f32.mrf.mxu0
    %6435 = vdwg.mxu0
    %6436 = vmatprep.subr.bf16.mxu0 %v6362
    %6437 = vmatpush1.bf16.msra.mxu0 %v6361
    %6438 = vmatprep.subr.bf16.mxu0 %v6358
    %6439 = vmatpush1.bf16.msra.mxu0 %v6357
    %6440 = vmatprep.subr.bf16.mxu0 %v6354
    %6441 = vmatpush1.bf16.msra.mxu0 %v6353
    %6442 = vmatprep.subr.bf16.mxu0 %v6350
    %6443 = vmatpush1.bf16.msra.mxu0 %v6349
    %6444 = vmatprep.subr.bf16.mxu0 %v6346
    %6445 = vmatpush1.bf16.msra.mxu0 %v6345
    %6446 = vmatprep.subr.bf16.mxu0 %v6342
    %6447 = vmatpush1.bf16.msra.mxu0 %v6341
    %6448 = vmatprep.subr.bf16.mxu0 %v6338
    %6449 = vmatpush1.bf16.msra.mxu0 %v6337
    %6450 = vmatprep.subr.bf16.mxu0 %v6334
    %6451 = vmatpush1.bf16.msra.mxu0 %v6333
    %6452 = vmatprep.subr.bf16.mxu0 0
    %6453 = vmatpush2.bf16.msra.mxu0 0
    %6454 = vmatprep.subr.bf16.mxu0 0
    %6455 = vmatpush2.bf16.msra.mxu0 0
    %6456 = vmatprep.subr.bf16.mxu0 0
    %6457 = vmatpush2.bf16.msra.mxu0 0
    %6458 = vmatprep.subr.bf16.mxu0 0
    %6459 = vmatpush2.bf16.msra.mxu0 0
    %6460 = vmatprep.subr.bf16.mxu0 0
    %6461 = vmatpush2.bf16.msra.mxu0 0
    %6462 = vmatprep.subr.bf16.mxu0 0
    %6463 = vmatpush2.bf16.msra.mxu0 0
    %6464 = vmatprep.subr.bf16.mxu0 0
    %6465 = vmatpush2.bf16.msra.mxu0 0
    %6466 = vmatprep.subr.bf16.mxu0 0
    %6467 = vmatpush2.bf16.msra.mxu0 0
    %6468 = vmatprep.mubr.bf16.mxu0 0
    %6469 = vmatmul.mubr.bf16.gmra.mxu0 0
    %v6470 = vpop.f32.mrf.mxu0
    %v6471 = vadd.f32 0.0, %v6470
    %v6472 = vpop.f32.mrf.mxu0
    %v6473 = vadd.f32 0.0, %v6472
    %v6474 = vpop.f32.mrf.mxu0
    %v6475 = vpop.f32.mrf.mxu0
    %6476 = vdwg.mxu0
    %v6477 = vadd.f32 %v6199, %v6430
    %v6478 = vadd.f32 %v6200, %v6432
    %v6479 = vadd.f32 %v6201, %v6471
    %v6480 = vadd.f32 %v6202, %v6473
    %v6481 = vmul.f32 %v6477, 0.5
    %v6482 = vtanh.pop %v6481
    %v6483 = vmul.f32 %v6482, 0.5
    %v6484 = vadd.f32 %v6483, 0.5
    %v6485 = vmul.f32 %v6478, 0.5
    %v6486 = vtanh.pop %v6485
    %v6487 = vmul.f32 %v6486, 0.5
    %v6488 = vadd.f32 %v6487, 0.5
    %v6489 = vtanh.pop %v6479
    %v6490 = vmul.f32 %v6480, 0.5
    %v6491 = vtanh.pop %v6490
    %v6492 = vmul.f32 %v6491, 0.5
    %v6493 = vadd.f32 %v6492, 0.5
    %v6494 = vmul.f32 %v6488, 0.0
    %v6495 = vmul.f32 %v6484, %v6489
    %v6496 = vadd.f32 %v6494, %v6495
    %v6497 = vtanh.pop %v6496
    %v6498 = vmul.f32 %v6493, %v6497
    %v6499 = vpack.c.bf16 %v6498, %v6498
    %v6500 = vld [vmem:[#allocation4 + $0x20] sm:$0xff]
    %v6501 = vld [vmem:[#allocation4 + $0x28] sm:$0xff]
    %v6502 = vld [vmem:[#allocation4 + $0x30] sm:$0xff]
    %v6503 = vld [vmem:[#allocation4 + $0x38] sm:$0xff]
    %6504 = vmatprep.subr.bf16.mxu0 %v6360
    %6505 = vmatpush1.bf16.msra.mxu0 %v6359
    %6506 = vmatprep.subr.bf16.mxu0 %v6356
    %6507 = vmatpush1.bf16.msra.mxu0 %v6355
    %6508 = vmatprep.subr.bf16.mxu0 %v6352
    %6509 = vmatpush1.bf16.msra.mxu0 %v6351
    %6510 = vmatprep.subr.bf16.mxu0 %v6348
    %6511 = vmatpush1.bf16.msra.mxu0 %v6347
    %6512 = vmatprep.subr.bf16.mxu0 %v6344
    %6513 = vmatpush1.bf16.msra.mxu0 %v6343
    %6514 = vmatprep.subr.bf16.mxu0 %v6340
    %6515 = vmatpush1.bf16.msra.mxu0 %v6339
    %6516 = vmatprep.subr.bf16.mxu0 %v6336
    %6517 = vmatpush1.bf16.msra.mxu0 %v6335
    %6518 = vmatprep.subr.bf16.mxu0 %v6332
    %6519 = vmatpush1.bf16.msra.mxu0 %v6331
    %6520 = vmatprep.subr.bf16.mxu0 0
    %6521 = vmatpush2.bf16.msra.mxu0 0
    %6522 = vmatprep.subr.bf16.mxu0 0
    %6523 = vmatpush2.bf16.msra.mxu0 0
    %6524 = vmatprep.subr.bf16.mxu0 0
    %6525 = vmatpush2.bf16.msra.mxu0 0
    %6526 = vmatprep.subr.bf16.mxu0 0
    %6527 = vmatpush2.bf16.msra.mxu0 0
    %6528 = vmatprep.subr.bf16.mxu0 0
    %6529 = vmatpush2.bf16.msra.mxu0 0
    %6530 = vmatprep.subr.bf16.mxu0 0
    %6531 = vmatpush2.bf16.msra.mxu0 0
    %6532 = vmatprep.subr.bf16.mxu0 0
    %6533 = vmatpush2.bf16.msra.mxu0 0
    %6534 = vmatprep.subr.bf16.mxu0 0
    %6535 = vmatpush2.bf16.msra.mxu0 0
    %6536 = vmatprep.mubr.bf16.mxu0 0
    %6537 = vmatmul.mubr.bf16.gmra.mxu0 %v6499
    %v6538 = vpop.f32.mrf.mxu0
    %v6539 = vadd.f32 0.0, %v6538
    %v6540 = vpop.f32.mrf.mxu0
    %v6541 = vadd.f32 0.0, %v6540
    %v6542 = vpop.f32.mrf.mxu0
    %v6543 = vpop.f32.mrf.mxu0
    %6544 = vdwg.mxu0
    %6545 = vmatprep.subr.bf16.mxu0 %v6362
    %6546 = vmatpush1.bf16.msra.mxu0 %v6361
    %6547 = vmatprep.subr.bf16.mxu0 %v6358
    %6548 = vmatpush1.bf16.msra.mxu0 %v6357
    %6549 = vmatprep.subr.bf16.mxu0 %v6354
    %6550 = vmatpush1.bf16.msra.mxu0 %v6353
    %6551 = vmatprep.subr.bf16.mxu0 %v6350
    %6552 = vmatpush1.bf16.msra.mxu0 %v6349
    %6553 = vmatprep.subr.bf16.mxu0 %v6346
    %6554 = vmatpush1.bf16.msra.mxu0 %v6345
    %6555 = vmatprep.subr.bf16.mxu0 %v6342
    %6556 = vmatpush1.bf16.msra.mxu0 %v6341
    %6557 = vmatprep.subr.bf16.mxu0 %v6338
    %6558 = vmatpush1.bf16.msra.mxu0 %v6337
    %6559 = vmatprep.subr.bf16.mxu0 %v6334
    %6560 = vmatpush1.bf16.msra.mxu0 %v6333
    %6561 = vmatprep.subr.bf16.mxu0 0
    %6562 = vmatpush2.bf16.msra.mxu0 0
    %6563 = vmatprep.subr.bf16.mxu0 0
    %6564 = vmatpush2.bf16.msra.mxu0 0
    %6565 = vmatprep.subr.bf16.mxu0 0
    %6566 = vmatpush2.bf16.msra.mxu0 0
    %6567 = vmatprep.subr.bf16.mxu0 0
    %6568 = vmatpush2.bf16.msra.mxu0 0
    %6569 = vmatprep.subr.bf16.mxu0 0
    %6570 = vmatpush2.bf16.msra.mxu0 0
    %6571 = vmatprep.subr.bf16.mxu0 0
    %6572 = vmatpush2.bf16.msra.mxu0 0
    %6573 = vmatprep.subr.bf16.mxu0 0
    %6574 = vmatpush2.bf16.msra.mxu0 0
    %6575 = vmatprep.subr.bf16.mxu0 0
    %6576 = vmatpush2.bf16.msra.mxu0 0
    %6577 = vmatprep.mubr.bf16.mxu0 0
    %6578 = vmatmul.mubr.bf16.gmra.mxu0 %v6499
    %v6579 = vpop.f32.mrf.mxu0
    %v6580 = vadd.f32 0.0, %v6579
    %v6581 = vpop.f32.mrf.mxu0
    %v6582 = vadd.f32 0.0, %v6581
    %v6583 = vpop.f32.mrf.mxu0
    %v6584 = vpop.f32.mrf.mxu0
    %6585 = vdwg.mxu0
    %v6586 = vadd.f32 %v6500, %v6539
    %v6587 = vadd.f32 %v6501, %v6541
    %v6588 = vadd.f32 %v6502, %v6580
    %v6589 = vadd.f32 %v6503, %v6582
    %v6590 = vmul.f32 %v6586, 0.5
    %v6591 = vtanh.pop %v6590
    %v6592 = vmul.f32 %v6591, 0.5
    %v6593 = vadd.f32 %v6592, 0.5
    %v6594 = vmul.f32 %v6587, 0.5
    %v6595 = vtanh.pop %v6594
    %v6596 = vmul.f32 %v6595, 0.5
    %v6597 = vadd.f32 %v6596, 0.5
    %v6598 = vtanh.pop %v6588
    %v6599 = vmul.f32 %v6589, 0.5
    %v6600 = vtanh.pop %v6599
    %v6601 = vmul.f32 %v6600, 0.5
    %v6602 = vadd.f32 %v6601, 0.5
    %v6603 = vmul.f32 %v6597, %v6496
    %v6604 = vmul.f32 %v6593, %v6598
    %v6605 = vadd.f32 %v6603, %v6604
    %v6606 = vtanh.pop %v6605
    %v6607 = vmul.f32 %v6602, %v6606
    %v6608 = vpack.c.bf16 %v6607, %v6607
    %v6609 = vld [vmem:[#allocation4 + $0x40] sm:$0xff]
    %v6610 = vld [vmem:[#allocation4 + $0x48] sm:$0xff]
    %v6611 = vld [vmem:[#allocation4 + $0x50] sm:$0xff]
    %v6612 = vld [vmem:[#allocation4 + $0x58] sm:$0xff]
    %6613 = vmatprep.subr.bf16.mxu0 %v6360
    %6614 = vmatpush1.bf16.msra.mxu0 %v6359
    %6615 = vmatprep.subr.bf16.mxu0 %v6356
    %6616 = vmatpush1.bf16.msra.mxu0 %v6355
    %6617 = vmatprep.subr.bf16.mxu0 %v6352
    %6618 = vmatpush1.bf16.msra.mxu0 %v6351
    %6619 = vmatprep.subr.bf16.mxu0 %v6348
    %6620 = vmatpush1.bf16.msra.mxu0 %v6347
    %6621 = vmatprep.subr.bf16.mxu0 %v6344
    %6622 = vmatpush1.bf16.msra.mxu0 %v6343
    %6623 = vmatprep.subr.bf16.mxu0 %v6340
    %6624 = vmatpush1.bf16.msra.mxu0 %v6339
    %6625 = vmatprep.subr.bf16.mxu0 %v6336
    %6626 = vmatpush1.bf16.msra.mxu0 %v6335
    %6627 = vmatprep.subr.bf16.mxu0 %v6332
    %6628 = vmatpush1.bf16.msra.mxu0 %v6331
    %6629 = vmatprep.subr.bf16.mxu0 0
    %6630 = vmatpush2.bf16.msra.mxu0 0
    %6631 = vmatprep.subr.bf16.mxu0 0
    %6632 = vmatpush2.bf16.msra.mxu0 0
    %6633 = vmatprep.subr.bf16.mxu0 0
    %6634 = vmatpush2.bf16.msra.mxu0 0
    %6635 = vmatprep.subr.bf16.mxu0 0
    %6636 = vmatpush2.bf16.msra.mxu0 0
    %6637 = vmatprep.subr.bf16.mxu0 0
    %6638 = vmatpush2.bf16.msra.mxu0 0
    %6639 = vmatprep.subr.bf16.mxu0 0
    %6640 = vmatpush2.bf16.msra.mxu0 0
    %6641 = vmatprep.subr.bf16.mxu0 0
    %6642 = vmatpush2.bf16.msra.mxu0 0
    %6643 = vmatprep.subr.bf16.mxu0 0
    %6644 = vmatpush2.bf16.msra.mxu0 0
    %6645 = vmatprep.mubr.bf16.mxu0 0
    %6646 = vmatmul.mubr.bf16.gmra.mxu0 %v6608
    %v6647 = vpop.f32.mrf.mxu0
    %v6648 = vadd.f32 0.0, %v6647
    %v6649 = vpop.f32.mrf.mxu0
    %v6650 = vadd.f32 0.0, %v6649
    %v6651 = vpop.f32.mrf.mxu0
    %v6652 = vpop.f32.mrf.mxu0
    %6653 = vdwg.mxu0
    %6654 = vmatprep.subr.bf16.mxu0 %v6362
    %6655 = vmatpush1.bf16.msra.mxu0 %v6361
    %6656 = vmatprep.subr.bf16.mxu0 %v6358
    %6657 = vmatpush1.bf16.msra.mxu0 %v6357
    %6658 = vmatprep.subr.bf16.mxu0 %v6354
    %6659 = vmatpush1.bf16.msra.mxu0 %v6353
    %6660 = vmatprep.subr.bf16.mxu0 %v6350
    %6661 = vmatpush1.bf16.msra.mxu0 %v6349
    %6662 = vmatprep.subr.bf16.mxu0 %v6346
    %6663 = vmatpush1.bf16.msra.mxu0 %v6345
    %6664 = vmatprep.subr.bf16.mxu0 %v6342
    %6665 = vmatpush1.bf16.msra.mxu0 %v6341
    %6666 = vmatprep.subr.bf16.mxu0 %v6338
    %6667 = vmatpush1.bf16.msra.mxu0 %v6337
    %6668 = vmatprep.subr.bf16.mxu0 %v6334
    %6669 = vmatpush1.bf16.msra.mxu0 %v6333
    %6670 = vmatprep.subr.bf16.mxu0 0
    %6671 = vmatpush2.bf16.msra.mxu0 0
    %6672 = vmatprep.subr.bf16.mxu0 0
    %6673 = vmatpush2.bf16.msra.mxu0 0
    %6674 = vmatprep.subr.bf16.mxu0 0
    %6675 = vmatpush2.bf16.msra.mxu0 0
    %6676 = vmatprep.subr.bf16.mxu0 0
    %6677 = vmatpush2.bf16.msra.mxu0 0
    %6678 = vmatprep.subr.bf16.mxu0 0
    %6679 = vmatpush2.bf16.msra.mxu0 0
    %6680 = vmatprep.subr.bf16.mxu0 0
    %6681 = vmatpush2.bf16.msra.mxu0 0
    %6682 = vmatprep.subr.bf16.mxu0 0
    %6683 = vmatpush2.bf16.msra.mxu0 0
    %6684 = vmatprep.subr.bf16.mxu0 0
    %6685 = vmatpush2.bf16.msra.mxu0 0
    %6686 = vmatprep.mubr.bf16.mxu0 0
    %6687 = vmatmul.mubr.bf16.gmra.mxu0 %v6608
    %v6688 = vpop.f32.mrf.mxu0
    %v6689 = vadd.f32 0.0, %v6688
    %v6690 = vpop.f32.mrf.mxu0
    %v6691 = vadd.f32 0.0, %v6690
    %v6692 = vpop.f32.mrf.mxu0
    %v6693 = vpop.f32.mrf.mxu0
    %6694 = vdwg.mxu0
    %v6695 = vadd.f32 %v6609, %v6648
    %v6696 = vadd.f32 %v6610, %v6650
    %v6697 = vadd.f32 %v6611, %v6689
    %v6698 = vadd.f32 %v6612, %v6691
    %v6699 = vmul.f32 %v6695, 0.5
    %v6700 = vtanh.pop %v6699
    %v6701 = vmul.f32 %v6700, 0.5
    %v6702 = vadd.f32 %v6701, 0.5
    %v6703 = vmul.f32 %v6696, 0.5
    %v6704 = vtanh.pop %v6703
    %v6705 = vmul.f32 %v6704, 0.5
    %v6706 = vadd.f32 %v6705, 0.5
    %v6707 = vtanh.pop %v6697
    %v6708 = vmul.f32 %v6698, 0.5
    %v6709 = vtanh.pop %v6708
    %v6710 = vmul.f32 %v6709, 0.5
    %v6711 = vadd.f32 %v6710, 0.5
    %v6712 = vmul.f32 %v6706, %v6605
    %v6713 = vmul.f32 %v6702, %v6707
    %v6714 = vadd.f32 %v6712, %v6713
    %v6715 = vtanh.pop %v6714
    %v6716 = vmul.f32 %v6711, %v6715
    %v6717 = vpack.c.bf16 %v6716, %v6716
    %v6718 = vld [vmem:[#allocation4 + $0x60] sm:$0xff]
    %v6719 = vld [vmem:[#allocation4 + $0x68] sm:$0xff]
    %v6720 = vld [vmem:[#allocation4 + $0x70] sm:$0xff]
    %v6721 = vld [vmem:[#allocation4 + $0x78] sm:$0xff]
    %6722 = vmatprep.subr.bf16.mxu0 %v6360
    %6723 = vmatpush1.bf16.msra.mxu0 %v6359
    %6724 = vmatprep.subr.bf16.mxu0 %v6356
    %6725 = vmatpush1.bf16.msra.mxu0 %v6355
    %6726 = vmatprep.subr.bf16.mxu0 %v6352
    %6727 = vmatpush1.bf16.msra.mxu0 %v6351
    %6728 = vmatprep.subr.bf16.mxu0 %v6348
    %6729 = vmatpush1.bf16.msra.mxu0 %v6347
    %6730 = vmatprep.subr.bf16.mxu0 %v6344
    %6731 = vmatpush1.bf16.msra.mxu0 %v6343
    %6732 = vmatprep.subr.bf16.mxu0 %v6340
    %6733 = vmatpush1.bf16.msra.mxu0 %v6339
    %6734 = vmatprep.subr.bf16.mxu0 %v6336
    %6735 = vmatpush1.bf16.msra.mxu0 %v6335
    %6736 = vmatprep.subr.bf16.mxu0 %v6332
    %6737 = vmatpush1.bf16.msra.mxu0 %v6331
    %6738 = vmatprep.subr.bf16.mxu0 0
    %6739 = vmatpush2.bf16.msra.mxu0 0
    %6740 = vmatprep.subr.bf16.mxu0 0
    %6741 = vmatpush2.bf16.msra.mxu0 0
    %6742 = vmatprep.subr.bf16.mxu0 0
    %6743 = vmatpush2.bf16.msra.mxu0 0
    %6744 = vmatprep.subr.bf16.mxu0 0
    %6745 = vmatpush2.bf16.msra.mxu0 0
    %6746 = vmatprep.subr.bf16.mxu0 0
    %6747 = vmatpush2.bf16.msra.mxu0 0
    %6748 = vmatprep.subr.bf16.mxu0 0
    %6749 = vmatpush2.bf16.msra.mxu0 0
    %6750 = vmatprep.subr.bf16.mxu0 0
    %6751 = vmatpush2.bf16.msra.mxu0 0
    %6752 = vmatprep.subr.bf16.mxu0 0
    %6753 = vmatpush2.bf16.msra.mxu0 0
    %6754 = vmatprep.mubr.bf16.mxu0 0
    %6755 = vmatmul.mubr.bf16.gmra.mxu0 %v6717
    %v6756 = vpop.f32.mrf.mxu0
    %v6757 = vadd.f32 0.0, %v6756
    %v6758 = vpop.f32.mrf.mxu0
    %v6759 = vadd.f32 0.0, %v6758
    %v6760 = vpop.f32.mrf.mxu0
    %v6761 = vpop.f32.mrf.mxu0
    %6762 = vdwg.mxu0
    %6763 = vmatprep.subr.bf16.mxu0 %v6362
    %6764 = vmatpush1.bf16.msra.mxu0 %v6361
    %6765 = vmatprep.subr.bf16.mxu0 %v6358
    %6766 = vmatpush1.bf16.msra.mxu0 %v6357
    %6767 = vmatprep.subr.bf16.mxu0 %v6354
    %6768 = vmatpush1.bf16.msra.mxu0 %v6353
    %6769 = vmatprep.subr.bf16.mxu0 %v6350
    %6770 = vmatpush1.bf16.msra.mxu0 %v6349
    %6771 = vmatprep.subr.bf16.mxu0 %v6346
    %6772 = vmatpush1.bf16.msra.mxu0 %v6345
    %6773 = vmatprep.subr.bf16.mxu0 %v6342
    %6774 = vmatpush1.bf16.msra.mxu0 %v6341
    %6775 = vmatprep.subr.bf16.mxu0 %v6338
    %6776 = vmatpush1.bf16.msra.mxu0 %v6337
    %6777 = vmatprep.subr.bf16.mxu0 %v6334
    %6778 = vmatpush1.bf16.msra.mxu0 %v6333
    %6779 = vmatprep.subr.bf16.mxu0 0
    %6780 = vmatpush2.bf16.msra.mxu0 0
    %6781 = vmatprep.subr.bf16.mxu0 0
    %6782 = vmatpush2.bf16.msra.mxu0 0
    %6783 = vmatprep.subr.bf16.mxu0 0
    %6784 = vmatpush2.bf16.msra.mxu0 0
    %6785 = vmatprep.subr.bf16.mxu0 0
    %6786 = vmatpush2.bf16.msra.mxu0 0
    %6787 = vmatprep.subr.bf16.mxu0 0
    %6788 = vmatpush2.bf16.msra.mxu0 0
    %6789 = vmatprep.subr.bf16.mxu0 0
    %6790 = vmatpush2.bf16.msra.mxu0 0
    %6791 = vmatprep.subr.bf16.mxu0 0
    %6792 = vmatpush2.bf16.msra.mxu0 0
    %6793 = vmatprep.subr.bf16.mxu0 0
    %6794 = vmatpush2.bf16.msra.mxu0 0
    %6795 = vmatprep.mubr.bf16.mxu0 0
    %6796 = vmatmul.mubr.bf16.gmra.mxu0 %v6717
    %v6797 = vpop.f32.mrf.mxu0
    %v6798 = vadd.f32 0.0, %v6797
    %v6799 = vpop.f32.mrf.mxu0
    %v6800 = vadd.f32 0.0, %v6799
    %v6801 = vpop.f32.mrf.mxu0
    %v6802 = vpop.f32.mrf.mxu0
    %6803 = vdwg.mxu0
    %v6804 = vadd.f32 %v6718, %v6757
    %v6805 = vadd.f32 %v6719, %v6759
    %v6806 = vadd.f32 %v6720, %v6798
    %v6807 = vadd.f32 %v6721, %v6800
    %v6808 = vmul.f32 %v6804, 0.5
    %v6809 = vtanh.pop %v6808
    %v6810 = vmul.f32 %v6809, 0.5
    %v6811 = vadd.f32 %v6810, 0.5
    %v6812 = vmul.f32 %v6805, 0.5
    %v6813 = vtanh.pop %v6812
    %v6814 = vmul.f32 %v6813, 0.5
    %v6815 = vadd.f32 %v6814, 0.5
    %v6816 = vtanh.pop %v6806
    %v6817 = vmul.f32 %v6807, 0.5
    %v6818 = vtanh.pop %v6817
    %v6819 = vmul.f32 %v6818, 0.5
    %v6820 = vadd.f32 %v6819, 0.5
    %v6821 = vmul.f32 %v6815, %v6714
    %v6822 = vmul.f32 %v6811, %v6816
    %v6823 = vadd.f32 %v6821, %v6822
    %v6824 = vtanh.pop %v6823
    %v6825 = vmul.f32 %v6820, %v6824
    %v6826 = vpack.c.bf16 %v6825, %v6825
    %v6827 = vld [vmem:[#allocation4 + $0x80] sm:$0xff]
    %v6828 = vld [vmem:[#allocation4 + $0x88] sm:$0xff]
    %v6829 = vld [vmem:[#allocation4 + $0x90] sm:$0xff]
    %v6830 = vld [vmem:[#allocation4 + $0x98] sm:$0xff]
    %6831 = vmatprep.subr.bf16.mxu0 %v6360
    %6832 = vmatpush1.bf16.msra.mxu0 %v6359
    %6833 = vmatprep.subr.bf16.mxu0 %v6356
    %6834 = vmatpush1.bf16.msra.mxu0 %v6355
    %6835 = vmatprep.subr.bf16.mxu0 %v6352
    %6836 = vmatpush1.bf16.msra.mxu0 %v6351
    %6837 = vmatprep.subr.bf16.mxu0 %v6348
    %6838 = vmatpush1.bf16.msra.mxu0 %v6347
    %6839 = vmatprep.subr.bf16.mxu0 %v6344
    %6840 = vmatpush1.bf16.msra.mxu0 %v6343
    %6841 = vmatprep.subr.bf16.mxu0 %v6340
    %6842 = vmatpush1.bf16.msra.mxu0 %v6339
    %6843 = vmatprep.subr.bf16.mxu0 %v6336
    %6844 = vmatpush1.bf16.msra.mxu0 %v6335
    %6845 = vmatprep.subr.bf16.mxu0 %v6332
    %6846 = vmatpush1.bf16.msra.mxu0 %v6331
    %6847 = vmatprep.subr.bf16.mxu0 0
    %6848 = vmatpush2.bf16.msra.mxu0 0
    %6849 = vmatprep.subr.bf16.mxu0 0
    %6850 = vmatpush2.bf16.msra.mxu0 0
    %6851 = vmatprep.subr.bf16.mxu0 0
    %6852 = vmatpush2.bf16.msra.mxu0 0
    %6853 = vmatprep.subr.bf16.mxu0 0
    %6854 = vmatpush2.bf16.msra.mxu0 0
    %6855 = vmatprep.subr.bf16.mxu0 0
    %6856 = vmatpush2.bf16.msra.mxu0 0
    %6857 = vmatprep.subr.bf16.mxu0 0
    %6858 = vmatpush2.bf16.msra.mxu0 0
    %6859 = vmatprep.subr.bf16.mxu0 0
    %6860 = vmatpush2.bf16.msra.mxu0 0
    %6861 = vmatprep.subr.bf16.mxu0 0
    %6862 = vmatpush2.bf16.msra.mxu0 0
    %6863 = vmatprep.mubr.bf16.mxu0 0
    %6864 = vmatmul.mubr.bf16.gmra.mxu0 %v6826
    %v6865 = vpop.f32.mrf.mxu0
    %v6866 = vadd.f32 0.0, %v6865
    %v6867 = vpop.f32.mrf.mxu0
    %v6868 = vadd.f32 0.0, %v6867
    %v6869 = vpop.f32.mrf.mxu0
    %v6870 = vpop.f32.mrf.mxu0
    %6871 = vdwg.mxu0
    %6872 = vmatprep.subr.bf16.mxu0 %v6362
    %6873 = vmatpush1.bf16.msra.mxu0 %v6361
    %6874 = vmatprep.subr.bf16.mxu0 %v6358
    %6875 = vmatpush1.bf16.msra.mxu0 %v6357
    %6876 = vmatprep.subr.bf16.mxu0 %v6354
    %6877 = vmatpush1.bf16.msra.mxu0 %v6353
    %6878 = vmatprep.subr.bf16.mxu0 %v6350
    %6879 = vmatpush1.bf16.msra.mxu0 %v6349
    %6880 = vmatprep.subr.bf16.mxu0 %v6346
    %6881 = vmatpush1.bf16.msra.mxu0 %v6345
    %6882 = vmatprep.subr.bf16.mxu0 %v6342
    %6883 = vmatpush1.bf16.msra.mxu0 %v6341
    %6884 = vmatprep.subr.bf16.mxu0 %v6338
    %6885 = vmatpush1.bf16.msra.mxu0 %v6337
    %6886 = vmatprep.subr.bf16.mxu0 %v6334
    %6887 = vmatpush1.bf16.msra.mxu0 %v6333
    %6888 = vmatprep.subr.bf16.mxu0 0
    %6889 = vmatpush2.bf16.msra.mxu0 0
    %6890 = vmatprep.subr.bf16.mxu0 0
    %6891 = vmatpush2.bf16.msra.mxu0 0
    %6892 = vmatprep.subr.bf16.mxu0 0
    %6893 = vmatpush2.bf16.msra.mxu0 0
    %6894 = vmatprep.subr.bf16.mxu0 0
    %6895 = vmatpush2.bf16.msra.mxu0 0
    %6896 = vmatprep.subr.bf16.mxu0 0
    %6897 = vmatpush2.bf16.msra.mxu0 0
    %6898 = vmatprep.subr.bf16.mxu0 0
    %6899 = vmatpush2.bf16.msra.mxu0 0
    %6900 = vmatprep.subr.bf16.mxu0 0
    %6901 = vmatpush2.bf16.msra.mxu0 0
    %6902 = vmatprep.subr.bf16.mxu0 0
    %6903 = vmatpush2.bf16.msra.mxu0 0
    %6904 = vmatprep.mubr.bf16.mxu0 0
    %6905 = vmatmul.mubr.bf16.gmra.mxu0 %v6826
    %v6906 = vpop.f32.mrf.mxu0
    %v6907 = vadd.f32 0.0, %v6906
    %v6908 = vpop.f32.mrf.mxu0
    %v6909 = vadd.f32 0.0, %v6908
    %v6910 = vpop.f32.mrf.mxu0
    %v6911 = vpop.f32.mrf.mxu0
    %6912 = vdwg.mxu0
    %v6913 = vadd.f32 %v6827, %v6866
    %v6914 = vadd.f32 %v6828, %v6868
    %v6915 = vadd.f32 %v6829, %v6907
    %v6916 = vadd.f32 %v6830, %v6909
    %v6917 = vmul.f32 %v6913, 0.5
    %v6918 = vtanh.pop %v6917
    %v6919 = vmul.f32 %v6918, 0.5
    %v6920 = vadd.f32 %v6919, 0.5
    %v6921 = vmul.f32 %v6914, 0.5
    %v6922 = vtanh.pop %v6921
    %v6923 = vmul.f32 %v6922, 0.5
    %v6924 = vadd.f32 %v6923, 0.5
    %v6925 = vtanh.pop %v6915
    %v6926 = vmul.f32 %v6916, 0.5
    %v6927 = vtanh.pop %v6926
    %v6928 = vmul.f32 %v6927, 0.5
    %v6929 = vadd.f32 %v6928, 0.5
    %v6930 = vmul.f32 %v6924, %v6823
    %v6931 = vmul.f32 %v6920, %v6925
    %v6932 = vadd.f32 %v6930, %v6931
    %v6933 = vtanh.pop %v6932
    %v6934 = vmul.f32 %v6929, %v6933
    %v6935 = vpack.c.bf16 %v6934, %v6934
    %v6936 = vld [vmem:[#allocation4 + $0xa0] sm:$0xff]
    %v6937 = vld [vmem:[#allocation4 + $0xa8] sm:$0xff]
    %v6938 = vld [vmem:[#allocation4 + $0xb0] sm:$0xff]
    %v6939 = vld [vmem:[#allocation4 + $0xb8] sm:$0xff]
    %6940 = vmatprep.subr.bf16.mxu0 %v6360
    %6941 = vmatpush1.bf16.msra.mxu0 %v6359
    %6942 = vmatprep.subr.bf16.mxu0 %v6356
    %6943 = vmatpush1.bf16.msra.mxu0 %v6355
    %6944 = vmatprep.subr.bf16.mxu0 %v6352
    %6945 = vmatpush1.bf16.msra.mxu0 %v6351
    %6946 = vmatprep.subr.bf16.mxu0 %v6348
    %6947 = vmatpush1.bf16.msra.mxu0 %v6347
    %6948 = vmatprep.subr.bf16.mxu0 %v6344
    %6949 = vmatpush1.bf16.msra.mxu0 %v6343
    %6950 = vmatprep.subr.bf16.mxu0 %v6340
    %6951 = vmatpush1.bf16.msra.mxu0 %v6339
    %6952 = vmatprep.subr.bf16.mxu0 %v6336
    %6953 = vmatpush1.bf16.msra.mxu0 %v6335
    %6954 = vmatprep.subr.bf16.mxu0 %v6332
    %6955 = vmatpush1.bf16.msra.mxu0 %v6331
    %6956 = vmatprep.subr.bf16.mxu0 0
    %6957 = vmatpush2.bf16.msra.mxu0 0
    %6958 = vmatprep.subr.bf16.mxu0 0
    %6959 = vmatpush2.bf16.msra.mxu0 0
    %6960 = vmatprep.subr.bf16.mxu0 0
    %6961 = vmatpush2.bf16.msra.mxu0 0
    %6962 = vmatprep.subr.bf16.mxu0 0
    %6963 = vmatpush2.bf16.msra.mxu0 0
    %6964 = vmatprep.subr.bf16.mxu0 0
    %6965 = vmatpush2.bf16.msra.mxu0 0
    %6966 = vmatprep.subr.bf16.mxu0 0
    %6967 = vmatpush2.bf16.msra.mxu0 0
    %6968 = vmatprep.subr.bf16.mxu0 0
    %6969 = vmatpush2.bf16.msra.mxu0 0
    %6970 = vmatprep.subr.bf16.mxu0 0
    %6971 = vmatpush2.bf16.msra.mxu0 0
    %6972 = vmatprep.mubr.bf16.mxu0 0
    %6973 = vmatmul.mubr.bf16.gmra.mxu0 %v6935
    %v6974 = vpop.f32.mrf.mxu0
    %v6975 = vadd.f32 0.0, %v6974
    %v6976 = vpop.f32.mrf.mxu0
    %v6977 = vadd.f32 0.0, %v6976
    %v6978 = vpop.f32.mrf.mxu0
    %v6979 = vpop.f32.mrf.mxu0
    %6980 = vdwg.mxu0
    %6981 = vmatprep.subr.bf16.mxu0 %v6362
    %6982 = vmatpush1.bf16.msra.mxu0 %v6361
    %6983 = vmatprep.subr.bf16.mxu0 %v6358
    %6984 = vmatpush1.bf16.msra.mxu0 %v6357
    %6985 = vmatprep.subr.bf16.mxu0 %v6354
    %6986 = vmatpush1.bf16.msra.mxu0 %v6353
    %6987 = vmatprep.subr.bf16.mxu0 %v6350
    %6988 = vmatpush1.bf16.msra.mxu0 %v6349
    %6989 = vmatprep.subr.bf16.mxu0 %v6346
    %6990 = vmatpush1.bf16.msra.mxu0 %v6345
    %6991 = vmatprep.subr.bf16.mxu0 %v6342
    %6992 = vmatpush1.bf16.msra.mxu0 %v6341
    %6993 = vmatprep.subr.bf16.mxu0 %v6338
    %6994 = vmatpush1.bf16.msra.mxu0 %v6337
    %6995 = vmatprep.subr.bf16.mxu0 %v6334
    %6996 = vmatpush1.bf16.msra.mxu0 %v6333
    %6997 = vmatprep.subr.bf16.mxu0 0
    %6998 = vmatpush2.bf16.msra.mxu0 0
    %6999 = vmatprep.subr.bf16.mxu0 0
    %7000 = vmatpush2.bf16.msra.mxu0 0
    %7001 = vmatprep.subr.bf16.mxu0 0
    %7002 = vmatpush2.bf16.msra.mxu0 0
    %7003 = vmatprep.subr.bf16.mxu0 0
    %7004 = vmatpush2.bf16.msra.mxu0 0
    %7005 = vmatprep.subr.bf16.mxu0 0
    %7006 = vmatpush2.bf16.msra.mxu0 0
    %7007 = vmatprep.subr.bf16.mxu0 0
    %7008 = vmatpush2.bf16.msra.mxu0 0
    %7009 = vmatprep.subr.bf16.mxu0 0
    %7010 = vmatpush2.bf16.msra.mxu0 0
    %7011 = vmatprep.subr.bf16.mxu0 0
    %7012 = vmatpush2.bf16.msra.mxu0 0
    %7013 = vmatprep.mubr.bf16.mxu0 0
    %7014 = vmatmul.mubr.bf16.gmra.mxu0 %v6935
    %v7015 = vpop.f32.mrf.mxu0
    %v7016 = vadd.f32 0.0, %v7015
    %v7017 = vpop.f32.mrf.mxu0
    %v7018 = vadd.f32 0.0, %v7017
    %v7019 = vpop.f32.mrf.mxu0
    %v7020 = vpop.f32.mrf.mxu0
    %7021 = vdwg.mxu0
    %v7022 = vadd.f32 %v6936, %v6975
    %v7023 = vadd.f32 %v6937, %v6977
    %v7024 = vadd.f32 %v6938, %v7016
    %v7025 = vadd.f32 %v6939, %v7018
    %v7026 = vmul.f32 %v7022, 0.5
    %v7027 = vtanh.pop %v7026
    %v7028 = vmul.f32 %v7027, 0.5
    %v7029 = vadd.f32 %v7028, 0.5
    %v7030 = vmul.f32 %v7023, 0.5
    %v7031 = vtanh.pop %v7030
    %v7032 = vmul.f32 %v7031, 0.5
    %v7033 = vadd.f32 %v7032, 0.5
    %v7034 = vtanh.pop %v7024
    %v7035 = vmul.f32 %v7025, 0.5
    %v7036 = vtanh.pop %v7035
    %v7037 = vmul.f32 %v7036, 0.5
    %v7038 = vadd.f32 %v7037, 0.5
    %v7039 = vmul.f32 %v7033, %v6932
    %v7040 = vmul.f32 %v7029, %v7034
    %v7041 = vadd.f32 %v7039, %v7040
    %v7042 = vtanh.pop %v7041
    %v7043 = vmul.f32 %v7038, %v7042
    %v7044 = vpack.c.bf16 %v7043, %v7043
    %v7045 = vld [vmem:[#allocation4 + $0xc0] sm:$0xff]
    %v7046 = vld [vmem:[#allocation4 + $0xc8] sm:$0xff]
    %v7047 = vld [vmem:[#allocation4 + $0xd0] sm:$0xff]
    %v7048 = vld [vmem:[#allocation4 + $0xd8] sm:$0xff]
    %7049 = vmatprep.subr.bf16.mxu0 %v6360
    %7050 = vmatpush1.bf16.msra.mxu0 %v6359
    %7051 = vmatprep.subr.bf16.mxu0 %v6356
    %7052 = vmatpush1.bf16.msra.mxu0 %v6355
    %7053 = vmatprep.subr.bf16.mxu0 %v6352
    %7054 = vmatpush1.bf16.msra.mxu0 %v6351
    %7055 = vmatprep.subr.bf16.mxu0 %v6348
    %7056 = vmatpush1.bf16.msra.mxu0 %v6347
    %7057 = vmatprep.subr.bf16.mxu0 %v6344
    %7058 = vmatpush1.bf16.msra.mxu0 %v6343
    %7059 = vmatprep.subr.bf16.mxu0 %v6340
    %7060 = vmatpush1.bf16.msra.mxu0 %v6339
    %7061 = vmatprep.subr.bf16.mxu0 %v6336
    %7062 = vmatpush1.bf16.msra.mxu0 %v6335
    %7063 = vmatprep.subr.bf16.mxu0 %v6332
    %7064 = vmatpush1.bf16.msra.mxu0 %v6331
    %7065 = vmatprep.subr.bf16.mxu0 0
    %7066 = vmatpush2.bf16.msra.mxu0 0
    %7067 = vmatprep.subr.bf16.mxu0 0
    %7068 = vmatpush2.bf16.msra.mxu0 0
    %7069 = vmatprep.subr.bf16.mxu0 0
    %7070 = vmatpush2.bf16.msra.mxu0 0
    %7071 = vmatprep.subr.bf16.mxu0 0
    %7072 = vmatpush2.bf16.msra.mxu0 0
    %7073 = vmatprep.subr.bf16.mxu0 0
    %7074 = vmatpush2.bf16.msra.mxu0 0
    %7075 = vmatprep.subr.bf16.mxu0 0
    %7076 = vmatpush2.bf16.msra.mxu0 0
    %7077 = vmatprep.subr.bf16.mxu0 0
    %7078 = vmatpush2.bf16.msra.mxu0 0
    %7079 = vmatprep.subr.bf16.mxu0 0
    %7080 = vmatpush2.bf16.msra.mxu0 0
    %7081 = vmatprep.mubr.bf16.mxu0 0
    %7082 = vmatmul.mubr.bf16.gmra.mxu0 %v7044
    %v7083 = vpop.f32.mrf.mxu0
    %v7084 = vadd.f32 0.0, %v7083
    %v7085 = vpop.f32.mrf.mxu0
    %v7086 = vadd.f32 0.0, %v7085
    %v7087 = vpop.f32.mrf.mxu0
    %v7088 = vpop.f32.mrf.mxu0
    %7089 = vdwg.mxu0
    %7090 = vmatprep.subr.bf16.mxu0 %v6362
    %7091 = vmatpush1.bf16.msra.mxu0 %v6361
    %7092 = vmatprep.subr.bf16.mxu0 %v6358
    %7093 = vmatpush1.bf16.msra.mxu0 %v6357
    %7094 = vmatprep.subr.bf16.mxu0 %v6354
    %7095 = vmatpush1.bf16.msra.mxu0 %v6353
    %7096 = vmatprep.subr.bf16.mxu0 %v6350
    %7097 = vmatpush1.bf16.msra.mxu0 %v6349
    %7098 = vmatprep.subr.bf16.mxu0 %v6346
    %7099 = vmatpush1.bf16.msra.mxu0 %v6345
    %7100 = vmatprep.subr.bf16.mxu0 %v6342
    %7101 = vmatpush1.bf16.msra.mxu0 %v6341
    %7102 = vmatprep.subr.bf16.mxu0 %v6338
    %7103 = vmatpush1.bf16.msra.mxu0 %v6337
    %7104 = vmatprep.subr.bf16.mxu0 %v6334
    %7105 = vmatpush1.bf16.msra.mxu0 %v6333
    %7106 = vmatprep.subr.bf16.mxu0 0
    %7107 = vmatpush2.bf16.msra.mxu0 0
    %7108 = vmatprep.subr.bf16.mxu0 0
    %7109 = vmatpush2.bf16.msra.mxu0 0
    %7110 = vmatprep.subr.bf16.mxu0 0
    %7111 = vmatpush2.bf16.msra.mxu0 0
    %7112 = vmatprep.subr.bf16.mxu0 0
    %7113 = vmatpush2.bf16.msra.mxu0 0
    %7114 = vmatprep.subr.bf16.mxu0 0
    %7115 = vmatpush2.bf16.msra.mxu0 0
    %7116 = vmatprep.subr.bf16.mxu0 0
    %7117 = vmatpush2.bf16.msra.mxu0 0
    %7118 = vmatprep.subr.bf16.mxu0 0
    %7119 = vmatpush2.bf16.msra.mxu0 0
    %7120 = vmatprep.subr.bf16.mxu0 0
    %7121 = vmatpush2.bf16.msra.mxu0 0
    %7122 = vmatprep.mubr.bf16.mxu0 0
    %7123 = vmatmul.mubr.bf16.gmra.mxu0 %v7044
    %v7124 = vpop.f32.mrf.mxu0
    %v7125 = vadd.f32 0.0, %v7124
    %v7126 = vpop.f32.mrf.mxu0
    %v7127 = vadd.f32 0.0, %v7126
    %v7128 = vpop.f32.mrf.mxu0
    %v7129 = vpop.f32.mrf.mxu0
    %7130 = vdwg.mxu0
    %v7131 = vadd.f32 %v7045, %v7084
    %v7132 = vadd.f32 %v7046, %v7086
    %v7133 = vadd.f32 %v7047, %v7125
    %v7134 = vadd.f32 %v7048, %v7127
    %v7135 = vmul.f32 %v7131, 0.5
    %v7136 = vtanh.pop %v7135
    %v7137 = vmul.f32 %v7136, 0.5
    %v7138 = vadd.f32 %v7137, 0.5
    %v7139 = vmul.f32 %v7132, 0.5
    %v7140 = vtanh.pop %v7139
    %v7141 = vmul.f32 %v7140, 0.5
    %v7142 = vadd.f32 %v7141, 0.5
    %v7143 = vtanh.pop %v7133
    %v7144 = vmul.f32 %v7134, 0.5
    %v7145 = vtanh.pop %v7144
    %v7146 = vmul.f32 %v7145, 0.5
    %v7147 = vadd.f32 %v7146, 0.5
    %v7148 = vmul.f32 %v7142, %v7041
    %v7149 = vmul.f32 %v7138, %v7143
    %v7150 = vadd.f32 %v7148, %v7149
    %v7151 = vtanh.pop %v7150
    %v7152 = vmul.f32 %v7147, %v7151
    %v7153 = vpack.c.bf16 %v7152, %v7152
    %v7154 = vld [vmem:[#allocation4 + $0xe0] sm:$0xff]
    %v7155 = vld [vmem:[#allocation4 + $0xe8] sm:$0xff]
    %v7156 = vld [vmem:[#allocation4 + $0xf0] sm:$0xff]
    %v7157 = vld [vmem:[#allocation4 + $0xf8] sm:$0xff]
    %7158 = vmatprep.subr.bf16.mxu0 %v6360
    %7159 = vmatpush1.bf16.msra.mxu0 %v6359
    %7160 = vmatprep.subr.bf16.mxu0 %v6356
    %7161 = vmatpush1.bf16.msra.mxu0 %v6355
    %7162 = vmatprep.subr.bf16.mxu0 %v6352
    %7163 = vmatpush1.bf16.msra.mxu0 %v6351
    %7164 = vmatprep.subr.bf16.mxu0 %v6348
    %7165 = vmatpush1.bf16.msra.mxu0 %v6347
    %7166 = vmatprep.subr.bf16.mxu0 %v6344
    %7167 = vmatpush1.bf16.msra.mxu0 %v6343
    %7168 = vmatprep.subr.bf16.mxu0 %v6340
    %7169 = vmatpush1.bf16.msra.mxu0 %v6339
    %7170 = vmatprep.subr.bf16.mxu0 %v6336
    %7171 = vmatpush1.bf16.msra.mxu0 %v6335
    %7172 = vmatprep.subr.bf16.mxu0 %v6332
    %7173 = vmatpush1.bf16.msra.mxu0 %v6331
    %7174 = vmatprep.subr.bf16.mxu0 0
    %7175 = vmatpush2.bf16.msra.mxu0 0
    %7176 = vmatprep.subr.bf16.mxu0 0
    %7177 = vmatpush2.bf16.msra.mxu0 0
    %7178 = vmatprep.subr.bf16.mxu0 0
    %7179 = vmatpush2.bf16.msra.mxu0 0
    %7180 = vmatprep.subr.bf16.mxu0 0
    %7181 = vmatpush2.bf16.msra.mxu0 0
    %7182 = vmatprep.subr.bf16.mxu0 0
    %7183 = vmatpush2.bf16.msra.mxu0 0
    %7184 = vmatprep.subr.bf16.mxu0 0
    %7185 = vmatpush2.bf16.msra.mxu0 0
    %7186 = vmatprep.subr.bf16.mxu0 0
    %7187 = vmatpush2.bf16.msra.mxu0 0
    %7188 = vmatprep.subr.bf16.mxu0 0
    %7189 = vmatpush2.bf16.msra.mxu0 0
    %7190 = vmatprep.mubr.bf16.mxu0 0
    %7191 = vmatmul.mubr.bf16.gmra.mxu0 %v7153
    %v7192 = vpop.f32.mrf.mxu0
    %v7193 = vadd.f32 0.0, %v7192
    %v7194 = vpop.f32.mrf.mxu0
    %v7195 = vadd.f32 0.0, %v7194
    %v7196 = vpop.f32.mrf.mxu0
    %v7197 = vpop.f32.mrf.mxu0
    %7198 = vdwg.mxu0
    %7199 = vmatprep.subr.bf16.mxu0 %v6362
    %7200 = vmatpush1.bf16.msra.mxu0 %v6361
    %7201 = vmatprep.subr.bf16.mxu0 %v6358
    %7202 = vmatpush1.bf16.msra.mxu0 %v6357
    %7203 = vmatprep.subr.bf16.mxu0 %v6354
    %7204 = vmatpush1.bf16.msra.mxu0 %v6353
    %7205 = vmatprep.subr.bf16.mxu0 %v6350
    %7206 = vmatpush1.bf16.msra.mxu0 %v6349
    %7207 = vmatprep.subr.bf16.mxu0 %v6346
    %7208 = vmatpush1.bf16.msra.mxu0 %v6345
    %7209 = vmatprep.subr.bf16.mxu0 %v6342
    %7210 = vmatpush1.bf16.msra.mxu0 %v6341
    %7211 = vmatprep.subr.bf16.mxu0 %v6338
    %7212 = vmatpush1.bf16.msra.mxu0 %v6337
    %7213 = vmatprep.subr.bf16.mxu0 %v6334
    %7214 = vmatpush1.bf16.msra.mxu0 %v6333
    %7215 = vmatprep.subr.bf16.mxu0 0
    %7216 = vmatpush2.bf16.msra.mxu0 0
    %7217 = vmatprep.subr.bf16.mxu0 0
    %7218 = vmatpush2.bf16.msra.mxu0 0
    %7219 = vmatprep.subr.bf16.mxu0 0
    %7220 = vmatpush2.bf16.msra.mxu0 0
    %7221 = vmatprep.subr.bf16.mxu0 0
    %7222 = vmatpush2.bf16.msra.mxu0 0
    %7223 = vmatprep.subr.bf16.mxu0 0
    %7224 = vmatpush2.bf16.msra.mxu0 0
    %7225 = vmatprep.subr.bf16.mxu0 0
    %7226 = vmatpush2.bf16.msra.mxu0 0
    %7227 = vmatprep.subr.bf16.mxu0 0
    %7228 = vmatpush2.bf16.msra.mxu0 0
    %7229 = vmatprep.subr.bf16.mxu0 0
    %7230 = vmatpush2.bf16.msra.mxu0 0
    %7231 = vmatprep.mubr.bf16.mxu0 0
    %7232 = vmatmul.mubr.bf16.gmra.mxu0 %v7153
    %v7233 = vpop.f32.mrf.mxu0
    %v7234 = vadd.f32 0.0, %v7233
    %v7235 = vpop.f32.mrf.mxu0
    %v7236 = vadd.f32 0.0, %v7235
    %v7237 = vpop.f32.mrf.mxu0
    %v7238 = vpop.f32.mrf.mxu0
    %7239 = vdwg.mxu0
    %v7240 = vadd.f32 %v7154, %v7193
    %v7241 = vadd.f32 %v7155, %v7195
    %v7242 = vadd.f32 %v7156, %v7234
    %v7243 = vadd.f32 %v7157, %v7236
    %v7244 = vmul.f32 %v7240, 0.5
    %v7245 = vtanh.pop %v7244
    %v7246 = vmul.f32 %v7245, 0.5
    %v7247 = vadd.f32 %v7246, 0.5
    %v7248 = vmul.f32 %v7241, 0.5
    %v7249 = vtanh.pop %v7248
    %v7250 = vmul.f32 %v7249, 0.5
    %v7251 = vadd.f32 %v7250, 0.5
    %v7252 = vtanh.pop %v7242
    %v7253 = vmul.f32 %v7243, 0.5
    %v7254 = vtanh.pop %v7253
    %v7255 = vmul.f32 %v7254, 0.5
    %v7256 = vadd.f32 %v7255, 0.5
    %v7257 = vmul.f32 %v7251, %v7150
    %v7258 = vmul.f32 %v7247, %v7252
    %v7259 = vadd.f32 %v7257, %v7258
    %v7260 = vtanh.pop %v7259
    %v7261 = vmul.f32 %v7256, %v7260
    %v7262 = vld [vmem:[#allocation15] sm:$0xff]
    %v7263 = vld [vmem:[#allocation15 + $0x8] sm:$0xff]
    %v7264 = vld [vmem:[#allocation15 + $0x10] sm:$0xff]
    %v7265 = vld [vmem:[#allocation15 + $0x18] sm:$0xff]
    %v7266 = vld [vmem:[#allocation15 + $0x20] sm:$0xff]
    %v7267 = vld [vmem:[#allocation15 + $0x28] sm:$0xff]
    %v7268 = vld [vmem:[#allocation15 + $0x30] sm:$0xff]
    %v7269 = vld [vmem:[#allocation15 + $0x38] sm:$0xff]
    %v7270 = vld [vmem:[#allocation15 + $0x40] sm:$0xff]
    %v7271 = vld [vmem:[#allocation15 + $0x48] sm:$0xff]
    %v7272 = vld [vmem:[#allocation15 + $0x50] sm:$0xff]
    %v7273 = vld [vmem:[#allocation15 + $0x58] sm:$0xff]
    %v7274 = vld [vmem:[#allocation15 + $0x60] sm:$0xff]
    %v7275 = vld [vmem:[#allocation15 + $0x68] sm:$0xff]
    %v7276 = vld [vmem:[#allocation15 + $0x70] sm:$0xff]
    %v7277 = vld [vmem:[#allocation15 + $0x78] sm:$0xff]
    %v7278 = vld [vmem:[%s11] sm:$0x1]
    %v7280 = vlaneseq
    %v7281 = vshrl.u32 %v7280, 7
    %v7282 = vsub.s32 0, %v7281
    %v7283 = vrot.slane %v7278, %v7282
    %7285 = vmatprep.subr.mxu0 0.0
    %7286 = vmatpush1.msra.mxu0 %v7277
    %7287 = vmatprep.subr.mxu0 0.0
    %7288 = vmatpush1.msra.mxu0 %v7276
    %7289 = vmatprep.subr.mxu0 0.0
    %7290 = vmatpush1.msra.mxu0 %v7275
    %7291 = vmatprep.subr.mxu0 0.0
    %7292 = vmatpush1.msra.mxu0 %v7274
    %7293 = vmatprep.subr.mxu0 0.0
    %7294 = vmatpush1.msra.mxu0 %v7273
    %7295 = vmatprep.subr.mxu0 0.0
    %7296 = vmatpush1.msra.mxu0 %v7272
    %7297 = vmatprep.subr.mxu0 0.0
    %7298 = vmatpush1.msra.mxu0 %v7271
    %7299 = vmatprep.subr.mxu0 0.0
    %7300 = vmatpush1.msra.mxu0 %v7270
    %7301 = vmatprep.subr.mxu0 0.0
    %7302 = vmatpush1.msra.mxu0 %v7269
    %7303 = vmatprep.subr.mxu0 0.0
    %7304 = vmatpush1.msra.mxu0 %v7268
    %7305 = vmatprep.subr.mxu0 0.0
    %7306 = vmatpush1.msra.mxu0 %v7267
    %7307 = vmatprep.subr.mxu0 0.0
    %7308 = vmatpush1.msra.mxu0 %v7266
    %7309 = vmatprep.subr.mxu0 0.0
    %7310 = vmatpush1.msra.mxu0 %v7265
    %7311 = vmatprep.subr.mxu0 0.0
    %7312 = vmatpush1.msra.mxu0 %v7264
    %7313 = vmatprep.subr.mxu0 0.0
    %7314 = vmatpush1.msra.mxu0 %v7263
    %7315 = vmatprep.subr.mxu0 0.0
    %7316 = vmatpush1.msra.mxu0 %v7262
    %7317 = vmatprep.subr.mxu0 0.0
    %7318 = vmatpush2.msra.mxu0 0.0
    %7319 = vmatprep.subr.mxu0 0.0
    %7320 = vmatpush2.msra.mxu0 0.0
    %7321 = vmatprep.subr.mxu0 0.0
    %7322 = vmatpush2.msra.mxu0 0.0
    %7323 = vmatprep.subr.mxu0 0.0
    %7324 = vmatpush2.msra.mxu0 0.0
    %7325 = vmatprep.subr.mxu0 0.0
    %7326 = vmatpush2.msra.mxu0 0.0
    %7327 = vmatprep.subr.mxu0 0.0
    %7328 = vmatpush2.msra.mxu0 0.0
    %7329 = vmatprep.subr.mxu0 0.0
    %7330 = vmatpush2.msra.mxu0 0.0
    %7331 = vmatprep.subr.mxu0 0.0
    %7332 = vmatpush2.msra.mxu0 0.0
    %7333 = vmatprep.subr.mxu0 0.0
    %7334 = vmatpush2.msra.mxu0 0.0
    %7335 = vmatprep.subr.mxu0 0.0
    %7336 = vmatpush2.msra.mxu0 0.0
    %7337 = vmatprep.subr.mxu0 0.0
    %7338 = vmatpush2.msra.mxu0 0.0
    %7339 = vmatprep.subr.mxu0 0.0
    %7340 = vmatpush2.msra.mxu0 0.0
    %7341 = vmatprep.subr.mxu0 0.0
    %7342 = vmatpush2.msra.mxu0 0.0
    %7343 = vmatprep.subr.mxu0 0.0
    %7344 = vmatpush2.msra.mxu0 0.0
    %7345 = vmatprep.subr.mxu0 0.0
    %7346 = vmatpush2.msra.mxu0 0.0
    %7347 = vmatprep.subr.mxu0 0.0
    %7348 = vmatpush2.msra.mxu0 0.0
    %7349 = vmatprep.mubr.f32.mxu0 0.0
    %7350 = vmatmul.mubr.f32.gmra.mxu0 %v7261
    %v7351 = vpop.f32.mrf.mxu0
    %v7352 = vadd.f32 %v7283, %v7351
    %v7353 = vpop.f32.mrf.mxu0
    %7354 = vdwg.mxu0
    %v7355 = vmul.f32 %v7352, 0.5
    %v7356 = vtanh.pop %v7355
    %v7357 = vmul.f32 %v7356, 0.5
    %v7358 = vadd.f32 %v7357, 0.5
    %7359 = vst [vmem:[%s12] sm:$0xff] %v7358
    // Predicated region
    $region78: #{lstm_forward.1} parent=1 // pred_check
      _
    $region79: #{lstm_forward.1} parent=1 // pred_check_branch
      %7361 = sbr.rel (0) target = $region81
    $region80: #{lstm_forward.1} parent=1 // pred_region
      _
    $region81: #{lstm_forward.1} parent=1 // pred_fallthru
      _
    // Predicated region
    $region82: #{lstm_forward.1} parent=1 // pred_check
      _
    $region83: #{lstm_forward.1} parent=1 // pred_check_branch
      %7363 = sbr.rel (0) target = $region85
    $region84: #{lstm_forward.1} parent=1 // pred_region
      _
    $region85: #{lstm_forward.1} parent=1 // pred_fallthru
      _
    %7364 = vsyncpa [#allocation6], 1
    %7365 = vsyncpa [#allocation8], 1
    %7366 = vsyncpa [#allocation11], 1
    %7367 = vsyncpa [#allocation14], 1

</llo_original>
